<compile_context>
chip_gen: v7x
topology: tpu7x:2x2x1
jax: 0.10.0
libtpu: 0.0.40
codegen_flags: <defaults>
</compile_context>

<pallas_src>
import jax
import jax.numpy as jnp
from jax import lax
from jax.experimental import pallas as pl
from jax.experimental.pallas import tpu as pltpu

EPS = 1e-6
# 48 MiB scoped-VMEM budget: headroom on v7x (64 MiB physical), a comfortable
# raise over the 16/32 MiB defaults on v5e/v6e.
VMEM_LIMIT = 48 * 1024 * 1024


# --------------------------------------------------------------------------
# helpers
# --------------------------------------------------------------------------
def _cparams(semantics):
    return pltpu.CompilerParams(dimension_semantics=semantics,
                                vmem_limit_bytes=VMEM_LIMIT)


def _full_spec(shape):
    nd = len(shape)
    return pl.BlockSpec(tuple(shape), lambda *_, nd=nd: (0,) * nd)


def _batch_tile(n, cap=128):
    """Largest multiple-of-8 divisor of n that is <= cap and gives >=2 tiles."""
    best = None
    for t in range(8, min(cap, n // 2) + 1, 8):
        if n % t == 0:
            best = t
    return best if best is not None else n


def _s1_tile(s, cap=64):
    """Largest multiple-of-8 divisor of s (<= cap); else the full length."""
    best = None
    for t in range(8, min(cap, s) + 1, 8):
        if s % t == 0:
            best = t
    return best if best is not None else s


def _unroll(n):
    # full unroll for short recurrences, partial unroll for long ones
    # (keeps LLO visibility without blowing the 64-vreg file).
    return True if n <= 16 else 4


def _lstm_cell(gates, c, H):
    i = jax.nn.sigmoid(gates[:, 0:H])
    f = jax.nn.sigmoid(gates[:, H:2 * H])
    g = jnp.tanh(gates[:, 2 * H:3 * H])
    o = jax.nn.sigmoid(gates[:, 3 * H:4 * H])
    c_new = f * c + i * g
    return o * jnp.tanh(c_new), c_new


# --------------------------------------------------------------------------
# Kernels
# --------------------------------------------------------------------------
def char_lstm_kernel(x_ref, wih_ref, whh_ref, o_ref, xp_ref):
    # x: (T, tN, Ce) f32   wih: (Ce, 4H) bf16   whh: (H, 4H) f32   o: (tN, H)
    T, N, Din = x_ref.shape
    H = whh_ref.shape[0]
    # fused input projection: one big MXU matmul (bf16 operands, f32 accum)
    xp_ref[...] = jnp.dot(
        x_ref[...].reshape(T * N, Din).astype(jnp.bfloat16), wih_ref[...],
        preferred_element_type=jnp.float32).reshape(T, N, 4 * H)
    whh = whh_ref[...]

    def step(t, carry):
        h, c = carry
        gates = xp_ref[t] + jnp.dot(h, whh, preferred_element_type=jnp.float32)
        return _lstm_cell(gates, c, H)

    z = jnp.zeros((N, H), jnp.float32)
    h, _ = lax.fori_loop(0, T, step, (z, z), unroll=_unroll(T))
    o_ref[...] = h


def bilstm_ctx_kernel(x_ref, wih_ref, whh_ref, of_ref, ob_ref, xp_ref):
    # Context BiLSTM (bias=False), full-sequence outputs.
    # x: (S, tN, Din)   wih: (Din, 8H) bf16 [fwd|bwd]   whh: (2H, 8H) block-diag
    # of/ob: (S, tN, H)   xp scratch: (S, tN, 8H)
    S, N, Din = x_ref.shape
    H = of_ref.shape[2]
    G = 4 * H
    # ONE fused input projection for both directions.
    xp_ref[...] = jnp.dot(
        x_ref[...].reshape(S * N, Din).astype(jnp.bfloat16), wih_ref[...],
        preferred_element_type=jnp.float32).reshape(S, N, 2 * G)
    whh = whh_ref[...]

    def step(t, carry):
        hf, cf, hb, cb = carry
        # ONE block-diagonal recurrence matmul for [hf | hb]
        g = jnp.dot(jnp.concatenate([hf, hb], axis=-1), whh,
                    preferred_element_type=jnp.float32)          # (N, 8H)
        gf = xp_ref[t][:, 0:G] + g[:, 0:G]
        gb = xp_ref[S - 1 - t][:, G:2 * G] + g[:, G:2 * G]
        hf, cf = _lstm_cell(gf, cf, H)
        hb, cb = _lstm_cell(gb, cb, H)
        of_ref[t] = hf
        ob_ref[S - 1 - t] = hb
        return hf, cf, hb, cb

    z = jnp.zeros((N, H), jnp.float32)
    lax.fori_loop(0, S, step, (z, z, z, z), unroll=_unroll(S))


def agg_pred_kernel(m_ref, wih_ref, whh_ref, b_ref,
                    w1t_ref, b1_ref, w2t_ref, b2_ref, o_ref, xp_ref):
    # Final-hidden-only aggregation BiLSTM fused with the prediction MLP.
    # m: (S, 2B, F) lane-dense padded matching features   o: (B, C) logits
    S, N, F = m_ref.shape
    H = whh_ref.shape[0] // 2
    G = 4 * H
    B = o_ref.shape[0]
    xp_ref[...] = (jnp.dot(
        m_ref[...].reshape(S * N, F).astype(jnp.bfloat16), wih_ref[...],
        preferred_element_type=jnp.float32).reshape(S, N, 2 * G) + b_ref[...])
    whh = whh_ref[...]

    def step(t, carry):
        hf, cf, hb, cb = carry
        g = jnp.dot(jnp.concatenate([hf, hb], axis=-1), whh,
                    preferred_element_type=jnp.float32)
        gf = xp_ref[t][:, 0:G] + g[:, 0:G]
        gb = xp_ref[S - 1 - t][:, G:2 * G] + g[:, G:2 * G]
        hf, cf = _lstm_cell(gf, cf, H)
        hb, cb = _lstm_cell(gb, cb, H)
        return hf, cf, hb, cb

    z = jnp.zeros((N, H), jnp.float32)
    hf, _, hb, _ = lax.fori_loop(0, S, step, (z, z, z, z), unroll=_unroll(S))

    # out5[-1,:, :H]=hf[:B], out5[0,:,H:]=hb[:B]; out6 likewise from rows B:
    pre = jnp.concatenate([hf[:B], hb[:B], hf[B:], hb[B:]], axis=-1)   # (B, 4H)
    h1 = jnp.tanh(jnp.dot(pre, w1t_ref[...],
                          preferred_element_type=jnp.float32) + b1_ref[...])
    o_ref[...] = (jnp.dot(h1, w2t_ref[...],
                          preferred_element_type=jnp.float32) + b2_ref[...])


def matching_kernel(pf_ref, pb_ref, qf_ref, qb_ref, w_ref, o_ref):
    # All tensor refs carry a leading size-1 "sentence-half" dim.
    # pf/pb: (1, B, tS1, H)  qf/qb: (1, B, S2, H)  w: (8, P, H)  o: (1, B, tS1, Fpad)
    W = w_ref[...]
    _, Bm, S2, H = qf_ref.shape
    P = W.shape[1]
    Fpad = o_ref.shape[3]

    def proj(v, w2t):
        # perspective-weighted H-contraction on the MXU: (Bm,T,H) @ (H,P)
        Bv, T, Hh = v.shape
        return jnp.dot(v.reshape(Bv * T, Hh).astype(jnp.bfloat16),
                       w2t.astype(jnp.bfloat16),
                       preferred_element_type=jnp.float32).reshape(Bv, T, P)

    def match_one(p, q, anchor, Wf, Wm, Wa, Wma):
        # p: (Bm, T, H)  q: (Bm, S2, H)  anchor: (Bm, H)
        Wf2t = (Wf * Wf).T
        Wm2 = Wm * Wm
        Wa2t = (Wa * Wa).T
        Wma2t = (Wma * Wma).T

        # 1) full matching vs the anchor state (anchor norm projected ONCE).
        m_full = (proj(p * anchor[:, None, :], Wf2t)
                  * lax.rsqrt(proj(p * p, Wf2t) + EPS)
                  * lax.rsqrt(proj((anchor * anchor)[:, None, :], Wf2t) + EPS))

        # 2) maxpool matching: MXU contractions + rsqrt denominators (EUP).
        T = p.shape[1]
        pw = (p[:, :, None, :] * Wm2[None, None, :, :]).reshape(Bm, T * P, H)
        num = jnp.einsum('bxh,bjh->bxj', pw.astype(jnp.bfloat16),
                         q.astype(jnp.bfloat16),
                         preferred_element_type=jnp.float32).reshape(Bm, T, P, S2)
        inv_pn = lax.rsqrt(proj(p * p, Wm2.T) + EPS)                 # (Bm,T,P)
        inv_qn = lax.rsqrt(proj(q * q, Wm2.T) + EPS)                 # (Bm,S2,P)
        m_max = jnp.max(num * inv_pn[:, :, :, None]
                        * jnp.transpose(inv_qn, (0, 2, 1))[:, None, :, :],
                        axis=-1)                                      # (Bm,T,P)

        # 3) attentive matching (cosine attention kept in f32).
        cosnum = jnp.einsum('bth,bjh->btj', p, q,
                            preferred_element_type=jnp.float32)       # (Bm,T,S2)
        cos = (cosnum
               * lax.rsqrt(jnp.sum(p * p, axis=-1) + EPS)[:, :, None]
               * lax.rsqrt(jnp.sum(q * q, axis=-1) + EPS)[:, None, :])
        q_w = jnp.einsum('btj,bjh->bth', cos, q,
                         preferred_element_type=jnp.float32)          # (Bm,T,H)
        q_mean = q_w * pl.reciprocal(
            jnp.sum(cos, axis=-1, keepdims=True) + EPS, approx=True)
        m_att = (proj(p * q_mean, Wa2t)
                 * lax.rsqrt(proj(p * p, Wa2t) + EPS)
                 * lax.rsqrt(proj(q_mean * q_mean, Wa2t) + EPS))

        # 4) max-attentive matching (>=max one-hot, averaged over ties).
        mx = jnp.max(cos, axis=-1, keepdims=True)
        onehot = (cos >= mx).astype(jnp.float32)
        onehot = onehot * pl.reciprocal(
            jnp.sum(onehot, axis=-1, keepdims=True), approx=True)
        q_sel = jnp.einsum('btj,bjh->bth', onehot, q,
                           preferred_element_type=jnp.float32)
        m_maxatt = (proj(p * q_sel, Wma2t)
                    * lax.rsqrt(proj(p * p, Wma2t) + EPS)
                    * lax.rsqrt(proj(q_sel * q_sel, Wma2t) + EPS))

        return [m_full, m_max, m_att, m_maxatt]

    qf = qf_ref[0]
    qb = qb_ref[0]
    feats = (match_one(pf_ref[0], qf, qf[:, S2 - 1, :], W[0], W[1], W[2], W[3])
             + match_one(pb_ref[0], qb, qb[:, 0, :], W[4], W[5], W[6], W[7]))
    pad = Fpad - 8 * P
    if pad > 0:
        feats.append(jnp.zeros(feats[0].shape[:2] + (pad,), jnp.float32))
    # lane-dense (multiple-of-128) store -> unmasked vst
    o_ref[0] = jnp.concatenate(feats, axis=-1)


# --------------------------------------------------------------------------
# Wrappers (glue)
# --------------------------------------------------------------------------
def char_final_hidden(ch, params):
    # ch: (B, Wl, S) int -> final char-LSTM hidden per sentence position (S, B, Cs)
    B, Wl, S = ch.shape
    emb = jnp.take(params['emb_char'], ch, axis=0)               # (B, Wl, S, Ce)
    x = jnp.transpose(emb, (1, 2, 0, 3)).reshape(Wl, S * B, -1)  # time-major
    wih_t = params['w_ih_c'].T.astype(jnp.bfloat16)              # (Ce, 4Cs)
    whh_t = params['w_hh_c'].T                                   # (Cs, 4Cs)
    Cs = whh_t.shape[0]
    N = S * B
    tN = _batch_tile(N)
    h = pl.pallas_call(
        char_lstm_kernel,
        grid=(N // tN,),
        in_specs=[pl.BlockSpec((Wl, tN, x.shape[2]), lambda i: (0, i, 0)),
                  _full_spec(wih_t.shape), _full_spec(whh_t.shape)],
        out_specs=pl.BlockSpec((tN, Cs), lambda i: (i, 0)),
        out_shape=jax.ShapeDtypeStruct((N, Cs), jnp.float32),
        scratch_shapes=[pltpu.VMEM((Wl, tN, 4 * Cs), jnp.float32)],
        compiler_params=_cparams(("parallel",)),
    )(x, wih_t, whh_t)
    return h.reshape(S, B, Cs)


def bilstm_context(x, p):
    # x: (S, N, Din) -> (hs_f, hs_b) each (S, N, H).  bias=False (per reference).
    S, N, Din = x.shape
    H = p['w_hh_f'].shape[1]
    wih = jnp.concatenate([p['w_ih_f'].T, p['w_ih_b'].T],
                          axis=1).astype(jnp.bfloat16)           # (Din, 8H)
    whh = jnp.zeros((2 * H, 8 * H), jnp.float32)                 # block-diagonal
    whh = whh.at[:H, :4 * H].set(p['w_hh_f'].T)
    whh = whh.at[H:, 4 * H:].set(p['w_hh_b'].T)

    tN = _batch_tile(N)
    out_shape = (jax.ShapeDtypeStruct((S, N, H), jnp.float32),
                 jax.ShapeDtypeStruct((S, N, H), jnp.float32))
    return pl.pallas_call(
        bilstm_ctx_kernel,
        grid=(N // tN,),
        in_specs=[pl.BlockSpec((S, tN, Din), lambda i: (0, i, 0)),
                  _full_spec(wih.shape), _full_spec(whh.shape)],
        out_specs=(pl.BlockSpec((S, tN, H), lambda i: (0, i, 0)),
                   pl.BlockSpec((S, tN, H), lambda i: (0, i, 0))),
        out_shape=out_shape,
        scratch_shapes=[pltpu.VMEM((S, tN, 8 * H), jnp.float32)],
        compiler_params=_cparams(("parallel",)),
    )(x, wih, whh)


def matching_both(ctx_f, ctx_b, mw, B):
    # ctx_f/ctx_b: (S, 2B, H) stacked [sentence1; sentence2] along batch.
    # Returns (2, B, S, Fpad) batch-major:
    #   half 0 = matching(out1, out2), half 1 = matching(out2, out1).
    S, _, H = ctx_f.shape
    P = mw['w1'].shape[0]
    Fpad = ((8 * P + 127) // 128) * 128          # lane-dense padded feature dim
    W = jnp.stack([mw['w%d' % (i + 1)] for i in range(8)])       # (8, P, H)

    def half_major(x):                            # one XLA transpose, (2,B,S,H)
        return jnp.transpose(x, (1, 0, 2)).reshape(2, B, S, H)

    cf = half_major(ctx_f)
    cb = half_major(ctx_b)

    tS1 = _s1_tile(S)
    p_spec = pl.BlockSpec((1, B, tS1, H), lambda h, i: (h, 0, i, 0))
    q_spec = pl.BlockSpec((1, B, S, H), lambda h, i: (1 - h, 0, 0, 0))  # swap halves
    return pl.pallas_call(
        matching_kernel,
        grid=(2, S // tS1),
        in_specs=[p_spec, p_spec, q_spec, q_spec, _full_spec(W.shape)],
        out_specs=pl.BlockSpec((1, B, tS1, Fpad), lambda h, i: (h, 0, i, 0)),
        out_shape=jax.ShapeDtypeStruct((2, B, S, Fpad), jnp.float32),
        compiler_params=_cparams(("parallel", "parallel")),
    )(cf, cb, cf, cb, W)


def aggregate_and_predict(m, p_aggr, p_pred, B):
    # m: (S, 2B, F) padded matching output.  Returns (B, C) logits.
    S, N, F = m.shape
    H = p_aggr['w_hh_f'].shape[1]
    P8 = p_aggr['w_ih_f'].shape[1]               # 8 * perspective (unpadded)

    def pad_ih(w):                                # (4H, 8P) -> (F, 4H) zero-padded
        return jnp.zeros((F, 4 * H), jnp.float32).at[:P8].set(w.T)

    wih = jnp.concatenate([pad_ih(p_aggr['w_ih_f']),
                           pad_ih(p_aggr['w_ih_b'])],
                          axis=1).astype(jnp.bfloat16)           # (F, 8H)
    whh = jnp.zeros((2 * H, 8 * H), jnp.float32)
    whh = whh.at[:H, :4 * H].set(p_aggr['w_hh_f'].T)
    whh = whh.at[H:, 4 * H:].set(p_aggr['w_hh_b'].T)
    b = jnp.concatenate([p_aggr['b_f'], p_aggr['b_b']]).reshape(1, 8 * H)

    w1t = p_pred['w1'].T
    b1 = p_pred['b1'].reshape(1, -1)
    w2t = p_pred['w2'].T
    b2 = p_pred['b2'].reshape(1, -1)
    C = p_pred['w2'].shape[0]

    return pl.pallas_call(
        agg_pred_kernel,
        grid=(1,),
        in_specs=[_full_spec(m.shape), _full_spec(wih.shape),
                  _full_spec(whh.shape), _full_spec(b.shape),
                  _full_spec(w1t.shape), _full_spec(b1.shape),
                  _full_spec(w2t.shape), _full_spec(b2.shape)],
        out_specs=_full_spec((B, C)),
        out_shape=jax.ShapeDtypeStruct((B, C), jnp.float32),
        scratch_shapes=[pltpu.VMEM((S, N, 8 * H), jnp.float32)],
        compiler_params=_cparams(("arbitrary",)),
    )(m, wih, whh, b, w1t, b1, w2t, b2)


def bimpm_forward(params, labels, s1, s2, ch1, ch2):
    del labels  # labels are unused by the forward pass
    B = s1.shape[1]
    # word embeddings (gather is glue)
    s1_emb = jnp.take(params['emb'], s1, axis=0)                 # (S, B, E)
    s2_emb = jnp.take(params['emb'], s2, axis=0)

    all_char1 = char_final_hidden(ch1, params)                   # (S, B, Cs)
    # Faithful to the reference bug: all_char2 = S copies of LAST s1 char hidden.
    S2 = ch2.shape[2]
    all_char2 = jnp.broadcast_to(all_char1[-1][None],
                                 (S2,) + all_char1.shape[1:])

    # dropout_layer treated as identity (eval mode / p = 0)
    s1_in = jnp.concatenate([s1_emb, all_char1], axis=2)
    s2_in = jnp.concatenate([s2_emb, all_char2], axis=2)

    # both sentences through ONE fused context BiLSTM call (stacked on batch)
    x = jnp.concatenate([s1_in, s2_in], axis=1)                  # (S, 2B, E+Cs)
    ctx_f, ctx_b = bilstm_context(x, params['ctx'])              # each (S, 2B, H)

    # both matching orderings in ONE kernel; lane-dense, batch-major output
    m4 = matching_both(ctx_f, ctx_b, params['match'], B)         # (2, B, S, Fpad)
    Fpad = m4.shape[-1]
    m = jnp.transpose(m4.reshape(2 * B, m4.shape[2], Fpad), (1, 0, 2))  # (S,2B,Fpad)

    # final-hidden-only aggregation BiLSTM fused with the prediction MLP
    pred = {'w1': params['pred_w1'], 'b1': params['pred_b1'],
            'w2': params['pred_w2'], 'b2': params['pred_b2']}
    return aggregate_and_predict(m, params['aggr'], pred, B)


# --------------------------------------------------------------------------
# Main
# --------------------------------------------------------------------------
if __name__ == "__main__":
    key = jax.random.PRNGKey(0)
    V, Vc = 20, 15            # word / char vocab sizes
    E, Ce, Cs = 16, 8, 8      # word emb, char emb, char LSTM size
    H, B, C, P = 16, 2, 3, 4  # hidden, batch, classes, perspectives
    S, Wl = 6, 5              # sentence length, word length

    ks = jax.random.split(key, 32)

    def u(k, shape, lo=-0.1, hi=0.1):
        return jax.random.uniform(k, shape, jnp.float32, lo, hi)

    params = {
        'emb': u(ks[0], (V + 1, E)),
        'emb_char': u(ks[1], (Vc + 1, Ce), -1.0, 1.0),
        'w_ih_c': u(ks[2], (4 * Cs, Ce)),
        'w_hh_c': u(ks[3], (4 * Cs, Cs)),
        'ctx': {
            'w_ih_f': u(ks[4], (4 * H, E + Cs)),
            'w_hh_f': u(ks[5], (4 * H, H)),
            'w_ih_b': u(ks[6], (4 * H, E + Cs)),
            'w_hh_b': u(ks[7], (4 * H, H)),
        },
        'match': {'w%d' % (i + 1): u(ks[8 + i], (P, H)) for i in range(8)},
        'aggr': {
            'w_ih_f': u(ks[16], (4 * H, 8 * P)),
            'w_hh_f': u(ks[17], (4 * H, H)),
            'b_f': u(ks[18], (4 * H,)) + u(ks[19], (4 * H,)),   # b_ih + b_hh folded
            'w_ih_b': u(ks[20], (4 * H, 8 * P)),
            'w_hh_b': u(ks[21], (4 * H, H)),
            'b_b': u(ks[22], (4 * H,)) + u(ks[23], (4 * H,)),
        },
        'pred_w1': u(ks[24], (H, 4 * H)),
        'pred_b1': u(ks[25], (H,)),
        'pred_w2': u(ks[26], (C, H)),
        'pred_b2': u(ks[27], (C,)),
    }

    labels = jax.random.randint(ks[28], (B,), 0, C)
    s1 = jax.random.randint(ks[29], (S, B), 0, V + 1)
    s2 = jax.random.randint(ks[30], (S, B), 0, V + 1)
    kc = jax.random.split(ks[31], 2)
    ch1 = jax.random.randint(kc[0], (B, Wl, S), 0, Vc + 1)
    ch2 = jax.random.randint(kc[1], (B, Wl, S), 0, Vc + 1)

    fwd = jax.jit(bimpm_forward)
    out = fwd(params, labels, s1, s2, ch1, ch2)
    jax.block_until_ready(out)
    assert out.shape == (B, C) and out.dtype == jnp.float32
    print("KERNEL_OK")
</pallas_src>

<mosaic_0001>
module attributes {stable_mosaic.version = 11 : i64} {
  func.func @char_lstm_kernel(%arg0: i32, %arg1: memref<5x12x8xf32, #tpu.memory_space<vmem>>, %arg2: memref<8x32xbf16, #tpu.memory_space<vmem>>, %arg3: memref<8x32xf32, #tpu.memory_space<vmem>>, %arg4: memref<12x8xf32, #tpu.memory_space<vmem>>, %arg5: memref<5x12x32xf32, #tpu.memory_space<vmem>>) attributes {dimension_semantics = [#tpu.dimension_semantics<parallel>], iteration_bounds = array<i64: 1>, scalar_prefetch = 0 : i64, scratch_operands = 1 : i64, tpu.core_type = #tpu.core_type<tc>, window_params = [{transform_indices = @transform_0, window_bounds = array<i64: 5, 12, 8>}, {pipeline_mode = #tpu.pipeline_mode<synchronous>, transform_indices = @transform_1, window_bounds = array<i64: 8, 32>}, {pipeline_mode = #tpu.pipeline_mode<synchronous>, transform_indices = @transform_2, window_bounds = array<i64: 8, 32>}, {transform_indices = @transform_3, window_bounds = array<i64: 12, 8>}]} {
    %c0 = arith.constant 0 : index
    %c0_0 = arith.constant 0 : index
    %c0_1 = arith.constant 0 : index
    %0 = vector.load %arg1[%c0, %c0_0, %c0_1] : memref<5x12x8xf32, #tpu.memory_space<vmem>>, vector<5x12x8xf32>
    %1 = vector.shape_cast %0 : vector<5x12x8xf32> to vector<60x8xf32>
    %2 = arith.truncf %1 : vector<60x8xf32> to vector<60x8xbf16>
    %c0_2 = arith.constant 0 : index
    %c0_3 = arith.constant 0 : index
    %3 = vector.load %arg2[%c0_2, %c0_3] : memref<8x32xbf16, #tpu.memory_space<vmem>>, vector<8x32xbf16>
    %cst = arith.constant dense<0.000000e+00> : vector<60x32xf32>
    %4 = tpu.matmul %2, %3, %cst {dimension_numbers = #tpu.dot_dimension_numbers<[1], [0], [0], [1], [0, 0, 1, 1], [], []>} : vector<60x8xbf16>, vector<8x32xbf16>, vector<60x32xf32> -> vector<60x32xf32>
    %5 = vector.shape_cast %4 : vector<60x32xf32> to vector<5x12x32xf32>
    %c0_4 = arith.constant 0 : index
    %c0_5 = arith.constant 0 : index
    %c0_6 = arith.constant 0 : index
    %6 = vector.load %arg5[%c0_4, %c0_5, %c0_6] : memref<5x12x32xf32, #tpu.memory_space<vmem>>, vector<5x12x32xf32>
    tpu.vector_store %arg5[%c0_4, %c0_5, %c0_6], %5 {strides = array<i32>} : memref<5x12x32xf32, #tpu.memory_space<vmem>>, vector<5x12x32xf32>,
    %c0_7 = arith.constant 0 : index
    %c0_8 = arith.constant 0 : index
    %7 = vector.load %arg3[%c0_7, %c0_8] : memref<8x32xf32, #tpu.memory_space<vmem>>, vector<8x32xf32>
    %cst_9 = arith.constant 0.000000e+00 : f32
    %8 = vector.broadcast %cst_9 : f32 to vector<12x8xf32>
    %c0_i32 = arith.constant 0 : i32
    %9 = arith.index_cast %c0_i32 : i32 to index
    %c0_10 = arith.constant 0 : index
    %c0_11 = arith.constant 0 : index
    %10 = vector.load %arg5[%9, %c0_10, %c0_11] : memref<5x12x32xf32, #tpu.memory_space<vmem>>, vector<1x12x32xf32>
    %11 = vector.shape_cast %10 : vector<1x12x32xf32> to vector<12x32xf32>
    %cst_12 = arith.constant dense<0.000000e+00> : vector<12x32xf32>
    %12 = tpu.matmul %8, %7, %cst_12 {dimension_numbers = #tpu.dot_dimension_numbers<[1], [0], [0], [1], [0, 0, 1, 1], [], []>} : vector<12x8xf32>, vector<8x32xf32>, vector<12x32xf32> -> vector<12x32xf32>
    %13 = arith.addf %11, %12 : vector<12x32xf32>
    %14 = vector.extract_strided_slice %13 {offsets = [0, 0], sizes = [12, 8], strides = [1, 1]} : vector<12x32xf32> to vector<12x8xf32>
    %15 = arith.negf %14 : vector<12x8xf32>
    %16 = math.exp %15 : vector<12x8xf32>
    %cst_13 = arith.constant 1.000000e+00 : f32
    %17 = vector.broadcast %cst_13 : f32 to vector<12x8xf32>
    %18 = arith.addf %17, %16 : vector<12x8xf32>
    %19 = arith.divf %17, %18 : vector<12x8xf32>
    %20 = vector.extract_strided_slice %13 {offsets = [0, 8], sizes = [12, 8], strides = [1, 1]} : vector<12x32xf32> to vector<12x8xf32>
    %21 = arith.negf %20 : vector<12x8xf32>
    %22 = math.exp %21 : vector<12x8xf32>
    %cst_14 = arith.constant 1.000000e+00 : f32
    %23 = vector.broadcast %cst_14 : f32 to vector<12x8xf32>
    %24 = arith.addf %23, %22 : vector<12x8xf32>
    %25 = arith.divf %23, %24 : vector<12x8xf32>
    %26 = vector.extract_strided_slice %13 {offsets = [0, 16], sizes = [12, 8], strides = [1, 1]} : vector<12x32xf32> to vector<12x8xf32>
    %27 = math.tanh %26 : vector<12x8xf32>
    %28 = vector.extract_strided_slice %13 {offsets = [0, 24], sizes = [12, 8], strides = [1, 1]} : vector<12x32xf32> to vector<12x8xf32>
    %29 = arith.negf %28 : vector<12x8xf32>
    %30 = math.exp %29 : vector<12x8xf32>
    %cst_15 = arith.constant 1.000000e+00 : f32
    %31 = vector.broadcast %cst_15 : f32 to vector<12x8xf32>
    %32 = arith.addf %31, %30 : vector<12x8xf32>
    %33 = arith.divf %31, %32 : vector<12x8xf32>
    %34 = arith.mulf %25, %8 : vector<12x8xf32>
    %35 = arith.mulf %19, %27 : vector<12x8xf32>
    %36 = arith.addf %34, %35 : vector<12x8xf32>
    %37 = math.tanh %36 : vector<12x8xf32>
    %38 = arith.mulf %33, %37 : vector<12x8xf32>
    %c1_i32 = arith.constant 1 : i32
    %39 = arith.index_cast %c1_i32 : i32 to index
    %c0_16 = arith.constant 0 : index
    %c0_17 = arith.constant 0 : index
    %40 = vector.load %arg5[%39, %c0_16, %c0_17] : memref<5x12x32xf32, #tpu.memory_space<vmem>>, vector<1x12x32xf32>
    %41 = vector.shape_cast %40 : vector<1x12x32xf32> to vector<12x32xf32>
    %cst_18 = arith.constant dense<0.000000e+00> : vector<12x32xf32>
    %42 = tpu.matmul %38, %7, %cst_18 {dimension_numbers = #tpu.dot_dimension_numbers<[1], [0], [0], [1], [0, 0, 1, 1], [], []>} : vector<12x8xf32>, vector<8x32xf32>, vector<12x32xf32> -> vector<12x32xf32>
    %43 = arith.addf %41, %42 : vector<12x32xf32>
    %44 = vector.extract_strided_slice %43 {offsets = [0, 0], sizes = [12, 8], strides = [1, 1]} : vector<12x32xf32> to vector<12x8xf32>
    %45 = arith.negf %44 : vector<12x8xf32>
    %46 = math.exp %45 : vector<12x8xf32>
    %cst_19 = arith.constant 1.000000e+00 : f32
    %47 = vector.broadcast %cst_19 : f32 to vector<12x8xf32>
    %48 = arith.addf %47, %46 : vector<12x8xf32>
    %49 = arith.divf %47, %48 : vector<12x8xf32>
    %50 = vector.extract_strided_slice %43 {offsets = [0, 8], sizes = [12, 8], strides = [1, 1]} : vector<12x32xf32> to vector<12x8xf32>
    %51 = arith.negf %50 : vector<12x8xf32>
    %52 = math.exp %51 : vector<12x8xf32>
    %cst_20 = arith.constant 1.000000e+00 : f32
    %53 = vector.broadcast %cst_20 : f32 to vector<12x8xf32>
    %54 = arith.addf %53, %52 : vector<12x8xf32>
    %55 = arith.divf %53, %54 : vector<12x8xf32>
    %56 = vector.extract_strided_slice %43 {offsets = [0, 16], sizes = [12, 8], strides = [1, 1]} : vector<12x32xf32> to vector<12x8xf32>
    %57 = math.tanh %56 : vector<12x8xf32>
    %58 = vector.extract_strided_slice %43 {offsets = [0, 24], sizes = [12, 8], strides = [1, 1]} : vector<12x32xf32> to vector<12x8xf32>
    %59 = arith.negf %58 : vector<12x8xf32>
    %60 = math.exp %59 : vector<12x8xf32>
    %cst_21 = arith.constant 1.000000e+00 : f32
    %61 = vector.broadcast %cst_21 : f32 to vector<12x8xf32>
    %62 = arith.addf %61, %60 : vector<12x8xf32>
    %63 = arith.divf %61, %62 : vector<12x8xf32>
    %64 = arith.mulf %55, %36 : vector<12x8xf32>
    %65 = arith.mulf %49, %57 : vector<12x8xf32>
    %66 = arith.addf %64, %65 : vector<12x8xf32>
    %67 = math.tanh %66 : vector<12x8xf32>
    %68 = arith.mulf %63, %67 : vector<12x8xf32>
    %c2_i32 = arith.constant 2 : i32
    %69 = arith.index_cast %c2_i32 : i32 to index
    %c0_22 = arith.constant 0 : index
    %c0_23 = arith.constant 0 : index
    %70 = vector.load %arg5[%69, %c0_22, %c0_23] : memref<5x12x32xf32, #tpu.memory_space<vmem>>, vector<1x12x32xf32>
    %71 = vector.shape_cast %70 : vector<1x12x32xf32> to vector<12x32xf32>
    %cst_24 = arith.constant dense<0.000000e+00> : vector<12x32xf32>
    %72 = tpu.matmul %68, %7, %cst_24 {dimension_numbers = #tpu.dot_dimension_numbers<[1], [0], [0], [1], [0, 0, 1, 1], [], []>} : vector<12x8xf32>, vector<8x32xf32>, vector<12x32xf32> -> vector<12x32xf32>
    %73 = arith.addf %71, %72 : vector<12x32xf32>
    %74 = vector.extract_strided_slice %73 {offsets = [0, 0], sizes = [12, 8], strides = [1, 1]} : vector<12x32xf32> to vector<12x8xf32>
    %75 = arith.negf %74 : vector<12x8xf32>
    %76 = math.exp %75 : vector<12x8xf32>
    %cst_25 = arith.constant 1.000000e+00 : f32
    %77 = vector.broadcast %cst_25 : f32 to vector<12x8xf32>
    %78 = arith.addf %77, %76 : vector<12x8xf32>
    %79 = arith.divf %77, %78 : vector<12x8xf32>
    %80 = vector.extract_strided_slice %73 {offsets = [0, 8], sizes = [12, 8], strides = [1, 1]} : vector<12x32xf32> to vector<12x8xf32>
    %81 = arith.negf %80 : vector<12x8xf32>
    %82 = math.exp %81 : vector<12x8xf32>
    %cst_26 = arith.constant 1.000000e+00 : f32
    %83 = vector.broadcast %cst_26 : f32 to vector<12x8xf32>
    %84 = arith.addf %83, %82 : vector<12x8xf32>
    %85 = arith.divf %83, %84 : vector<12x8xf32>
    %86 = vector.extract_strided_slice %73 {offsets = [0, 16], sizes = [12, 8], strides = [1, 1]} : vector<12x32xf32> to vector<12x8xf32>
    %87 = math.tanh %86 : vector<12x8xf32>
    %88 = vector.extract_strided_slice %73 {offsets = [0, 24], sizes = [12, 8], strides = [1, 1]} : vector<12x32xf32> to vector<12x8xf32>
    %89 = arith.negf %88 : vector<12x8xf32>
    %90 = math.exp %89 : vector<12x8xf32>
    %cst_27 = arith.constant 1.000000e+00 : f32
    %91 = vector.broadcast %cst_27 : f32 to vector<12x8xf32>
    %92 = arith.addf %91, %90 : vector<12x8xf32>
    %93 = arith.divf %91, %92 : vector<12x8xf32>
    %94 = arith.mulf %85, %66 : vector<12x8xf32>
    %95 = arith.mulf %79, %87 : vector<12x8xf32>
    %96 = arith.addf %94, %95 : vector<12x8xf32>
    %97 = math.tanh %96 : vector<12x8xf32>
    %98 = arith.mulf %93, %97 : vector<12x8xf32>
    %c3_i32 = arith.constant 3 : i32
    %99 = arith.index_cast %c3_i32 : i32 to index
    %c0_28 = arith.constant 0 : index
    %c0_29 = arith.constant 0 : index
    %100 = vector.load %arg5[%99, %c0_28, %c0_29] : memref<5x12x32xf32, #tpu.memory_space<vmem>>, vector<1x12x32xf32>
    %101 = vector.shape_cast %100 : vector<1x12x32xf32> to vector<12x32xf32>
    %cst_30 = arith.constant dense<0.000000e+00> : vector<12x32xf32>
    %102 = tpu.matmul %98, %7, %cst_30 {dimension_numbers = #tpu.dot_dimension_numbers<[1], [0], [0], [1], [0, 0, 1, 1], [], []>} : vector<12x8xf32>, vector<8x32xf32>, vector<12x32xf32> -> vector<12x32xf32>
    %103 = arith.addf %101, %102 : vector<12x32xf32>
    %104 = vector.extract_strided_slice %103 {offsets = [0, 0], sizes = [12, 8], strides = [1, 1]} : vector<12x32xf32> to vector<12x8xf32>
    %105 = arith.negf %104 : vector<12x8xf32>
    %106 = math.exp %105 : vector<12x8xf32>
    %cst_31 = arith.constant 1.000000e+00 : f32
    %107 = vector.broadcast %cst_31 : f32 to vector<12x8xf32>
    %108 = arith.addf %107, %106 : vector<12x8xf32>
    %109 = arith.divf %107, %108 : vector<12x8xf32>
    %110 = vector.extract_strided_slice %103 {offsets = [0, 8], sizes = [12, 8], strides = [1, 1]} : vector<12x32xf32> to vector<12x8xf32>
    %111 = arith.negf %110 : vector<12x8xf32>
    %112 = math.exp %111 : vector<12x8xf32>
    %cst_32 = arith.constant 1.000000e+00 : f32
    %113 = vector.broadcast %cst_32 : f32 to vector<12x8xf32>
    %114 = arith.addf %113, %112 : vector<12x8xf32>
    %115 = arith.divf %113, %114 : vector<12x8xf32>
    %116 = vector.extract_strided_slice %103 {offsets = [0, 16], sizes = [12, 8], strides = [1, 1]} : vector<12x32xf32> to vector<12x8xf32>
    %117 = math.tanh %116 : vector<12x8xf32>
    %118 = vector.extract_strided_slice %103 {offsets = [0, 24], sizes = [12, 8], strides = [1, 1]} : vector<12x32xf32> to vector<12x8xf32>
    %119 = arith.negf %118 : vector<12x8xf32>
    %120 = math.exp %119 : vector<12x8xf32>
    %cst_33 = arith.constant 1.000000e+00 : f32
    %121 = vector.broadcast %cst_33 : f32 to vector<12x8xf32>
    %122 = arith.addf %121, %120 : vector<12x8xf32>
    %123 = arith.divf %121, %122 : vector<12x8xf32>
    %124 = arith.mulf %115, %96 : vector<12x8xf32>
    %125 = arith.mulf %109, %117 : vector<12x8xf32>
    %126 = arith.addf %124, %125 : vector<12x8xf32>
    %127 = math.tanh %126 : vector<12x8xf32>
    %128 = arith.mulf %123, %127 : vector<12x8xf32>
    %c4_i32 = arith.constant 4 : i32
    %129 = arith.index_cast %c4_i32 : i32 to index
    %c0_34 = arith.constant 0 : index
    %c0_35 = arith.constant 0 : index
    %130 = vector.load %arg5[%129, %c0_34, %c0_35] : memref<5x12x32xf32, #tpu.memory_space<vmem>>, vector<1x12x32xf32>
    %131 = vector.shape_cast %130 : vector<1x12x32xf32> to vector<12x32xf32>
    %cst_36 = arith.constant dense<0.000000e+00> : vector<12x32xf32>
    %132 = tpu.matmul %128, %7, %cst_36 {dimension_numbers = #tpu.dot_dimension_numbers<[1], [0], [0], [1], [0, 0, 1, 1], [], []>} : vector<12x8xf32>, vector<8x32xf32>, vector<12x32xf32> -> vector<12x32xf32>
    %133 = arith.addf %131, %132 : vector<12x32xf32>
    %134 = vector.extract_strided_slice %133 {offsets = [0, 0], sizes = [12, 8], strides = [1, 1]} : vector<12x32xf32> to vector<12x8xf32>
    %135 = arith.negf %134 : vector<12x8xf32>
    %136 = math.exp %135 : vector<12x8xf32>
    %cst_37 = arith.constant 1.000000e+00 : f32
    %137 = vector.broadcast %cst_37 : f32 to vector<12x8xf32>
    %138 = arith.addf %137, %136 : vector<12x8xf32>
    %139 = arith.divf %137, %138 : vector<12x8xf32>
    %140 = vector.extract_strided_slice %133 {offsets = [0, 8], sizes = [12, 8], strides = [1, 1]} : vector<12x32xf32> to vector<12x8xf32>
    %141 = arith.negf %140 : vector<12x8xf32>
    %142 = math.exp %141 : vector<12x8xf32>
    %cst_38 = arith.constant 1.000000e+00 : f32
    %143 = vector.broadcast %cst_38 : f32 to vector<12x8xf32>
    %144 = arith.addf %143, %142 : vector<12x8xf32>
    %145 = arith.divf %143, %144 : vector<12x8xf32>
    %146 = vector.extract_strided_slice %133 {offsets = [0, 16], sizes = [12, 8], strides = [1, 1]} : vector<12x32xf32> to vector<12x8xf32>
    %147 = math.tanh %146 : vector<12x8xf32>
    %148 = vector.extract_strided_slice %133 {offsets = [0, 24], sizes = [12, 8], strides = [1, 1]} : vector<12x32xf32> to vector<12x8xf32>
    %149 = arith.negf %148 : vector<12x8xf32>
    %150 = math.exp %149 : vector<12x8xf32>
    %cst_39 = arith.constant 1.000000e+00 : f32
    %151 = vector.broadcast %cst_39 : f32 to vector<12x8xf32>
    %152 = arith.addf %151, %150 : vector<12x8xf32>
    %153 = arith.divf %151, %152 : vector<12x8xf32>
    %154 = arith.mulf %145, %126 : vector<12x8xf32>
    %155 = arith.mulf %139, %147 : vector<12x8xf32>
    %156 = arith.addf %154, %155 : vector<12x8xf32>
    %157 = math.tanh %156 : vector<12x8xf32>
    %158 = arith.mulf %153, %157 : vector<12x8xf32>
    %c5_i32 = arith.constant 5 : i32
    %c0_40 = arith.constant 0 : index
    %c0_41 = arith.constant 0 : index
    %159 = vector.load %arg4[%c0_40, %c0_41] : memref<12x8xf32, #tpu.memory_space<vmem>>, vector<12x8xf32>
    tpu.vector_store %arg4[%c0_40, %c0_41], %158 {strides = array<i32>} : memref<12x8xf32, #tpu.memory_space<vmem>>, vector<12x8xf32>,
    return
  }
  func.func @transform_0(%arg0: i32) -> (i32, i32, i32) {
    %c0_i32 = arith.constant 0 : i32
    %c0_i32_0 = arith.constant 0 : i32
    %c0_i32_1 = arith.constant 0 : i32
    return %c0_i32, %arg0, %c0_i32_0 : i32, i32, i32
  }
  func.func @transform_1(%arg0: i32) -> (i32, i32) {
    %c0_i32 = arith.constant 0 : i32
    %c0_i32_0 = arith.constant 0 : i32
    %c0_i32_1 = arith.constant 0 : i32
    return %c0_i32, %c0_i32_0 : i32, i32
  }
  func.func @transform_2(%arg0: i32) -> (i32, i32) {
    %c0_i32 = arith.constant 0 : i32
    %c0_i32_0 = arith.constant 0 : i32
    %c0_i32_1 = arith.constant 0 : i32
    return %c0_i32, %c0_i32_0 : i32, i32
  }
  func.func @transform_3(%arg0: i32) -> (i32, i32) {
    %c0_i32 = arith.constant 0 : i32
    %c0_i32_0 = arith.constant 0 : i32
    return %arg0, %c0_i32 : i32, i32
  }
}

module attributes {stable_mosaic.version = 11 : i64} {
  func.func @bilstm_ctx_kernel(%arg0: i32, %arg1: memref<6x4x24xf32, #tpu.memory_space<vmem>>, %arg2: memref<24x128xbf16, #tpu.memory_space<vmem>>, %arg3: memref<32x128xf32, #tpu.memory_space<vmem>>, %arg4: memref<6x4x16xf32, #tpu.memory_space<vmem>>, %arg5: memref<6x4x16xf32, #tpu.memory_space<vmem>>, %arg6: memref<6x4x128xf32, #tpu.memory_space<vmem>>) attributes {dimension_semantics = [#tpu.dimension_semantics<parallel>], iteration_bounds = array<i64: 1>, scalar_prefetch = 0 : i64, scratch_operands = 1 : i64, tpu.core_type = #tpu.core_type<tc>, window_params = [{transform_indices = @transform_0, window_bounds = array<i64: 6, 4, 24>}, {pipeline_mode = #tpu.pipeline_mode<synchronous>, transform_indices = @transform_1, window_bounds = array<i64: 24, 128>}, {pipeline_mode = #tpu.pipeline_mode<synchronous>, transform_indices = @transform_2, window_bounds = array<i64: 32, 128>}, {transform_indices = @transform_3, window_bounds = array<i64: 6, 4, 16>}, {transform_indices = @transform_4, window_bounds = array<i64: 6, 4, 16>}]} {
    %c0 = arith.constant 0 : index
    %c0_0 = arith.constant 0 : index
    %c0_1 = arith.constant 0 : index
    %0 = vector.load %arg1[%c0, %c0_0, %c0_1] : memref<6x4x24xf32, #tpu.memory_space<vmem>>, vector<6x4x24xf32>
    %1 = vector.shape_cast %0 : vector<6x4x24xf32> to vector<24x24xf32>
    %2 = arith.truncf %1 : vector<24x24xf32> to vector<24x24xbf16>
    %c0_2 = arith.constant 0 : index
    %c0_3 = arith.constant 0 : index
    %3 = vector.load %arg2[%c0_2, %c0_3] : memref<24x128xbf16, #tpu.memory_space<vmem>>, vector<24x128xbf16>
    %cst = arith.constant dense<0.000000e+00> : vector<24x128xf32>
    %4 = tpu.matmul %2, %3, %cst {dimension_numbers = #tpu.dot_dimension_numbers<[1], [0], [0], [1], [0, 0, 1, 1], [], []>} : vector<24x24xbf16>, vector<24x128xbf16>, vector<24x128xf32> -> vector<24x128xf32>
    %5 = vector.shape_cast %4 : vector<24x128xf32> to vector<6x4x128xf32>
    %c0_4 = arith.constant 0 : index
    %c0_5 = arith.constant 0 : index
    %c0_6 = arith.constant 0 : index
    %6 = vector.load %arg6[%c0_4, %c0_5, %c0_6] : memref<6x4x128xf32, #tpu.memory_space<vmem>>, vector<6x4x128xf32>
    tpu.vector_store %arg6[%c0_4, %c0_5, %c0_6], %5 {strides = array<i32>} : memref<6x4x128xf32, #tpu.memory_space<vmem>>, vector<6x4x128xf32>,
    %c0_7 = arith.constant 0 : index
    %c0_8 = arith.constant 0 : index
    %7 = vector.load %arg3[%c0_7, %c0_8] : memref<32x128xf32, #tpu.memory_space<vmem>>, vector<32x128xf32>
    %cst_9 = arith.constant 0.000000e+00 : f32
    %8 = vector.broadcast %cst_9 : f32 to vector<4x16xf32>
    %c0_i32 = arith.constant 0 : i32
    %9 = tpu.concatenate %8, %8 in 1 : vector<4x16xf32>, vector<4x16xf32> -> vector<4x32xf32>
    %cst_10 = arith.constant dense<0.000000e+00> : vector<4x128xf32>
    %10 = tpu.matmul %9, %7, %cst_10 {dimension_numbers = #tpu.dot_dimension_numbers<[1], [0], [0], [1], [0, 0, 1, 1], [], []>} : vector<4x32xf32>, vector<32x128xf32>, vector<4x128xf32> -> vector<4x128xf32>
    %11 = arith.index_cast %c0_i32 : i32 to index
    %c0_11 = arith.constant 0 : index
    %c0_12 = arith.constant 0 : index
    %12 = vector.load %arg6[%11, %c0_11, %c0_12] : memref<6x4x128xf32, #tpu.memory_space<vmem>>, vector<1x4x128xf32>
    %13 = vector.shape_cast %12 : vector<1x4x128xf32> to vector<4x128xf32>
    %14 = vector.extract_strided_slice %13 {offsets = [0, 0], sizes = [4, 64], strides = [1, 1]} : vector<4x128xf32> to vector<4x64xf32>
    %15 = vector.extract_strided_slice %10 {offsets = [0, 0], sizes = [4, 64], strides = [1, 1]} : vector<4x128xf32> to vector<4x64xf32>
    %16 = arith.addf %14, %15 : vector<4x64xf32>
    %c5_i32 = arith.constant 5 : i32
    %17 = arith.subi %c5_i32, %c0_i32 : i32
    %18 = arith.index_cast %17 : i32 to index
    %c0_13 = arith.constant 0 : index
    %c0_14 = arith.constant 0 : index
    %19 = vector.load %arg6[%18, %c0_13, %c0_14] : memref<6x4x128xf32, #tpu.memory_space<vmem>>, vector<1x4x128xf32>
    %20 = vector.shape_cast %19 : vector<1x4x128xf32> to vector<4x128xf32>
    %21 = vector.extract_strided_slice %20 {offsets = [0, 64], sizes = [4, 64], strides = [1, 1]} : vector<4x128xf32> to vector<4x64xf32>
    %22 = vector.extract_strided_slice %10 {offsets = [0, 64], sizes = [4, 64], strides = [1, 1]} : vector<4x128xf32> to vector<4x64xf32>
    %23 = arith.addf %21, %22 : vector<4x64xf32>
    %24 = vector.extract_strided_slice %16 {offsets = [0, 0], sizes = [4, 16], strides = [1, 1]} : vector<4x64xf32> to vector<4x16xf32>
    %25 = arith.negf %24 : vector<4x16xf32>
    %26 = math.exp %25 : vector<4x16xf32>
    %cst_15 = arith.constant 1.000000e+00 : f32
    %27 = vector.broadcast %cst_15 : f32 to vector<4x16xf32>
    %28 = arith.addf %27, %26 : vector<4x16xf32>
    %29 = arith.divf %27, %28 : vector<4x16xf32>
    %30 = vector.extract_strided_slice %16 {offsets = [0, 16], sizes = [4, 16], strides = [1, 1]} : vector<4x64xf32> to vector<4x16xf32>
    %31 = arith.negf %30 : vector<4x16xf32>
    %32 = math.exp %31 : vector<4x16xf32>
    %cst_16 = arith.constant 1.000000e+00 : f32
    %33 = vector.broadcast %cst_16 : f32 to vector<4x16xf32>
    %34 = arith.addf %33, %32 : vector<4x16xf32>
    %35 = arith.divf %33, %34 : vector<4x16xf32>
    %36 = vector.extract_strided_slice %16 {offsets = [0, 32], sizes = [4, 16], strides = [1, 1]} : vector<4x64xf32> to vector<4x16xf32>
    %37 = math.tanh %36 : vector<4x16xf32>
    %38 = vector.extract_strided_slice %16 {offsets = [0, 48], sizes = [4, 16], strides = [1, 1]} : vector<4x64xf32> to vector<4x16xf32>
    %39 = arith.negf %38 : vector<4x16xf32>
    %40 = math.exp %39 : vector<4x16xf32>
    %cst_17 = arith.constant 1.000000e+00 : f32
    %41 = vector.broadcast %cst_17 : f32 to vector<4x16xf32>
    %42 = arith.addf %41, %40 : vector<4x16xf32>
    %43 = arith.divf %41, %42 : vector<4x16xf32>
    %44 = arith.mulf %35, %8 : vector<4x16xf32>
    %45 = arith.mulf %29, %37 : vector<4x16xf32>
    %46 = arith.addf %44, %45 : vector<4x16xf32>
    %47 = math.tanh %46 : vector<4x16xf32>
    %48 = arith.mulf %43, %47 : vector<4x16xf32>
    %49 = vector.extract_strided_slice %23 {offsets = [0, 0], sizes = [4, 16], strides = [1, 1]} : vector<4x64xf32> to vector<4x16xf32>
    %50 = arith.negf %49 : vector<4x16xf32>
    %51 = math.exp %50 : vector<4x16xf32>
    %cst_18 = arith.constant 1.000000e+00 : f32
    %52 = vector.broadcast %cst_18 : f32 to vector<4x16xf32>
    %53 = arith.addf %52, %51 : vector<4x16xf32>
    %54 = arith.divf %52, %53 : vector<4x16xf32>
    %55 = vector.extract_strided_slice %23 {offsets = [0, 16], sizes = [4, 16], strides = [1, 1]} : vector<4x64xf32> to vector<4x16xf32>
    %56 = arith.negf %55 : vector<4x16xf32>
    %57 = math.exp %56 : vector<4x16xf32>
    %cst_19 = arith.constant 1.000000e+00 : f32
    %58 = vector.broadcast %cst_19 : f32 to vector<4x16xf32>
    %59 = arith.addf %58, %57 : vector<4x16xf32>
    %60 = arith.divf %58, %59 : vector<4x16xf32>
    %61 = vector.extract_strided_slice %23 {offsets = [0, 32], sizes = [4, 16], strides = [1, 1]} : vector<4x64xf32> to vector<4x16xf32>
    %62 = math.tanh %61 : vector<4x16xf32>
    %63 = vector.extract_strided_slice %23 {offsets = [0, 48], sizes = [4, 16], strides = [1, 1]} : vector<4x64xf32> to vector<4x16xf32>
    %64 = arith.negf %63 : vector<4x16xf32>
    %65 = math.exp %64 : vector<4x16xf32>
    %cst_20 = arith.constant 1.000000e+00 : f32
    %66 = vector.broadcast %cst_20 : f32 to vector<4x16xf32>
    %67 = arith.addf %66, %65 : vector<4x16xf32>
    %68 = arith.divf %66, %67 : vector<4x16xf32>
    %69 = arith.mulf %60, %8 : vector<4x16xf32>
    %70 = arith.mulf %54, %62 : vector<4x16xf32>
    %71 = arith.addf %69, %70 : vector<4x16xf32>
    %72 = math.tanh %71 : vector<4x16xf32>
    %73 = arith.mulf %68, %72 : vector<4x16xf32>
    %74 = arith.index_cast %c0_i32 : i32 to index
    %c0_21 = arith.constant 0 : index
    %c0_22 = arith.constant 0 : index
    %75 = vector.load %arg4[%74, %c0_21, %c0_22] : memref<6x4x16xf32, #tpu.memory_space<vmem>>, vector<1x4x16xf32>
    %76 = vector.shape_cast %75 : vector<1x4x16xf32> to vector<4x16xf32>
    %77 = vector.shape_cast %48 : vector<4x16xf32> to vector<1x4x16xf32>
    tpu.vector_store %arg4[%74, %c0_21, %c0_22], %77 {strides = array<i32>} : memref<6x4x16xf32, #tpu.memory_space<vmem>>, vector<1x4x16xf32>,
    %c5_i32_23 = arith.constant 5 : i32
    %78 = arith.subi %c5_i32_23, %c0_i32 : i32
    %79 = arith.index_cast %78 : i32 to index
    %c0_24 = arith.constant 0 : index
    %c0_25 = arith.constant 0 : index
    %80 = vector.load %arg5[%79, %c0_24, %c0_25] : memref<6x4x16xf32, #tpu.memory_space<vmem>>, vector<1x4x16xf32>
    %81 = vector.shape_cast %80 : vector<1x4x16xf32> to vector<4x16xf32>
    %82 = vector.shape_cast %73 : vector<4x16xf32> to vector<1x4x16xf32>
    tpu.vector_store %arg5[%79, %c0_24, %c0_25], %82 {strides = array<i32>} : memref<6x4x16xf32, #tpu.memory_space<vmem>>, vector<1x4x16xf32>,
    %c1_i32 = arith.constant 1 : i32
    %83 = tpu.concatenate %48, %73 in 1 : vector<4x16xf32>, vector<4x16xf32> -> vector<4x32xf32>
    %cst_26 = arith.constant dense<0.000000e+00> : vector<4x128xf32>
    %84 = tpu.matmul %83, %7, %cst_26 {dimension_numbers = #tpu.dot_dimension_numbers<[1], [0], [0], [1], [0, 0, 1, 1], [], []>} : vector<4x32xf32>, vector<32x128xf32>, vector<4x128xf32> -> vector<4x128xf32>
    %85 = arith.index_cast %c1_i32 : i32 to index
    %c0_27 = arith.constant 0 : index
    %c0_28 = arith.constant 0 : index
    %86 = vector.load %arg6[%85, %c0_27, %c0_28] : memref<6x4x128xf32, #tpu.memory_space<vmem>>, vector<1x4x128xf32>
    %87 = vector.shape_cast %86 : vector<1x4x128xf32> to vector<4x128xf32>
    %88 = vector.extract_strided_slice %87 {offsets = [0, 0], sizes = [4, 64], strides = [1, 1]} : vector<4x128xf32> to vector<4x64xf32>
    %89 = vector.extract_strided_slice %84 {offsets = [0, 0], sizes = [4, 64], strides = [1, 1]} : vector<4x128xf32> to vector<4x64xf32>
    %90 = arith.addf %88, %89 : vector<4x64xf32>
    %c5_i32_29 = arith.constant 5 : i32
    %91 = arith.subi %c5_i32_29, %c1_i32 : i32
    %92 = arith.index_cast %91 : i32 to index
    %c0_30 = arith.constant 0 : index
    %c0_31 = arith.constant 0 : index
    %93 = vector.load %arg6[%92, %c0_30, %c0_31] : memref<6x4x128xf32, #tpu.memory_space<vmem>>, vector<1x4x128xf32>
    %94 = vector.shape_cast %93 : vector<1x4x128xf32> to vector<4x128xf32>
    %95 = vector.extract_strided_slice %94 {offsets = [0, 64], sizes = [4, 64], strides = [1, 1]} : vector<4x128xf32> to vector<4x64xf32>
    %96 = vector.extract_strided_slice %84 {offsets = [0, 64], sizes = [4, 64], strides = [1, 1]} : vector<4x128xf32> to vector<4x64xf32>
    %97 = arith.addf %95, %96 : vector<4x64xf32>
    %98 = vector.extract_strided_slice %90 {offsets = [0, 0], sizes = [4, 16], strides = [1, 1]} : vector<4x64xf32> to vector<4x16xf32>
    %99 = arith.negf %98 : vector<4x16xf32>
    %100 = math.exp %99 : vector<4x16xf32>
    %cst_32 = arith.constant 1.000000e+00 : f32
    %101 = vector.broadcast %cst_32 : f32 to vector<4x16xf32>
    %102 = arith.addf %101, %100 : vector<4x16xf32>
    %103 = arith.divf %101, %102 : vector<4x16xf32>
    %104 = vector.extract_strided_slice %90 {offsets = [0, 16], sizes = [4, 16], strides = [1, 1]} : vector<4x64xf32> to vector<4x16xf32>
    %105 = arith.negf %104 : vector<4x16xf32>
    %106 = math.exp %105 : vector<4x16xf32>
    %cst_33 = arith.constant 1.000000e+00 : f32
    %107 = vector.broadcast %cst_33 : f32 to vector<4x16xf32>
    %108 = arith.addf %107, %106 : vector<4x16xf32>
    %109 = arith.divf %107, %108 : vector<4x16xf32>
    %110 = vector.extract_strided_slice %90 {offsets = [0, 32], sizes = [4, 16], strides = [1, 1]} : vector<4x64xf32> to vector<4x16xf32>
    %111 = math.tanh %110 : vector<4x16xf32>
    %112 = vector.extract_strided_slice %90 {offsets = [0, 48], sizes = [4, 16], strides = [1, 1]} : vector<4x64xf32> to vector<4x16xf32>
    %113 = arith.negf %112 : vector<4x16xf32>
    %114 = math.exp %113 : vector<4x16xf32>
    %cst_34 = arith.constant 1.000000e+00 : f32
    %115 = vector.broadcast %cst_34 : f32 to vector<4x16xf32>
    %116 = arith.addf %115, %114 : vector<4x16xf32>
    %117 = arith.divf %115, %116 : vector<4x16xf32>
    %118 = arith.mulf %109, %46 : vector<4x16xf32>
    %119 = arith.mulf %103, %111 : vector<4x16xf32>
    %120 = arith.addf %118, %119 : vector<4x16xf32>
    %121 = math.tanh %120 : vector<4x16xf32>
    %122 = arith.mulf %117, %121 : vector<4x16xf32>
    %123 = vector.extract_strided_slice %97 {offsets = [0, 0], sizes = [4, 16], strides = [1, 1]} : vector<4x64xf32> to vector<4x16xf32>
    %124 = arith.negf %123 : vector<4x16xf32>
    %125 = math.exp %124 : vector<4x16xf32>
    %cst_35 = arith.constant 1.000000e+00 : f32
    %126 = vector.broadcast %cst_35 : f32 to vector<4x16xf32>
    %127 = arith.addf %126, %125 : vector<4x16xf32>
    %128 = arith.divf %126, %127 : vector<4x16xf32>
    %129 = vector.extract_strided_slice %97 {offsets = [0, 16], sizes = [4, 16], strides = [1, 1]} : vector<4x64xf32> to vector<4x16xf32>
    %130 = arith.negf %129 : vector<4x16xf32>
    %131 = math.exp %130 : vector<4x16xf32>
    %cst_36 = arith.constant 1.000000e+00 : f32
    %132 = vector.broadcast %cst_36 : f32 to vector<4x16xf32>
    %133 = arith.addf %132, %131 : vector<4x16xf32>
    %134 = arith.divf %132, %133 : vector<4x16xf32>
    %135 = vector.extract_strided_slice %97 {offsets = [0, 32], sizes = [4, 16], strides = [1, 1]} : vector<4x64xf32> to vector<4x16xf32>
    %136 = math.tanh %135 : vector<4x16xf32>
    %137 = vector.extract_strided_slice %97 {offsets = [0, 48], sizes = [4, 16], strides = [1, 1]} : vector<4x64xf32> to vector<4x16xf32>
    %138 = arith.negf %137 : vector<4x16xf32>
    %139 = math.exp %138 : vector<4x16xf32>
    %cst_37 = arith.constant 1.000000e+00 : f32
    %140 = vector.broadcast %cst_37 : f32 to vector<4x16xf32>
    %141 = arith.addf %140, %139 : vector<4x16xf32>
    %142 = arith.divf %140, %141 : vector<4x16xf32>
    %143 = arith.mulf %134, %71 : vector<4x16xf32>
    %144 = arith.mulf %128, %136 : vector<4x16xf32>
    %145 = arith.addf %143, %144 : vector<4x16xf32>
    %146 = math.tanh %145 : vector<4x16xf32>
    %147 = arith.mulf %142, %146 : vector<4x16xf32>
    %148 = arith.index_cast %c1_i32 : i32 to index
    %c0_38 = arith.constant 0 : index
    %c0_39 = arith.constant 0 : index
    %149 = vector.load %arg4[%148, %c0_38, %c0_39] : memref<6x4x16xf32, #tpu.memory_space<vmem>>, vector<1x4x16xf32>
    %150 = vector.shape_cast %149 : vector<1x4x16xf32> to vector<4x16xf32>
    %151 = vector.shape_cast %122 : vector<4x16xf32> to vector<1x4x16xf32>
    tpu.vector_store %arg4[%148, %c0_38, %c0_39], %151 {strides = array<i32>} : memref<6x4x16xf32, #tpu.memory_space<vmem>>, vector<1x4x16xf32>,
    %c5_i32_40 = arith.constant 5 : i32
    %152 = arith.subi %c5_i32_40, %c1_i32 : i32
    %153 = arith.index_cast %152 : i32 to index
    %c0_41 = arith.constant 0 : index
    %c0_42 = arith.constant 0 : index
    %154 = vector.load %arg5[%153, %c0_41, %c0_42] : memref<6x4x16xf32, #tpu.memory_space<vmem>>, vector<1x4x16xf32>
    %155 = vector.shape_cast %154 : vector<1x4x16xf32> to vector<4x16xf32>
    %156 = vector.shape_cast %147 : vector<4x16xf32> to vector<1x4x16xf32>
    tpu.vector_store %arg5[%153, %c0_41, %c0_42], %156 {strides = array<i32>} : memref<6x4x16xf32, #tpu.memory_space<vmem>>, vector<1x4x16xf32>,
    %c2_i32 = arith.constant 2 : i32
    %157 = tpu.concatenate %122, %147 in 1 : vector<4x16xf32>, vector<4x16xf32> -> vector<4x32xf32>
    %cst_43 = arith.constant dense<0.000000e+00> : vector<4x128xf32>
    %158 = tpu.matmul %157, %7, %cst_43 {dimension_numbers = #tpu.dot_dimension_numbers<[1], [0], [0], [1], [0, 0, 1, 1], [], []>} : vector<4x32xf32>, vector<32x128xf32>, vector<4x128xf32> -> vector<4x128xf32>
    %159 = arith.index_cast %c2_i32 : i32 to index
    %c0_44 = arith.constant 0 : index
    %c0_45 = arith.constant 0 : index
    %160 = vector.load %arg6[%159, %c0_44, %c0_45] : memref<6x4x128xf32, #tpu.memory_space<vmem>>, vector<1x4x128xf32>
    %161 = vector.shape_cast %160 : vector<1x4x128xf32> to vector<4x128xf32>
    %162 = vector.extract_strided_slice %161 {offsets = [0, 0], sizes = [4, 64], strides = [1, 1]} : vector<4x128xf32> to vector<4x64xf32>
    %163 = vector.extract_strided_slice %158 {offsets = [0, 0], sizes = [4, 64], strides = [1, 1]} : vector<4x128xf32> to vector<4x64xf32>
    %164 = arith.addf %162, %163 : vector<4x64xf32>
    %c5_i32_46 = arith.constant 5 : i32
    %165 = arith.subi %c5_i32_46, %c2_i32 : i32
    %166 = arith.index_cast %165 : i32 to index
    %c0_47 = arith.constant 0 : index
    %c0_48 = arith.constant 0 : index
    %167 = vector.load %arg6[%166, %c0_47, %c0_48] : memref<6x4x128xf32, #tpu.memory_space<vmem>>, vector<1x4x128xf32>
    %168 = vector.shape_cast %167 : vector<1x4x128xf32> to vector<4x128xf32>
    %169 = vector.extract_strided_slice %168 {offsets = [0, 64], sizes = [4, 64], strides = [1, 1]} : vector<4x128xf32> to vector<4x64xf32>
    %170 = vector.extract_strided_slice %158 {offsets = [0, 64], sizes = [4, 64], strides = [1, 1]} : vector<4x128xf32> to vector<4x64xf32>
    %171 = arith.addf %169, %170 : vector<4x64xf32>
    %172 = vector.extract_strided_slice %164 {offsets = [0, 0], sizes = [4, 16], strides = [1, 1]} : vector<4x64xf32> to vector<4x16xf32>
    %173 = arith.negf %172 : vector<4x16xf32>
    %174 = math.exp %173 : vector<4x16xf32>
    %cst_49 = arith.constant 1.000000e+00 : f32
    %175 = vector.broadcast %cst_49 : f32 to vector<4x16xf32>
    %176 = arith.addf %175, %174 : vector<4x16xf32>
    %177 = arith.divf %175, %176 : vector<4x16xf32>
    %178 = vector.extract_strided_slice %164 {offsets = [0, 16], sizes = [4, 16], strides = [1, 1]} : vector<4x64xf32> to vector<4x16xf32>
    %179 = arith.negf %178 : vector<4x16xf32>
    %180 = math.exp %179 : vector<4x16xf32>
    %cst_50 = arith.constant 1.000000e+00 : f32
    %181 = vector.broadcast %cst_50 : f32 to vector<4x16xf32>
    %182 = arith.addf %181, %180 : vector<4x16xf32>
    %183 = arith.divf %181, %182 : vector<4x16xf32>
    %184 = vector.extract_strided_slice %164 {offsets = [0, 32], sizes = [4, 16], strides = [1, 1]} : vector<4x64xf32> to vector<4x16xf32>
    %185 = math.tanh %184 : vector<4x16xf32>
    %186 = vector.extract_strided_slice %164 {offsets = [0, 48], sizes = [4, 16], strides = [1, 1]} : vector<4x64xf32> to vector<4x16xf32>
    %187 = arith.negf %186 : vector<4x16xf32>
    %188 = math.exp %187 : vector<4x16xf32>
    %cst_51 = arith.constant 1.000000e+00 : f32
    %189 = vector.broadcast %cst_51 : f32 to vector<4x16xf32>
    %190 = arith.addf %189, %188 : vector<4x16xf32>
    %191 = arith.divf %189, %190 : vector<4x16xf32>
    %192 = arith.mulf %183, %120 : vector<4x16xf32>
    %193 = arith.mulf %177, %185 : vector<4x16xf32>
    %194 = arith.addf %192, %193 : vector<4x16xf32>
    %195 = math.tanh %194 : vector<4x16xf32>
    %196 = arith.mulf %191, %195 : vector<4x16xf32>
    %197 = vector.extract_strided_slice %171 {offsets = [0, 0], sizes = [4, 16], strides = [1, 1]} : vector<4x64xf32> to vector<4x16xf32>
    %198 = arith.negf %197 : vector<4x16xf32>
    %199 = math.exp %198 : vector<4x16xf32>
    %cst_52 = arith.constant 1.000000e+00 : f32
    %200 = vector.broadcast %cst_52 : f32 to vector<4x16xf32>
    %201 = arith.addf %200, %199 : vector<4x16xf32>
    %202 = arith.divf %200, %201 : vector<4x16xf32>
    %203 = vector.extract_strided_slice %171 {offsets = [0, 16], sizes = [4, 16], strides = [1, 1]} : vector<4x64xf32> to vector<4x16xf32>
    %204 = arith.negf %203 : vector<4x16xf32>
    %205 = math.exp %204 : vector<4x16xf32>
    %cst_53 = arith.constant 1.000000e+00 : f32
    %206 = vector.broadcast %cst_53 : f32 to vector<4x16xf32>
    %207 = arith.addf %206, %205 : vector<4x16xf32>
    %208 = arith.divf %206, %207 : vector<4x16xf32>
    %209 = vector.extract_strided_slice %171 {offsets = [0, 32], sizes = [4, 16], strides = [1, 1]} : vector<4x64xf32> to vector<4x16xf32>
    %210 = math.tanh %209 : vector<4x16xf32>
    %211 = vector.extract_strided_slice %171 {offsets = [0, 48], sizes = [4, 16], strides = [1, 1]} : vector<4x64xf32> to vector<4x16xf32>
    %212 = arith.negf %211 : vector<4x16xf32>
    %213 = math.exp %212 : vector<4x16xf32>
    %cst_54 = arith.constant 1.000000e+00 : f32
    %214 = vector.broadcast %cst_54 : f32 to vector<4x16xf32>
    %215 = arith.addf %214, %213 : vector<4x16xf32>
    %216 = arith.divf %214, %215 : vector<4x16xf32>
    %217 = arith.mulf %208, %145 : vector<4x16xf32>
    %218 = arith.mulf %202, %210 : vector<4x16xf32>
    %219 = arith.addf %217, %218 : vector<4x16xf32>
    %220 = math.tanh %219 : vector<4x16xf32>
    %221 = arith.mulf %216, %220 : vector<4x16xf32>
    %222 = arith.index_cast %c2_i32 : i32 to index
    %c0_55 = arith.constant 0 : index
    %c0_56 = arith.constant 0 : index
    %223 = vector.load %arg4[%222, %c0_55, %c0_56] : memref<6x4x16xf32, #tpu.memory_space<vmem>>, vector<1x4x16xf32>
    %224 = vector.shape_cast %223 : vector<1x4x16xf32> to vector<4x16xf32>
    %225 = vector.shape_cast %196 : vector<4x16xf32> to vector<1x4x16xf32>
    tpu.vector_store %arg4[%222, %c0_55, %c0_56], %225 {strides = array<i32>} : memref<6x4x16xf32, #tpu.memory_space<vmem>>, vector<1x4x16xf32>,
    %c5_i32_57 = arith.constant 5 : i32
    %226 = arith.subi %c5_i32_57, %c2_i32 : i32
    %227 = arith.index_cast %226 : i32 to index
    %c0_58 = arith.constant 0 : index
    %c0_59 = arith.constant 0 : index
    %228 = vector.load %arg5[%227, %c0_58, %c0_59] : memref<6x4x16xf32, #tpu.memory_space<vmem>>, vector<1x4x16xf32>
    %229 = vector.shape_cast %228 : vector<1x4x16xf32> to vector<4x16xf32>
    %230 = vector.shape_cast %221 : vector<4x16xf32> to vector<1x4x16xf32>
    tpu.vector_store %arg5[%227, %c0_58, %c0_59], %230 {strides = array<i32>} : memref<6x4x16xf32, #tpu.memory_space<vmem>>, vector<1x4x16xf32>,
    %c3_i32 = arith.constant 3 : i32
    %231 = tpu.concatenate %196, %221 in 1 : vector<4x16xf32>, vector<4x16xf32> -> vector<4x32xf32>
    %cst_60 = arith.constant dense<0.000000e+00> : vector<4x128xf32>
    %232 = tpu.matmul %231, %7, %cst_60 {dimension_numbers = #tpu.dot_dimension_numbers<[1], [0], [0], [1], [0, 0, 1, 1], [], []>} : vector<4x32xf32>, vector<32x128xf32>, vector<4x128xf32> -> vector<4x128xf32>
    %233 = arith.index_cast %c3_i32 : i32 to index
    %c0_61 = arith.constant 0 : index
    %c0_62 = arith.constant 0 : index
    %234 = vector.load %arg6[%233, %c0_61, %c0_62] : memref<6x4x128xf32, #tpu.memory_space<vmem>>, vector<1x4x128xf32>
    %235 = vector.shape_cast %234 : vector<1x4x128xf32> to vector<4x128xf32>
    %236 = vector.extract_strided_slice %235 {offsets = [0, 0], sizes = [4, 64], strides = [1, 1]} : vector<4x128xf32> to vector<4x64xf32>
    %237 = vector.extract_strided_slice %232 {offsets = [0, 0], sizes = [4, 64], strides = [1, 1]} : vector<4x128xf32> to vector<4x64xf32>
    %238 = arith.addf %236, %237 : vector<4x64xf32>
    %c5_i32_63 = arith.constant 5 : i32
    %239 = arith.subi %c5_i32_63, %c3_i32 : i32
    %240 = arith.index_cast %239 : i32 to index
    %c0_64 = arith.constant 0 : index
    %c0_65 = arith.constant 0 : index
    %241 = vector.load %arg6[%240, %c0_64, %c0_65] : memref<6x4x128xf32, #tpu.memory_space<vmem>>, vector<1x4x128xf32>
    %242 = vector.shape_cast %241 : vector<1x4x128xf32> to vector<4x128xf32>
    %243 = vector.extract_strided_slice %242 {offsets = [0, 64], sizes = [4, 64], strides = [1, 1]} : vector<4x128xf32> to vector<4x64xf32>
    %244 = vector.extract_strided_slice %232 {offsets = [0, 64], sizes = [4, 64], strides = [1, 1]} : vector<4x128xf32> to vector<4x64xf32>
    %245 = arith.addf %243, %244 : vector<4x64xf32>
    %246 = vector.extract_strided_slice %238 {offsets = [0, 0], sizes = [4, 16], strides = [1, 1]} : vector<4x64xf32> to vector<4x16xf32>
    %247 = arith.negf %246 : vector<4x16xf32>
    %248 = math.exp %247 : vector<4x16xf32>
    %cst_66 = arith.constant 1.000000e+00 : f32
    %249 = vector.broadcast %cst_66 : f32 to vector<4x16xf32>
    %250 = arith.addf %249, %248 : vector<4x16xf32>
    %251 = arith.divf %249, %250 : vector<4x16xf32>
    %252 = vector.extract_strided_slice %238 {offsets = [0, 16], sizes = [4, 16], strides = [1, 1]} : vector<4x64xf32> to vector<4x16xf32>
    %253 = arith.negf %252 : vector<4x16xf32>
    %254 = math.exp %253 : vector<4x16xf32>
    %cst_67 = arith.constant 1.000000e+00 : f32
    %255 = vector.broadcast %cst_67 : f32 to vector<4x16xf32>
    %256 = arith.addf %255, %254 : vector<4x16xf32>
    %257 = arith.divf %255, %256 : vector<4x16xf32>
    %258 = vector.extract_strided_slice %238 {offsets = [0, 32], sizes = [4, 16], strides = [1, 1]} : vector<4x64xf32> to vector<4x16xf32>
    %259 = math.tanh %258 : vector<4x16xf32>
    %260 = vector.extract_strided_slice %238 {offsets = [0, 48], sizes = [4, 16], strides = [1, 1]} : vector<4x64xf32> to vector<4x16xf32>
    %261 = arith.negf %260 : vector<4x16xf32>
    %262 = math.exp %261 : vector<4x16xf32>
    %cst_68 = arith.constant 1.000000e+00 : f32
    %263 = vector.broadcast %cst_68 : f32 to vector<4x16xf32>
    %264 = arith.addf %263, %262 : vector<4x16xf32>
    %265 = arith.divf %263, %264 : vector<4x16xf32>
    %266 = arith.mulf %257, %194 : vector<4x16xf32>
    %267 = arith.mulf %251, %259 : vector<4x16xf32>
    %268 = arith.addf %266, %267 : vector<4x16xf32>
    %269 = math.tanh %268 : vector<4x16xf32>
    %270 = arith.mulf %265, %269 : vector<4x16xf32>
    %271 = vector.extract_strided_slice %245 {offsets = [0, 0], sizes = [4, 16], strides = [1, 1]} : vector<4x64xf32> to vector<4x16xf32>
    %272 = arith.negf %271 : vector<4x16xf32>
    %273 = math.exp %272 : vector<4x16xf32>
    %cst_69 = arith.constant 1.000000e+00 : f32
    %274 = vector.broadcast %cst_69 : f32 to vector<4x16xf32>
    %275 = arith.addf %274, %273 : vector<4x16xf32>
    %276 = arith.divf %274, %275 : vector<4x16xf32>
    %277 = vector.extract_strided_slice %245 {offsets = [0, 16], sizes = [4, 16], strides = [1, 1]} : vector<4x64xf32> to vector<4x16xf32>
    %278 = arith.negf %277 : vector<4x16xf32>
    %279 = math.exp %278 : vector<4x16xf32>
    %cst_70 = arith.constant 1.000000e+00 : f32
    %280 = vector.broadcast %cst_70 : f32 to vector<4x16xf32>
    %281 = arith.addf %280, %279 : vector<4x16xf32>
    %282 = arith.divf %280, %281 : vector<4x16xf32>
    %283 = vector.extract_strided_slice %245 {offsets = [0, 32], sizes = [4, 16], strides = [1, 1]} : vector<4x64xf32> to vector<4x16xf32>
    %284 = math.tanh %283 : vector<4x16xf32>
    %285 = vector.extract_strided_slice %245 {offsets = [0, 48], sizes = [4, 16], strides = [1, 1]} : vector<4x64xf32> to vector<4x16xf32>
    %286 = arith.negf %285 : vector<4x16xf32>
    %287 = math.exp %286 : vector<4x16xf32>
    %cst_71 = arith.constant 1.000000e+00 : f32
    %288 = vector.broadcast %cst_71 : f32 to vector<4x16xf32>
    %289 = arith.addf %288, %287 : vector<4x16xf32>
    %290 = arith.divf %288, %289 : vector<4x16xf32>
    %291 = arith.mulf %282, %219 : vector<4x16xf32>
    %292 = arith.mulf %276, %284 : vector<4x16xf32>
    %293 = arith.addf %291, %292 : vector<4x16xf32>
    %294 = math.tanh %293 : vector<4x16xf32>
    %295 = arith.mulf %290, %294 : vector<4x16xf32>
    %296 = arith.index_cast %c3_i32 : i32 to index
    %c0_72 = arith.constant 0 : index
    %c0_73 = arith.constant 0 : index
    %297 = vector.load %arg4[%296, %c0_72, %c0_73] : memref<6x4x16xf32, #tpu.memory_space<vmem>>, vector<1x4x16xf32>
    %298 = vector.shape_cast %297 : vector<1x4x16xf32> to vector<4x16xf32>
    %299 = vector.shape_cast %270 : vector<4x16xf32> to vector<1x4x16xf32>
    tpu.vector_store %arg4[%296, %c0_72, %c0_73], %299 {strides = array<i32>} : memref<6x4x16xf32, #tpu.memory_space<vmem>>, vector<1x4x16xf32>,
    %c5_i32_74 = arith.constant 5 : i32
    %300 = arith.subi %c5_i32_74, %c3_i32 : i32
    %301 = arith.index_cast %300 : i32 to index
    %c0_75 = arith.constant 0 : index
    %c0_76 = arith.constant 0 : index
    %302 = vector.load %arg5[%301, %c0_75, %c0_76] : memref<6x4x16xf32, #tpu.memory_space<vmem>>, vector<1x4x16xf32>
    %303 = vector.shape_cast %302 : vector<1x4x16xf32> to vector<4x16xf32>
    %304 = vector.shape_cast %295 : vector<4x16xf32> to vector<1x4x16xf32>
    tpu.vector_store %arg5[%301, %c0_75, %c0_76], %304 {strides = array<i32>} : memref<6x4x16xf32, #tpu.memory_space<vmem>>, vector<1x4x16xf32>,
    %c4_i32 = arith.constant 4 : i32
    %305 = tpu.concatenate %270, %295 in 1 : vector<4x16xf32>, vector<4x16xf32> -> vector<4x32xf32>
    %cst_77 = arith.constant dense<0.000000e+00> : vector<4x128xf32>
    %306 = tpu.matmul %305, %7, %cst_77 {dimension_numbers = #tpu.dot_dimension_numbers<[1], [0], [0], [1], [0, 0, 1, 1], [], []>} : vector<4x32xf32>, vector<32x128xf32>, vector<4x128xf32> -> vector<4x128xf32>
    %307 = arith.index_cast %c4_i32 : i32 to index
    %c0_78 = arith.constant 0 : index
    %c0_79 = arith.constant 0 : index
    %308 = vector.load %arg6[%307, %c0_78, %c0_79] : memref<6x4x128xf32, #tpu.memory_space<vmem>>, vector<1x4x128xf32>
    %309 = vector.shape_cast %308 : vector<1x4x128xf32> to vector<4x128xf32>
    %310 = vector.extract_strided_slice %309 {offsets = [0, 0], sizes = [4, 64], strides = [1, 1]} : vector<4x128xf32> to vector<4x64xf32>
    %311 = vector.extract_strided_slice %306 {offsets = [0, 0], sizes = [4, 64], strides = [1, 1]} : vector<4x128xf32> to vector<4x64xf32>
    %312 = arith.addf %310, %311 : vector<4x64xf32>
    %c5_i32_80 = arith.constant 5 : i32
    %313 = arith.subi %c5_i32_80, %c4_i32 : i32
    %314 = arith.index_cast %313 : i32 to index
    %c0_81 = arith.constant 0 : index
    %c0_82 = arith.constant 0 : index
    %315 = vector.load %arg6[%314, %c0_81, %c0_82] : memref<6x4x128xf32, #tpu.memory_space<vmem>>, vector<1x4x128xf32>
    %316 = vector.shape_cast %315 : vector<1x4x128xf32> to vector<4x128xf32>
    %317 = vector.extract_strided_slice %316 {offsets = [0, 64], sizes = [4, 64], strides = [1, 1]} : vector<4x128xf32> to vector<4x64xf32>
    %318 = vector.extract_strided_slice %306 {offsets = [0, 64], sizes = [4, 64], strides = [1, 1]} : vector<4x128xf32> to vector<4x64xf32>
    %319 = arith.addf %317, %318 : vector<4x64xf32>
    %320 = vector.extract_strided_slice %312 {offsets = [0, 0], sizes = [4, 16], strides = [1, 1]} : vector<4x64xf32> to vector<4x16xf32>
    %321 = arith.negf %320 : vector<4x16xf32>
    %322 = math.exp %321 : vector<4x16xf32>
    %cst_83 = arith.constant 1.000000e+00 : f32
    %323 = vector.broadcast %cst_83 : f32 to vector<4x16xf32>
    %324 = arith.addf %323, %322 : vector<4x16xf32>
    %325 = arith.divf %323, %324 : vector<4x16xf32>
    %326 = vector.extract_strided_slice %312 {offsets = [0, 16], sizes = [4, 16], strides = [1, 1]} : vector<4x64xf32> to vector<4x16xf32>
    %327 = arith.negf %326 : vector<4x16xf32>
    %328 = math.exp %327 : vector<4x16xf32>
    %cst_84 = arith.constant 1.000000e+00 : f32
    %329 = vector.broadcast %cst_84 : f32 to vector<4x16xf32>
    %330 = arith.addf %329, %328 : vector<4x16xf32>
    %331 = arith.divf %329, %330 : vector<4x16xf32>
    %332 = vector.extract_strided_slice %312 {offsets = [0, 32], sizes = [4, 16], strides = [1, 1]} : vector<4x64xf32> to vector<4x16xf32>
    %333 = math.tanh %332 : vector<4x16xf32>
    %334 = vector.extract_strided_slice %312 {offsets = [0, 48], sizes = [4, 16], strides = [1, 1]} : vector<4x64xf32> to vector<4x16xf32>
    %335 = arith.negf %334 : vector<4x16xf32>
    %336 = math.exp %335 : vector<4x16xf32>
    %cst_85 = arith.constant 1.000000e+00 : f32
    %337 = vector.broadcast %cst_85 : f32 to vector<4x16xf32>
    %338 = arith.addf %337, %336 : vector<4x16xf32>
    %339 = arith.divf %337, %338 : vector<4x16xf32>
    %340 = arith.mulf %331, %268 : vector<4x16xf32>
    %341 = arith.mulf %325, %333 : vector<4x16xf32>
    %342 = arith.addf %340, %341 : vector<4x16xf32>
    %343 = math.tanh %342 : vector<4x16xf32>
    %344 = arith.mulf %339, %343 : vector<4x16xf32>
    %345 = vector.extract_strided_slice %319 {offsets = [0, 0], sizes = [4, 16], strides = [1, 1]} : vector<4x64xf32> to vector<4x16xf32>
    %346 = arith.negf %345 : vector<4x16xf32>
    %347 = math.exp %346 : vector<4x16xf32>
    %cst_86 = arith.constant 1.000000e+00 : f32
    %348 = vector.broadcast %cst_86 : f32 to vector<4x16xf32>
    %349 = arith.addf %348, %347 : vector<4x16xf32>
    %350 = arith.divf %348, %349 : vector<4x16xf32>
    %351 = vector.extract_strided_slice %319 {offsets = [0, 16], sizes = [4, 16], strides = [1, 1]} : vector<4x64xf32> to vector<4x16xf32>
    %352 = arith.negf %351 : vector<4x16xf32>
    %353 = math.exp %352 : vector<4x16xf32>
    %cst_87 = arith.constant 1.000000e+00 : f32
    %354 = vector.broadcast %cst_87 : f32 to vector<4x16xf32>
    %355 = arith.addf %354, %353 : vector<4x16xf32>
    %356 = arith.divf %354, %355 : vector<4x16xf32>
    %357 = vector.extract_strided_slice %319 {offsets = [0, 32], sizes = [4, 16], strides = [1, 1]} : vector<4x64xf32> to vector<4x16xf32>
    %358 = math.tanh %357 : vector<4x16xf32>
    %359 = vector.extract_strided_slice %319 {offsets = [0, 48], sizes = [4, 16], strides = [1, 1]} : vector<4x64xf32> to vector<4x16xf32>
    %360 = arith.negf %359 : vector<4x16xf32>
    %361 = math.exp %360 : vector<4x16xf32>
    %cst_88 = arith.constant 1.000000e+00 : f32
    %362 = vector.broadcast %cst_88 : f32 to vector<4x16xf32>
    %363 = arith.addf %362, %361 : vector<4x16xf32>
    %364 = arith.divf %362, %363 : vector<4x16xf32>
    %365 = arith.mulf %356, %293 : vector<4x16xf32>
    %366 = arith.mulf %350, %358 : vector<4x16xf32>
    %367 = arith.addf %365, %366 : vector<4x16xf32>
    %368 = math.tanh %367 : vector<4x16xf32>
    %369 = arith.mulf %364, %368 : vector<4x16xf32>
    %370 = arith.index_cast %c4_i32 : i32 to index
    %c0_89 = arith.constant 0 : index
    %c0_90 = arith.constant 0 : index
    %371 = vector.load %arg4[%370, %c0_89, %c0_90] : memref<6x4x16xf32, #tpu.memory_space<vmem>>, vector<1x4x16xf32>
    %372 = vector.shape_cast %371 : vector<1x4x16xf32> to vector<4x16xf32>
    %373 = vector.shape_cast %344 : vector<4x16xf32> to vector<1x4x16xf32>
    tpu.vector_store %arg4[%370, %c0_89, %c0_90], %373 {strides = array<i32>} : memref<6x4x16xf32, #tpu.memory_space<vmem>>, vector<1x4x16xf32>,
    %c5_i32_91 = arith.constant 5 : i32
    %374 = arith.subi %c5_i32_91, %c4_i32 : i32
    %375 = arith.index_cast %374 : i32 to index
    %c0_92 = arith.constant 0 : index
    %c0_93 = arith.constant 0 : index
    %376 = vector.load %arg5[%375, %c0_92, %c0_93] : memref<6x4x16xf32, #tpu.memory_space<vmem>>, vector<1x4x16xf32>
    %377 = vector.shape_cast %376 : vector<1x4x16xf32> to vector<4x16xf32>
    %378 = vector.shape_cast %369 : vector<4x16xf32> to vector<1x4x16xf32>
    tpu.vector_store %arg5[%375, %c0_92, %c0_93], %378 {strides = array<i32>} : memref<6x4x16xf32, #tpu.memory_space<vmem>>, vector<1x4x16xf32>,
    %c5_i32_94 = arith.constant 5 : i32
    %379 = tpu.concatenate %344, %369 in 1 : vector<4x16xf32>, vector<4x16xf32> -> vector<4x32xf32>
    %cst_95 = arith.constant dense<0.000000e+00> : vector<4x128xf32>
    %380 = tpu.matmul %379, %7, %cst_95 {dimension_numbers = #tpu.dot_dimension_numbers<[1], [0], [0], [1], [0, 0, 1, 1], [], []>} : vector<4x32xf32>, vector<32x128xf32>, vector<4x128xf32> -> vector<4x128xf32>
    %381 = arith.index_cast %c5_i32_94 : i32 to index
    %c0_96 = arith.constant 0 : index
    %c0_97 = arith.constant 0 : index
    %382 = vector.load %arg6[%381, %c0_96, %c0_97] : memref<6x4x128xf32, #tpu.memory_space<vmem>>, vector<1x4x128xf32>
    %383 = vector.shape_cast %382 : vector<1x4x128xf32> to vector<4x128xf32>
    %384 = vector.extract_strided_slice %383 {offsets = [0, 0], sizes = [4, 64], strides = [1, 1]} : vector<4x128xf32> to vector<4x64xf32>
    %385 = vector.extract_strided_slice %380 {offsets = [0, 0], sizes = [4, 64], strides = [1, 1]} : vector<4x128xf32> to vector<4x64xf32>
    %386 = arith.addf %384, %385 : vector<4x64xf32>
    %c5_i32_98 = arith.constant 5 : i32
    %387 = arith.subi %c5_i32_98, %c5_i32_94 : i32
    %388 = arith.index_cast %387 : i32 to index
    %c0_99 = arith.constant 0 : index
    %c0_100 = arith.constant 0 : index
    %389 = vector.load %arg6[%388, %c0_99, %c0_100] : memref<6x4x128xf32, #tpu.memory_space<vmem>>, vector<1x4x128xf32>
    %390 = vector.shape_cast %389 : vector<1x4x128xf32> to vector<4x128xf32>
    %391 = vector.extract_strided_slice %390 {offsets = [0, 64], sizes = [4, 64], strides = [1, 1]} : vector<4x128xf32> to vector<4x64xf32>
    %392 = vector.extract_strided_slice %380 {offsets = [0, 64], sizes = [4, 64], strides = [1, 1]} : vector<4x128xf32> to vector<4x64xf32>
    %393 = arith.addf %391, %392 : vector<4x64xf32>
    %394 = vector.extract_strided_slice %386 {offsets = [0, 0], sizes = [4, 16], strides = [1, 1]} : vector<4x64xf32> to vector<4x16xf32>
    %395 = arith.negf %394 : vector<4x16xf32>
    %396 = math.exp %395 : vector<4x16xf32>
    %cst_101 = arith.constant 1.000000e+00 : f32
    %397 = vector.broadcast %cst_101 : f32 to vector<4x16xf32>
    %398 = arith.addf %397, %396 : vector<4x16xf32>
    %399 = arith.divf %397, %398 : vector<4x16xf32>
    %400 = vector.extract_strided_slice %386 {offsets = [0, 16], sizes = [4, 16], strides = [1, 1]} : vector<4x64xf32> to vector<4x16xf32>
    %401 = arith.negf %400 : vector<4x16xf32>
    %402 = math.exp %401 : vector<4x16xf32>
    %cst_102 = arith.constant 1.000000e+00 : f32
    %403 = vector.broadcast %cst_102 : f32 to vector<4x16xf32>
    %404 = arith.addf %403, %402 : vector<4x16xf32>
    %405 = arith.divf %403, %404 : vector<4x16xf32>
    %406 = vector.extract_strided_slice %386 {offsets = [0, 32], sizes = [4, 16], strides = [1, 1]} : vector<4x64xf32> to vector<4x16xf32>
    %407 = math.tanh %406 : vector<4x16xf32>
    %408 = vector.extract_strided_slice %386 {offsets = [0, 48], sizes = [4, 16], strides = [1, 1]} : vector<4x64xf32> to vector<4x16xf32>
    %409 = arith.negf %408 : vector<4x16xf32>
    %410 = math.exp %409 : vector<4x16xf32>
    %cst_103 = arith.constant 1.000000e+00 : f32
    %411 = vector.broadcast %cst_103 : f32 to vector<4x16xf32>
    %412 = arith.addf %411, %410 : vector<4x16xf32>
    %413 = arith.divf %411, %412 : vector<4x16xf32>
    %414 = arith.mulf %405, %342 : vector<4x16xf32>
    %415 = arith.mulf %399, %407 : vector<4x16xf32>
    %416 = arith.addf %414, %415 : vector<4x16xf32>
    %417 = math.tanh %416 : vector<4x16xf32>
    %418 = arith.mulf %413, %417 : vector<4x16xf32>
    %419 = vector.extract_strided_slice %393 {offsets = [0, 0], sizes = [4, 16], strides = [1, 1]} : vector<4x64xf32> to vector<4x16xf32>
    %420 = arith.negf %419 : vector<4x16xf32>
    %421 = math.exp %420 : vector<4x16xf32>
    %cst_104 = arith.constant 1.000000e+00 : f32
    %422 = vector.broadcast %cst_104 : f32 to vector<4x16xf32>
    %423 = arith.addf %422, %421 : vector<4x16xf32>
    %424 = arith.divf %422, %423 : vector<4x16xf32>
    %425 = vector.extract_strided_slice %393 {offsets = [0, 16], sizes = [4, 16], strides = [1, 1]} : vector<4x64xf32> to vector<4x16xf32>
    %426 = arith.negf %425 : vector<4x16xf32>
    %427 = math.exp %426 : vector<4x16xf32>
    %cst_105 = arith.constant 1.000000e+00 : f32
    %428 = vector.broadcast %cst_105 : f32 to vector<4x16xf32>
    %429 = arith.addf %428, %427 : vector<4x16xf32>
    %430 = arith.divf %428, %429 : vector<4x16xf32>
    %431 = vector.extract_strided_slice %393 {offsets = [0, 32], sizes = [4, 16], strides = [1, 1]} : vector<4x64xf32> to vector<4x16xf32>
    %432 = math.tanh %431 : vector<4x16xf32>
    %433 = vector.extract_strided_slice %393 {offsets = [0, 48], sizes = [4, 16], strides = [1, 1]} : vector<4x64xf32> to vector<4x16xf32>
    %434 = arith.negf %433 : vector<4x16xf32>
    %435 = math.exp %434 : vector<4x16xf32>
    %cst_106 = arith.constant 1.000000e+00 : f32
    %436 = vector.broadcast %cst_106 : f32 to vector<4x16xf32>
    %437 = arith.addf %436, %435 : vector<4x16xf32>
    %438 = arith.divf %436, %437 : vector<4x16xf32>
    %439 = arith.mulf %430, %367 : vector<4x16xf32>
    %440 = arith.mulf %424, %432 : vector<4x16xf32>
    %441 = arith.addf %439, %440 : vector<4x16xf32>
    %442 = math.tanh %441 : vector<4x16xf32>
    %443 = arith.mulf %438, %442 : vector<4x16xf32>
    %444 = arith.index_cast %c5_i32_94 : i32 to index
    %c0_107 = arith.constant 0 : index
    %c0_108 = arith.constant 0 : index
    %445 = vector.load %arg4[%444, %c0_107, %c0_108] : memref<6x4x16xf32, #tpu.memory_space<vmem>>, vector<1x4x16xf32>
    %446 = vector.shape_cast %445 : vector<1x4x16xf32> to vector<4x16xf32>
    %447 = vector.shape_cast %418 : vector<4x16xf32> to vector<1x4x16xf32>
    tpu.vector_store %arg4[%444, %c0_107, %c0_108], %447 {strides = array<i32>} : memref<6x4x16xf32, #tpu.memory_space<vmem>>, vector<1x4x16xf32>,
    %c5_i32_109 = arith.constant 5 : i32
    %448 = arith.subi %c5_i32_109, %c5_i32_94 : i32
    %449 = arith.index_cast %448 : i32 to index
    %c0_110 = arith.constant 0 : index
    %c0_111 = arith.constant 0 : index
    %450 = vector.load %arg5[%449, %c0_110, %c0_111] : memref<6x4x16xf32, #tpu.memory_space<vmem>>, vector<1x4x16xf32>
    %451 = vector.shape_cast %450 : vector<1x4x16xf32> to vector<4x16xf32>
    %452 = vector.shape_cast %443 : vector<4x16xf32> to vector<1x4x16xf32>
    tpu.vector_store %arg5[%449, %c0_110, %c0_111], %452 {strides = array<i32>} : memref<6x4x16xf32, #tpu.memory_space<vmem>>, vector<1x4x16xf32>,
    %c6_i32 = arith.constant 6 : i32
    return
  }
  func.func @transform_0(%arg0: i32) -> (i32, i32, i32) {
    %c0_i32 = arith.constant 0 : i32
    %c0_i32_0 = arith.constant 0 : i32
    %c0_i32_1 = arith.constant 0 : i32
    return %c0_i32, %arg0, %c0_i32_0 : i32, i32, i32
  }
  func.func @transform_1(%arg0: i32) -> (i32, i32) {
    %c0_i32 = arith.constant 0 : i32
    %c0_i32_0 = arith.constant 0 : i32
    %c0_i32_1 = arith.constant 0 : i32
    return %c0_i32, %c0_i32_0 : i32, i32
  }
  func.func @transform_2(%arg0: i32) -> (i32, i32) {
    %c0_i32 = arith.constant 0 : i32
    %c0_i32_0 = arith.constant 0 : i32
    %c0_i32_1 = arith.constant 0 : i32
    return %c0_i32, %c0_i32_0 : i32, i32
  }
  func.func @transform_3(%arg0: i32) -> (i32, i32, i32) {
    %c0_i32 = arith.constant 0 : i32
    %c0_i32_0 = arith.constant 0 : i32
    %c0_i32_1 = arith.constant 0 : i32
    return %c0_i32, %arg0, %c0_i32_0 : i32, i32, i32
  }
  func.func @transform_4(%arg0: i32) -> (i32, i32, i32) {
    %c0_i32 = arith.constant 0 : i32
    %c0_i32_0 = arith.constant 0 : i32
    %c0_i32_1 = arith.constant 0 : i32
    return %c0_i32, %arg0, %c0_i32_0 : i32, i32, i32
  }
}

module attributes {stable_mosaic.version = 11 : i64} {
  func.func @matching_kernel(%arg0: i32, %arg1: i32, %arg2: memref<1x2x6x16xf32, #tpu.memory_space<vmem>>, %arg3: memref<1x2x6x16xf32, #tpu.memory_space<vmem>>, %arg4: memref<1x2x6x16xf32, #tpu.memory_space<vmem>>, %arg5: memref<1x2x6x16xf32, #tpu.memory_space<vmem>>, %arg6: memref<8x4x16xf32, #tpu.memory_space<vmem>>, %arg7: memref<1x2x6x128xf32, #tpu.memory_space<vmem>>) attributes {dimension_semantics = [#tpu.dimension_semantics<parallel>, #tpu.dimension_semantics<parallel>], iteration_bounds = array<i64: 2, 1>, scalar_prefetch = 0 : i64, scratch_operands = 0 : i64, tpu.core_type = #tpu.core_type<tc>, window_params = [{transform_indices = @transform_0, window_bounds = array<i64: 1, 2, 6, 16>}, {transform_indices = @transform_1, window_bounds = array<i64: 1, 2, 6, 16>}, {transform_indices = @transform_2, window_bounds = array<i64: 1, 2, 6, 16>}, {transform_indices = @transform_3, window_bounds = array<i64: 1, 2, 6, 16>}, {pipeline_mode = #tpu.pipeline_mode<synchronous>, transform_indices = @transform_4, window_bounds = array<i64: 8, 4, 16>}, {transform_indices = @transform_5, window_bounds = array<i64: 1, 2, 6, 128>}]} {
    %c0 = arith.constant 0 : index
    %c0_0 = arith.constant 0 : index
    %c0_1 = arith.constant 0 : index
    %0 = vector.load %arg6[%c0, %c0_0, %c0_1] : memref<8x4x16xf32, #tpu.memory_space<vmem>>, vector<8x4x16xf32>
    %c0_2 = arith.constant 0 : index
    %c0_3 = arith.constant 0 : index
    %c0_4 = arith.constant 0 : index
    %c0_5 = arith.constant 0 : index
    %1 = vector.load %arg4[%c0_2, %c0_3, %c0_4, %c0_5] : memref<1x2x6x16xf32, #tpu.memory_space<vmem>>, vector<1x2x6x16xf32>
    %2 = vector.shape_cast %1 : vector<1x2x6x16xf32> to vector<2x6x16xf32>
    %c0_6 = arith.constant 0 : index
    %c0_7 = arith.constant 0 : index
    %c0_8 = arith.constant 0 : index
    %c0_9 = arith.constant 0 : index
    %3 = vector.load %arg5[%c0_6, %c0_7, %c0_8, %c0_9] : memref<1x2x6x16xf32, #tpu.memory_space<vmem>>, vector<1x2x6x16xf32>
    %4 = vector.shape_cast %3 : vector<1x2x6x16xf32> to vector<2x6x16xf32>
    %c0_10 = arith.constant 0 : index
    %c0_11 = arith.constant 0 : index
    %c0_12 = arith.constant 0 : index
    %c0_13 = arith.constant 0 : index
    %5 = vector.load %arg2[%c0_10, %c0_11, %c0_12, %c0_13] : memref<1x2x6x16xf32, #tpu.memory_space<vmem>>, vector<1x2x6x16xf32>
    %6 = vector.shape_cast %5 : vector<1x2x6x16xf32> to vector<2x6x16xf32>
    %7 = vector.extract_strided_slice %2 {offsets = [0, 5, 0], sizes = [2, 1, 16], strides = [1, 1, 1]} : vector<2x6x16xf32> to vector<2x1x16xf32>
    %8 = vector.shape_cast %7 : vector<2x1x16xf32> to vector<2x16xf32>
    %9 = vector.extract_strided_slice %0 {offsets = [0, 0, 0], sizes = [1, 4, 16], strides = [1, 1, 1]} : vector<8x4x16xf32> to vector<1x4x16xf32>
    %10 = vector.shape_cast %9 : vector<1x4x16xf32> to vector<4x16xf32>
    %11 = vector.extract_strided_slice %0 {offsets = [1, 0, 0], sizes = [1, 4, 16], strides = [1, 1, 1]} : vector<8x4x16xf32> to vector<1x4x16xf32>
    %12 = vector.shape_cast %11 : vector<1x4x16xf32> to vector<4x16xf32>
    %13 = vector.extract_strided_slice %0 {offsets = [2, 0, 0], sizes = [1, 4, 16], strides = [1, 1, 1]} : vector<8x4x16xf32> to vector<1x4x16xf32>
    %14 = vector.shape_cast %13 : vector<1x4x16xf32> to vector<4x16xf32>
    %15 = vector.extract_strided_slice %0 {offsets = [3, 0, 0], sizes = [1, 4, 16], strides = [1, 1, 1]} : vector<8x4x16xf32> to vector<1x4x16xf32>
    %16 = vector.shape_cast %15 : vector<1x4x16xf32> to vector<4x16xf32>
    %17 = arith.mulf %10, %10 : vector<4x16xf32>
    %18 = tpu.transpose %17, [1, 0] : vector<4x16xf32> -> vector<16x4xf32>
    %19 = arith.mulf %12, %12 : vector<4x16xf32>
    %20 = arith.mulf %14, %14 : vector<4x16xf32>
    %21 = tpu.transpose %20, [1, 0] : vector<4x16xf32> -> vector<16x4xf32>
    %22 = arith.mulf %16, %16 : vector<4x16xf32>
    %23 = tpu.transpose %22, [1, 0] : vector<4x16xf32> -> vector<16x4xf32>
    %24 = vector.shape_cast %8 : vector<2x16xf32> to vector<2x1x16xf32>
    %25 = vector.broadcast %24 : vector<2x1x16xf32> to vector<2x6x16xf32>
    %26 = arith.mulf %6, %25 : vector<2x6x16xf32>
    %27 = vector.shape_cast %26 : vector<2x6x16xf32> to vector<12x16xf32>
    %28 = arith.truncf %27 : vector<12x16xf32> to vector<12x16xbf16>
    %29 = arith.truncf %18 : vector<16x4xf32> to vector<16x4xbf16>
    %cst = arith.constant dense<0.000000e+00> : vector<12x4xf32>
    %30 = tpu.matmul %28, %29, %cst {dimension_numbers = #tpu.dot_dimension_numbers<[1], [0], [0], [1], [0, 0, 1, 1], [], []>} : vector<12x16xbf16>, vector<16x4xbf16>, vector<12x4xf32> -> vector<12x4xf32>
    %31 = vector.shape_cast %30 : vector<12x4xf32> to vector<2x6x4xf32>
    %32 = arith.mulf %6, %6 : vector<2x6x16xf32>
    %33 = vector.shape_cast %32 : vector<2x6x16xf32> to vector<12x16xf32>
    %34 = arith.truncf %33 : vector<12x16xf32> to vector<12x16xbf16>
    %35 = arith.truncf %18 : vector<16x4xf32> to vector<16x4xbf16>
    %cst_14 = arith.constant dense<0.000000e+00> : vector<12x4xf32>
    %36 = tpu.matmul %34, %35, %cst_14 {dimension_numbers = #tpu.dot_dimension_numbers<[1], [0], [0], [1], [0, 0, 1, 1], [], []>} : vector<12x16xbf16>, vector<16x4xbf16>, vector<12x4xf32> -> vector<12x4xf32>
    %37 = vector.shape_cast %36 : vector<12x4xf32> to vector<2x6x4xf32>
    %cst_15 = arith.constant 9.99999997E-7 : f32
    %38 = vector.broadcast %cst_15 : f32 to vector<2x6x4xf32>
    %39 = arith.addf %37, %38 : vector<2x6x4xf32>
    %40 = math.rsqrt %39 : vector<2x6x4xf32>
    %41 = arith.mulf %31, %40 : vector<2x6x4xf32>
    %42 = arith.mulf %8, %8 : vector<2x16xf32>
    %43 = vector.shape_cast %42 : vector<2x16xf32> to vector<2x1x16xf32>
    %44 = vector.shape_cast %43 : vector<2x1x16xf32> to vector<2x16xf32>
    %45 = arith.truncf %44 : vector<2x16xf32> to vector<2x16xbf16>
    %46 = arith.truncf %18 : vector<16x4xf32> to vector<16x4xbf16>
    %cst_16 = arith.constant dense<0.000000e+00> : vector<2x4xf32>
    %47 = tpu.matmul %45, %46, %cst_16 {dimension_numbers = #tpu.dot_dimension_numbers<[1], [0], [0], [1], [0, 0, 1, 1], [], []>} : vector<2x16xbf16>, vector<16x4xbf16>, vector<2x4xf32> -> vector<2x4xf32>
    %48 = vector.shape_cast %47 : vector<2x4xf32> to vector<2x1x4xf32>
    %cst_17 = arith.constant 9.99999997E-7 : f32
    %49 = vector.broadcast %cst_17 : f32 to vector<2x1x4xf32>
    %50 = arith.addf %48, %49 : vector<2x1x4xf32>
    %51 = math.rsqrt %50 : vector<2x1x4xf32>
    %52 = vector.broadcast %51 : vector<2x1x4xf32> to vector<2x6x4xf32>
    %53 = arith.mulf %41, %52 : vector<2x6x4xf32>
    %54 = vector.shape_cast %6 : vector<2x6x16xf32> to vector<2x6x1x16xf32>
    %55 = vector.shape_cast %19 : vector<4x16xf32> to vector<1x1x4x16xf32>
    %56 = vector.broadcast %54 : vector<2x6x1x16xf32> to vector<2x6x4x16xf32>
    %57 = vector.broadcast %55 : vector<1x1x4x16xf32> to vector<2x6x4x16xf32>
    %58 = arith.mulf %56, %57 : vector<2x6x4x16xf32>
    %59 = vector.shape_cast %58 : vector<2x6x4x16xf32> to vector<2x24x16xf32>
    %60 = arith.truncf %59 : vector<2x24x16xf32> to vector<2x24x16xbf16>
    %61 = arith.truncf %2 : vector<2x6x16xf32> to vector<2x6x16xbf16>
    "tpu.trace_start"() <{level = 10 : i32, message = "bxh,bjh->bxj"}> : () -> ()
    %cst_18 = arith.constant dense<0.000000e+00> : vector<2x24x6xf32>
    %62 = tpu.matmul %60, %61, %cst_18 {dimension_numbers = #tpu.dot_dimension_numbers<[2], [2], [1], [1], [0, 0, 0, 1, 1, 1], [0], [0]>} : vector<2x24x16xbf16>, vector<2x6x16xbf16>, vector<2x24x6xf32> -> vector<2x24x6xf32>
    "tpu.trace_stop"() : () -> ()
    %63 = vector.shape_cast %62 : vector<2x24x6xf32> to vector<2x6x4x6xf32>
    %64 = arith.mulf %6, %6 : vector<2x6x16xf32>
    %65 = tpu.transpose %19, [1, 0] : vector<4x16xf32> -> vector<16x4xf32>
    %66 = vector.shape_cast %64 : vector<2x6x16xf32> to vector<12x16xf32>
    %67 = arith.truncf %66 : vector<12x16xf32> to vector<12x16xbf16>
    %68 = arith.truncf %65 : vector<16x4xf32> to vector<16x4xbf16>
    %cst_19 = arith.constant dense<0.000000e+00> : vector<12x4xf32>
    %69 = tpu.matmul %67, %68, %cst_19 {dimension_numbers = #tpu.dot_dimension_numbers<[1], [0], [0], [1], [0, 0, 1, 1], [], []>} : vector<12x16xbf16>, vector<16x4xbf16>, vector<12x4xf32> -> vector<12x4xf32>
    %70 = vector.shape_cast %69 : vector<12x4xf32> to vector<2x6x4xf32>
    %cst_20 = arith.constant 9.99999997E-7 : f32
    %71 = vector.broadcast %cst_20 : f32 to vector<2x6x4xf32>
    %72 = arith.addf %70, %71 : vector<2x6x4xf32>
    %73 = math.rsqrt %72 : vector<2x6x4xf32>
    %74 = arith.mulf %2, %2 : vector<2x6x16xf32>
    %75 = tpu.transpose %19, [1, 0] : vector<4x16xf32> -> vector<16x4xf32>
    %76 = vector.shape_cast %74 : vector<2x6x16xf32> to vector<12x16xf32>
    %77 = arith.truncf %76 : vector<12x16xf32> to vector<12x16xbf16>
    %78 = arith.truncf %75 : vector<16x4xf32> to vector<16x4xbf16>
    %cst_21 = arith.constant dense<0.000000e+00> : vector<12x4xf32>
    %79 = tpu.matmul %77, %78, %cst_21 {dimension_numbers = #tpu.dot_dimension_numbers<[1], [0], [0], [1], [0, 0, 1, 1], [], []>} : vector<12x16xbf16>, vector<16x4xbf16>, vector<12x4xf32> -> vector<12x4xf32>
    %80 = vector.shape_cast %79 : vector<12x4xf32> to vector<2x6x4xf32>
    %cst_22 = arith.constant 9.99999997E-7 : f32
    %81 = vector.broadcast %cst_22 : f32 to vector<2x6x4xf32>
    %82 = arith.addf %80, %81 : vector<2x6x4xf32>
    %83 = math.rsqrt %82 : vector<2x6x4xf32>
    %84 = vector.shape_cast %73 : vector<2x6x4xf32> to vector<2x6x4x1xf32>
    %85 = vector.broadcast %84 : vector<2x6x4x1xf32> to vector<2x6x4x6xf32>
    %86 = arith.mulf %63, %85 : vector<2x6x4x6xf32>
    %87 = tpu.transpose %83, [0, 2, 1] : vector<2x6x4xf32> -> vector<2x4x6xf32>
    %88 = vector.shape_cast %87 : vector<2x4x6xf32> to vector<2x1x4x6xf32>
    %89 = vector.broadcast %88 : vector<2x1x4x6xf32> to vector<2x6x4x6xf32>
    %90 = arith.mulf %86, %89 : vector<2x6x4x6xf32>
    %cst_23 = arith.constant dense<0xFF800000> : vector<2x6x4xf32>
    %91 = vector.multi_reduction <maximumf>, %90, %cst_23 [3] : vector<2x6x4x6xf32> to vector<2x6x4xf32>
    "tpu.trace_start"() <{level = 10 : i32, message = "bth,bjh->btj"}> : () -> ()
    %cst_24 = arith.constant dense<0.000000e+00> : vector<2x6x6xf32>
    %92 = tpu.matmul %6, %2, %cst_24 {dimension_numbers = #tpu.dot_dimension_numbers<[2], [2], [1], [1], [0, 0, 0, 1, 1, 1], [0], [0]>} : vector<2x6x16xf32>, vector<2x6x16xf32>, vector<2x6x6xf32> -> vector<2x6x6xf32>
    "tpu.trace_stop"() : () -> ()
    %93 = arith.mulf %6, %6 : vector<2x6x16xf32>
    %cst_25 = arith.constant dense<0.000000e+00> : vector<2x6xf32>
    %94 = vector.multi_reduction <add>, %93, %cst_25 [2] : vector<2x6x16xf32> to vector<2x6xf32>
    %cst_26 = arith.constant 9.99999997E-7 : f32
    %95 = vector.broadcast %cst_26 : f32 to vector<2x6xf32>
    %96 = arith.addf %94, %95 : vector<2x6xf32>
    %97 = math.rsqrt %96 : vector<2x6xf32>
    %98 = vector.shape_cast %97 : vector<2x6xf32> to vector<2x6x1xf32>
    %99 = vector.broadcast %98 : vector<2x6x1xf32> to vector<2x6x6xf32>
    %100 = arith.mulf %92, %99 : vector<2x6x6xf32>
    %101 = arith.mulf %2, %2 : vector<2x6x16xf32>
    %cst_27 = arith.constant dense<0.000000e+00> : vector<2x6xf32>
    %102 = vector.multi_reduction <add>, %101, %cst_27 [2] : vector<2x6x16xf32> to vector<2x6xf32>
    %cst_28 = arith.constant 9.99999997E-7 : f32
    %103 = vector.broadcast %cst_28 : f32 to vector<2x6xf32>
    %104 = arith.addf %102, %103 : vector<2x6xf32>
    %105 = math.rsqrt %104 : vector<2x6xf32>
    %106 = vector.shape_cast %105 : vector<2x6xf32> to vector<2x1x6xf32>
    %107 = vector.broadcast %106 : vector<2x1x6xf32> to vector<2x6x6xf32>
    %108 = arith.mulf %100, %107 : vector<2x6x6xf32>
    "tpu.trace_start"() <{level = 10 : i32, message = "btj,bjh->bth"}> : () -> ()
    %cst_29 = arith.constant dense<0.000000e+00> : vector<2x6x16xf32>
    %109 = tpu.matmul %108, %2, %cst_29 {dimension_numbers = #tpu.dot_dimension_numbers<[2], [1], [1], [2], [0, 0, 0, 1, 1, 2], [0], [0]>} : vector<2x6x6xf32>, vector<2x6x16xf32>, vector<2x6x16xf32> -> vector<2x6x16xf32>
    "tpu.trace_stop"() : () -> ()
    %cst_30 = arith.constant dense<0.000000e+00> : vector<2x6xf32>
    %110 = vector.multi_reduction <add>, %108, %cst_30 [2] : vector<2x6x6xf32> to vector<2x6xf32>
    %111 = vector.shape_cast %110 : vector<2x6xf32> to vector<2x6x1xf32>
    %cst_31 = arith.constant 9.99999997E-7 : f32
    %112 = vector.broadcast %cst_31 : f32 to vector<2x6x1xf32>
    %113 = arith.addf %111, %112 : vector<2x6x1xf32>
    %114 = tpu.reciprocal %113 {approx = true} : vector<2x6x1xf32> -> vector<2x6x1xf32>
    %115 = vector.broadcast %114 : vector<2x6x1xf32> to vector<2x6x16xf32>
    %116 = arith.mulf %109, %115 : vector<2x6x16xf32>
    %117 = arith.mulf %6, %116 : vector<2x6x16xf32>
    %118 = vector.shape_cast %117 : vector<2x6x16xf32> to vector<12x16xf32>
    %119 = arith.truncf %118 : vector<12x16xf32> to vector<12x16xbf16>
    %120 = arith.truncf %21 : vector<16x4xf32> to vector<16x4xbf16>
    %cst_32 = arith.constant dense<0.000000e+00> : vector<12x4xf32>
    %121 = tpu.matmul %119, %120, %cst_32 {dimension_numbers = #tpu.dot_dimension_numbers<[1], [0], [0], [1], [0, 0, 1, 1], [], []>} : vector<12x16xbf16>, vector<16x4xbf16>, vector<12x4xf32> -> vector<12x4xf32>
    %122 = vector.shape_cast %121 : vector<12x4xf32> to vector<2x6x4xf32>
    %123 = arith.mulf %6, %6 : vector<2x6x16xf32>
    %124 = vector.shape_cast %123 : vector<2x6x16xf32> to vector<12x16xf32>
    %125 = arith.truncf %124 : vector<12x16xf32> to vector<12x16xbf16>
    %126 = arith.truncf %21 : vector<16x4xf32> to vector<16x4xbf16>
    %cst_33 = arith.constant dense<0.000000e+00> : vector<12x4xf32>
    %127 = tpu.matmul %125, %126, %cst_33 {dimension_numbers = #tpu.dot_dimension_numbers<[1], [0], [0], [1], [0, 0, 1, 1], [], []>} : vector<12x16xbf16>, vector<16x4xbf16>, vector<12x4xf32> -> vector<12x4xf32>
    %128 = vector.shape_cast %127 : vector<12x4xf32> to vector<2x6x4xf32>
    %cst_34 = arith.constant 9.99999997E-7 : f32
    %129 = vector.broadcast %cst_34 : f32 to vector<2x6x4xf32>
    %130 = arith.addf %128, %129 : vector<2x6x4xf32>
    %131 = math.rsqrt %130 : vector<2x6x4xf32>
    %132 = arith.mulf %122, %131 : vector<2x6x4xf32>
    %133 = arith.mulf %116, %116 : vector<2x6x16xf32>
    %134 = vector.shape_cast %133 : vector<2x6x16xf32> to vector<12x16xf32>
    %135 = arith.truncf %134 : vector<12x16xf32> to vector<12x16xbf16>
    %136 = arith.truncf %21 : vector<16x4xf32> to vector<16x4xbf16>
    %cst_35 = arith.constant dense<0.000000e+00> : vector<12x4xf32>
    %137 = tpu.matmul %135, %136, %cst_35 {dimension_numbers = #tpu.dot_dimension_numbers<[1], [0], [0], [1], [0, 0, 1, 1], [], []>} : vector<12x16xbf16>, vector<16x4xbf16>, vector<12x4xf32> -> vector<12x4xf32>
    %138 = vector.shape_cast %137 : vector<12x4xf32> to vector<2x6x4xf32>
    %cst_36 = arith.constant 9.99999997E-7 : f32
    %139 = vector.broadcast %cst_36 : f32 to vector<2x6x4xf32>
    %140 = arith.addf %138, %139 : vector<2x6x4xf32>
    %141 = math.rsqrt %140 : vector<2x6x4xf32>
    %142 = arith.mulf %132, %141 : vector<2x6x4xf32>
    %cst_37 = arith.constant dense<0xFF800000> : vector<2x6xf32>
    %143 = vector.multi_reduction <maximumf>, %108, %cst_37 [2] : vector<2x6x6xf32> to vector<2x6xf32>
    %144 = vector.shape_cast %143 : vector<2x6xf32> to vector<2x6x1xf32>
    %145 = vector.broadcast %144 : vector<2x6x1xf32> to vector<2x6x6xf32>
    %146 = arith.cmpf oge, %108, %145 : vector<2x6x6xf32>
    %147 = arith.extui %146 : vector<2x6x6xi1> to vector<2x6x6xi32>
    %148 = arith.sitofp %147 : vector<2x6x6xi32> to vector<2x6x6xf32>
    %cst_38 = arith.constant dense<0.000000e+00> : vector<2x6xf32>
    %149 = vector.multi_reduction <add>, %148, %cst_38 [2] : vector<2x6x6xf32> to vector<2x6xf32>
    %150 = vector.shape_cast %149 : vector<2x6xf32> to vector<2x6x1xf32>
    %151 = tpu.reciprocal %150 {approx = true} : vector<2x6x1xf32> -> vector<2x6x1xf32>
    %152 = vector.broadcast %151 : vector<2x6x1xf32> to vector<2x6x6xf32>
    %153 = arith.mulf %148, %152 : vector<2x6x6xf32>
    "tpu.trace_start"() <{level = 10 : i32, message = "btj,bjh->bth"}> : () -> ()
    %cst_39 = arith.constant dense<0.000000e+00> : vector<2x6x16xf32>
    %154 = tpu.matmul %153, %2, %cst_39 {dimension_numbers = #tpu.dot_dimension_numbers<[2], [1], [1], [2], [0, 0, 0, 1, 1, 2], [0], [0]>} : vector<2x6x6xf32>, vector<2x6x16xf32>, vector<2x6x16xf32> -> vector<2x6x16xf32>
    "tpu.trace_stop"() : () -> ()
    %155 = arith.mulf %6, %154 : vector<2x6x16xf32>
    %156 = vector.shape_cast %155 : vector<2x6x16xf32> to vector<12x16xf32>
    %157 = arith.truncf %156 : vector<12x16xf32> to vector<12x16xbf16>
    %158 = arith.truncf %23 : vector<16x4xf32> to vector<16x4xbf16>
    %cst_40 = arith.constant dense<0.000000e+00> : vector<12x4xf32>
    %159 = tpu.matmul %157, %158, %cst_40 {dimension_numbers = #tpu.dot_dimension_numbers<[1], [0], [0], [1], [0, 0, 1, 1], [], []>} : vector<12x16xbf16>, vector<16x4xbf16>, vector<12x4xf32> -> vector<12x4xf32>
    %160 = vector.shape_cast %159 : vector<12x4xf32> to vector<2x6x4xf32>
    %161 = arith.mulf %6, %6 : vector<2x6x16xf32>
    %162 = vector.shape_cast %161 : vector<2x6x16xf32> to vector<12x16xf32>
    %163 = arith.truncf %162 : vector<12x16xf32> to vector<12x16xbf16>
    %164 = arith.truncf %23 : vector<16x4xf32> to vector<16x4xbf16>
    %cst_41 = arith.constant dense<0.000000e+00> : vector<12x4xf32>
    %165 = tpu.matmul %163, %164, %cst_41 {dimension_numbers = #tpu.dot_dimension_numbers<[1], [0], [0], [1], [0, 0, 1, 1], [], []>} : vector<12x16xbf16>, vector<16x4xbf16>, vector<12x4xf32> -> vector<12x4xf32>
    %166 = vector.shape_cast %165 : vector<12x4xf32> to vector<2x6x4xf32>
    %cst_42 = arith.constant 9.99999997E-7 : f32
    %167 = vector.broadcast %cst_42 : f32 to vector<2x6x4xf32>
    %168 = arith.addf %166, %167 : vector<2x6x4xf32>
    %169 = math.rsqrt %168 : vector<2x6x4xf32>
    %170 = arith.mulf %160, %169 : vector<2x6x4xf32>
    %171 = arith.mulf %154, %154 : vector<2x6x16xf32>
    %172 = vector.shape_cast %171 : vector<2x6x16xf32> to vector<12x16xf32>
    %173 = arith.truncf %172 : vector<12x16xf32> to vector<12x16xbf16>
    %174 = arith.truncf %23 : vector<16x4xf32> to vector<16x4xbf16>
    %cst_43 = arith.constant dense<0.000000e+00> : vector<12x4xf32>
    %175 = tpu.matmul %173, %174, %cst_43 {dimension_numbers = #tpu.dot_dimension_numbers<[1], [0], [0], [1], [0, 0, 1, 1], [], []>} : vector<12x16xbf16>, vector<16x4xbf16>, vector<12x4xf32> -> vector<12x4xf32>
    %176 = vector.shape_cast %175 : vector<12x4xf32> to vector<2x6x4xf32>
    %cst_44 = arith.constant 9.99999997E-7 : f32
    %177 = vector.broadcast %cst_44 : f32 to vector<2x6x4xf32>
    %178 = arith.addf %176, %177 : vector<2x6x4xf32>
    %179 = math.rsqrt %178 : vector<2x6x4xf32>
    %180 = arith.mulf %170, %179 : vector<2x6x4xf32>
    %c0_45 = arith.constant 0 : index
    %c0_46 = arith.constant 0 : index
    %c0_47 = arith.constant 0 : index
    %c0_48 = arith.constant 0 : index
    %181 = vector.load %arg3[%c0_45, %c0_46, %c0_47, %c0_48] : memref<1x2x6x16xf32, #tpu.memory_space<vmem>>, vector<1x2x6x16xf32>
    %182 = vector.shape_cast %181 : vector<1x2x6x16xf32> to vector<2x6x16xf32>
    %183 = vector.extract_strided_slice %4 {offsets = [0, 0, 0], sizes = [2, 1, 16], strides = [1, 1, 1]} : vector<2x6x16xf32> to vector<2x1x16xf32>
    %184 = vector.shape_cast %183 : vector<2x1x16xf32> to vector<2x16xf32>
    %185 = vector.extract_strided_slice %0 {offsets = [4, 0, 0], sizes = [1, 4, 16], strides = [1, 1, 1]} : vector<8x4x16xf32> to vector<1x4x16xf32>
    %186 = vector.shape_cast %185 : vector<1x4x16xf32> to vector<4x16xf32>
    %187 = vector.extract_strided_slice %0 {offsets = [5, 0, 0], sizes = [1, 4, 16], strides = [1, 1, 1]} : vector<8x4x16xf32> to vector<1x4x16xf32>
    %188 = vector.shape_cast %187 : vector<1x4x16xf32> to vector<4x16xf32>
    %189 = vector.extract_strided_slice %0 {offsets = [6, 0, 0], sizes = [1, 4, 16], strides = [1, 1, 1]} : vector<8x4x16xf32> to vector<1x4x16xf32>
    %190 = vector.shape_cast %189 : vector<1x4x16xf32> to vector<4x16xf32>
    %191 = vector.extract_strided_slice %0 {offsets = [7, 0, 0], sizes = [1, 4, 16], strides = [1, 1, 1]} : vector<8x4x16xf32> to vector<1x4x16xf32>
    %192 = vector.shape_cast %191 : vector<1x4x16xf32> to vector<4x16xf32>
    %193 = arith.mulf %186, %186 : vector<4x16xf32>
    %194 = tpu.transpose %193, [1, 0] : vector<4x16xf32> -> vector<16x4xf32>
    %195 = arith.mulf %188, %188 : vector<4x16xf32>
    %196 = arith.mulf %190, %190 : vector<4x16xf32>
    %197 = tpu.transpose %196, [1, 0] : vector<4x16xf32> -> vector<16x4xf32>
    %198 = arith.mulf %192, %192 : vector<4x16xf32>
    %199 = tpu.transpose %198, [1, 0] : vector<4x16xf32> -> vector<16x4xf32>
    %200 = vector.shape_cast %184 : vector<2x16xf32> to vector<2x1x16xf32>
    %201 = vector.broadcast %200 : vector<2x1x16xf32> to vector<2x6x16xf32>
    %202 = arith.mulf %182, %201 : vector<2x6x16xf32>
    %203 = vector.shape_cast %202 : vector<2x6x16xf32> to vector<12x16xf32>
    %204 = arith.truncf %203 : vector<12x16xf32> to vector<12x16xbf16>
    %205 = arith.truncf %194 : vector<16x4xf32> to vector<16x4xbf16>
    %cst_49 = arith.constant dense<0.000000e+00> : vector<12x4xf32>
    %206 = tpu.matmul %204, %205, %cst_49 {dimension_numbers = #tpu.dot_dimension_numbers<[1], [0], [0], [1], [0, 0, 1, 1], [], []>} : vector<12x16xbf16>, vector<16x4xbf16>, vector<12x4xf32> -> vector<12x4xf32>
    %207 = vector.shape_cast %206 : vector<12x4xf32> to vector<2x6x4xf32>
    %208 = arith.mulf %182, %182 : vector<2x6x16xf32>
    %209 = vector.shape_cast %208 : vector<2x6x16xf32> to vector<12x16xf32>
    %210 = arith.truncf %209 : vector<12x16xf32> to vector<12x16xbf16>
    %211 = arith.truncf %194 : vector<16x4xf32> to vector<16x4xbf16>
    %cst_50 = arith.constant dense<0.000000e+00> : vector<12x4xf32>
    %212 = tpu.matmul %210, %211, %cst_50 {dimension_numbers = #tpu.dot_dimension_numbers<[1], [0], [0], [1], [0, 0, 1, 1], [], []>} : vector<12x16xbf16>, vector<16x4xbf16>, vector<12x4xf32> -> vector<12x4xf32>
    %213 = vector.shape_cast %212 : vector<12x4xf32> to vector<2x6x4xf32>
    %cst_51 = arith.constant 9.99999997E-7 : f32
    %214 = vector.broadcast %cst_51 : f32 to vector<2x6x4xf32>
    %215 = arith.addf %213, %214 : vector<2x6x4xf32>
    %216 = math.rsqrt %215 : vector<2x6x4xf32>
    %217 = arith.mulf %207, %216 : vector<2x6x4xf32>
    %218 = arith.mulf %184, %184 : vector<2x16xf32>
    %219 = vector.shape_cast %218 : vector<2x16xf32> to vector<2x1x16xf32>
    %220 = vector.shape_cast %219 : vector<2x1x16xf32> to vector<2x16xf32>
    %221 = arith.truncf %220 : vector<2x16xf32> to vector<2x16xbf16>
    %222 = arith.truncf %194 : vector<16x4xf32> to vector<16x4xbf16>
    %cst_52 = arith.constant dense<0.000000e+00> : vector<2x4xf32>
    %223 = tpu.matmul %221, %222, %cst_52 {dimension_numbers = #tpu.dot_dimension_numbers<[1], [0], [0], [1], [0, 0, 1, 1], [], []>} : vector<2x16xbf16>, vector<16x4xbf16>, vector<2x4xf32> -> vector<2x4xf32>
    %224 = vector.shape_cast %223 : vector<2x4xf32> to vector<2x1x4xf32>
    %cst_53 = arith.constant 9.99999997E-7 : f32
    %225 = vector.broadcast %cst_53 : f32 to vector<2x1x4xf32>
    %226 = arith.addf %224, %225 : vector<2x1x4xf32>
    %227 = math.rsqrt %226 : vector<2x1x4xf32>
    %228 = vector.broadcast %227 : vector<2x1x4xf32> to vector<2x6x4xf32>
    %229 = arith.mulf %217, %228 : vector<2x6x4xf32>
    %230 = vector.shape_cast %182 : vector<2x6x16xf32> to vector<2x6x1x16xf32>
    %231 = vector.shape_cast %195 : vector<4x16xf32> to vector<1x1x4x16xf32>
    %232 = vector.broadcast %230 : vector<2x6x1x16xf32> to vector<2x6x4x16xf32>
    %233 = vector.broadcast %231 : vector<1x1x4x16xf32> to vector<2x6x4x16xf32>
    %234 = arith.mulf %232, %233 : vector<2x6x4x16xf32>
    %235 = vector.shape_cast %234 : vector<2x6x4x16xf32> to vector<2x24x16xf32>
    %236 = arith.truncf %235 : vector<2x24x16xf32> to vector<2x24x16xbf16>
    %237 = arith.truncf %4 : vector<2x6x16xf32> to vector<2x6x16xbf16>
    "tpu.trace_start"() <{level = 10 : i32, message = "bxh,bjh->bxj"}> : () -> ()
    %cst_54 = arith.constant dense<0.000000e+00> : vector<2x24x6xf32>
    %238 = tpu.matmul %236, %237, %cst_54 {dimension_numbers = #tpu.dot_dimension_numbers<[2], [2], [1], [1], [0, 0, 0, 1, 1, 1], [0], [0]>} : vector<2x24x16xbf16>, vector<2x6x16xbf16>, vector<2x24x6xf32> -> vector<2x24x6xf32>
    "tpu.trace_stop"() : () -> ()
    %239 = vector.shape_cast %238 : vector<2x24x6xf32> to vector<2x6x4x6xf32>
    %240 = arith.mulf %182, %182 : vector<2x6x16xf32>
    %241 = tpu.transpose %195, [1, 0] : vector<4x16xf32> -> vector<16x4xf32>
    %242 = vector.shape_cast %240 : vector<2x6x16xf32> to vector<12x16xf32>
    %243 = arith.truncf %242 : vector<12x16xf32> to vector<12x16xbf16>
    %244 = arith.truncf %241 : vector<16x4xf32> to vector<16x4xbf16>
    %cst_55 = arith.constant dense<0.000000e+00> : vector<12x4xf32>
    %245 = tpu.matmul %243, %244, %cst_55 {dimension_numbers = #tpu.dot_dimension_numbers<[1], [0], [0], [1], [0, 0, 1, 1], [], []>} : vector<12x16xbf16>, vector<16x4xbf16>, vector<12x4xf32> -> vector<12x4xf32>
    %246 = vector.shape_cast %245 : vector<12x4xf32> to vector<2x6x4xf32>
    %cst_56 = arith.constant 9.99999997E-7 : f32
    %247 = vector.broadcast %cst_56 : f32 to vector<2x6x4xf32>
    %248 = arith.addf %246, %247 : vector<2x6x4xf32>
    %249 = math.rsqrt %248 : vector<2x6x4xf32>
    %250 = arith.mulf %4, %4 : vector<2x6x16xf32>
    %251 = tpu.transpose %195, [1, 0] : vector<4x16xf32> -> vector<16x4xf32>
    %252 = vector.shape_cast %250 : vector<2x6x16xf32> to vector<12x16xf32>
    %253 = arith.truncf %252 : vector<12x16xf32> to vector<12x16xbf16>
    %254 = arith.truncf %251 : vector<16x4xf32> to vector<16x4xbf16>
    %cst_57 = arith.constant dense<0.000000e+00> : vector<12x4xf32>
    %255 = tpu.matmul %253, %254, %cst_57 {dimension_numbers = #tpu.dot_dimension_numbers<[1], [0], [0], [1], [0, 0, 1, 1], [], []>} : vector<12x16xbf16>, vector<16x4xbf16>, vector<12x4xf32> -> vector<12x4xf32>
    %256 = vector.shape_cast %255 : vector<12x4xf32> to vector<2x6x4xf32>
    %cst_58 = arith.constant 9.99999997E-7 : f32
    %257 = vector.broadcast %cst_58 : f32 to vector<2x6x4xf32>
    %258 = arith.addf %256, %257 : vector<2x6x4xf32>
    %259 = math.rsqrt %258 : vector<2x6x4xf32>
    %260 = vector.shape_cast %249 : vector<2x6x4xf32> to vector<2x6x4x1xf32>
    %261 = vector.broadcast %260 : vector<2x6x4x1xf32> to vector<2x6x4x6xf32>
    %262 = arith.mulf %239, %261 : vector<2x6x4x6xf32>
    %263 = tpu.transpose %259, [0, 2, 1] : vector<2x6x4xf32> -> vector<2x4x6xf32>
    %264 = vector.shape_cast %263 : vector<2x4x6xf32> to vector<2x1x4x6xf32>
    %265 = vector.broadcast %264 : vector<2x1x4x6xf32> to vector<2x6x4x6xf32>
    %266 = arith.mulf %262, %265 : vector<2x6x4x6xf32>
    %cst_59 = arith.constant dense<0xFF800000> : vector<2x6x4xf32>
    %267 = vector.multi_reduction <maximumf>, %266, %cst_59 [3] : vector<2x6x4x6xf32> to vector<2x6x4xf32>
    "tpu.trace_start"() <{level = 10 : i32, message = "bth,bjh->btj"}> : () -> ()
    %cst_60 = arith.constant dense<0.000000e+00> : vector<2x6x6xf32>
    %268 = tpu.matmul %182, %4, %cst_60 {dimension_numbers = #tpu.dot_dimension_numbers<[2], [2], [1], [1], [0, 0, 0, 1, 1, 1], [0], [0]>} : vector<2x6x16xf32>, vector<2x6x16xf32>, vector<2x6x6xf32> -> vector<2x6x6xf32>
    "tpu.trace_stop"() : () -> ()
    %269 = arith.mulf %182, %182 : vector<2x6x16xf32>
    %cst_61 = arith.constant dense<0.000000e+00> : vector<2x6xf32>
    %270 = vector.multi_reduction <add>, %269, %cst_61 [2] : vector<2x6x16xf32> to vector<2x6xf32>
    %cst_62 = arith.constant 9.99999997E-7 : f32
    %271 = vector.broadcast %cst_62 : f32 to vector<2x6xf32>
    %272 = arith.addf %270, %271 : vector<2x6xf32>
    %273 = math.rsqrt %272 : vector<2x6xf32>
    %274 = vector.shape_cast %273 : vector<2x6xf32> to vector<2x6x1xf32>
    %275 = vector.broadcast %274 : vector<2x6x1xf32> to vector<2x6x6xf32>
    %276 = arith.mulf %268, %275 : vector<2x6x6xf32>
    %277 = arith.mulf %4, %4 : vector<2x6x16xf32>
    %cst_63 = arith.constant dense<0.000000e+00> : vector<2x6xf32>
    %278 = vector.multi_reduction <add>, %277, %cst_63 [2] : vector<2x6x16xf32> to vector<2x6xf32>
    %cst_64 = arith.constant 9.99999997E-7 : f32
    %279 = vector.broadcast %cst_64 : f32 to vector<2x6xf32>
    %280 = arith.addf %278, %279 : vector<2x6xf32>
    %281 = math.rsqrt %280 : vector<2x6xf32>
    %282 = vector.shape_cast %281 : vector<2x6xf32> to vector<2x1x6xf32>
    %283 = vector.broadcast %282 : vector<2x1x6xf32> to vector<2x6x6xf32>
    %284 = arith.mulf %276, %283 : vector<2x6x6xf32>
    "tpu.trace_start"() <{level = 10 : i32, message = "btj,bjh->bth"}> : () -> ()
    %cst_65 = arith.constant dense<0.000000e+00> : vector<2x6x16xf32>
    %285 = tpu.matmul %284, %4, %cst_65 {dimension_numbers = #tpu.dot_dimension_numbers<[2], [1], [1], [2], [0, 0, 0, 1, 1, 2], [0], [0]>} : vector<2x6x6xf32>, vector<2x6x16xf32>, vector<2x6x16xf32> -> vector<2x6x16xf32>
    "tpu.trace_stop"() : () -> ()
    %cst_66 = arith.constant dense<0.000000e+00> : vector<2x6xf32>
    %286 = vector.multi_reduction <add>, %284, %cst_66 [2] : vector<2x6x6xf32> to vector<2x6xf32>
    %287 = vector.shape_cast %286 : vector<2x6xf32> to vector<2x6x1xf32>
    %cst_67 = arith.constant 9.99999997E-7 : f32
    %288 = vector.broadcast %cst_67 : f32 to vector<2x6x1xf32>
    %289 = arith.addf %287, %288 : vector<2x6x1xf32>
    %290 = tpu.reciprocal %289 {approx = true} : vector<2x6x1xf32> -> vector<2x6x1xf32>
    %291 = vector.broadcast %290 : vector<2x6x1xf32> to vector<2x6x16xf32>
    %292 = arith.mulf %285, %291 : vector<2x6x16xf32>
    %293 = arith.mulf %182, %292 : vector<2x6x16xf32>
    %294 = vector.shape_cast %293 : vector<2x6x16xf32> to vector<12x16xf32>
    %295 = arith.truncf %294 : vector<12x16xf32> to vector<12x16xbf16>
    %296 = arith.truncf %197 : vector<16x4xf32> to vector<16x4xbf16>
    %cst_68 = arith.constant dense<0.000000e+00> : vector<12x4xf32>
    %297 = tpu.matmul %295, %296, %cst_68 {dimension_numbers = #tpu.dot_dimension_numbers<[1], [0], [0], [1], [0, 0, 1, 1], [], []>} : vector<12x16xbf16>, vector<16x4xbf16>, vector<12x4xf32> -> vector<12x4xf32>
    %298 = vector.shape_cast %297 : vector<12x4xf32> to vector<2x6x4xf32>
    %299 = arith.mulf %182, %182 : vector<2x6x16xf32>
    %300 = vector.shape_cast %299 : vector<2x6x16xf32> to vector<12x16xf32>
    %301 = arith.truncf %300 : vector<12x16xf32> to vector<12x16xbf16>
    %302 = arith.truncf %197 : vector<16x4xf32> to vector<16x4xbf16>
    %cst_69 = arith.constant dense<0.000000e+00> : vector<12x4xf32>
    %303 = tpu.matmul %301, %302, %cst_69 {dimension_numbers = #tpu.dot_dimension_numbers<[1], [0], [0], [1], [0, 0, 1, 1], [], []>} : vector<12x16xbf16>, vector<16x4xbf16>, vector<12x4xf32> -> vector<12x4xf32>
    %304 = vector.shape_cast %303 : vector<12x4xf32> to vector<2x6x4xf32>
    %cst_70 = arith.constant 9.99999997E-7 : f32
    %305 = vector.broadcast %cst_70 : f32 to vector<2x6x4xf32>
    %306 = arith.addf %304, %305 : vector<2x6x4xf32>
    %307 = math.rsqrt %306 : vector<2x6x4xf32>
    %308 = arith.mulf %298, %307 : vector<2x6x4xf32>
    %309 = arith.mulf %292, %292 : vector<2x6x16xf32>
    %310 = vector.shape_cast %309 : vector<2x6x16xf32> to vector<12x16xf32>
    %311 = arith.truncf %310 : vector<12x16xf32> to vector<12x16xbf16>
    %312 = arith.truncf %197 : vector<16x4xf32> to vector<16x4xbf16>
    %cst_71 = arith.constant dense<0.000000e+00> : vector<12x4xf32>
    %313 = tpu.matmul %311, %312, %cst_71 {dimension_numbers = #tpu.dot_dimension_numbers<[1], [0], [0], [1], [0, 0, 1, 1], [], []>} : vector<12x16xbf16>, vector<16x4xbf16>, vector<12x4xf32> -> vector<12x4xf32>
    %314 = vector.shape_cast %313 : vector<12x4xf32> to vector<2x6x4xf32>
    %cst_72 = arith.constant 9.99999997E-7 : f32
    %315 = vector.broadcast %cst_72 : f32 to vector<2x6x4xf32>
    %316 = arith.addf %314, %315 : vector<2x6x4xf32>
    %317 = math.rsqrt %316 : vector<2x6x4xf32>
    %318 = arith.mulf %308, %317 : vector<2x6x4xf32>
    %cst_73 = arith.constant dense<0xFF800000> : vector<2x6xf32>
    %319 = vector.multi_reduction <maximumf>, %284, %cst_73 [2] : vector<2x6x6xf32> to vector<2x6xf32>
    %320 = vector.shape_cast %319 : vector<2x6xf32> to vector<2x6x1xf32>
    %321 = vector.broadcast %320 : vector<2x6x1xf32> to vector<2x6x6xf32>
    %322 = arith.cmpf oge, %284, %321 : vector<2x6x6xf32>
    %323 = arith.extui %322 : vector<2x6x6xi1> to vector<2x6x6xi32>
    %324 = arith.sitofp %323 : vector<2x6x6xi32> to vector<2x6x6xf32>
    %cst_74 = arith.constant dense<0.000000e+00> : vector<2x6xf32>
    %325 = vector.multi_reduction <add>, %324, %cst_74 [2] : vector<2x6x6xf32> to vector<2x6xf32>
    %326 = vector.shape_cast %325 : vector<2x6xf32> to vector<2x6x1xf32>
    %327 = tpu.reciprocal %326 {approx = true} : vector<2x6x1xf32> -> vector<2x6x1xf32>
    %328 = vector.broadcast %327 : vector<2x6x1xf32> to vector<2x6x6xf32>
    %329 = arith.mulf %324, %328 : vector<2x6x6xf32>
    "tpu.trace_start"() <{level = 10 : i32, message = "btj,bjh->bth"}> : () -> ()
    %cst_75 = arith.constant dense<0.000000e+00> : vector<2x6x16xf32>
    %330 = tpu.matmul %329, %4, %cst_75 {dimension_numbers = #tpu.dot_dimension_numbers<[2], [1], [1], [2], [0, 0, 0, 1, 1, 2], [0], [0]>} : vector<2x6x6xf32>, vector<2x6x16xf32>, vector<2x6x16xf32> -> vector<2x6x16xf32>
    "tpu.trace_stop"() : () -> ()
    %331 = arith.mulf %182, %330 : vector<2x6x16xf32>
    %332 = vector.shape_cast %331 : vector<2x6x16xf32> to vector<12x16xf32>
    %333 = arith.truncf %332 : vector<12x16xf32> to vector<12x16xbf16>
    %334 = arith.truncf %199 : vector<16x4xf32> to vector<16x4xbf16>
    %cst_76 = arith.constant dense<0.000000e+00> : vector<12x4xf32>
    %335 = tpu.matmul %333, %334, %cst_76 {dimension_numbers = #tpu.dot_dimension_numbers<[1], [0], [0], [1], [0, 0, 1, 1], [], []>} : vector<12x16xbf16>, vector<16x4xbf16>, vector<12x4xf32> -> vector<12x4xf32>
    %336 = vector.shape_cast %335 : vector<12x4xf32> to vector<2x6x4xf32>
    %337 = arith.mulf %182, %182 : vector<2x6x16xf32>
    %338 = vector.shape_cast %337 : vector<2x6x16xf32> to vector<12x16xf32>
    %339 = arith.truncf %338 : vector<12x16xf32> to vector<12x16xbf16>
    %340 = arith.truncf %199 : vector<16x4xf32> to vector<16x4xbf16>
    %cst_77 = arith.constant dense<0.000000e+00> : vector<12x4xf32>
    %341 = tpu.matmul %339, %340, %cst_77 {dimension_numbers = #tpu.dot_dimension_numbers<[1], [0], [0], [1], [0, 0, 1, 1], [], []>} : vector<12x16xbf16>, vector<16x4xbf16>, vector<12x4xf32> -> vector<12x4xf32>
    %342 = vector.shape_cast %341 : vector<12x4xf32> to vector<2x6x4xf32>
    %cst_78 = arith.constant 9.99999997E-7 : f32
    %343 = vector.broadcast %cst_78 : f32 to vector<2x6x4xf32>
    %344 = arith.addf %342, %343 : vector<2x6x4xf32>
    %345 = math.rsqrt %344 : vector<2x6x4xf32>
    %346 = arith.mulf %336, %345 : vector<2x6x4xf32>
    %347 = arith.mulf %330, %330 : vector<2x6x16xf32>
    %348 = vector.shape_cast %347 : vector<2x6x16xf32> to vector<12x16xf32>
    %349 = arith.truncf %348 : vector<12x16xf32> to vector<12x16xbf16>
    %350 = arith.truncf %199 : vector<16x4xf32> to vector<16x4xbf16>
    %cst_79 = arith.constant dense<0.000000e+00> : vector<12x4xf32>
    %351 = tpu.matmul %349, %350, %cst_79 {dimension_numbers = #tpu.dot_dimension_numbers<[1], [0], [0], [1], [0, 0, 1, 1], [], []>} : vector<12x16xbf16>, vector<16x4xbf16>, vector<12x4xf32> -> vector<12x4xf32>
    %352 = vector.shape_cast %351 : vector<12x4xf32> to vector<2x6x4xf32>
    %cst_80 = arith.constant 9.99999997E-7 : f32
    %353 = vector.broadcast %cst_80 : f32 to vector<2x6x4xf32>
    %354 = arith.addf %352, %353 : vector<2x6x4xf32>
    %355 = math.rsqrt %354 : vector<2x6x4xf32>
    %356 = arith.mulf %346, %355 : vector<2x6x4xf32>
    %cst_81 = arith.constant 0.000000e+00 : f32
    %357 = vector.broadcast %cst_81 : f32 to vector<2x6x96xf32>
    %358 = tpu.concatenate %53, %91, %142, %180, %229, %267, %318, %356, %357 in 2 : vector<2x6x4xf32>, vector<2x6x4xf32>, vector<2x6x4xf32>, vector<2x6x4xf32>, vector<2x6x4xf32>, vector<2x6x4xf32>, vector<2x6x4xf32>, vector<2x6x4xf32>, vector<2x6x96xf32> -> vector<2x6x128xf32>
    %c0_82 = arith.constant 0 : index
    %c0_83 = arith.constant 0 : index
    %c0_84 = arith.constant 0 : index
    %c0_85 = arith.constant 0 : index
    %359 = vector.load %arg7[%c0_82, %c0_83, %c0_84, %c0_85] : memref<1x2x6x128xf32, #tpu.memory_space<vmem>>, vector<1x2x6x128xf32>
    %360 = vector.shape_cast %359 : vector<1x2x6x128xf32> to vector<2x6x128xf32>
    %361 = vector.shape_cast %358 : vector<2x6x128xf32> to vector<1x2x6x128xf32>
    tpu.vector_store %arg7[%c0_82, %c0_83, %c0_84, %c0_85], %361 {strides = array<i32>} : memref<1x2x6x128xf32, #tpu.memory_space<vmem>>, vector<1x2x6x128xf32>,
    return
  }
  func.func @transform_0(%arg0: i32, %arg1: i32) -> (i32, i32, i32, i32) {
    %c0_i32 = arith.constant 0 : i32
    %c0_i32_0 = arith.constant 0 : i32
    %c0_i32_1 = arith.constant 0 : i32
    return %arg0, %c0_i32, %arg1, %c0_i32_0 : i32, i32, i32, i32
  }
  func.func @transform_1(%arg0: i32, %arg1: i32) -> (i32, i32, i32, i32) {
    %c0_i32 = arith.constant 0 : i32
    %c0_i32_0 = arith.constant 0 : i32
    %c0_i32_1 = arith.constant 0 : i32
    return %arg0, %c0_i32, %arg1, %c0_i32_0 : i32, i32, i32, i32
  }
  func.func @transform_2(%arg0: i32, %arg1: i32) -> (i32, i32, i32, i32) {
    %c1_i32 = arith.constant 1 : i32
    %0 = arith.subi %c1_i32, %arg0 : i32
    %c0_i32 = arith.constant 0 : i32
    %c0_i32_0 = arith.constant 0 : i32
    %c0_i32_1 = arith.constant 0 : i32
    %c0_i32_2 = arith.constant 0 : i32
    return %0, %c0_i32, %c0_i32_0, %c0_i32_1 : i32, i32, i32, i32
  }
  func.func @transform_3(%arg0: i32, %arg1: i32) -> (i32, i32, i32, i32) {
    %c1_i32 = arith.constant 1 : i32
    %0 = arith.subi %c1_i32, %arg0 : i32
    %c0_i32 = arith.constant 0 : i32
    %c0_i32_0 = arith.constant 0 : i32
    %c0_i32_1 = arith.constant 0 : i32
    %c0_i32_2 = arith.constant 0 : i32
    return %0, %c0_i32, %c0_i32_0, %c0_i32_1 : i32, i32, i32, i32
  }
  func.func @transform_4(%arg0: i32, %arg1: i32) -> (i32, i32, i32) {
    %c0_i32 = arith.constant 0 : i32
    %c0_i32_0 = arith.constant 0 : i32
    %c0_i32_1 = arith.constant 0 : i32
    %c0_i32_2 = arith.constant 0 : i32
    return %c0_i32, %c0_i32_0, %c0_i32_1 : i32, i32, i32
  }
  func.func @transform_5(%arg0: i32, %arg1: i32) -> (i32, i32, i32, i32) {
    %c0_i32 = arith.constant 0 : i32
    %c0_i32_0 = arith.constant 0 : i32
    %c0_i32_1 = arith.constant 0 : i32
    return %arg0, %c0_i32, %arg1, %c0_i32_0 : i32, i32, i32, i32
  }
}

module attributes {stable_mosaic.version = 11 : i64} {
  func.func @agg_pred_kernel(%arg0: i32, %arg1: memref<6x4x128xf32, #tpu.memory_space<vmem>>, %arg2: memref<128x128xbf16, #tpu.memory_space<vmem>>, %arg3: memref<32x128xf32, #tpu.memory_space<vmem>>, %arg4: memref<1x128xf32, #tpu.memory_space<vmem>>, %arg5: memref<64x16xf32, #tpu.memory_space<vmem>>, %arg6: memref<1x16xf32, #tpu.memory_space<vmem>>, %arg7: memref<16x3xf32, #tpu.memory_space<vmem>>, %arg8: memref<1x3xf32, #tpu.memory_space<vmem>>, %arg9: memref<2x3xf32, #tpu.memory_space<vmem>>, %arg10: memref<6x4x128xf32, #tpu.memory_space<vmem>>) attributes {dimension_semantics = [#tpu.dimension_semantics<arbitrary>], iteration_bounds = array<i64: 1>, scalar_prefetch = 0 : i64, scratch_operands = 1 : i64, tpu.core_type = #tpu.core_type<tc>, window_params = [{pipeline_mode = #tpu.pipeline_mode<synchronous>, transform_indices = @transform_0, window_bounds = array<i64: 6, 4, 128>}, {pipeline_mode = #tpu.pipeline_mode<synchronous>, transform_indices = @transform_1, window_bounds = array<i64: 128, 128>}, {pipeline_mode = #tpu.pipeline_mode<synchronous>, transform_indices = @transform_2, window_bounds = array<i64: 32, 128>}, {pipeline_mode = #tpu.pipeline_mode<synchronous>, transform_indices = @transform_3, window_bounds = array<i64: 1, 128>}, {pipeline_mode = #tpu.pipeline_mode<synchronous>, transform_indices = @transform_4, window_bounds = array<i64: 64, 16>}, {pipeline_mode = #tpu.pipeline_mode<synchronous>, transform_indices = @transform_5, window_bounds = array<i64: 1, 16>}, {pipeline_mode = #tpu.pipeline_mode<synchronous>, transform_indices = @transform_6, window_bounds = array<i64: 16, 3>}, {pipeline_mode = #tpu.pipeline_mode<synchronous>, transform_indices = @transform_7, window_bounds = array<i64: 1, 3>}, {pipeline_mode = #tpu.pipeline_mode<synchronous>, transform_indices = @transform_8, window_bounds = array<i64: 2, 3>}]} {
    %c0 = arith.constant 0 : index
    %c0_0 = arith.constant 0 : index
    %c0_1 = arith.constant 0 : index
    %0 = vector.load %arg1[%c0, %c0_0, %c0_1] : memref<6x4x128xf32, #tpu.memory_space<vmem>>, vector<6x4x128xf32>
    %1 = vector.shape_cast %0 : vector<6x4x128xf32> to vector<24x128xf32>
    %2 = arith.truncf %1 : vector<24x128xf32> to vector<24x128xbf16>
    %c0_2 = arith.constant 0 : index
    %c0_3 = arith.constant 0 : index
    %3 = vector.load %arg2[%c0_2, %c0_3] : memref<128x128xbf16, #tpu.memory_space<vmem>>, vector<128x128xbf16>
    %cst = arith.constant dense<0.000000e+00> : vector<24x128xf32>
    %4 = tpu.matmul %2, %3, %cst {dimension_numbers = #tpu.dot_dimension_numbers<[1], [0], [0], [1], [0, 0, 1, 1], [], []>} : vector<24x128xbf16>, vector<128x128xbf16>, vector<24x128xf32> -> vector<24x128xf32>
    %5 = vector.shape_cast %4 : vector<24x128xf32> to vector<6x4x128xf32>
    %c0_4 = arith.constant 0 : index
    %c0_5 = arith.constant 0 : index
    %6 = vector.load %arg4[%c0_4, %c0_5] : memref<1x128xf32, #tpu.memory_space<vmem>>, vector<1x128xf32>
    %7 = vector.shape_cast %6 : vector<1x128xf32> to vector<1x1x128xf32>
    %8 = vector.broadcast %7 : vector<1x1x128xf32> to vector<6x4x128xf32>
    %9 = arith.addf %5, %8 : vector<6x4x128xf32>
    %c0_6 = arith.constant 0 : index
    %c0_7 = arith.constant 0 : index
    %c0_8 = arith.constant 0 : index
    %10 = vector.load %arg10[%c0_6, %c0_7, %c0_8] : memref<6x4x128xf32, #tpu.memory_space<vmem>>, vector<6x4x128xf32>
    tpu.vector_store %arg10[%c0_6, %c0_7, %c0_8], %9 {strides = array<i32>} : memref<6x4x128xf32, #tpu.memory_space<vmem>>, vector<6x4x128xf32>,
    %c0_9 = arith.constant 0 : index
    %c0_10 = arith.constant 0 : index
    %11 = vector.load %arg3[%c0_9, %c0_10] : memref<32x128xf32, #tpu.memory_space<vmem>>, vector<32x128xf32>
    %cst_11 = arith.constant 0.000000e+00 : f32
    %12 = vector.broadcast %cst_11 : f32 to vector<4x16xf32>
    %c0_i32 = arith.constant 0 : i32
    %13 = tpu.concatenate %12, %12 in 1 : vector<4x16xf32>, vector<4x16xf32> -> vector<4x32xf32>
    %cst_12 = arith.constant dense<0.000000e+00> : vector<4x128xf32>
    %14 = tpu.matmul %13, %11, %cst_12 {dimension_numbers = #tpu.dot_dimension_numbers<[1], [0], [0], [1], [0, 0, 1, 1], [], []>} : vector<4x32xf32>, vector<32x128xf32>, vector<4x128xf32> -> vector<4x128xf32>
    %15 = arith.index_cast %c0_i32 : i32 to index
    %c0_13 = arith.constant 0 : index
    %c0_14 = arith.constant 0 : index
    %16 = vector.load %arg10[%15, %c0_13, %c0_14] : memref<6x4x128xf32, #tpu.memory_space<vmem>>, vector<1x4x128xf32>
    %17 = vector.shape_cast %16 : vector<1x4x128xf32> to vector<4x128xf32>
    %18 = vector.extract_strided_slice %17 {offsets = [0, 0], sizes = [4, 64], strides = [1, 1]} : vector<4x128xf32> to vector<4x64xf32>
    %19 = vector.extract_strided_slice %14 {offsets = [0, 0], sizes = [4, 64], strides = [1, 1]} : vector<4x128xf32> to vector<4x64xf32>
    %20 = arith.addf %18, %19 : vector<4x64xf32>
    %c5_i32 = arith.constant 5 : i32
    %21 = arith.subi %c5_i32, %c0_i32 : i32
    %22 = arith.index_cast %21 : i32 to index
    %c0_15 = arith.constant 0 : index
    %c0_16 = arith.constant 0 : index
    %23 = vector.load %arg10[%22, %c0_15, %c0_16] : memref<6x4x128xf32, #tpu.memory_space<vmem>>, vector<1x4x128xf32>
    %24 = vector.shape_cast %23 : vector<1x4x128xf32> to vector<4x128xf32>
    %25 = vector.extract_strided_slice %24 {offsets = [0, 64], sizes = [4, 64], strides = [1, 1]} : vector<4x128xf32> to vector<4x64xf32>
    %26 = vector.extract_strided_slice %14 {offsets = [0, 64], sizes = [4, 64], strides = [1, 1]} : vector<4x128xf32> to vector<4x64xf32>
    %27 = arith.addf %25, %26 : vector<4x64xf32>
    %28 = vector.extract_strided_slice %20 {offsets = [0, 0], sizes = [4, 16], strides = [1, 1]} : vector<4x64xf32> to vector<4x16xf32>
    %29 = arith.negf %28 : vector<4x16xf32>
    %30 = math.exp %29 : vector<4x16xf32>
    %cst_17 = arith.constant 1.000000e+00 : f32
    %31 = vector.broadcast %cst_17 : f32 to vector<4x16xf32>
    %32 = arith.addf %31, %30 : vector<4x16xf32>
    %33 = arith.divf %31, %32 : vector<4x16xf32>
    %34 = vector.extract_strided_slice %20 {offsets = [0, 16], sizes = [4, 16], strides = [1, 1]} : vector<4x64xf32> to vector<4x16xf32>
    %35 = arith.negf %34 : vector<4x16xf32>
    %36 = math.exp %35 : vector<4x16xf32>
    %cst_18 = arith.constant 1.000000e+00 : f32
    %37 = vector.broadcast %cst_18 : f32 to vector<4x16xf32>
    %38 = arith.addf %37, %36 : vector<4x16xf32>
    %39 = arith.divf %37, %38 : vector<4x16xf32>
    %40 = vector.extract_strided_slice %20 {offsets = [0, 32], sizes = [4, 16], strides = [1, 1]} : vector<4x64xf32> to vector<4x16xf32>
    %41 = math.tanh %40 : vector<4x16xf32>
    %42 = vector.extract_strided_slice %20 {offsets = [0, 48], sizes = [4, 16], strides = [1, 1]} : vector<4x64xf32> to vector<4x16xf32>
    %43 = arith.negf %42 : vector<4x16xf32>
    %44 = math.exp %43 : vector<4x16xf32>
    %cst_19 = arith.constant 1.000000e+00 : f32
    %45 = vector.broadcast %cst_19 : f32 to vector<4x16xf32>
    %46 = arith.addf %45, %44 : vector<4x16xf32>
    %47 = arith.divf %45, %46 : vector<4x16xf32>
    %48 = arith.mulf %39, %12 : vector<4x16xf32>
    %49 = arith.mulf %33, %41 : vector<4x16xf32>
    %50 = arith.addf %48, %49 : vector<4x16xf32>
    %51 = math.tanh %50 : vector<4x16xf32>
    %52 = arith.mulf %47, %51 : vector<4x16xf32>
    %53 = vector.extract_strided_slice %27 {offsets = [0, 0], sizes = [4, 16], strides = [1, 1]} : vector<4x64xf32> to vector<4x16xf32>
    %54 = arith.negf %53 : vector<4x16xf32>
    %55 = math.exp %54 : vector<4x16xf32>
    %cst_20 = arith.constant 1.000000e+00 : f32
    %56 = vector.broadcast %cst_20 : f32 to vector<4x16xf32>
    %57 = arith.addf %56, %55 : vector<4x16xf32>
    %58 = arith.divf %56, %57 : vector<4x16xf32>
    %59 = vector.extract_strided_slice %27 {offsets = [0, 16], sizes = [4, 16], strides = [1, 1]} : vector<4x64xf32> to vector<4x16xf32>
    %60 = arith.negf %59 : vector<4x16xf32>
    %61 = math.exp %60 : vector<4x16xf32>
    %cst_21 = arith.constant 1.000000e+00 : f32
    %62 = vector.broadcast %cst_21 : f32 to vector<4x16xf32>
    %63 = arith.addf %62, %61 : vector<4x16xf32>
    %64 = arith.divf %62, %63 : vector<4x16xf32>
    %65 = vector.extract_strided_slice %27 {offsets = [0, 32], sizes = [4, 16], strides = [1, 1]} : vector<4x64xf32> to vector<4x16xf32>
    %66 = math.tanh %65 : vector<4x16xf32>
    %67 = vector.extract_strided_slice %27 {offsets = [0, 48], sizes = [4, 16], strides = [1, 1]} : vector<4x64xf32> to vector<4x16xf32>
    %68 = arith.negf %67 : vector<4x16xf32>
    %69 = math.exp %68 : vector<4x16xf32>
    %cst_22 = arith.constant 1.000000e+00 : f32
    %70 = vector.broadcast %cst_22 : f32 to vector<4x16xf32>
    %71 = arith.addf %70, %69 : vector<4x16xf32>
    %72 = arith.divf %70, %71 : vector<4x16xf32>
    %73 = arith.mulf %64, %12 : vector<4x16xf32>
    %74 = arith.mulf %58, %66 : vector<4x16xf32>
    %75 = arith.addf %73, %74 : vector<4x16xf32>
    %76 = math.tanh %75 : vector<4x16xf32>
    %77 = arith.mulf %72, %76 : vector<4x16xf32>
    %c1_i32 = arith.constant 1 : i32
    %78 = tpu.concatenate %52, %77 in 1 : vector<4x16xf32>, vector<4x16xf32> -> vector<4x32xf32>
    %cst_23 = arith.constant dense<0.000000e+00> : vector<4x128xf32>
    %79 = tpu.matmul %78, %11, %cst_23 {dimension_numbers = #tpu.dot_dimension_numbers<[1], [0], [0], [1], [0, 0, 1, 1], [], []>} : vector<4x32xf32>, vector<32x128xf32>, vector<4x128xf32> -> vector<4x128xf32>
    %80 = arith.index_cast %c1_i32 : i32 to index
    %c0_24 = arith.constant 0 : index
    %c0_25 = arith.constant 0 : index
    %81 = vector.load %arg10[%80, %c0_24, %c0_25] : memref<6x4x128xf32, #tpu.memory_space<vmem>>, vector<1x4x128xf32>
    %82 = vector.shape_cast %81 : vector<1x4x128xf32> to vector<4x128xf32>
    %83 = vector.extract_strided_slice %82 {offsets = [0, 0], sizes = [4, 64], strides = [1, 1]} : vector<4x128xf32> to vector<4x64xf32>
    %84 = vector.extract_strided_slice %79 {offsets = [0, 0], sizes = [4, 64], strides = [1, 1]} : vector<4x128xf32> to vector<4x64xf32>
    %85 = arith.addf %83, %84 : vector<4x64xf32>
    %c5_i32_26 = arith.constant 5 : i32
    %86 = arith.subi %c5_i32_26, %c1_i32 : i32
    %87 = arith.index_cast %86 : i32 to index
    %c0_27 = arith.constant 0 : index
    %c0_28 = arith.constant 0 : index
    %88 = vector.load %arg10[%87, %c0_27, %c0_28] : memref<6x4x128xf32, #tpu.memory_space<vmem>>, vector<1x4x128xf32>
    %89 = vector.shape_cast %88 : vector<1x4x128xf32> to vector<4x128xf32>
    %90 = vector.extract_strided_slice %89 {offsets = [0, 64], sizes = [4, 64], strides = [1, 1]} : vector<4x128xf32> to vector<4x64xf32>
    %91 = vector.extract_strided_slice %79 {offsets = [0, 64], sizes = [4, 64], strides = [1, 1]} : vector<4x128xf32> to vector<4x64xf32>
    %92 = arith.addf %90, %91 : vector<4x64xf32>
    %93 = vector.extract_strided_slice %85 {offsets = [0, 0], sizes = [4, 16], strides = [1, 1]} : vector<4x64xf32> to vector<4x16xf32>
    %94 = arith.negf %93 : vector<4x16xf32>
    %95 = math.exp %94 : vector<4x16xf32>
    %cst_29 = arith.constant 1.000000e+00 : f32
    %96 = vector.broadcast %cst_29 : f32 to vector<4x16xf32>
    %97 = arith.addf %96, %95 : vector<4x16xf32>
    %98 = arith.divf %96, %97 : vector<4x16xf32>
    %99 = vector.extract_strided_slice %85 {offsets = [0, 16], sizes = [4, 16], strides = [1, 1]} : vector<4x64xf32> to vector<4x16xf32>
    %100 = arith.negf %99 : vector<4x16xf32>
    %101 = math.exp %100 : vector<4x16xf32>
    %cst_30 = arith.constant 1.000000e+00 : f32
    %102 = vector.broadcast %cst_30 : f32 to vector<4x16xf32>
    %103 = arith.addf %102, %101 : vector<4x16xf32>
    %104 = arith.divf %102, %103 : vector<4x16xf32>
    %105 = vector.extract_strided_slice %85 {offsets = [0, 32], sizes = [4, 16], strides = [1, 1]} : vector<4x64xf32> to vector<4x16xf32>
    %106 = math.tanh %105 : vector<4x16xf32>
    %107 = vector.extract_strided_slice %85 {offsets = [0, 48], sizes = [4, 16], strides = [1, 1]} : vector<4x64xf32> to vector<4x16xf32>
    %108 = arith.negf %107 : vector<4x16xf32>
    %109 = math.exp %108 : vector<4x16xf32>
    %cst_31 = arith.constant 1.000000e+00 : f32
    %110 = vector.broadcast %cst_31 : f32 to vector<4x16xf32>
    %111 = arith.addf %110, %109 : vector<4x16xf32>
    %112 = arith.divf %110, %111 : vector<4x16xf32>
    %113 = arith.mulf %104, %50 : vector<4x16xf32>
    %114 = arith.mulf %98, %106 : vector<4x16xf32>
    %115 = arith.addf %113, %114 : vector<4x16xf32>
    %116 = math.tanh %115 : vector<4x16xf32>
    %117 = arith.mulf %112, %116 : vector<4x16xf32>
    %118 = vector.extract_strided_slice %92 {offsets = [0, 0], sizes = [4, 16], strides = [1, 1]} : vector<4x64xf32> to vector<4x16xf32>
    %119 = arith.negf %118 : vector<4x16xf32>
    %120 = math.exp %119 : vector<4x16xf32>
    %cst_32 = arith.constant 1.000000e+00 : f32
    %121 = vector.broadcast %cst_32 : f32 to vector<4x16xf32>
    %122 = arith.addf %121, %120 : vector<4x16xf32>
    %123 = arith.divf %121, %122 : vector<4x16xf32>
    %124 = vector.extract_strided_slice %92 {offsets = [0, 16], sizes = [4, 16], strides = [1, 1]} : vector<4x64xf32> to vector<4x16xf32>
    %125 = arith.negf %124 : vector<4x16xf32>
    %126 = math.exp %125 : vector<4x16xf32>
    %cst_33 = arith.constant 1.000000e+00 : f32
    %127 = vector.broadcast %cst_33 : f32 to vector<4x16xf32>
    %128 = arith.addf %127, %126 : vector<4x16xf32>
    %129 = arith.divf %127, %128 : vector<4x16xf32>
    %130 = vector.extract_strided_slice %92 {offsets = [0, 32], sizes = [4, 16], strides = [1, 1]} : vector<4x64xf32> to vector<4x16xf32>
    %131 = math.tanh %130 : vector<4x16xf32>
    %132 = vector.extract_strided_slice %92 {offsets = [0, 48], sizes = [4, 16], strides = [1, 1]} : vector<4x64xf32> to vector<4x16xf32>
    %133 = arith.negf %132 : vector<4x16xf32>
    %134 = math.exp %133 : vector<4x16xf32>
    %cst_34 = arith.constant 1.000000e+00 : f32
    %135 = vector.broadcast %cst_34 : f32 to vector<4x16xf32>
    %136 = arith.addf %135, %134 : vector<4x16xf32>
    %137 = arith.divf %135, %136 : vector<4x16xf32>
    %138 = arith.mulf %129, %75 : vector<4x16xf32>
    %139 = arith.mulf %123, %131 : vector<4x16xf32>
    %140 = arith.addf %138, %139 : vector<4x16xf32>
    %141 = math.tanh %140 : vector<4x16xf32>
    %142 = arith.mulf %137, %141 : vector<4x16xf32>
    %c2_i32 = arith.constant 2 : i32
    %143 = tpu.concatenate %117, %142 in 1 : vector<4x16xf32>, vector<4x16xf32> -> vector<4x32xf32>
    %cst_35 = arith.constant dense<0.000000e+00> : vector<4x128xf32>
    %144 = tpu.matmul %143, %11, %cst_35 {dimension_numbers = #tpu.dot_dimension_numbers<[1], [0], [0], [1], [0, 0, 1, 1], [], []>} : vector<4x32xf32>, vector<32x128xf32>, vector<4x128xf32> -> vector<4x128xf32>
    %145 = arith.index_cast %c2_i32 : i32 to index
    %c0_36 = arith.constant 0 : index
    %c0_37 = arith.constant 0 : index
    %146 = vector.load %arg10[%145, %c0_36, %c0_37] : memref<6x4x128xf32, #tpu.memory_space<vmem>>, vector<1x4x128xf32>
    %147 = vector.shape_cast %146 : vector<1x4x128xf32> to vector<4x128xf32>
    %148 = vector.extract_strided_slice %147 {offsets = [0, 0], sizes = [4, 64], strides = [1, 1]} : vector<4x128xf32> to vector<4x64xf32>
    %149 = vector.extract_strided_slice %144 {offsets = [0, 0], sizes = [4, 64], strides = [1, 1]} : vector<4x128xf32> to vector<4x64xf32>
    %150 = arith.addf %148, %149 : vector<4x64xf32>
    %c5_i32_38 = arith.constant 5 : i32
    %151 = arith.subi %c5_i32_38, %c2_i32 : i32
    %152 = arith.index_cast %151 : i32 to index
    %c0_39 = arith.constant 0 : index
    %c0_40 = arith.constant 0 : index
    %153 = vector.load %arg10[%152, %c0_39, %c0_40] : memref<6x4x128xf32, #tpu.memory_space<vmem>>, vector<1x4x128xf32>
    %154 = vector.shape_cast %153 : vector<1x4x128xf32> to vector<4x128xf32>
    %155 = vector.extract_strided_slice %154 {offsets = [0, 64], sizes = [4, 64], strides = [1, 1]} : vector<4x128xf32> to vector<4x64xf32>
    %156 = vector.extract_strided_slice %144 {offsets = [0, 64], sizes = [4, 64], strides = [1, 1]} : vector<4x128xf32> to vector<4x64xf32>
    %157 = arith.addf %155, %156 : vector<4x64xf32>
    %158 = vector.extract_strided_slice %150 {offsets = [0, 0], sizes = [4, 16], strides = [1, 1]} : vector<4x64xf32> to vector<4x16xf32>
    %159 = arith.negf %158 : vector<4x16xf32>
    %160 = math.exp %159 : vector<4x16xf32>
    %cst_41 = arith.constant 1.000000e+00 : f32
    %161 = vector.broadcast %cst_41 : f32 to vector<4x16xf32>
    %162 = arith.addf %161, %160 : vector<4x16xf32>
    %163 = arith.divf %161, %162 : vector<4x16xf32>
    %164 = vector.extract_strided_slice %150 {offsets = [0, 16], sizes = [4, 16], strides = [1, 1]} : vector<4x64xf32> to vector<4x16xf32>
    %165 = arith.negf %164 : vector<4x16xf32>
    %166 = math.exp %165 : vector<4x16xf32>
    %cst_42 = arith.constant 1.000000e+00 : f32
    %167 = vector.broadcast %cst_42 : f32 to vector<4x16xf32>
    %168 = arith.addf %167, %166 : vector<4x16xf32>
    %169 = arith.divf %167, %168 : vector<4x16xf32>
    %170 = vector.extract_strided_slice %150 {offsets = [0, 32], sizes = [4, 16], strides = [1, 1]} : vector<4x64xf32> to vector<4x16xf32>
    %171 = math.tanh %170 : vector<4x16xf32>
    %172 = vector.extract_strided_slice %150 {offsets = [0, 48], sizes = [4, 16], strides = [1, 1]} : vector<4x64xf32> to vector<4x16xf32>
    %173 = arith.negf %172 : vector<4x16xf32>
    %174 = math.exp %173 : vector<4x16xf32>
    %cst_43 = arith.constant 1.000000e+00 : f32
    %175 = vector.broadcast %cst_43 : f32 to vector<4x16xf32>
    %176 = arith.addf %175, %174 : vector<4x16xf32>
    %177 = arith.divf %175, %176 : vector<4x16xf32>
    %178 = arith.mulf %169, %115 : vector<4x16xf32>
    %179 = arith.mulf %163, %171 : vector<4x16xf32>
    %180 = arith.addf %178, %179 : vector<4x16xf32>
    %181 = math.tanh %180 : vector<4x16xf32>
    %182 = arith.mulf %177, %181 : vector<4x16xf32>
    %183 = vector.extract_strided_slice %157 {offsets = [0, 0], sizes = [4, 16], strides = [1, 1]} : vector<4x64xf32> to vector<4x16xf32>
    %184 = arith.negf %183 : vector<4x16xf32>
    %185 = math.exp %184 : vector<4x16xf32>
    %cst_44 = arith.constant 1.000000e+00 : f32
    %186 = vector.broadcast %cst_44 : f32 to vector<4x16xf32>
    %187 = arith.addf %186, %185 : vector<4x16xf32>
    %188 = arith.divf %186, %187 : vector<4x16xf32>
    %189 = vector.extract_strided_slice %157 {offsets = [0, 16], sizes = [4, 16], strides = [1, 1]} : vector<4x64xf32> to vector<4x16xf32>
    %190 = arith.negf %189 : vector<4x16xf32>
    %191 = math.exp %190 : vector<4x16xf32>
    %cst_45 = arith.constant 1.000000e+00 : f32
    %192 = vector.broadcast %cst_45 : f32 to vector<4x16xf32>
    %193 = arith.addf %192, %191 : vector<4x16xf32>
    %194 = arith.divf %192, %193 : vector<4x16xf32>
    %195 = vector.extract_strided_slice %157 {offsets = [0, 32], sizes = [4, 16], strides = [1, 1]} : vector<4x64xf32> to vector<4x16xf32>
    %196 = math.tanh %195 : vector<4x16xf32>
    %197 = vector.extract_strided_slice %157 {offsets = [0, 48], sizes = [4, 16], strides = [1, 1]} : vector<4x64xf32> to vector<4x16xf32>
    %198 = arith.negf %197 : vector<4x16xf32>
    %199 = math.exp %198 : vector<4x16xf32>
    %cst_46 = arith.constant 1.000000e+00 : f32
    %200 = vector.broadcast %cst_46 : f32 to vector<4x16xf32>
    %201 = arith.addf %200, %199 : vector<4x16xf32>
    %202 = arith.divf %200, %201 : vector<4x16xf32>
    %203 = arith.mulf %194, %140 : vector<4x16xf32>
    %204 = arith.mulf %188, %196 : vector<4x16xf32>
    %205 = arith.addf %203, %204 : vector<4x16xf32>
    %206 = math.tanh %205 : vector<4x16xf32>
    %207 = arith.mulf %202, %206 : vector<4x16xf32>
    %c3_i32 = arith.constant 3 : i32
    %208 = tpu.concatenate %182, %207 in 1 : vector<4x16xf32>, vector<4x16xf32> -> vector<4x32xf32>
    %cst_47 = arith.constant dense<0.000000e+00> : vector<4x128xf32>
    %209 = tpu.matmul %208, %11, %cst_47 {dimension_numbers = #tpu.dot_dimension_numbers<[1], [0], [0], [1], [0, 0, 1, 1], [], []>} : vector<4x32xf32>, vector<32x128xf32>, vector<4x128xf32> -> vector<4x128xf32>
    %210 = arith.index_cast %c3_i32 : i32 to index
    %c0_48 = arith.constant 0 : index
    %c0_49 = arith.constant 0 : index
    %211 = vector.load %arg10[%210, %c0_48, %c0_49] : memref<6x4x128xf32, #tpu.memory_space<vmem>>, vector<1x4x128xf32>
    %212 = vector.shape_cast %211 : vector<1x4x128xf32> to vector<4x128xf32>
    %213 = vector.extract_strided_slice %212 {offsets = [0, 0], sizes = [4, 64], strides = [1, 1]} : vector<4x128xf32> to vector<4x64xf32>
    %214 = vector.extract_strided_slice %209 {offsets = [0, 0], sizes = [4, 64], strides = [1, 1]} : vector<4x128xf32> to vector<4x64xf32>
    %215 = arith.addf %213, %214 : vector<4x64xf32>
    %c5_i32_50 = arith.constant 5 : i32
    %216 = arith.subi %c5_i32_50, %c3_i32 : i32
    %217 = arith.index_cast %216 : i32 to index
    %c0_51 = arith.constant 0 : index
    %c0_52 = arith.constant 0 : index
    %218 = vector.load %arg10[%217, %c0_51, %c0_52] : memref<6x4x128xf32, #tpu.memory_space<vmem>>, vector<1x4x128xf32>
    %219 = vector.shape_cast %218 : vector<1x4x128xf32> to vector<4x128xf32>
    %220 = vector.extract_strided_slice %219 {offsets = [0, 64], sizes = [4, 64], strides = [1, 1]} : vector<4x128xf32> to vector<4x64xf32>
    %221 = vector.extract_strided_slice %209 {offsets = [0, 64], sizes = [4, 64], strides = [1, 1]} : vector<4x128xf32> to vector<4x64xf32>
    %222 = arith.addf %220, %221 : vector<4x64xf32>
    %223 = vector.extract_strided_slice %215 {offsets = [0, 0], sizes = [4, 16], strides = [1, 1]} : vector<4x64xf32> to vector<4x16xf32>
    %224 = arith.negf %223 : vector<4x16xf32>
    %225 = math.exp %224 : vector<4x16xf32>
    %cst_53 = arith.constant 1.000000e+00 : f32
    %226 = vector.broadcast %cst_53 : f32 to vector<4x16xf32>
    %227 = arith.addf %226, %225 : vector<4x16xf32>
    %228 = arith.divf %226, %227 : vector<4x16xf32>
    %229 = vector.extract_strided_slice %215 {offsets = [0, 16], sizes = [4, 16], strides = [1, 1]} : vector<4x64xf32> to vector<4x16xf32>
    %230 = arith.negf %229 : vector<4x16xf32>
    %231 = math.exp %230 : vector<4x16xf32>
    %cst_54 = arith.constant 1.000000e+00 : f32
    %232 = vector.broadcast %cst_54 : f32 to vector<4x16xf32>
    %233 = arith.addf %232, %231 : vector<4x16xf32>
    %234 = arith.divf %232, %233 : vector<4x16xf32>
    %235 = vector.extract_strided_slice %215 {offsets = [0, 32], sizes = [4, 16], strides = [1, 1]} : vector<4x64xf32> to vector<4x16xf32>
    %236 = math.tanh %235 : vector<4x16xf32>
    %237 = vector.extract_strided_slice %215 {offsets = [0, 48], sizes = [4, 16], strides = [1, 1]} : vector<4x64xf32> to vector<4x16xf32>
    %238 = arith.negf %237 : vector<4x16xf32>
    %239 = math.exp %238 : vector<4x16xf32>
    %cst_55 = arith.constant 1.000000e+00 : f32
    %240 = vector.broadcast %cst_55 : f32 to vector<4x16xf32>
    %241 = arith.addf %240, %239 : vector<4x16xf32>
    %242 = arith.divf %240, %241 : vector<4x16xf32>
    %243 = arith.mulf %234, %180 : vector<4x16xf32>
    %244 = arith.mulf %228, %236 : vector<4x16xf32>
    %245 = arith.addf %243, %244 : vector<4x16xf32>
    %246 = math.tanh %245 : vector<4x16xf32>
    %247 = arith.mulf %242, %246 : vector<4x16xf32>
    %248 = vector.extract_strided_slice %222 {offsets = [0, 0], sizes = [4, 16], strides = [1, 1]} : vector<4x64xf32> to vector<4x16xf32>
    %249 = arith.negf %248 : vector<4x16xf32>
    %250 = math.exp %249 : vector<4x16xf32>
    %cst_56 = arith.constant 1.000000e+00 : f32
    %251 = vector.broadcast %cst_56 : f32 to vector<4x16xf32>
    %252 = arith.addf %251, %250 : vector<4x16xf32>
    %253 = arith.divf %251, %252 : vector<4x16xf32>
    %254 = vector.extract_strided_slice %222 {offsets = [0, 16], sizes = [4, 16], strides = [1, 1]} : vector<4x64xf32> to vector<4x16xf32>
    %255 = arith.negf %254 : vector<4x16xf32>
    %256 = math.exp %255 : vector<4x16xf32>
    %cst_57 = arith.constant 1.000000e+00 : f32
    %257 = vector.broadcast %cst_57 : f32 to vector<4x16xf32>
    %258 = arith.addf %257, %256 : vector<4x16xf32>
    %259 = arith.divf %257, %258 : vector<4x16xf32>
    %260 = vector.extract_strided_slice %222 {offsets = [0, 32], sizes = [4, 16], strides = [1, 1]} : vector<4x64xf32> to vector<4x16xf32>
    %261 = math.tanh %260 : vector<4x16xf32>
    %262 = vector.extract_strided_slice %222 {offsets = [0, 48], sizes = [4, 16], strides = [1, 1]} : vector<4x64xf32> to vector<4x16xf32>
    %263 = arith.negf %262 : vector<4x16xf32>
    %264 = math.exp %263 : vector<4x16xf32>
    %cst_58 = arith.constant 1.000000e+00 : f32
    %265 = vector.broadcast %cst_58 : f32 to vector<4x16xf32>
    %266 = arith.addf %265, %264 : vector<4x16xf32>
    %267 = arith.divf %265, %266 : vector<4x16xf32>
    %268 = arith.mulf %259, %205 : vector<4x16xf32>
    %269 = arith.mulf %253, %261 : vector<4x16xf32>
    %270 = arith.addf %268, %269 : vector<4x16xf32>
    %271 = math.tanh %270 : vector<4x16xf32>
    %272 = arith.mulf %267, %271 : vector<4x16xf32>
    %c4_i32 = arith.constant 4 : i32
    %273 = tpu.concatenate %247, %272 in 1 : vector<4x16xf32>, vector<4x16xf32> -> vector<4x32xf32>
    %cst_59 = arith.constant dense<0.000000e+00> : vector<4x128xf32>
    %274 = tpu.matmul %273, %11, %cst_59 {dimension_numbers = #tpu.dot_dimension_numbers<[1], [0], [0], [1], [0, 0, 1, 1], [], []>} : vector<4x32xf32>, vector<32x128xf32>, vector<4x128xf32> -> vector<4x128xf32>
    %275 = arith.index_cast %c4_i32 : i32 to index
    %c0_60 = arith.constant 0 : index
    %c0_61 = arith.constant 0 : index
    %276 = vector.load %arg10[%275, %c0_60, %c0_61] : memref<6x4x128xf32, #tpu.memory_space<vmem>>, vector<1x4x128xf32>
    %277 = vector.shape_cast %276 : vector<1x4x128xf32> to vector<4x128xf32>
    %278 = vector.extract_strided_slice %277 {offsets = [0, 0], sizes = [4, 64], strides = [1, 1]} : vector<4x128xf32> to vector<4x64xf32>
    %279 = vector.extract_strided_slice %274 {offsets = [0, 0], sizes = [4, 64], strides = [1, 1]} : vector<4x128xf32> to vector<4x64xf32>
    %280 = arith.addf %278, %279 : vector<4x64xf32>
    %c5_i32_62 = arith.constant 5 : i32
    %281 = arith.subi %c5_i32_62, %c4_i32 : i32
    %282 = arith.index_cast %281 : i32 to index
    %c0_63 = arith.constant 0 : index
    %c0_64 = arith.constant 0 : index
    %283 = vector.load %arg10[%282, %c0_63, %c0_64] : memref<6x4x128xf32, #tpu.memory_space<vmem>>, vector<1x4x128xf32>
    %284 = vector.shape_cast %283 : vector<1x4x128xf32> to vector<4x128xf32>
    %285 = vector.extract_strided_slice %284 {offsets = [0, 64], sizes = [4, 64], strides = [1, 1]} : vector<4x128xf32> to vector<4x64xf32>
    %286 = vector.extract_strided_slice %274 {offsets = [0, 64], sizes = [4, 64], strides = [1, 1]} : vector<4x128xf32> to vector<4x64xf32>
    %287 = arith.addf %285, %286 : vector<4x64xf32>
    %288 = vector.extract_strided_slice %280 {offsets = [0, 0], sizes = [4, 16], strides = [1, 1]} : vector<4x64xf32> to vector<4x16xf32>
    %289 = arith.negf %288 : vector<4x16xf32>
    %290 = math.exp %289 : vector<4x16xf32>
    %cst_65 = arith.constant 1.000000e+00 : f32
    %291 = vector.broadcast %cst_65 : f32 to vector<4x16xf32>
    %292 = arith.addf %291, %290 : vector<4x16xf32>
    %293 = arith.divf %291, %292 : vector<4x16xf32>
    %294 = vector.extract_strided_slice %280 {offsets = [0, 16], sizes = [4, 16], strides = [1, 1]} : vector<4x64xf32> to vector<4x16xf32>
    %295 = arith.negf %294 : vector<4x16xf32>
    %296 = math.exp %295 : vector<4x16xf32>
    %cst_66 = arith.constant 1.000000e+00 : f32
    %297 = vector.broadcast %cst_66 : f32 to vector<4x16xf32>
    %298 = arith.addf %297, %296 : vector<4x16xf32>
    %299 = arith.divf %297, %298 : vector<4x16xf32>
    %300 = vector.extract_strided_slice %280 {offsets = [0, 32], sizes = [4, 16], strides = [1, 1]} : vector<4x64xf32> to vector<4x16xf32>
    %301 = math.tanh %300 : vector<4x16xf32>
    %302 = vector.extract_strided_slice %280 {offsets = [0, 48], sizes = [4, 16], strides = [1, 1]} : vector<4x64xf32> to vector<4x16xf32>
    %303 = arith.negf %302 : vector<4x16xf32>
    %304 = math.exp %303 : vector<4x16xf32>
    %cst_67 = arith.constant 1.000000e+00 : f32
    %305 = vector.broadcast %cst_67 : f32 to vector<4x16xf32>
    %306 = arith.addf %305, %304 : vector<4x16xf32>
    %307 = arith.divf %305, %306 : vector<4x16xf32>
    %308 = arith.mulf %299, %245 : vector<4x16xf32>
    %309 = arith.mulf %293, %301 : vector<4x16xf32>
    %310 = arith.addf %308, %309 : vector<4x16xf32>
    %311 = math.tanh %310 : vector<4x16xf32>
    %312 = arith.mulf %307, %311 : vector<4x16xf32>
    %313 = vector.extract_strided_slice %287 {offsets = [0, 0], sizes = [4, 16], strides = [1, 1]} : vector<4x64xf32> to vector<4x16xf32>
    %314 = arith.negf %313 : vector<4x16xf32>
    %315 = math.exp %314 : vector<4x16xf32>
    %cst_68 = arith.constant 1.000000e+00 : f32
    %316 = vector.broadcast %cst_68 : f32 to vector<4x16xf32>
    %317 = arith.addf %316, %315 : vector<4x16xf32>
    %318 = arith.divf %316, %317 : vector<4x16xf32>
    %319 = vector.extract_strided_slice %287 {offsets = [0, 16], sizes = [4, 16], strides = [1, 1]} : vector<4x64xf32> to vector<4x16xf32>
    %320 = arith.negf %319 : vector<4x16xf32>
    %321 = math.exp %320 : vector<4x16xf32>
    %cst_69 = arith.constant 1.000000e+00 : f32
    %322 = vector.broadcast %cst_69 : f32 to vector<4x16xf32>
    %323 = arith.addf %322, %321 : vector<4x16xf32>
    %324 = arith.divf %322, %323 : vector<4x16xf32>
    %325 = vector.extract_strided_slice %287 {offsets = [0, 32], sizes = [4, 16], strides = [1, 1]} : vector<4x64xf32> to vector<4x16xf32>
    %326 = math.tanh %325 : vector<4x16xf32>
    %327 = vector.extract_strided_slice %287 {offsets = [0, 48], sizes = [4, 16], strides = [1, 1]} : vector<4x64xf32> to vector<4x16xf32>
    %328 = arith.negf %327 : vector<4x16xf32>
    %329 = math.exp %328 : vector<4x16xf32>
    %cst_70 = arith.constant 1.000000e+00 : f32
    %330 = vector.broadcast %cst_70 : f32 to vector<4x16xf32>
    %331 = arith.addf %330, %329 : vector<4x16xf32>
    %332 = arith.divf %330, %331 : vector<4x16xf32>
    %333 = arith.mulf %324, %270 : vector<4x16xf32>
    %334 = arith.mulf %318, %326 : vector<4x16xf32>
    %335 = arith.addf %333, %334 : vector<4x16xf32>
    %336 = math.tanh %335 : vector<4x16xf32>
    %337 = arith.mulf %332, %336 : vector<4x16xf32>
    %c5_i32_71 = arith.constant 5 : i32
    %338 = tpu.concatenate %312, %337 in 1 : vector<4x16xf32>, vector<4x16xf32> -> vector<4x32xf32>
    %cst_72 = arith.constant dense<0.000000e+00> : vector<4x128xf32>
    %339 = tpu.matmul %338, %11, %cst_72 {dimension_numbers = #tpu.dot_dimension_numbers<[1], [0], [0], [1], [0, 0, 1, 1], [], []>} : vector<4x32xf32>, vector<32x128xf32>, vector<4x128xf32> -> vector<4x128xf32>
    %340 = arith.index_cast %c5_i32_71 : i32 to index
    %c0_73 = arith.constant 0 : index
    %c0_74 = arith.constant 0 : index
    %341 = vector.load %arg10[%340, %c0_73, %c0_74] : memref<6x4x128xf32, #tpu.memory_space<vmem>>, vector<1x4x128xf32>
    %342 = vector.shape_cast %341 : vector<1x4x128xf32> to vector<4x128xf32>
    %343 = vector.extract_strided_slice %342 {offsets = [0, 0], sizes = [4, 64], strides = [1, 1]} : vector<4x128xf32> to vector<4x64xf32>
    %344 = vector.extract_strided_slice %339 {offsets = [0, 0], sizes = [4, 64], strides = [1, 1]} : vector<4x128xf32> to vector<4x64xf32>
    %345 = arith.addf %343, %344 : vector<4x64xf32>
    %c5_i32_75 = arith.constant 5 : i32
    %346 = arith.subi %c5_i32_75, %c5_i32_71 : i32
    %347 = arith.index_cast %346 : i32 to index
    %c0_76 = arith.constant 0 : index
    %c0_77 = arith.constant 0 : index
    %348 = vector.load %arg10[%347, %c0_76, %c0_77] : memref<6x4x128xf32, #tpu.memory_space<vmem>>, vector<1x4x128xf32>
    %349 = vector.shape_cast %348 : vector<1x4x128xf32> to vector<4x128xf32>
    %350 = vector.extract_strided_slice %349 {offsets = [0, 64], sizes = [4, 64], strides = [1, 1]} : vector<4x128xf32> to vector<4x64xf32>
    %351 = vector.extract_strided_slice %339 {offsets = [0, 64], sizes = [4, 64], strides = [1, 1]} : vector<4x128xf32> to vector<4x64xf32>
    %352 = arith.addf %350, %351 : vector<4x64xf32>
    %353 = vector.extract_strided_slice %345 {offsets = [0, 0], sizes = [4, 16], strides = [1, 1]} : vector<4x64xf32> to vector<4x16xf32>
    %354 = arith.negf %353 : vector<4x16xf32>
    %355 = math.exp %354 : vector<4x16xf32>
    %cst_78 = arith.constant 1.000000e+00 : f32
    %356 = vector.broadcast %cst_78 : f32 to vector<4x16xf32>
    %357 = arith.addf %356, %355 : vector<4x16xf32>
    %358 = arith.divf %356, %357 : vector<4x16xf32>
    %359 = vector.extract_strided_slice %345 {offsets = [0, 16], sizes = [4, 16], strides = [1, 1]} : vector<4x64xf32> to vector<4x16xf32>
    %360 = arith.negf %359 : vector<4x16xf32>
    %361 = math.exp %360 : vector<4x16xf32>
    %cst_79 = arith.constant 1.000000e+00 : f32
    %362 = vector.broadcast %cst_79 : f32 to vector<4x16xf32>
    %363 = arith.addf %362, %361 : vector<4x16xf32>
    %364 = arith.divf %362, %363 : vector<4x16xf32>
    %365 = vector.extract_strided_slice %345 {offsets = [0, 32], sizes = [4, 16], strides = [1, 1]} : vector<4x64xf32> to vector<4x16xf32>
    %366 = math.tanh %365 : vector<4x16xf32>
    %367 = vector.extract_strided_slice %345 {offsets = [0, 48], sizes = [4, 16], strides = [1, 1]} : vector<4x64xf32> to vector<4x16xf32>
    %368 = arith.negf %367 : vector<4x16xf32>
    %369 = math.exp %368 : vector<4x16xf32>
    %cst_80 = arith.constant 1.000000e+00 : f32
    %370 = vector.broadcast %cst_80 : f32 to vector<4x16xf32>
    %371 = arith.addf %370, %369 : vector<4x16xf32>
    %372 = arith.divf %370, %371 : vector<4x16xf32>
    %373 = arith.mulf %364, %310 : vector<4x16xf32>
    %374 = arith.mulf %358, %366 : vector<4x16xf32>
    %375 = arith.addf %373, %374 : vector<4x16xf32>
    %376 = math.tanh %375 : vector<4x16xf32>
    %377 = arith.mulf %372, %376 : vector<4x16xf32>
    %378 = vector.extract_strided_slice %352 {offsets = [0, 0], sizes = [4, 16], strides = [1, 1]} : vector<4x64xf32> to vector<4x16xf32>
    %379 = arith.negf %378 : vector<4x16xf32>
    %380 = math.exp %379 : vector<4x16xf32>
    %cst_81 = arith.constant 1.000000e+00 : f32
    %381 = vector.broadcast %cst_81 : f32 to vector<4x16xf32>
    %382 = arith.addf %381, %380 : vector<4x16xf32>
    %383 = arith.divf %381, %382 : vector<4x16xf32>
    %384 = vector.extract_strided_slice %352 {offsets = [0, 16], sizes = [4, 16], strides = [1, 1]} : vector<4x64xf32> to vector<4x16xf32>
    %385 = arith.negf %384 : vector<4x16xf32>
    %386 = math.exp %385 : vector<4x16xf32>
    %cst_82 = arith.constant 1.000000e+00 : f32
    %387 = vector.broadcast %cst_82 : f32 to vector<4x16xf32>
    %388 = arith.addf %387, %386 : vector<4x16xf32>
    %389 = arith.divf %387, %388 : vector<4x16xf32>
    %390 = vector.extract_strided_slice %352 {offsets = [0, 32], sizes = [4, 16], strides = [1, 1]} : vector<4x64xf32> to vector<4x16xf32>
    %391 = math.tanh %390 : vector<4x16xf32>
    %392 = vector.extract_strided_slice %352 {offsets = [0, 48], sizes = [4, 16], strides = [1, 1]} : vector<4x64xf32> to vector<4x16xf32>
    %393 = arith.negf %392 : vector<4x16xf32>
    %394 = math.exp %393 : vector<4x16xf32>
    %cst_83 = arith.constant 1.000000e+00 : f32
    %395 = vector.broadcast %cst_83 : f32 to vector<4x16xf32>
    %396 = arith.addf %395, %394 : vector<4x16xf32>
    %397 = arith.divf %395, %396 : vector<4x16xf32>
    %398 = arith.mulf %389, %335 : vector<4x16xf32>
    %399 = arith.mulf %383, %391 : vector<4x16xf32>
    %400 = arith.addf %398, %399 : vector<4x16xf32>
    %401 = math.tanh %400 : vector<4x16xf32>
    %402 = arith.mulf %397, %401 : vector<4x16xf32>
    %c6_i32 = arith.constant 6 : i32
    %403 = vector.extract_strided_slice %377 {offsets = [0, 0], sizes = [2, 16], strides = [1, 1]} : vector<4x16xf32> to vector<2x16xf32>
    %404 = vector.extract_strided_slice %402 {offsets = [0, 0], sizes = [2, 16], strides = [1, 1]} : vector<4x16xf32> to vector<2x16xf32>
    %405 = vector.extract_strided_slice %377 {offsets = [2, 0], sizes = [2, 16], strides = [1, 1]} : vector<4x16xf32> to vector<2x16xf32>
    %406 = vector.extract_strided_slice %402 {offsets = [2, 0], sizes = [2, 16], strides = [1, 1]} : vector<4x16xf32> to vector<2x16xf32>
    %407 = tpu.concatenate %403, %404, %405, %406 in 1 : vector<2x16xf32>, vector<2x16xf32>, vector<2x16xf32>, vector<2x16xf32> -> vector<2x64xf32>
    %c0_84 = arith.constant 0 : index
    %c0_85 = arith.constant 0 : index
    %408 = vector.load %arg5[%c0_84, %c0_85] : memref<64x16xf32, #tpu.memory_space<vmem>>, vector<64x16xf32>
    %cst_86 = arith.constant dense<0.000000e+00> : vector<2x16xf32>
    %409 = tpu.matmul %407, %408, %cst_86 {dimension_numbers = #tpu.dot_dimension_numbers<[1], [0], [0], [1], [0, 0, 1, 1], [], []>} : vector<2x64xf32>, vector<64x16xf32>, vector<2x16xf32> -> vector<2x16xf32>
    %c0_87 = arith.constant 0 : index
    %c0_88 = arith.constant 0 : index
    %410 = vector.load %arg6[%c0_87, %c0_88] : memref<1x16xf32, #tpu.memory_space<vmem>>, vector<1x16xf32>
    %411 = vector.broadcast %410 : vector<1x16xf32> to vector<2x16xf32>
    %412 = arith.addf %409, %411 : vector<2x16xf32>
    %413 = math.tanh %412 : vector<2x16xf32>
    %c0_89 = arith.constant 0 : index
    %c0_90 = arith.constant 0 : index
    %414 = vector.load %arg7[%c0_89, %c0_90] : memref<16x3xf32, #tpu.memory_space<vmem>>, vector<16x3xf32>
    %cst_91 = arith.constant dense<0.000000e+00> : vector<2x3xf32>
    %415 = tpu.matmul %413, %414, %cst_91 {dimension_numbers = #tpu.dot_dimension_numbers<[1], [0], [0], [1], [0, 0, 1, 1], [], []>} : vector<2x16xf32>, vector<16x3xf32>, vector<2x3xf32> -> vector<2x3xf32>
    %c0_92 = arith.constant 0 : index
    %c0_93 = arith.constant 0 : index
    %416 = vector.load %arg8[%c0_92, %c0_93] : memref<1x3xf32, #tpu.memory_space<vmem>>, vector<1x3xf32>
    %417 = vector.broadcast %416 : vector<1x3xf32> to vector<2x3xf32>
    %418 = arith.addf %415, %417 : vector<2x3xf32>
    %c0_94 = arith.constant 0 : index
    %c0_95 = arith.constant 0 : index
    %419 = vector.load %arg9[%c0_94, %c0_95] : memref<2x3xf32, #tpu.memory_space<vmem>>, vector<2x3xf32>
    tpu.vector_store %arg9[%c0_94, %c0_95], %418 {strides = array<i32>} : memref<2x3xf32, #tpu.memory_space<vmem>>, vector<2x3xf32>,
    return
  }
  func.func @transform_0(%arg0: i32) -> (i32, i32, i32) {
    %c0_i32 = arith.constant 0 : i32
    %c0_i32_0 = arith.constant 0 : i32
    %c0_i32_1 = arith.constant 0 : i32
    %c0_i32_2 = arith.constant 0 : i32
    return %c0_i32, %c0_i32_0, %c0_i32_1 : i32, i32, i32
  }
  func.func @transform_1(%arg0: i32) -> (i32, i32) {
    %c0_i32 = arith.constant 0 : i32
    %c0_i32_0 = arith.constant 0 : i32
    %c0_i32_1 = arith.constant 0 : i32
    return %c0_i32, %c0_i32_0 : i32, i32
  }
  func.func @transform_2(%arg0: i32) -> (i32, i32) {
    %c0_i32 = arith.constant 0 : i32
    %c0_i32_0 = arith.constant 0 : i32
    %c0_i32_1 = arith.constant 0 : i32
    return %c0_i32, %c0_i32_0 : i32, i32
  }
  func.func @transform_3(%arg0: i32) -> (i32, i32) {
    %c0_i32 = arith.constant 0 : i32
    %c0_i32_0 = arith.constant 0 : i32
    %c0_i32_1 = arith.constant 0 : i32
    return %c0_i32, %c0_i32_0 : i32, i32
  }
  func.func @transform_4(%arg0: i32) -> (i32, i32) {
    %c0_i32 = arith.constant 0 : i32
    %c0_i32_0 = arith.constant 0 : i32
    %c0_i32_1 = arith.constant 0 : i32
    return %c0_i32, %c0_i32_0 : i32, i32
  }
  func.func @transform_5(%arg0: i32) -> (i32, i32) {
    %c0_i32 = arith.constant 0 : i32
    %c0_i32_0 = arith.constant 0 : i32
    %c0_i32_1 = arith.constant 0 : i32
    return %c0_i32, %c0_i32_0 : i32, i32
  }
  func.func @transform_6(%arg0: i32) -> (i32, i32) {
    %c0_i32 = arith.constant 0 : i32
    %c0_i32_0 = arith.constant 0 : i32
    %c0_i32_1 = arith.constant 0 : i32
    return %c0_i32, %c0_i32_0 : i32, i32
  }
  func.func @transform_7(%arg0: i32) -> (i32, i32) {
    %c0_i32 = arith.constant 0 : i32
    %c0_i32_0 = arith.constant 0 : i32
    %c0_i32_1 = arith.constant 0 : i32
    return %c0_i32, %c0_i32_0 : i32, i32
  }
  func.func @transform_8(%arg0: i32) -> (i32, i32) {
    %c0_i32 = arith.constant 0 : i32
    %c0_i32_0 = arith.constant 0 : i32
    %c0_i32_1 = arith.constant 0 : i32
    return %c0_i32, %c0_i32_0 : i32, i32
  }
}

</mosaic_0001>

<llo_original>
// kernel: bimpm_forward.4
$region0: #{bimpm_forward.4}
  #allocation0 [shape = 'u32[]', space=smem, size = 0x4, offset = 0x4, fixed_abs, tag = 'smem constant byte address 0x4 - core index']
  #allocation1 [shape = 'u32[144,128]{1,0:T(1,128)}', space=vmem, size = 0x12000, scoped, tag = 'internal scratch']
  #allocation2 [shape = 'f32[5,12,32]{2,1,0:T(8,128)}', space=vmem, size = 0xa000, scoped, tag = 'scratch operand']
  %s0 = inlined_call_operand.vmem [shape: f32[5,12,8], index: 0, kind: input, shape index: {}]
  %s1 = inlined_call_operand.vmem [shape: bf16[8,32], index: 1, kind: input, shape index: {}]
  %s2 = inlined_call_operand.vmem [shape: f32[8,32], index: 2, kind: input, shape index: {}]
  %s3 = inlined_call_operand.vmem [shape: f32[12,8], index: 3, kind: output, shape index: {}]
  %s4 = sld [smem:[#allocation0]]
  $region22: #{bimpm_forward.4} parent=0
    _
  %s6 = ssub.s32 1, %s4
  %s7 = scalar_select 0, %s6, %s4
  // Predicated region
  $region2: #{bimpm_forward.4} parent=0 // pred_check
    _
  $region3: #{bimpm_forward.4} parent=0 // pred_check_branch
    %9 = sbr.rel (0) target = $region5
  $region4: #{bimpm_forward.4} parent=0 // pred_region
    _
  $region5: #{bimpm_forward.4} parent=0 // pred_fallthru
    _
  // Predicated region
  $region6: #{bimpm_forward.4} parent=0 // pred_check
    _
  $region7: #{bimpm_forward.4} parent=0 // pred_check_branch
    %11 = sbr.rel (0) target = $region9
  $region8: #{bimpm_forward.4} parent=0 // pred_region
    _
  $region9: #{bimpm_forward.4} parent=0 // pred_fallthru
    _
  // Predicated region
  $region10: #{bimpm_forward.4} parent=0 // pred_check
    _
  $region11: #{bimpm_forward.4} parent=0 // pred_check_branch
    %13 = sbr.rel (0) target = $region13
  $region12: #{bimpm_forward.4} parent=0 // pred_region
    _
  $region13: #{bimpm_forward.4} parent=0 // pred_fallthru
    _
  %v15 = vld [vmem:[%s0] sm:$0xff]
  %v16 = vld [vmem:[%s0 + $0x8] sm:$0xf]
  %v17 = vld [vmem:[%s0 + $0x10] sm:$0xff]
  %v18 = vld [vmem:[%s0 + $0x18] sm:$0xf]
  %v19 = vld [vmem:[%s0 + $0x20] sm:$0xff]
  %v20 = vld [vmem:[%s0 + $0x28] sm:$0xf]
  %v21 = vld [vmem:[%s0 + $0x30] sm:$0xff]
  %v22 = vld [vmem:[%s0 + $0x38] sm:$0xf]
  %v23 = vld [vmem:[%s0 + $0x40] sm:$0xff]
  %v24 = vld [vmem:[%s0 + $0x48] sm:$0xf]
  %v34 = vcombine.high %v15, %v15
  %v35 = vcombine.high %v17, %v17
  %v36 = vcombine.high %v19, %v19
  %v37 = vcombine.high %v21, %v21
  %v38 = vcombine.high %v23, %v23
  %v39 = vcombine.low %v15, %v34
  %v40 = vcombine.low %v16, %v17
  %v41 = vcombine.low %v35, %v18
  %v42 = vcombine.low %v19, %v36
  %v43 = vcombine.low %v20, %v21
  %v44 = vcombine.low %v37, %v22
  %v45 = vcombine.low %v23, %v38
  %v53 = vpack.c.bf16 %v40, %v39
  %v54 = vpack.c.bf16 %v42, %v41
  %v55 = vpack.c.bf16 %v44, %v43
  %v56 = vpack.c.bf16 %v24, %v45
  %v57 = vld [vmem:[%s1] sm:$0xf]
  %vm58 = vcmask 64512
  %v60 = vsel %vm58, %v53, 0
  %v63 = vsel %vm58, %v54, 0
  %v66 = vsel %vm58, %v55, 0
  %v69 = vsel %vm58, %v56, 0
  %vm71 = vcmask 1043456
  %v73 = vsel %vm71, %v57, 0
  %75 = vmatprep.subr.bf16.mxu0 0
  %76 = vmatpush1.bf16.msra.mxu0 %v73
  %77 = vmatprep.subr.bf16.mxu0 0
  %78 = vmatpush1.bf16.msra.mxu0 0
  %79 = vmatprep.subr.bf16.mxu0 0
  %80 = vmatpush1.bf16.msra.mxu0 0
  %81 = vmatprep.subr.bf16.mxu0 0
  %82 = vmatpush1.bf16.msra.mxu0 0
  %83 = vmatprep.subr.bf16.mxu0 0
  %84 = vmatpush1.bf16.msra.mxu0 0
  %85 = vmatprep.subr.bf16.mxu0 0
  %86 = vmatpush1.bf16.msra.mxu0 0
  %87 = vmatprep.subr.bf16.mxu0 0
  %88 = vmatpush1.bf16.msra.mxu0 0
  %89 = vmatprep.subr.bf16.mxu0 0
  %90 = vmatpush1.bf16.msra.mxu0 0
  %91 = vmatprep.subr.bf16.mxu0 0
  %92 = vmatpush1.bf16.msra.mxu0 0
  %93 = vmatprep.subr.bf16.mxu0 0
  %94 = vmatpush1.bf16.msra.mxu0 0
  %95 = vmatprep.subr.bf16.mxu0 0
  %96 = vmatpush1.bf16.msra.mxu0 0
  %97 = vmatprep.subr.bf16.mxu0 0
  %98 = vmatpush1.bf16.msra.mxu0 0
  %99 = vmatprep.subr.bf16.mxu0 0
  %100 = vmatpush1.bf16.msra.mxu0 0
  %101 = vmatprep.subr.bf16.mxu0 0
  %102 = vmatpush1.bf16.msra.mxu0 0
  %103 = vmatprep.subr.bf16.mxu0 0
  %104 = vmatpush1.bf16.msra.mxu0 0
  %105 = vmatprep.subr.bf16.mxu0 0
  %106 = vmatpush1.bf16.msra.mxu0 0
  %107 = vmatprep.mubr.bf16.mxu0 0
  %108 = vmatmul.mubr.bf16.gmra.mrb[0].mxu0 %v60
  %v109 = vpop.f32.mrb[0].mxu0
  %v110 = vadd.f32 0.0, %v109
  %v111 = vpop.f32.mrb[0].mxu0
  %v112 = vpop.f32.mrb[0].mxu0
  %v113 = vadd.f32 0.0, %v112
  %v114 = vpop.f32.mrb[0].mxu0
  %115 = vmatprep.mubr.bf16.mxu0 0
  %116 = vmatmul.mubr.bf16.gmra.mrb[0].mxu0 %v63
  %v117 = vpop.f32.mrb[0].mxu0
  %v118 = vadd.f32 0.0, %v117
  %v119 = vpop.f32.mrb[0].mxu0
  %v120 = vpop.f32.mrb[0].mxu0
  %v121 = vadd.f32 0.0, %v120
  %v122 = vpop.f32.mrb[0].mxu0
  %123 = vmatprep.mubr.bf16.mxu0 0
  %124 = vmatmul.mubr.bf16.gmra.mrb[0].mxu0 %v66
  %v125 = vpop.f32.mrb[0].mxu0
  %v126 = vadd.f32 0.0, %v125
  %v127 = vpop.f32.mrb[0].mxu0
  %v128 = vpop.f32.mrb[0].mxu0
  %v129 = vadd.f32 0.0, %v128
  %v130 = vpop.f32.mrb[0].mxu0
  %131 = vmatprep.mubr.bf16.mxu0 0
  %132 = vmatmul.mubr.bf16.gmra.mrb[0].mxu0 %v69
  %v133 = vpop.f32.mrb[0].mxu0
  %v134 = vadd.f32 0.0, %v133
  %v135 = vpop.f32.mrb[0].mxu0
  %v136 = vpop.f32.mrb[0].mxu0
  %v137 = vadd.f32 0.0, %v136
  %v138 = vpop.f32.mrb[0].mxu0
  %139 = vdwg.mxu0
  %v147 = vcombine.high %v110, %v110
  %v148 = vcombine.high %v113, %v113
  %v149 = vcombine.high %v118, %v118
  %v150 = vcombine.high %v121, %v121
  %v151 = vcombine.high %v126, %v126
  %v152 = vcombine.high %v129, %v129
  %v153 = vcombine.high %v134, %v134
  %v156 = vcombine.low %v110, %v147
  %v157 = vcombine.low %v148, %v118
  %v158 = vcombine.low %v121, %v150
  %v159 = vcombine.low %v151, %v129
  %v160 = vcombine.low %v134, %v153
  %vm166 = vcmask 261120
  %167 = vst.msk [vmem:[#allocation2] sm:$0xff] %vm166, %v156
  %vm168 = vcmask 257024
  %169 = vst.msk [vmem:[#allocation2 + $0x8] sm:$0xf] %vm168, %v113
  %170 = vst.msk [vmem:[#allocation2 + $0x10] sm:$0xff] %vm166, %v157
  %171 = vst.msk [vmem:[#allocation2 + $0x18] sm:$0xf] %vm168, %v149
  %172 = vst.msk [vmem:[#allocation2 + $0x20] sm:$0xff] %vm166, %v158
  %173 = vst.msk [vmem:[#allocation2 + $0x28] sm:$0xf] %vm168, %v126
  %174 = vst.msk [vmem:[#allocation2 + $0x30] sm:$0xff] %vm166, %v159
  %175 = vst.msk [vmem:[#allocation2 + $0x38] sm:$0xf] %vm168, %v152
  %176 = vst.msk [vmem:[#allocation2 + $0x40] sm:$0xff] %vm166, %v160
  %177 = vst.msk [vmem:[#allocation2 + $0x48] sm:$0xf] %vm168, %v137
  %v178 = vld [vmem:[%s2] sm:$0xff]
  %v179 = vld [vmem:[#allocation2] sm:$0xff]
  %v180 = vld [vmem:[#allocation2 + $0x8] sm:$0xf]
  %v182 = vsel %vm58, 0.0, 0
  %184 = vmatprep.subr.mxu0 0.0
  %185 = vmatpush1.msra.mxu0 %v178
  %186 = vmatprep.subr.mxu0 0.0
  %187 = vmatpush1.msra.mxu0 0.0
  %188 = vmatprep.subr.mxu0 0.0
  %189 = vmatpush1.msra.mxu0 0.0
  %190 = vmatprep.subr.mxu0 0.0
  %191 = vmatpush1.msra.mxu0 0.0
  %192 = vmatprep.subr.mxu0 0.0
  %193 = vmatpush1.msra.mxu0 0.0
  %194 = vmatprep.subr.mxu0 0.0
  %195 = vmatpush1.msra.mxu0 0.0
  %196 = vmatprep.subr.mxu0 0.0
  %197 = vmatpush1.msra.mxu0 0.0
  %198 = vmatprep.subr.mxu0 0.0
  %199 = vmatpush1.msra.mxu0 0.0
  %200 = vmatprep.subr.mxu0 0.0
  %201 = vmatpush1.msra.mxu0 0.0
  %202 = vmatprep.subr.mxu0 0.0
  %203 = vmatpush1.msra.mxu0 0.0
  %204 = vmatprep.subr.mxu0 0.0
  %205 = vmatpush1.msra.mxu0 0.0
  %206 = vmatprep.subr.mxu0 0.0
  %207 = vmatpush1.msra.mxu0 0.0
  %208 = vmatprep.subr.mxu0 0.0
  %209 = vmatpush1.msra.mxu0 0.0
  %210 = vmatprep.subr.mxu0 0.0
  %211 = vmatpush1.msra.mxu0 0.0
  %212 = vmatprep.subr.mxu0 0.0
  %213 = vmatpush1.msra.mxu0 0.0
  %214 = vmatprep.subr.mxu0 0.0
  %215 = vmatpush1.msra.mxu0 0.0
  %216 = vmatprep.subr.mxu0 0.0
  %217 = vmatpush1.msra.mxu0 0.0
  %218 = vmatprep.subr.mxu0 0.0
  %219 = vmatpush1.msra.mxu0 0.0
  %220 = vmatprep.subr.mxu0 0.0
  %221 = vmatpush1.msra.mxu0 0.0
  %222 = vmatprep.subr.mxu0 0.0
  %223 = vmatpush1.msra.mxu0 0.0
  %224 = vmatprep.subr.mxu0 0.0
  %225 = vmatpush1.msra.mxu0 0.0
  %226 = vmatprep.subr.mxu0 0.0
  %227 = vmatpush1.msra.mxu0 0.0
  %228 = vmatprep.subr.mxu0 0.0
  %229 = vmatpush1.msra.mxu0 0.0
  %230 = vmatprep.subr.mxu0 0.0
  %231 = vmatpush1.msra.mxu0 0.0
  %232 = vmatprep.subr.mxu0 0.0
  %233 = vmatpush1.msra.mxu0 0.0
  %234 = vmatprep.subr.mxu0 0.0
  %235 = vmatpush1.msra.mxu0 0.0
  %236 = vmatprep.subr.mxu0 0.0
  %237 = vmatpush1.msra.mxu0 0.0
  %238 = vmatprep.subr.mxu0 0.0
  %239 = vmatpush1.msra.mxu0 0.0
  %240 = vmatprep.subr.mxu0 0.0
  %241 = vmatpush1.msra.mxu0 0.0
  %242 = vmatprep.subr.mxu0 0.0
  %243 = vmatpush1.msra.mxu0 0.0
  %244 = vmatprep.subr.mxu0 0.0
  %245 = vmatpush1.msra.mxu0 0.0
  %246 = vmatprep.subr.mxu0 0.0
  %247 = vmatpush1.msra.mxu0 0.0
  %248 = vmatprep.mubr.f32.mxu0 0.0
  %249 = vmatmul.mubr.f32.gmra.mrb[0].mxu0 %v182
  %v250 = vpop.f32.mrb[0].mxu0
  %v251 = vadd.f32 0.0, %v250
  %v252 = vpop.f32.mrb[0].mxu0
  %253 = vmatprep.mubr.f32.mxu0 0.0
  %254 = vmatmul.mubr.f32.gmra.mrb[0].mxu0 %v182
  %v255 = vpop.f32.mrb[0].mxu0
  %v256 = vadd.f32 0.0, %v255
  %v257 = vpop.f32.mrb[0].mxu0
  %258 = vdwg.mxu0
  %v259 = vadd.f32 %v179, %v251
  %v260 = vadd.f32 %v180, %v256
  %v261 = vxor.u32 %v259, 2147483648
  %v262 = vxor.u32 %v260, 2147483648
  %v263 = vmul.f32 %v261, 1.442695
  %v264 = vpow.pop %v263
  %v265 = vmul.f32 %v262, 1.442695
  %v266 = vpow.pop %v265
  %v267 = vadd.f32 %v264, 1.0
  %v268 = vadd.f32 %v266, 1.0
  %v269 = vrcp.pop %v267
  %v270 = vmul.f32 1.0, %v269
  %v271 = vrcp.pop %v268
  %v272 = vmul.f32 1.0, %v271
  %v273 = vtanh.pop %v259
  %v274 = vtanh.pop %v260
  %v275 = vmul.f32 %v270, 0.0
  %v276 = vmul.f32 %v272, 0.0
  %279 = vrot.lane.b32.xlu0 %v273, 112
  %v280 = vpop.permute.xlu0 %279
  %281 = vrot.lane.b32.xlu0 %v274, 112
  %v282 = vpop.permute.xlu0 %281
  %v285 = vmul.f32 %v270, %v280
  %v286 = vmul.f32 %v272, %v282
  %289 = vrot.lane.b32.xlu0 %v285, 8
  %v290 = vpop.permute.xlu0 %289
  %291 = vrot.lane.b32.xlu0 %v286, 8
  %v292 = vpop.permute.xlu0 %291
  %v295 = vadd.f32 %v275, %v290
  %v296 = vadd.f32 %v276, %v292
  %v297 = vtanh.pop %v295
  %v298 = vtanh.pop %v296
  %301 = vrot.lane.b32.xlu0 %v297, 16
  %v302 = vpop.permute.xlu0 %301
  %303 = vrot.lane.b32.xlu0 %v298, 16
  %v304 = vpop.permute.xlu0 %303
  %v307 = vmul.f32 %v270, %v302
  %v308 = vmul.f32 %v272, %v304
  %s309 = scalar_lea.vmem [#allocation2], 16
  %v310 = vld [vmem:[%s309] sm:$0xff]
  %v311 = vld [vmem:[%s309 + $0x8] sm:$0xf]
  %314 = vrot.lane.b32.xlu0 %v307, 104
  %v315 = vpop.permute.xlu0 %314
  %316 = vrot.lane.b32.xlu0 %v308, 104
  %v317 = vpop.permute.xlu0 %316
  %v318 = vsel %vm58, %v315, 0
  %v320 = vsel %vm58, %v317, 0
  %322 = vmatprep.subr.mxu0 0.0
  %323 = vmatpush1.msra.mxu0 %v178
  %324 = vmatprep.subr.mxu0 0.0
  %325 = vmatpush1.msra.mxu0 0.0
  %326 = vmatprep.subr.mxu0 0.0
  %327 = vmatpush1.msra.mxu0 0.0
  %328 = vmatprep.subr.mxu0 0.0
  %329 = vmatpush1.msra.mxu0 0.0
  %330 = vmatprep.subr.mxu0 0.0
  %331 = vmatpush1.msra.mxu0 0.0
  %332 = vmatprep.subr.mxu0 0.0
  %333 = vmatpush1.msra.mxu0 0.0
  %334 = vmatprep.subr.mxu0 0.0
  %335 = vmatpush1.msra.mxu0 0.0
  %336 = vmatprep.subr.mxu0 0.0
  %337 = vmatpush1.msra.mxu0 0.0
  %338 = vmatprep.subr.mxu0 0.0
  %339 = vmatpush1.msra.mxu0 0.0
  %340 = vmatprep.subr.mxu0 0.0
  %341 = vmatpush1.msra.mxu0 0.0
  %342 = vmatprep.subr.mxu0 0.0
  %343 = vmatpush1.msra.mxu0 0.0
  %344 = vmatprep.subr.mxu0 0.0
  %345 = vmatpush1.msra.mxu0 0.0
  %346 = vmatprep.subr.mxu0 0.0
  %347 = vmatpush1.msra.mxu0 0.0
  %348 = vmatprep.subr.mxu0 0.0
  %349 = vmatpush1.msra.mxu0 0.0
  %350 = vmatprep.subr.mxu0 0.0
  %351 = vmatpush1.msra.mxu0 0.0
  %352 = vmatprep.subr.mxu0 0.0
  %353 = vmatpush1.msra.mxu0 0.0
  %354 = vmatprep.subr.mxu0 0.0
  %355 = vmatpush1.msra.mxu0 0.0
  %356 = vmatprep.subr.mxu0 0.0
  %357 = vmatpush1.msra.mxu0 0.0
  %358 = vmatprep.subr.mxu0 0.0
  %359 = vmatpush1.msra.mxu0 0.0
  %360 = vmatprep.subr.mxu0 0.0
  %361 = vmatpush1.msra.mxu0 0.0
  %362 = vmatprep.subr.mxu0 0.0
  %363 = vmatpush1.msra.mxu0 0.0
  %364 = vmatprep.subr.mxu0 0.0
  %365 = vmatpush1.msra.mxu0 0.0
  %366 = vmatprep.subr.mxu0 0.0
  %367 = vmatpush1.msra.mxu0 0.0
  %368 = vmatprep.subr.mxu0 0.0
  %369 = vmatpush1.msra.mxu0 0.0
  %370 = vmatprep.subr.mxu0 0.0
  %371 = vmatpush1.msra.mxu0 0.0
  %372 = vmatprep.subr.mxu0 0.0
  %373 = vmatpush1.msra.mxu0 0.0
  %374 = vmatprep.subr.mxu0 0.0
  %375 = vmatpush1.msra.mxu0 0.0
  %376 = vmatprep.subr.mxu0 0.0
  %377 = vmatpush1.msra.mxu0 0.0
  %378 = vmatprep.subr.mxu0 0.0
  %379 = vmatpush1.msra.mxu0 0.0
  %380 = vmatprep.subr.mxu0 0.0
  %381 = vmatpush1.msra.mxu0 0.0
  %382 = vmatprep.subr.mxu0 0.0
  %383 = vmatpush1.msra.mxu0 0.0
  %384 = vmatprep.subr.mxu0 0.0
  %385 = vmatpush1.msra.mxu0 0.0
  %386 = vmatprep.mubr.f32.mxu0 0.0
  %387 = vmatmul.mubr.f32.gmra.mrb[0].mxu0 %v318
  %v388 = vpop.f32.mrb[0].mxu0
  %v389 = vadd.f32 0.0, %v388
  %v390 = vpop.f32.mrb[0].mxu0
  %391 = vmatprep.mubr.f32.mxu0 0.0
  %392 = vmatmul.mubr.f32.gmra.mrb[0].mxu0 %v320
  %v393 = vpop.f32.mrb[0].mxu0
  %v394 = vadd.f32 0.0, %v393
  %v395 = vpop.f32.mrb[0].mxu0
  %396 = vdwg.mxu0
  %v397 = vadd.f32 %v310, %v389
  %v398 = vadd.f32 %v311, %v394
  %v399 = vxor.u32 %v397, 2147483648
  %v400 = vxor.u32 %v398, 2147483648
  %v401 = vmul.f32 %v399, 1.442695
  %v402 = vpow.pop %v401
  %v403 = vmul.f32 %v400, 1.442695
  %v404 = vpow.pop %v403
  %v405 = vadd.f32 %v402, 1.0
  %v406 = vadd.f32 %v404, 1.0
  %v407 = vrcp.pop %v405
  %v408 = vmul.f32 1.0, %v407
  %v409 = vrcp.pop %v406
  %v410 = vmul.f32 1.0, %v409
  %v411 = vtanh.pop %v397
  %v412 = vtanh.pop %v398
  %v413 = vmul.f32 %v408, %v295
  %v414 = vmul.f32 %v410, %v296
  %417 = vrot.lane.b32.xlu0 %v411, 112
  %v418 = vpop.permute.xlu0 %417
  %419 = vrot.lane.b32.xlu0 %v412, 112
  %v420 = vpop.permute.xlu0 %419
  %v423 = vmul.f32 %v408, %v418
  %v424 = vmul.f32 %v410, %v420
  %427 = vrot.lane.b32.xlu0 %v423, 8
  %v428 = vpop.permute.xlu0 %427
  %429 = vrot.lane.b32.xlu0 %v424, 8
  %v430 = vpop.permute.xlu0 %429
  %v433 = vadd.f32 %v413, %v428
  %v434 = vadd.f32 %v414, %v430
  %v435 = vtanh.pop %v433
  %v436 = vtanh.pop %v434
  %439 = vrot.lane.b32.xlu0 %v435, 16
  %v440 = vpop.permute.xlu0 %439
  %441 = vrot.lane.b32.xlu0 %v436, 16
  %v442 = vpop.permute.xlu0 %441
  %v445 = vmul.f32 %v408, %v440
  %v446 = vmul.f32 %v410, %v442
  %s447 = scalar_lea.vmem [#allocation2], 32
  %v448 = vld [vmem:[%s447] sm:$0xff]
  %v449 = vld [vmem:[%s447 + $0x8] sm:$0xf]
  %452 = vrot.lane.b32.xlu0 %v445, 104
  %v453 = vpop.permute.xlu0 %452
  %454 = vrot.lane.b32.xlu0 %v446, 104
  %v455 = vpop.permute.xlu0 %454
  %v456 = vsel %vm58, %v453, 0
  %v458 = vsel %vm58, %v455, 0
  %460 = vmatprep.subr.mxu0 0.0
  %461 = vmatpush1.msra.mxu0 %v178
  %462 = vmatprep.subr.mxu0 0.0
  %463 = vmatpush1.msra.mxu0 0.0
  %464 = vmatprep.subr.mxu0 0.0
  %465 = vmatpush1.msra.mxu0 0.0
  %466 = vmatprep.subr.mxu0 0.0
  %467 = vmatpush1.msra.mxu0 0.0
  %468 = vmatprep.subr.mxu0 0.0
  %469 = vmatpush1.msra.mxu0 0.0
  %470 = vmatprep.subr.mxu0 0.0
  %471 = vmatpush1.msra.mxu0 0.0
  %472 = vmatprep.subr.mxu0 0.0
  %473 = vmatpush1.msra.mxu0 0.0
  %474 = vmatprep.subr.mxu0 0.0
  %475 = vmatpush1.msra.mxu0 0.0
  %476 = vmatprep.subr.mxu0 0.0
  %477 = vmatpush1.msra.mxu0 0.0
  %478 = vmatprep.subr.mxu0 0.0
  %479 = vmatpush1.msra.mxu0 0.0
  %480 = vmatprep.subr.mxu0 0.0
  %481 = vmatpush1.msra.mxu0 0.0
  %482 = vmatprep.subr.mxu0 0.0
  %483 = vmatpush1.msra.mxu0 0.0
  %484 = vmatprep.subr.mxu0 0.0
  %485 = vmatpush1.msra.mxu0 0.0
  %486 = vmatprep.subr.mxu0 0.0
  %487 = vmatpush1.msra.mxu0 0.0
  %488 = vmatprep.subr.mxu0 0.0
  %489 = vmatpush1.msra.mxu0 0.0
  %490 = vmatprep.subr.mxu0 0.0
  %491 = vmatpush1.msra.mxu0 0.0
  %492 = vmatprep.subr.mxu0 0.0
  %493 = vmatpush1.msra.mxu0 0.0
  %494 = vmatprep.subr.mxu0 0.0
  %495 = vmatpush1.msra.mxu0 0.0
  %496 = vmatprep.subr.mxu0 0.0
  %497 = vmatpush1.msra.mxu0 0.0
  %498 = vmatprep.subr.mxu0 0.0
  %499 = vmatpush1.msra.mxu0 0.0
  %500 = vmatprep.subr.mxu0 0.0
  %501 = vmatpush1.msra.mxu0 0.0
  %502 = vmatprep.subr.mxu0 0.0
  %503 = vmatpush1.msra.mxu0 0.0
  %504 = vmatprep.subr.mxu0 0.0
  %505 = vmatpush1.msra.mxu0 0.0
  %506 = vmatprep.subr.mxu0 0.0
  %507 = vmatpush1.msra.mxu0 0.0
  %508 = vmatprep.subr.mxu0 0.0
  %509 = vmatpush1.msra.mxu0 0.0
  %510 = vmatprep.subr.mxu0 0.0
  %511 = vmatpush1.msra.mxu0 0.0
  %512 = vmatprep.subr.mxu0 0.0
  %513 = vmatpush1.msra.mxu0 0.0
  %514 = vmatprep.subr.mxu0 0.0
  %515 = vmatpush1.msra.mxu0 0.0
  %516 = vmatprep.subr.mxu0 0.0
  %517 = vmatpush1.msra.mxu0 0.0
  %518 = vmatprep.subr.mxu0 0.0
  %519 = vmatpush1.msra.mxu0 0.0
  %520 = vmatprep.subr.mxu0 0.0
  %521 = vmatpush1.msra.mxu0 0.0
  %522 = vmatprep.subr.mxu0 0.0
  %523 = vmatpush1.msra.mxu0 0.0
  %524 = vmatprep.mubr.f32.mxu0 0.0
  %525 = vmatmul.mubr.f32.gmra.mrb[0].mxu0 %v456
  %v526 = vpop.f32.mrb[0].mxu0
  %v527 = vadd.f32 0.0, %v526
  %v528 = vpop.f32.mrb[0].mxu0
  %529 = vmatprep.mubr.f32.mxu0 0.0
  %530 = vmatmul.mubr.f32.gmra.mrb[0].mxu0 %v458
  %v531 = vpop.f32.mrb[0].mxu0
  %v532 = vadd.f32 0.0, %v531
  %v533 = vpop.f32.mrb[0].mxu0
  %534 = vdwg.mxu0
  %v535 = vadd.f32 %v448, %v527
  %v536 = vadd.f32 %v449, %v532
  %v537 = vxor.u32 %v535, 2147483648
  %v538 = vxor.u32 %v536, 2147483648
  %v539 = vmul.f32 %v537, 1.442695
  %v540 = vpow.pop %v539
  %v541 = vmul.f32 %v538, 1.442695
  %v542 = vpow.pop %v541
  %v543 = vadd.f32 %v540, 1.0
  %v544 = vadd.f32 %v542, 1.0
  %v545 = vrcp.pop %v543
  %v546 = vmul.f32 1.0, %v545
  %v547 = vrcp.pop %v544
  %v548 = vmul.f32 1.0, %v547
  %v549 = vtanh.pop %v535
  %v550 = vtanh.pop %v536
  %v551 = vmul.f32 %v546, %v433
  %v552 = vmul.f32 %v548, %v434
  %555 = vrot.lane.b32.xlu0 %v549, 112
  %v556 = vpop.permute.xlu0 %555
  %557 = vrot.lane.b32.xlu0 %v550, 112
  %v558 = vpop.permute.xlu0 %557
  %v561 = vmul.f32 %v546, %v556
  %v562 = vmul.f32 %v548, %v558
  %565 = vrot.lane.b32.xlu0 %v561, 8
  %v566 = vpop.permute.xlu0 %565
  %567 = vrot.lane.b32.xlu0 %v562, 8
  %v568 = vpop.permute.xlu0 %567
  %v571 = vadd.f32 %v551, %v566
  %v572 = vadd.f32 %v552, %v568
  %v573 = vtanh.pop %v571
  %v574 = vtanh.pop %v572
  %577 = vrot.lane.b32.xlu0 %v573, 16
  %v578 = vpop.permute.xlu0 %577
  %579 = vrot.lane.b32.xlu0 %v574, 16
  %v580 = vpop.permute.xlu0 %579
  %v583 = vmul.f32 %v546, %v578
  %v584 = vmul.f32 %v548, %v580
  %s585 = scalar_lea.vmem [#allocation2], 48
  %v586 = vld [vmem:[%s585] sm:$0xff]
  %v587 = vld [vmem:[%s585 + $0x8] sm:$0xf]
  %590 = vrot.lane.b32.xlu0 %v583, 104
  %v591 = vpop.permute.xlu0 %590
  %592 = vrot.lane.b32.xlu0 %v584, 104
  %v593 = vpop.permute.xlu0 %592
  %v594 = vsel %vm58, %v591, 0
  %v596 = vsel %vm58, %v593, 0
  %598 = vmatprep.subr.mxu0 0.0
  %599 = vmatpush1.msra.mxu0 %v178
  %600 = vmatprep.subr.mxu0 0.0
  %601 = vmatpush1.msra.mxu0 0.0
  %602 = vmatprep.subr.mxu0 0.0
  %603 = vmatpush1.msra.mxu0 0.0
  %604 = vmatprep.subr.mxu0 0.0
  %605 = vmatpush1.msra.mxu0 0.0
  %606 = vmatprep.subr.mxu0 0.0
  %607 = vmatpush1.msra.mxu0 0.0
  %608 = vmatprep.subr.mxu0 0.0
  %609 = vmatpush1.msra.mxu0 0.0
  %610 = vmatprep.subr.mxu0 0.0
  %611 = vmatpush1.msra.mxu0 0.0
  %612 = vmatprep.subr.mxu0 0.0
  %613 = vmatpush1.msra.mxu0 0.0
  %614 = vmatprep.subr.mxu0 0.0
  %615 = vmatpush1.msra.mxu0 0.0
  %616 = vmatprep.subr.mxu0 0.0
  %617 = vmatpush1.msra.mxu0 0.0
  %618 = vmatprep.subr.mxu0 0.0
  %619 = vmatpush1.msra.mxu0 0.0
  %620 = vmatprep.subr.mxu0 0.0
  %621 = vmatpush1.msra.mxu0 0.0
  %622 = vmatprep.subr.mxu0 0.0
  %623 = vmatpush1.msra.mxu0 0.0
  %624 = vmatprep.subr.mxu0 0.0
  %625 = vmatpush1.msra.mxu0 0.0
  %626 = vmatprep.subr.mxu0 0.0
  %627 = vmatpush1.msra.mxu0 0.0
  %628 = vmatprep.subr.mxu0 0.0
  %629 = vmatpush1.msra.mxu0 0.0
  %630 = vmatprep.subr.mxu0 0.0
  %631 = vmatpush1.msra.mxu0 0.0
  %632 = vmatprep.subr.mxu0 0.0
  %633 = vmatpush1.msra.mxu0 0.0
  %634 = vmatprep.subr.mxu0 0.0
  %635 = vmatpush1.msra.mxu0 0.0
  %636 = vmatprep.subr.mxu0 0.0
  %637 = vmatpush1.msra.mxu0 0.0
  %638 = vmatprep.subr.mxu0 0.0
  %639 = vmatpush1.msra.mxu0 0.0
  %640 = vmatprep.subr.mxu0 0.0
  %641 = vmatpush1.msra.mxu0 0.0
  %642 = vmatprep.subr.mxu0 0.0
  %643 = vmatpush1.msra.mxu0 0.0
  %644 = vmatprep.subr.mxu0 0.0
  %645 = vmatpush1.msra.mxu0 0.0
  %646 = vmatprep.subr.mxu0 0.0
  %647 = vmatpush1.msra.mxu0 0.0
  %648 = vmatprep.subr.mxu0 0.0
  %649 = vmatpush1.msra.mxu0 0.0
  %650 = vmatprep.subr.mxu0 0.0
  %651 = vmatpush1.msra.mxu0 0.0
  %652 = vmatprep.subr.mxu0 0.0
  %653 = vmatpush1.msra.mxu0 0.0
  %654 = vmatprep.subr.mxu0 0.0
  %655 = vmatpush1.msra.mxu0 0.0
  %656 = vmatprep.subr.mxu0 0.0
  %657 = vmatpush1.msra.mxu0 0.0
  %658 = vmatprep.subr.mxu0 0.0
  %659 = vmatpush1.msra.mxu0 0.0
  %660 = vmatprep.subr.mxu0 0.0
  %661 = vmatpush1.msra.mxu0 0.0
  %662 = vmatprep.mubr.f32.mxu0 0.0
  %663 = vmatmul.mubr.f32.gmra.mrb[0].mxu0 %v594
  %v664 = vpop.f32.mrb[0].mxu0
  %v665 = vadd.f32 0.0, %v664
  %v666 = vpop.f32.mrb[0].mxu0
  %667 = vmatprep.mubr.f32.mxu0 0.0
  %668 = vmatmul.mubr.f32.gmra.mrb[0].mxu0 %v596
  %v669 = vpop.f32.mrb[0].mxu0
  %v670 = vadd.f32 0.0, %v669
  %v671 = vpop.f32.mrb[0].mxu0
  %672 = vdwg.mxu0
  %v673 = vadd.f32 %v586, %v665
  %v674 = vadd.f32 %v587, %v670
  %v675 = vxor.u32 %v673, 2147483648
  %v676 = vxor.u32 %v674, 2147483648
  %v677 = vmul.f32 %v675, 1.442695
  %v678 = vpow.pop %v677
  %v679 = vmul.f32 %v676, 1.442695
  %v680 = vpow.pop %v679
  %v681 = vadd.f32 %v678, 1.0
  %v682 = vadd.f32 %v680, 1.0
  %v683 = vrcp.pop %v681
  %v684 = vmul.f32 1.0, %v683
  %v685 = vrcp.pop %v682
  %v686 = vmul.f32 1.0, %v685
  %v687 = vtanh.pop %v673
  %v688 = vtanh.pop %v674
  %v689 = vmul.f32 %v684, %v571
  %v690 = vmul.f32 %v686, %v572
  %693 = vrot.lane.b32.xlu0 %v687, 112
  %v694 = vpop.permute.xlu0 %693
  %695 = vrot.lane.b32.xlu0 %v688, 112
  %v696 = vpop.permute.xlu0 %695
  %v699 = vmul.f32 %v684, %v694
  %v700 = vmul.f32 %v686, %v696
  %703 = vrot.lane.b32.xlu0 %v699, 8
  %v704 = vpop.permute.xlu0 %703
  %705 = vrot.lane.b32.xlu0 %v700, 8
  %v706 = vpop.permute.xlu0 %705
  %v709 = vadd.f32 %v689, %v704
  %v710 = vadd.f32 %v690, %v706
  %v711 = vtanh.pop %v709
  %v712 = vtanh.pop %v710
  %715 = vrot.lane.b32.xlu0 %v711, 16
  %v716 = vpop.permute.xlu0 %715
  %717 = vrot.lane.b32.xlu0 %v712, 16
  %v718 = vpop.permute.xlu0 %717
  %v721 = vmul.f32 %v684, %v716
  %v722 = vmul.f32 %v686, %v718
  %s723 = scalar_lea.vmem [#allocation2], 64
  %v724 = vld [vmem:[%s723] sm:$0xff]
  %v725 = vld [vmem:[%s723 + $0x8] sm:$0xf]
  %728 = vrot.lane.b32.xlu0 %v721, 104
  %v729 = vpop.permute.xlu0 %728
  %730 = vrot.lane.b32.xlu0 %v722, 104
  %v731 = vpop.permute.xlu0 %730
  %v732 = vsel %vm58, %v729, 0
  %v734 = vsel %vm58, %v731, 0
  %736 = vmatprep.subr.mxu0 0.0
  %737 = vmatpush1.msra.mxu0 %v178
  %738 = vmatprep.subr.mxu0 0.0
  %739 = vmatpush1.msra.mxu0 0.0
  %740 = vmatprep.subr.mxu0 0.0
  %741 = vmatpush1.msra.mxu0 0.0
  %742 = vmatprep.subr.mxu0 0.0
  %743 = vmatpush1.msra.mxu0 0.0
  %744 = vmatprep.subr.mxu0 0.0
  %745 = vmatpush1.msra.mxu0 0.0
  %746 = vmatprep.subr.mxu0 0.0
  %747 = vmatpush1.msra.mxu0 0.0
  %748 = vmatprep.subr.mxu0 0.0
  %749 = vmatpush1.msra.mxu0 0.0
  %750 = vmatprep.subr.mxu0 0.0
  %751 = vmatpush1.msra.mxu0 0.0
  %752 = vmatprep.subr.mxu0 0.0
  %753 = vmatpush1.msra.mxu0 0.0
  %754 = vmatprep.subr.mxu0 0.0
  %755 = vmatpush1.msra.mxu0 0.0
  %756 = vmatprep.subr.mxu0 0.0
  %757 = vmatpush1.msra.mxu0 0.0
  %758 = vmatprep.subr.mxu0 0.0
  %759 = vmatpush1.msra.mxu0 0.0
  %760 = vmatprep.subr.mxu0 0.0
  %761 = vmatpush1.msra.mxu0 0.0
  %762 = vmatprep.subr.mxu0 0.0
  %763 = vmatpush1.msra.mxu0 0.0
  %764 = vmatprep.subr.mxu0 0.0
  %765 = vmatpush1.msra.mxu0 0.0
  %766 = vmatprep.subr.mxu0 0.0
  %767 = vmatpush1.msra.mxu0 0.0
  %768 = vmatprep.subr.mxu0 0.0
  %769 = vmatpush1.msra.mxu0 0.0
  %770 = vmatprep.subr.mxu0 0.0
  %771 = vmatpush1.msra.mxu0 0.0
  %772 = vmatprep.subr.mxu0 0.0
  %773 = vmatpush1.msra.mxu0 0.0
  %774 = vmatprep.subr.mxu0 0.0
  %775 = vmatpush1.msra.mxu0 0.0
  %776 = vmatprep.subr.mxu0 0.0
  %777 = vmatpush1.msra.mxu0 0.0
  %778 = vmatprep.subr.mxu0 0.0
  %779 = vmatpush1.msra.mxu0 0.0
  %780 = vmatprep.subr.mxu0 0.0
  %781 = vmatpush1.msra.mxu0 0.0
  %782 = vmatprep.subr.mxu0 0.0
  %783 = vmatpush1.msra.mxu0 0.0
  %784 = vmatprep.subr.mxu0 0.0
  %785 = vmatpush1.msra.mxu0 0.0
  %786 = vmatprep.subr.mxu0 0.0
  %787 = vmatpush1.msra.mxu0 0.0
  %788 = vmatprep.subr.mxu0 0.0
  %789 = vmatpush1.msra.mxu0 0.0
  %790 = vmatprep.subr.mxu0 0.0
  %791 = vmatpush1.msra.mxu0 0.0
  %792 = vmatprep.subr.mxu0 0.0
  %793 = vmatpush1.msra.mxu0 0.0
  %794 = vmatprep.subr.mxu0 0.0
  %795 = vmatpush1.msra.mxu0 0.0
  %796 = vmatprep.subr.mxu0 0.0
  %797 = vmatpush1.msra.mxu0 0.0
  %798 = vmatprep.subr.mxu0 0.0
  %799 = vmatpush1.msra.mxu0 0.0
  %800 = vmatprep.mubr.f32.mxu0 0.0
  %801 = vmatmul.mubr.f32.gmra.mrb[0].mxu0 %v732
  %v802 = vpop.f32.mrb[0].mxu0
  %v803 = vadd.f32 0.0, %v802
  %v804 = vpop.f32.mrb[0].mxu0
  %805 = vmatprep.mubr.f32.mxu0 0.0
  %806 = vmatmul.mubr.f32.gmra.mrb[0].mxu0 %v734
  %v807 = vpop.f32.mrb[0].mxu0
  %v808 = vadd.f32 0.0, %v807
  %v809 = vpop.f32.mrb[0].mxu0
  %810 = vdwg.mxu0
  %v811 = vadd.f32 %v724, %v803
  %v812 = vadd.f32 %v725, %v808
  %v813 = vxor.u32 %v811, 2147483648
  %v814 = vxor.u32 %v812, 2147483648
  %v815 = vmul.f32 %v813, 1.442695
  %v816 = vpow.pop %v815
  %v817 = vmul.f32 %v814, 1.442695
  %v818 = vpow.pop %v817
  %v819 = vadd.f32 %v816, 1.0
  %v820 = vadd.f32 %v818, 1.0
  %v821 = vrcp.pop %v819
  %v822 = vmul.f32 1.0, %v821
  %v823 = vrcp.pop %v820
  %v824 = vmul.f32 1.0, %v823
  %v825 = vtanh.pop %v811
  %v826 = vtanh.pop %v812
  %v827 = vmul.f32 %v822, %v709
  %v828 = vmul.f32 %v824, %v710
  %831 = vrot.lane.b32.xlu0 %v825, 112
  %v832 = vpop.permute.xlu0 %831
  %833 = vrot.lane.b32.xlu0 %v826, 112
  %v834 = vpop.permute.xlu0 %833
  %v837 = vmul.f32 %v822, %v832
  %v838 = vmul.f32 %v824, %v834
  %841 = vrot.lane.b32.xlu0 %v837, 8
  %v842 = vpop.permute.xlu0 %841
  %843 = vrot.lane.b32.xlu0 %v838, 8
  %v844 = vpop.permute.xlu0 %843
  %v847 = vadd.f32 %v827, %v842
  %v848 = vadd.f32 %v828, %v844
  %v849 = vtanh.pop %v847
  %v850 = vtanh.pop %v848
  %853 = vrot.lane.b32.xlu0 %v849, 16
  %v854 = vpop.permute.xlu0 %853
  %855 = vrot.lane.b32.xlu0 %v850, 16
  %v856 = vpop.permute.xlu0 %855
  %v859 = vmul.f32 %v822, %v854
  %v860 = vmul.f32 %v824, %v856
  %863 = vrot.lane.b32.xlu0 %v859, 104
  %v864 = vpop.permute.xlu0 %863
  %865 = vrot.lane.b32.xlu0 %v860, 104
  %v866 = vpop.permute.xlu0 %865
  %869 = vst.msk [vmem:[%s3] sm:$0xff] %vm58, %v864
  %vm870 = vcmask 60416
  %871 = vst.msk [vmem:[%s3 + $0x8] sm:$0xf] %vm870, %v866
  // Predicated region
  $region14: #{bimpm_forward.4} parent=0 // pred_check
    _
  $region15: #{bimpm_forward.4} parent=0 // pred_check_branch
    %873 = sbr.rel (0) target = $region17
  $region16: #{bimpm_forward.4} parent=0 // pred_region
    _
  $region17: #{bimpm_forward.4} parent=0 // pred_fallthru
    _
  // Predicated region
  $region18: #{bimpm_forward.4} parent=0 // pred_check
    _
  $region19: #{bimpm_forward.4} parent=0 // pred_check_branch
    %875 = sbr.rel (0) target = $region21
  $region20: #{bimpm_forward.4} parent=0 // pred_region
    _
  $region21: #{bimpm_forward.4} parent=0 // pred_fallthru
    _

// kernel: bimpm_forward.5
$region0: #{bimpm_forward.5}
  #allocation0 [shape = 'u32[]', space=smem, size = 0x4, offset = 0x4, fixed_abs, tag = 'smem constant byte address 0x4 - core index']
  #allocation1 [shape = 'u32[144,128]{1,0:T(1,128)}', space=vmem, size = 0x12000, scoped, tag = 'internal scratch']
  #allocation2 [shape = 'f32[6,4,128]{2,1,0:T(4,128)}', space=vmem, size = 0x3000, scoped, tag = 'scratch operand']
  %s0 = inlined_call_operand.vmem [shape: f32[6,4,24], index: 0, kind: input, shape index: {}]
  %s1 = inlined_call_operand.vmem [shape: bf16[24,128], index: 1, kind: input, shape index: {}]
  %s2 = inlined_call_operand.vmem [shape: f32[32,128], index: 2, kind: input, shape index: {}]
  %s3 = inlined_call_operand.vmem [shape: f32[6,4,16], index: 3, kind: output, shape index: {0}]
  %s4 = inlined_call_operand.vmem [shape: f32[6,4,16], index: 4, kind: output, shape index: {1}]
  %5 = xla_tuple %s3, %s4
  %s6 = sld [smem:[#allocation0]]
  $region30: #{bimpm_forward.5} parent=0
    _
  %s8 = ssub.s32 1, %s6
  %s9 = scalar_select 0, %s8, %s6
  // Predicated region
  $region2: #{bimpm_forward.5} parent=0 // pred_check
    _
  $region3: #{bimpm_forward.5} parent=0 // pred_check_branch
    %11 = sbr.rel (0) target = $region5
  $region4: #{bimpm_forward.5} parent=0 // pred_region
    _
  $region5: #{bimpm_forward.5} parent=0 // pred_fallthru
    _
  // Predicated region
  $region6: #{bimpm_forward.5} parent=0 // pred_check
    _
  $region7: #{bimpm_forward.5} parent=0 // pred_check_branch
    %13 = sbr.rel (0) target = $region9
  $region8: #{bimpm_forward.5} parent=0 // pred_region
    _
  $region9: #{bimpm_forward.5} parent=0 // pred_fallthru
    _
  // Predicated region
  $region10: #{bimpm_forward.5} parent=0 // pred_check
    _
  $region11: #{bimpm_forward.5} parent=0 // pred_check_branch
    %15 = sbr.rel (0) target = $region13
  $region12: #{bimpm_forward.5} parent=0 // pred_region
    _
  $region13: #{bimpm_forward.5} parent=0 // pred_fallthru
    _
  %v17 = vld [vmem:[%s0] sm:$0xf]
  %v18 = vld [vmem:[%s0 + $0x4] sm:$0xf]
  %v19 = vld [vmem:[%s0 + $0x8] sm:$0xf]
  %v20 = vld [vmem:[%s0 + $0xc] sm:$0xf]
  %v21 = vld [vmem:[%s0 + $0x10] sm:$0xf]
  %v22 = vld [vmem:[%s0 + $0x14] sm:$0xf]
  %v29 = vcombine.low %v17, %v18
  %v30 = vcombine.low %v19, %v20
  %v31 = vcombine.low %v21, %v22
  %v35 = vpack.c.bf16 %v30, %v29
  %v36 = vpack.c.bf16 %v31, %v31
  %v37 = vld [vmem:[%s1] sm:$0xf]
  %v38 = vld [vmem:[%s1 + $0x4] sm:$0xf]
  %v39 = vld [vmem:[%s1 + $0x8] sm:$0xf]
  %v43 = vunpack.c.l.b16 %v37
  %v44 = vunpack.c.l.b16 %v38
  %v45 = vunpack.c.l.b16 %v39
  %v46 = vpack.c.b16 %v44, %v43
  %v47 = vpack.c.b16 %v45, %v45
  %vm49 = vcmask 195584
  %v51 = vsel %vm49, %v35, 0
  %v54 = vsel %vm49, %v36, 0
  %vm56 = vcmask 1043456
  %v58 = vsel %vm56, %v47, 0
  %60 = vmatprep.subr.bf16.mxu0 0
  %61 = vmatpush1.bf16.msra.mxu0 %v46
  %62 = vmatprep.subr.bf16.mxu0 0
  %63 = vmatpush1.bf16.msra.mxu0 %v58
  %64 = vmatprep.subr.bf16.mxu0 0
  %65 = vmatpush1.bf16.msra.mxu0 0
  %66 = vmatprep.subr.bf16.mxu0 0
  %67 = vmatpush1.bf16.msra.mxu0 0
  %68 = vmatprep.subr.bf16.mxu0 0
  %69 = vmatpush1.bf16.msra.mxu0 0
  %70 = vmatprep.subr.bf16.mxu0 0
  %71 = vmatpush1.bf16.msra.mxu0 0
  %72 = vmatprep.subr.bf16.mxu0 0
  %73 = vmatpush1.bf16.msra.mxu0 0
  %74 = vmatprep.subr.bf16.mxu0 0
  %75 = vmatpush1.bf16.msra.mxu0 0
  %76 = vmatprep.subr.bf16.mxu0 0
  %77 = vmatpush1.bf16.msra.mxu0 0
  %78 = vmatprep.subr.bf16.mxu0 0
  %79 = vmatpush1.bf16.msra.mxu0 0
  %80 = vmatprep.subr.bf16.mxu0 0
  %81 = vmatpush1.bf16.msra.mxu0 0
  %82 = vmatprep.subr.bf16.mxu0 0
  %83 = vmatpush1.bf16.msra.mxu0 0
  %84 = vmatprep.subr.bf16.mxu0 0
  %85 = vmatpush1.bf16.msra.mxu0 0
  %86 = vmatprep.subr.bf16.mxu0 0
  %87 = vmatpush1.bf16.msra.mxu0 0
  %88 = vmatprep.subr.bf16.mxu0 0
  %89 = vmatpush1.bf16.msra.mxu0 0
  %90 = vmatprep.subr.bf16.mxu0 0
  %91 = vmatpush1.bf16.msra.mxu0 0
  %92 = vmatprep.mubr.bf16.mxu0 0
  %93 = vmatmul.mubr.bf16.gmra.mrb[0].mxu0 %v51
  %v94 = vpop.f32.mrb[0].mxu0
  %v95 = vadd.f32 0.0, %v94
  %v96 = vpop.f32.mrb[0].mxu0
  %v97 = vpop.f32.mrb[0].mxu0
  %v98 = vadd.f32 0.0, %v97
  %v99 = vpop.f32.mrb[0].mxu0
  %100 = vmatprep.mubr.bf16.mxu0 0
  %101 = vmatmul.mubr.bf16.gmra.mrb[0].mxu0 %v54
  %v102 = vpop.f32.mrb[0].mxu0
  %v103 = vadd.f32 0.0, %v102
  %v104 = vpop.f32.mrb[0].mxu0
  %v105 = vpop.f32.mrb[0].mxu0
  %v106 = vpop.f32.mrb[0].mxu0
  %107 = vdwg.mxu0
  %v111 = vcombine.high %v95, %v95
  %v112 = vcombine.high %v98, %v98
  %v113 = vcombine.high %v103, %v103
  %117 = vst [vmem:[#allocation2] sm:$0xf] %v95
  %118 = vst [vmem:[#allocation2 + $0x4] sm:$0xf] %v111
  %119 = vst [vmem:[#allocation2 + $0x8] sm:$0xf] %v98
  %120 = vst [vmem:[#allocation2 + $0xc] sm:$0xf] %v112
  %121 = vst [vmem:[#allocation2 + $0x10] sm:$0xf] %v103
  %122 = vst [vmem:[#allocation2 + $0x14] sm:$0xf] %v113
  %v123 = vld [vmem:[%s2] sm:$0xff]
  %v124 = vld [vmem:[%s2 + $0x8] sm:$0xff]
  %v125 = vld [vmem:[%s2 + $0x10] sm:$0xff]
  %v126 = vld [vmem:[%s2 + $0x18] sm:$0xff]
  %vm127 = vcmask 261120
  %v129 = vsel %vm127, 0.0, 0
  %131 = vmatprep.subr.mxu0 0.0
  %132 = vmatpush1.msra.mxu0 %v123
  %133 = vmatprep.subr.mxu0 0.0
  %134 = vmatpush1.msra.mxu0 %v124
  %135 = vmatprep.subr.mxu0 0.0
  %136 = vmatpush1.msra.mxu0 %v125
  %137 = vmatprep.subr.mxu0 0.0
  %138 = vmatpush1.msra.mxu0 %v126
  %139 = vmatprep.subr.mxu0 0.0
  %140 = vmatpush1.msra.mxu0 0.0
  %141 = vmatprep.subr.mxu0 0.0
  %142 = vmatpush1.msra.mxu0 0.0
  %143 = vmatprep.subr.mxu0 0.0
  %144 = vmatpush1.msra.mxu0 0.0
  %145 = vmatprep.subr.mxu0 0.0
  %146 = vmatpush1.msra.mxu0 0.0
  %147 = vmatprep.subr.mxu0 0.0
  %148 = vmatpush1.msra.mxu0 0.0
  %149 = vmatprep.subr.mxu0 0.0
  %150 = vmatpush1.msra.mxu0 0.0
  %151 = vmatprep.subr.mxu0 0.0
  %152 = vmatpush1.msra.mxu0 0.0
  %153 = vmatprep.subr.mxu0 0.0
  %154 = vmatpush1.msra.mxu0 0.0
  %155 = vmatprep.subr.mxu0 0.0
  %156 = vmatpush1.msra.mxu0 0.0
  %157 = vmatprep.subr.mxu0 0.0
  %158 = vmatpush1.msra.mxu0 0.0
  %159 = vmatprep.subr.mxu0 0.0
  %160 = vmatpush1.msra.mxu0 0.0
  %161 = vmatprep.subr.mxu0 0.0
  %162 = vmatpush1.msra.mxu0 0.0
  %163 = vmatprep.subr.mxu0 0.0
  %164 = vmatpush1.msra.mxu0 0.0
  %165 = vmatprep.subr.mxu0 0.0
  %166 = vmatpush1.msra.mxu0 0.0
  %167 = vmatprep.subr.mxu0 0.0
  %168 = vmatpush1.msra.mxu0 0.0
  %169 = vmatprep.subr.mxu0 0.0
  %170 = vmatpush1.msra.mxu0 0.0
  %171 = vmatprep.subr.mxu0 0.0
  %172 = vmatpush1.msra.mxu0 0.0
  %173 = vmatprep.subr.mxu0 0.0
  %174 = vmatpush1.msra.mxu0 0.0
  %175 = vmatprep.subr.mxu0 0.0
  %176 = vmatpush1.msra.mxu0 0.0
  %177 = vmatprep.subr.mxu0 0.0
  %178 = vmatpush1.msra.mxu0 0.0
  %179 = vmatprep.subr.mxu0 0.0
  %180 = vmatpush1.msra.mxu0 0.0
  %181 = vmatprep.subr.mxu0 0.0
  %182 = vmatpush1.msra.mxu0 0.0
  %183 = vmatprep.subr.mxu0 0.0
  %184 = vmatpush1.msra.mxu0 0.0
  %185 = vmatprep.subr.mxu0 0.0
  %186 = vmatpush1.msra.mxu0 0.0
  %187 = vmatprep.subr.mxu0 0.0
  %188 = vmatpush1.msra.mxu0 0.0
  %189 = vmatprep.subr.mxu0 0.0
  %190 = vmatpush1.msra.mxu0 0.0
  %191 = vmatprep.subr.mxu0 0.0
  %192 = vmatpush1.msra.mxu0 0.0
  %193 = vmatprep.subr.mxu0 0.0
  %194 = vmatpush1.msra.mxu0 0.0
  %195 = vmatprep.mubr.f32.mxu0 0.0
  %196 = vmatmul.mubr.f32.gmra.mrb[0].mxu0 %v129
  %v197 = vpop.f32.mrb[0].mxu0
  %v198 = vadd.f32 0.0, %v197
  %v199 = vpop.f32.mrb[0].mxu0
  %200 = vdwg.mxu0
  %v201 = vld [vmem:[#allocation2] sm:$0xf]
  %v202 = vadd.f32 %v201, %v198
  %s203 = scalar_lea.vmem [#allocation2], 20
  %v204 = vld [vmem:[%s203] sm:$0xf]
  %v205 = vadd.f32 %v204, %v198
  %v206 = vxor.u32 %v202, 2147483648
  %v207 = vmul.f32 %v206, 1.442695
  %v208 = vpow.pop %v207
  %v209 = vadd.f32 %v208, 1.0
  %v210 = vrcp.pop %v209
  %v211 = vmul.f32 1.0, %v210
  %v212 = vtanh.pop %v202
  %v213 = vmul.f32 %v211, 0.0
  %215 = vrot.lane.b32.xlu0 %v212, 96
  %v216 = vpop.permute.xlu0 %215
  %v218 = vmul.f32 %v211, %v216
  %220 = vrot.lane.b32.xlu0 %v218, 16
  %v221 = vpop.permute.xlu0 %220
  %v223 = vadd.f32 %v213, %v221
  %v224 = vtanh.pop %v223
  %226 = vrot.lane.b32.xlu0 %v224, 32
  %v227 = vpop.permute.xlu0 %226
  %v229 = vmul.f32 %v211, %v227
  %v230 = vxor.u32 %v205, 2147483648
  %v231 = vmul.f32 %v230, 1.442695
  %v232 = vpow.pop %v231
  %v233 = vadd.f32 %v232, 1.0
  %v234 = vrcp.pop %v233
  %v235 = vmul.f32 1.0, %v234
  %v236 = vtanh.pop %v205
  %v237 = vmul.f32 %v235, 0.0
  %239 = vrot.lane.b32.xlu0 %v236, 96
  %v240 = vpop.permute.xlu0 %239
  %v242 = vmul.f32 %v235, %v240
  %244 = vrot.lane.b32.xlu0 %v242, 16
  %v245 = vpop.permute.xlu0 %244
  %v247 = vadd.f32 %v237, %v245
  %v248 = vtanh.pop %v247
  %250 = vrot.lane.b32.xlu0 %v248, 32
  %v251 = vpop.permute.xlu0 %250
  %v253 = vmul.f32 %v235, %v251
  %255 = vrot.lane.b32.xlu0 %v229, 80
  %v256 = vpop.permute.xlu0 %255
  %vm258 = vcmask 125952
  %259 = vst.msk [vmem:[%s3] sm:$0xf] %vm258, %v256
  %261 = vrot.lane.b32.xlu0 %v253, 16
  %v262 = vpop.permute.xlu0 %261
  %s264 = scalar_lea.vmem %s4, 20
  %265 = vst.msk [vmem:[%s264] sm:$0xf] %vm258, %v262
  %266 = vrot.lane.b32.xlu0 %v253, 32
  %v267 = vpop.permute.xlu0 %266
  %vm269 = vcmask 130048
  %v270 = vsel %vm269, %v256, %v267
  %v272 = vsel %vm127, %v270, 0
  %274 = vmatprep.subr.mxu0 0.0
  %275 = vmatpush1.msra.mxu0 %v123
  %276 = vmatprep.subr.mxu0 0.0
  %277 = vmatpush1.msra.mxu0 %v124
  %278 = vmatprep.subr.mxu0 0.0
  %279 = vmatpush1.msra.mxu0 %v125
  %280 = vmatprep.subr.mxu0 0.0
  %281 = vmatpush1.msra.mxu0 %v126
  %282 = vmatprep.subr.mxu0 0.0
  %283 = vmatpush1.msra.mxu0 0.0
  %284 = vmatprep.subr.mxu0 0.0
  %285 = vmatpush1.msra.mxu0 0.0
  %286 = vmatprep.subr.mxu0 0.0
  %287 = vmatpush1.msra.mxu0 0.0
  %288 = vmatprep.subr.mxu0 0.0
  %289 = vmatpush1.msra.mxu0 0.0
  %290 = vmatprep.subr.mxu0 0.0
  %291 = vmatpush1.msra.mxu0 0.0
  %292 = vmatprep.subr.mxu0 0.0
  %293 = vmatpush1.msra.mxu0 0.0
  %294 = vmatprep.subr.mxu0 0.0
  %295 = vmatpush1.msra.mxu0 0.0
  %296 = vmatprep.subr.mxu0 0.0
  %297 = vmatpush1.msra.mxu0 0.0
  %298 = vmatprep.subr.mxu0 0.0
  %299 = vmatpush1.msra.mxu0 0.0
  %300 = vmatprep.subr.mxu0 0.0
  %301 = vmatpush1.msra.mxu0 0.0
  %302 = vmatprep.subr.mxu0 0.0
  %303 = vmatpush1.msra.mxu0 0.0
  %304 = vmatprep.subr.mxu0 0.0
  %305 = vmatpush1.msra.mxu0 0.0
  %306 = vmatprep.subr.mxu0 0.0
  %307 = vmatpush1.msra.mxu0 0.0
  %308 = vmatprep.subr.mxu0 0.0
  %309 = vmatpush1.msra.mxu0 0.0
  %310 = vmatprep.subr.mxu0 0.0
  %311 = vmatpush1.msra.mxu0 0.0
  %312 = vmatprep.subr.mxu0 0.0
  %313 = vmatpush1.msra.mxu0 0.0
  %314 = vmatprep.subr.mxu0 0.0
  %315 = vmatpush1.msra.mxu0 0.0
  %316 = vmatprep.subr.mxu0 0.0
  %317 = vmatpush1.msra.mxu0 0.0
  %318 = vmatprep.subr.mxu0 0.0
  %319 = vmatpush1.msra.mxu0 0.0
  %320 = vmatprep.subr.mxu0 0.0
  %321 = vmatpush1.msra.mxu0 0.0
  %322 = vmatprep.subr.mxu0 0.0
  %323 = vmatpush1.msra.mxu0 0.0
  %324 = vmatprep.subr.mxu0 0.0
  %325 = vmatpush1.msra.mxu0 0.0
  %326 = vmatprep.subr.mxu0 0.0
  %327 = vmatpush1.msra.mxu0 0.0
  %328 = vmatprep.subr.mxu0 0.0
  %329 = vmatpush1.msra.mxu0 0.0
  %330 = vmatprep.subr.mxu0 0.0
  %331 = vmatpush1.msra.mxu0 0.0
  %332 = vmatprep.subr.mxu0 0.0
  %333 = vmatpush1.msra.mxu0 0.0
  %334 = vmatprep.subr.mxu0 0.0
  %335 = vmatpush1.msra.mxu0 0.0
  %336 = vmatprep.subr.mxu0 0.0
  %337 = vmatpush1.msra.mxu0 0.0
  %338 = vmatprep.mubr.f32.mxu0 0.0
  %339 = vmatmul.mubr.f32.gmra.mrb[0].mxu0 %v272
  %v340 = vpop.f32.mrb[0].mxu0
  %v341 = vadd.f32 0.0, %v340
  %v342 = vpop.f32.mrb[0].mxu0
  %343 = vdwg.mxu0
  %s344 = scalar_lea.vmem [#allocation2], 4
  %v345 = vld [vmem:[%s344] sm:$0xf]
  %v346 = vadd.f32 %v345, %v341
  %s347 = scalar_lea.vmem [#allocation2], 16
  %v348 = vld [vmem:[%s347] sm:$0xf]
  %v349 = vadd.f32 %v348, %v341
  %v350 = vxor.u32 %v346, 2147483648
  %v351 = vmul.f32 %v350, 1.442695
  %v352 = vpow.pop %v351
  %v353 = vadd.f32 %v352, 1.0
  %v354 = vrcp.pop %v353
  %v355 = vmul.f32 1.0, %v354
  %v356 = vtanh.pop %v346
  %v357 = vmul.f32 %v355, %v223
  %359 = vrot.lane.b32.xlu0 %v356, 96
  %v360 = vpop.permute.xlu0 %359
  %v362 = vmul.f32 %v355, %v360
  %364 = vrot.lane.b32.xlu0 %v362, 16
  %v365 = vpop.permute.xlu0 %364
  %v367 = vadd.f32 %v357, %v365
  %v368 = vtanh.pop %v367
  %370 = vrot.lane.b32.xlu0 %v368, 32
  %v371 = vpop.permute.xlu0 %370
  %v373 = vmul.f32 %v355, %v371
  %v374 = vxor.u32 %v349, 2147483648
  %v375 = vmul.f32 %v374, 1.442695
  %v376 = vpow.pop %v375
  %v377 = vadd.f32 %v376, 1.0
  %v378 = vrcp.pop %v377
  %v379 = vmul.f32 1.0, %v378
  %v380 = vtanh.pop %v349
  %v381 = vmul.f32 %v379, %v247
  %383 = vrot.lane.b32.xlu0 %v380, 96
  %v384 = vpop.permute.xlu0 %383
  %v386 = vmul.f32 %v379, %v384
  %388 = vrot.lane.b32.xlu0 %v386, 16
  %v389 = vpop.permute.xlu0 %388
  %v391 = vadd.f32 %v381, %v389
  %v392 = vtanh.pop %v391
  %394 = vrot.lane.b32.xlu0 %v392, 32
  %v395 = vpop.permute.xlu0 %394
  %v397 = vmul.f32 %v379, %v395
  %399 = vrot.lane.b32.xlu0 %v373, 80
  %v400 = vpop.permute.xlu0 %399
  %s402 = scalar_lea.vmem %s3, 4
  %403 = vst.msk [vmem:[%s402] sm:$0xf] %vm258, %v400
  %405 = vrot.lane.b32.xlu0 %v397, 16
  %v406 = vpop.permute.xlu0 %405
  %s408 = scalar_lea.vmem %s4, 16
  %409 = vst.msk [vmem:[%s408] sm:$0xf] %vm258, %v406
  %410 = vrot.lane.b32.xlu0 %v397, 32
  %v411 = vpop.permute.xlu0 %410
  %v413 = vsel %vm269, %v400, %v411
  %v415 = vsel %vm127, %v413, 0
  %417 = vmatprep.subr.mxu0 0.0
  %418 = vmatpush1.msra.mxu0 %v123
  %419 = vmatprep.subr.mxu0 0.0
  %420 = vmatpush1.msra.mxu0 %v124
  %421 = vmatprep.subr.mxu0 0.0
  %422 = vmatpush1.msra.mxu0 %v125
  %423 = vmatprep.subr.mxu0 0.0
  %424 = vmatpush1.msra.mxu0 %v126
  %425 = vmatprep.subr.mxu0 0.0
  %426 = vmatpush1.msra.mxu0 0.0
  %427 = vmatprep.subr.mxu0 0.0
  %428 = vmatpush1.msra.mxu0 0.0
  %429 = vmatprep.subr.mxu0 0.0
  %430 = vmatpush1.msra.mxu0 0.0
  %431 = vmatprep.subr.mxu0 0.0
  %432 = vmatpush1.msra.mxu0 0.0
  %433 = vmatprep.subr.mxu0 0.0
  %434 = vmatpush1.msra.mxu0 0.0
  %435 = vmatprep.subr.mxu0 0.0
  %436 = vmatpush1.msra.mxu0 0.0
  %437 = vmatprep.subr.mxu0 0.0
  %438 = vmatpush1.msra.mxu0 0.0
  %439 = vmatprep.subr.mxu0 0.0
  %440 = vmatpush1.msra.mxu0 0.0
  %441 = vmatprep.subr.mxu0 0.0
  %442 = vmatpush1.msra.mxu0 0.0
  %443 = vmatprep.subr.mxu0 0.0
  %444 = vmatpush1.msra.mxu0 0.0
  %445 = vmatprep.subr.mxu0 0.0
  %446 = vmatpush1.msra.mxu0 0.0
  %447 = vmatprep.subr.mxu0 0.0
  %448 = vmatpush1.msra.mxu0 0.0
  %449 = vmatprep.subr.mxu0 0.0
  %450 = vmatpush1.msra.mxu0 0.0
  %451 = vmatprep.subr.mxu0 0.0
  %452 = vmatpush1.msra.mxu0 0.0
  %453 = vmatprep.subr.mxu0 0.0
  %454 = vmatpush1.msra.mxu0 0.0
  %455 = vmatprep.subr.mxu0 0.0
  %456 = vmatpush1.msra.mxu0 0.0
  %457 = vmatprep.subr.mxu0 0.0
  %458 = vmatpush1.msra.mxu0 0.0
  %459 = vmatprep.subr.mxu0 0.0
  %460 = vmatpush1.msra.mxu0 0.0
  %461 = vmatprep.subr.mxu0 0.0
  %462 = vmatpush1.msra.mxu0 0.0
  %463 = vmatprep.subr.mxu0 0.0
  %464 = vmatpush1.msra.mxu0 0.0
  %465 = vmatprep.subr.mxu0 0.0
  %466 = vmatpush1.msra.mxu0 0.0
  %467 = vmatprep.subr.mxu0 0.0
  %468 = vmatpush1.msra.mxu0 0.0
  %469 = vmatprep.subr.mxu0 0.0
  %470 = vmatpush1.msra.mxu0 0.0
  %471 = vmatprep.subr.mxu0 0.0
  %472 = vmatpush1.msra.mxu0 0.0
  %473 = vmatprep.subr.mxu0 0.0
  %474 = vmatpush1.msra.mxu0 0.0
  %475 = vmatprep.subr.mxu0 0.0
  %476 = vmatpush1.msra.mxu0 0.0
  %477 = vmatprep.subr.mxu0 0.0
  %478 = vmatpush1.msra.mxu0 0.0
  %479 = vmatprep.subr.mxu0 0.0
  %480 = vmatpush1.msra.mxu0 0.0
  %481 = vmatprep.mubr.f32.mxu0 0.0
  %482 = vmatmul.mubr.f32.gmra.mrb[0].mxu0 %v415
  %v483 = vpop.f32.mrb[0].mxu0
  %v484 = vadd.f32 0.0, %v483
  %v485 = vpop.f32.mrb[0].mxu0
  %486 = vdwg.mxu0
  %s487 = scalar_lea.vmem [#allocation2], 8
  %v488 = vld [vmem:[%s487] sm:$0xf]
  %v489 = vadd.f32 %v488, %v484
  %s490 = scalar_lea.vmem [#allocation2], 12
  %v491 = vld [vmem:[%s490] sm:$0xf]
  %v492 = vadd.f32 %v491, %v484
  %v493 = vxor.u32 %v489, 2147483648
  %v494 = vmul.f32 %v493, 1.442695
  %v495 = vpow.pop %v494
  %v496 = vadd.f32 %v495, 1.0
  %v497 = vrcp.pop %v496
  %v498 = vmul.f32 1.0, %v497
  %v499 = vtanh.pop %v489
  %v500 = vmul.f32 %v498, %v367
  %502 = vrot.lane.b32.xlu0 %v499, 96
  %v503 = vpop.permute.xlu0 %502
  %v505 = vmul.f32 %v498, %v503
  %507 = vrot.lane.b32.xlu0 %v505, 16
  %v508 = vpop.permute.xlu0 %507
  %v510 = vadd.f32 %v500, %v508
  %v511 = vtanh.pop %v510
  %513 = vrot.lane.b32.xlu0 %v511, 32
  %v514 = vpop.permute.xlu0 %513
  %v516 = vmul.f32 %v498, %v514
  %v517 = vxor.u32 %v492, 2147483648
  %v518 = vmul.f32 %v517, 1.442695
  %v519 = vpow.pop %v518
  %v520 = vadd.f32 %v519, 1.0
  %v521 = vrcp.pop %v520
  %v522 = vmul.f32 1.0, %v521
  %v523 = vtanh.pop %v492
  %v524 = vmul.f32 %v522, %v391
  %526 = vrot.lane.b32.xlu0 %v523, 96
  %v527 = vpop.permute.xlu0 %526
  %v529 = vmul.f32 %v522, %v527
  %531 = vrot.lane.b32.xlu0 %v529, 16
  %v532 = vpop.permute.xlu0 %531
  %v534 = vadd.f32 %v524, %v532
  %v535 = vtanh.pop %v534
  %537 = vrot.lane.b32.xlu0 %v535, 32
  %v538 = vpop.permute.xlu0 %537
  %v540 = vmul.f32 %v522, %v538
  %542 = vrot.lane.b32.xlu0 %v516, 80
  %v543 = vpop.permute.xlu0 %542
  %s545 = scalar_lea.vmem %s3, 8
  %546 = vst.msk [vmem:[%s545] sm:$0xf] %vm258, %v543
  %548 = vrot.lane.b32.xlu0 %v540, 16
  %v549 = vpop.permute.xlu0 %548
  %s551 = scalar_lea.vmem %s4, 12
  %552 = vst.msk [vmem:[%s551] sm:$0xf] %vm258, %v549
  %553 = vrot.lane.b32.xlu0 %v540, 32
  %v554 = vpop.permute.xlu0 %553
  %v556 = vsel %vm269, %v543, %v554
  %v558 = vsel %vm127, %v556, 0
  %560 = vmatprep.subr.mxu0 0.0
  %561 = vmatpush1.msra.mxu0 %v123
  %562 = vmatprep.subr.mxu0 0.0
  %563 = vmatpush1.msra.mxu0 %v124
  %564 = vmatprep.subr.mxu0 0.0
  %565 = vmatpush1.msra.mxu0 %v125
  %566 = vmatprep.subr.mxu0 0.0
  %567 = vmatpush1.msra.mxu0 %v126
  %568 = vmatprep.subr.mxu0 0.0
  %569 = vmatpush1.msra.mxu0 0.0
  %570 = vmatprep.subr.mxu0 0.0
  %571 = vmatpush1.msra.mxu0 0.0
  %572 = vmatprep.subr.mxu0 0.0
  %573 = vmatpush1.msra.mxu0 0.0
  %574 = vmatprep.subr.mxu0 0.0
  %575 = vmatpush1.msra.mxu0 0.0
  %576 = vmatprep.subr.mxu0 0.0
  %577 = vmatpush1.msra.mxu0 0.0
  %578 = vmatprep.subr.mxu0 0.0
  %579 = vmatpush1.msra.mxu0 0.0
  %580 = vmatprep.subr.mxu0 0.0
  %581 = vmatpush1.msra.mxu0 0.0
  %582 = vmatprep.subr.mxu0 0.0
  %583 = vmatpush1.msra.mxu0 0.0
  %584 = vmatprep.subr.mxu0 0.0
  %585 = vmatpush1.msra.mxu0 0.0
  %586 = vmatprep.subr.mxu0 0.0
  %587 = vmatpush1.msra.mxu0 0.0
  %588 = vmatprep.subr.mxu0 0.0
  %589 = vmatpush1.msra.mxu0 0.0
  %590 = vmatprep.subr.mxu0 0.0
  %591 = vmatpush1.msra.mxu0 0.0
  %592 = vmatprep.subr.mxu0 0.0
  %593 = vmatpush1.msra.mxu0 0.0
  %594 = vmatprep.subr.mxu0 0.0
  %595 = vmatpush1.msra.mxu0 0.0
  %596 = vmatprep.subr.mxu0 0.0
  %597 = vmatpush1.msra.mxu0 0.0
  %598 = vmatprep.subr.mxu0 0.0
  %599 = vmatpush1.msra.mxu0 0.0
  %600 = vmatprep.subr.mxu0 0.0
  %601 = vmatpush1.msra.mxu0 0.0
  %602 = vmatprep.subr.mxu0 0.0
  %603 = vmatpush1.msra.mxu0 0.0
  %604 = vmatprep.subr.mxu0 0.0
  %605 = vmatpush1.msra.mxu0 0.0
  %606 = vmatprep.subr.mxu0 0.0
  %607 = vmatpush1.msra.mxu0 0.0
  %608 = vmatprep.subr.mxu0 0.0
  %609 = vmatpush1.msra.mxu0 0.0
  %610 = vmatprep.subr.mxu0 0.0
  %611 = vmatpush1.msra.mxu0 0.0
  %612 = vmatprep.subr.mxu0 0.0
  %613 = vmatpush1.msra.mxu0 0.0
  %614 = vmatprep.subr.mxu0 0.0
  %615 = vmatpush1.msra.mxu0 0.0
  %616 = vmatprep.subr.mxu0 0.0
  %617 = vmatpush1.msra.mxu0 0.0
  %618 = vmatprep.subr.mxu0 0.0
  %619 = vmatpush1.msra.mxu0 0.0
  %620 = vmatprep.subr.mxu0 0.0
  %621 = vmatpush1.msra.mxu0 0.0
  %622 = vmatprep.subr.mxu0 0.0
  %623 = vmatpush1.msra.mxu0 0.0
  %624 = vmatprep.mubr.f32.mxu0 0.0
  %625 = vmatmul.mubr.f32.gmra.mrb[0].mxu0 %v558
  %v626 = vpop.f32.mrb[0].mxu0
  %v627 = vadd.f32 0.0, %v626
  %v628 = vpop.f32.mrb[0].mxu0
  %629 = vdwg.mxu0
  %v630 = vld [vmem:[%s490] sm:$0xf]
  %v631 = vadd.f32 %v630, %v627
  %v632 = vld [vmem:[%s487] sm:$0xf]
  %v633 = vadd.f32 %v632, %v627
  %v634 = vxor.u32 %v631, 2147483648
  %v635 = vmul.f32 %v634, 1.442695
  %v636 = vpow.pop %v635
  %v637 = vadd.f32 %v636, 1.0
  %v638 = vrcp.pop %v637
  %v639 = vmul.f32 1.0, %v638
  %v640 = vtanh.pop %v631
  %v641 = vmul.f32 %v639, %v510
  %643 = vrot.lane.b32.xlu0 %v640, 96
  %v644 = vpop.permute.xlu0 %643
  %v646 = vmul.f32 %v639, %v644
  %648 = vrot.lane.b32.xlu0 %v646, 16
  %v649 = vpop.permute.xlu0 %648
  %v651 = vadd.f32 %v641, %v649
  %v652 = vtanh.pop %v651
  %654 = vrot.lane.b32.xlu0 %v652, 32
  %v655 = vpop.permute.xlu0 %654
  %v657 = vmul.f32 %v639, %v655
  %v658 = vxor.u32 %v633, 2147483648
  %v659 = vmul.f32 %v658, 1.442695
  %v660 = vpow.pop %v659
  %v661 = vadd.f32 %v660, 1.0
  %v662 = vrcp.pop %v661
  %v663 = vmul.f32 1.0, %v662
  %v664 = vtanh.pop %v633
  %v665 = vmul.f32 %v663, %v534
  %667 = vrot.lane.b32.xlu0 %v664, 96
  %v668 = vpop.permute.xlu0 %667
  %v670 = vmul.f32 %v663, %v668
  %672 = vrot.lane.b32.xlu0 %v670, 16
  %v673 = vpop.permute.xlu0 %672
  %v675 = vadd.f32 %v665, %v673
  %v676 = vtanh.pop %v675
  %678 = vrot.lane.b32.xlu0 %v676, 32
  %v679 = vpop.permute.xlu0 %678
  %v681 = vmul.f32 %v663, %v679
  %683 = vrot.lane.b32.xlu0 %v657, 80
  %v684 = vpop.permute.xlu0 %683
  %s686 = scalar_lea.vmem %s3, 12
  %687 = vst.msk [vmem:[%s686] sm:$0xf] %vm258, %v684
  %689 = vrot.lane.b32.xlu0 %v681, 16
  %v690 = vpop.permute.xlu0 %689
  %s692 = scalar_lea.vmem %s4, 8
  %693 = vst.msk [vmem:[%s692] sm:$0xf] %vm258, %v690
  %694 = vrot.lane.b32.xlu0 %v681, 32
  %v695 = vpop.permute.xlu0 %694
  %v697 = vsel %vm269, %v684, %v695
  %v699 = vsel %vm127, %v697, 0
  %701 = vmatprep.subr.mxu0 0.0
  %702 = vmatpush1.msra.mxu0 %v123
  %703 = vmatprep.subr.mxu0 0.0
  %704 = vmatpush1.msra.mxu0 %v124
  %705 = vmatprep.subr.mxu0 0.0
  %706 = vmatpush1.msra.mxu0 %v125
  %707 = vmatprep.subr.mxu0 0.0
  %708 = vmatpush1.msra.mxu0 %v126
  %709 = vmatprep.subr.mxu0 0.0
  %710 = vmatpush1.msra.mxu0 0.0
  %711 = vmatprep.subr.mxu0 0.0
  %712 = vmatpush1.msra.mxu0 0.0
  %713 = vmatprep.subr.mxu0 0.0
  %714 = vmatpush1.msra.mxu0 0.0
  %715 = vmatprep.subr.mxu0 0.0
  %716 = vmatpush1.msra.mxu0 0.0
  %717 = vmatprep.subr.mxu0 0.0
  %718 = vmatpush1.msra.mxu0 0.0
  %719 = vmatprep.subr.mxu0 0.0
  %720 = vmatpush1.msra.mxu0 0.0
  %721 = vmatprep.subr.mxu0 0.0
  %722 = vmatpush1.msra.mxu0 0.0
  %723 = vmatprep.subr.mxu0 0.0
  %724 = vmatpush1.msra.mxu0 0.0
  %725 = vmatprep.subr.mxu0 0.0
  %726 = vmatpush1.msra.mxu0 0.0
  %727 = vmatprep.subr.mxu0 0.0
  %728 = vmatpush1.msra.mxu0 0.0
  %729 = vmatprep.subr.mxu0 0.0
  %730 = vmatpush1.msra.mxu0 0.0
  %731 = vmatprep.subr.mxu0 0.0
  %732 = vmatpush1.msra.mxu0 0.0
  %733 = vmatprep.subr.mxu0 0.0
  %734 = vmatpush1.msra.mxu0 0.0
  %735 = vmatprep.subr.mxu0 0.0
  %736 = vmatpush1.msra.mxu0 0.0
  %737 = vmatprep.subr.mxu0 0.0
  %738 = vmatpush1.msra.mxu0 0.0
  %739 = vmatprep.subr.mxu0 0.0
  %740 = vmatpush1.msra.mxu0 0.0
  %741 = vmatprep.subr.mxu0 0.0
  %742 = vmatpush1.msra.mxu0 0.0
  %743 = vmatprep.subr.mxu0 0.0
  %744 = vmatpush1.msra.mxu0 0.0
  %745 = vmatprep.subr.mxu0 0.0
  %746 = vmatpush1.msra.mxu0 0.0
  %747 = vmatprep.subr.mxu0 0.0
  %748 = vmatpush1.msra.mxu0 0.0
  %749 = vmatprep.subr.mxu0 0.0
  %750 = vmatpush1.msra.mxu0 0.0
  %751 = vmatprep.subr.mxu0 0.0
  %752 = vmatpush1.msra.mxu0 0.0
  %753 = vmatprep.subr.mxu0 0.0
  %754 = vmatpush1.msra.mxu0 0.0
  %755 = vmatprep.subr.mxu0 0.0
  %756 = vmatpush1.msra.mxu0 0.0
  %757 = vmatprep.subr.mxu0 0.0
  %758 = vmatpush1.msra.mxu0 0.0
  %759 = vmatprep.subr.mxu0 0.0
  %760 = vmatpush1.msra.mxu0 0.0
  %761 = vmatprep.subr.mxu0 0.0
  %762 = vmatpush1.msra.mxu0 0.0
  %763 = vmatprep.subr.mxu0 0.0
  %764 = vmatpush1.msra.mxu0 0.0
  %765 = vmatprep.mubr.f32.mxu0 0.0
  %766 = vmatmul.mubr.f32.gmra.mrb[0].mxu0 %v699
  %v767 = vpop.f32.mrb[0].mxu0
  %v768 = vadd.f32 0.0, %v767
  %v769 = vpop.f32.mrb[0].mxu0
  %770 = vdwg.mxu0
  %v771 = vld [vmem:[%s347] sm:$0xf]
  %v772 = vadd.f32 %v771, %v768
  %v773 = vld [vmem:[%s344] sm:$0xf]
  %v774 = vadd.f32 %v773, %v768
  %v775 = vxor.u32 %v772, 2147483648
  %v776 = vmul.f32 %v775, 1.442695
  %v777 = vpow.pop %v776
  %v778 = vadd.f32 %v777, 1.0
  %v779 = vrcp.pop %v778
  %v780 = vmul.f32 1.0, %v779
  %v781 = vtanh.pop %v772
  %v782 = vmul.f32 %v780, %v651
  %784 = vrot.lane.b32.xlu0 %v781, 96
  %v785 = vpop.permute.xlu0 %784
  %v787 = vmul.f32 %v780, %v785
  %789 = vrot.lane.b32.xlu0 %v787, 16
  %v790 = vpop.permute.xlu0 %789
  %v792 = vadd.f32 %v782, %v790
  %v793 = vtanh.pop %v792
  %795 = vrot.lane.b32.xlu0 %v793, 32
  %v796 = vpop.permute.xlu0 %795
  %v798 = vmul.f32 %v780, %v796
  %v799 = vxor.u32 %v774, 2147483648
  %v800 = vmul.f32 %v799, 1.442695
  %v801 = vpow.pop %v800
  %v802 = vadd.f32 %v801, 1.0
  %v803 = vrcp.pop %v802
  %v804 = vmul.f32 1.0, %v803
  %v805 = vtanh.pop %v774
  %v806 = vmul.f32 %v804, %v675
  %808 = vrot.lane.b32.xlu0 %v805, 96
  %v809 = vpop.permute.xlu0 %808
  %v811 = vmul.f32 %v804, %v809
  %813 = vrot.lane.b32.xlu0 %v811, 16
  %v814 = vpop.permute.xlu0 %813
  %v816 = vadd.f32 %v806, %v814
  %v817 = vtanh.pop %v816
  %819 = vrot.lane.b32.xlu0 %v817, 32
  %v820 = vpop.permute.xlu0 %819
  %v822 = vmul.f32 %v804, %v820
  %824 = vrot.lane.b32.xlu0 %v798, 80
  %v825 = vpop.permute.xlu0 %824
  %s827 = scalar_lea.vmem %s3, 16
  %828 = vst.msk [vmem:[%s827] sm:$0xf] %vm258, %v825
  %830 = vrot.lane.b32.xlu0 %v822, 16
  %v831 = vpop.permute.xlu0 %830
  %s833 = scalar_lea.vmem %s4, 4
  %834 = vst.msk [vmem:[%s833] sm:$0xf] %vm258, %v831
  %835 = vrot.lane.b32.xlu0 %v822, 32
  %v836 = vpop.permute.xlu0 %835
  %v838 = vsel %vm269, %v825, %v836
  %v840 = vsel %vm127, %v838, 0
  %842 = vmatprep.subr.mxu0 0.0
  %843 = vmatpush1.msra.mxu0 %v123
  %844 = vmatprep.subr.mxu0 0.0
  %845 = vmatpush1.msra.mxu0 %v124
  %846 = vmatprep.subr.mxu0 0.0
  %847 = vmatpush1.msra.mxu0 %v125
  %848 = vmatprep.subr.mxu0 0.0
  %849 = vmatpush1.msra.mxu0 %v126
  %850 = vmatprep.subr.mxu0 0.0
  %851 = vmatpush1.msra.mxu0 0.0
  %852 = vmatprep.subr.mxu0 0.0
  %853 = vmatpush1.msra.mxu0 0.0
  %854 = vmatprep.subr.mxu0 0.0
  %855 = vmatpush1.msra.mxu0 0.0
  %856 = vmatprep.subr.mxu0 0.0
  %857 = vmatpush1.msra.mxu0 0.0
  %858 = vmatprep.subr.mxu0 0.0
  %859 = vmatpush1.msra.mxu0 0.0
  %860 = vmatprep.subr.mxu0 0.0
  %861 = vmatpush1.msra.mxu0 0.0
  %862 = vmatprep.subr.mxu0 0.0
  %863 = vmatpush1.msra.mxu0 0.0
  %864 = vmatprep.subr.mxu0 0.0
  %865 = vmatpush1.msra.mxu0 0.0
  %866 = vmatprep.subr.mxu0 0.0
  %867 = vmatpush1.msra.mxu0 0.0
  %868 = vmatprep.subr.mxu0 0.0
  %869 = vmatpush1.msra.mxu0 0.0
  %870 = vmatprep.subr.mxu0 0.0
  %871 = vmatpush1.msra.mxu0 0.0
  %872 = vmatprep.subr.mxu0 0.0
  %873 = vmatpush1.msra.mxu0 0.0
  %874 = vmatprep.subr.mxu0 0.0
  %875 = vmatpush1.msra.mxu0 0.0
  %876 = vmatprep.subr.mxu0 0.0
  %877 = vmatpush1.msra.mxu0 0.0
  %878 = vmatprep.subr.mxu0 0.0
  %879 = vmatpush1.msra.mxu0 0.0
  %880 = vmatprep.subr.mxu0 0.0
  %881 = vmatpush1.msra.mxu0 0.0
  %882 = vmatprep.subr.mxu0 0.0
  %883 = vmatpush1.msra.mxu0 0.0
  %884 = vmatprep.subr.mxu0 0.0
  %885 = vmatpush1.msra.mxu0 0.0
  %886 = vmatprep.subr.mxu0 0.0
  %887 = vmatpush1.msra.mxu0 0.0
  %888 = vmatprep.subr.mxu0 0.0
  %889 = vmatpush1.msra.mxu0 0.0
  %890 = vmatprep.subr.mxu0 0.0
  %891 = vmatpush1.msra.mxu0 0.0
  %892 = vmatprep.subr.mxu0 0.0
  %893 = vmatpush1.msra.mxu0 0.0
  %894 = vmatprep.subr.mxu0 0.0
  %895 = vmatpush1.msra.mxu0 0.0
  %896 = vmatprep.subr.mxu0 0.0
  %897 = vmatpush1.msra.mxu0 0.0
  %898 = vmatprep.subr.mxu0 0.0
  %899 = vmatpush1.msra.mxu0 0.0
  %900 = vmatprep.subr.mxu0 0.0
  %901 = vmatpush1.msra.mxu0 0.0
  %902 = vmatprep.subr.mxu0 0.0
  %903 = vmatpush1.msra.mxu0 0.0
  %904 = vmatprep.subr.mxu0 0.0
  %905 = vmatpush1.msra.mxu0 0.0
  %906 = vmatprep.mubr.f32.mxu0 0.0
  %907 = vmatmul.mubr.f32.gmra.mrb[0].mxu0 %v840
  %v908 = vpop.f32.mrb[0].mxu0
  %v909 = vadd.f32 0.0, %v908
  %v910 = vpop.f32.mrb[0].mxu0
  %911 = vdwg.mxu0
  %v912 = vld [vmem:[%s203] sm:$0xf]
  %v913 = vadd.f32 %v912, %v909
  %v914 = vld [vmem:[#allocation2] sm:$0xf]
  %v915 = vadd.f32 %v914, %v909
  %v916 = vxor.u32 %v913, 2147483648
  %v917 = vmul.f32 %v916, 1.442695
  %v918 = vpow.pop %v917
  %v919 = vadd.f32 %v918, 1.0
  %v920 = vrcp.pop %v919
  %v921 = vmul.f32 1.0, %v920
  %v922 = vtanh.pop %v913
  %v923 = vmul.f32 %v921, %v792
  %925 = vrot.lane.b32.xlu0 %v922, 96
  %v926 = vpop.permute.xlu0 %925
  %v928 = vmul.f32 %v921, %v926
  %930 = vrot.lane.b32.xlu0 %v928, 16
  %v931 = vpop.permute.xlu0 %930
  %v933 = vadd.f32 %v923, %v931
  %v934 = vtanh.pop %v933
  %936 = vrot.lane.b32.xlu0 %v934, 32
  %v937 = vpop.permute.xlu0 %936
  %v939 = vmul.f32 %v921, %v937
  %v940 = vxor.u32 %v915, 2147483648
  %v941 = vmul.f32 %v940, 1.442695
  %v942 = vpow.pop %v941
  %v943 = vadd.f32 %v942, 1.0
  %v944 = vrcp.pop %v943
  %v945 = vmul.f32 1.0, %v944
  %v946 = vtanh.pop %v915
  %v947 = vmul.f32 %v945, %v816
  %949 = vrot.lane.b32.xlu0 %v946, 96
  %v950 = vpop.permute.xlu0 %949
  %v952 = vmul.f32 %v945, %v950
  %954 = vrot.lane.b32.xlu0 %v952, 16
  %v955 = vpop.permute.xlu0 %954
  %v957 = vadd.f32 %v947, %v955
  %v958 = vtanh.pop %v957
  %960 = vrot.lane.b32.xlu0 %v958, 32
  %v961 = vpop.permute.xlu0 %960
  %v963 = vmul.f32 %v945, %v961
  %965 = vrot.lane.b32.xlu0 %v939, 80
  %v966 = vpop.permute.xlu0 %965
  %s968 = scalar_lea.vmem %s3, 20
  %969 = vst.msk [vmem:[%s968] sm:$0xf] %vm258, %v966
  %971 = vrot.lane.b32.xlu0 %v963, 16
  %v972 = vpop.permute.xlu0 %971
  %974 = vst.msk [vmem:[%s4] sm:$0xf] %vm258, %v972
  // Predicated region
  $region14: #{bimpm_forward.5} parent=0 // pred_check
    _
  $region15: #{bimpm_forward.5} parent=0 // pred_check_branch
    %976 = sbr.rel (0) target = $region17
  $region16: #{bimpm_forward.5} parent=0 // pred_region
    _
  $region17: #{bimpm_forward.5} parent=0 // pred_fallthru
    _
  // Predicated region
  $region18: #{bimpm_forward.5} parent=0 // pred_check
    _
  $region19: #{bimpm_forward.5} parent=0 // pred_check_branch
    %978 = sbr.rel (0) target = $region21
  $region20: #{bimpm_forward.5} parent=0 // pred_region
    _
  $region21: #{bimpm_forward.5} parent=0 // pred_fallthru
    _
  // Predicated region
  $region22: #{bimpm_forward.5} parent=0 // pred_check
    _
  $region23: #{bimpm_forward.5} parent=0 // pred_check_branch
    %980 = sbr.rel (0) target = $region25
  $region24: #{bimpm_forward.5} parent=0 // pred_region
    _
  $region25: #{bimpm_forward.5} parent=0 // pred_fallthru
    _
  // Predicated region
  $region26: #{bimpm_forward.5} parent=0 // pred_check
    _
  $region27: #{bimpm_forward.5} parent=0 // pred_check_branch
    %982 = sbr.rel (0) target = $region29
  $region28: #{bimpm_forward.5} parent=0 // pred_region
    _
  $region29: #{bimpm_forward.5} parent=0 // pred_fallthru
    _

// kernel: bimpm_forward.7
$region0: #{bimpm_forward.7}
  #allocation0 [shape = 'u32[]', space=smem, size = 0x4, offset = 0x4, fixed_abs, tag = 'smem constant byte address 0x4 - core index']
  #allocation1 [shape = 'u32[144,128]{1,0:T(1,128)}', space=vmem, size = 0x12000, scoped, tag = 'internal scratch']
  #allocation2 [shape = 'f32[6,4,128]{2,1,0:T(4,128)}', space=vmem, size = 0x3000, scoped, tag = 'scratch operand']
  %s0 = inlined_call_operand.vmem [shape: f32[6,4,128], index: 0, kind: input, shape index: {}]
  %s1 = inlined_call_operand.vmem [shape: bf16[128,128], index: 1, kind: input, shape index: {}]
  %s2 = inlined_call_operand.vmem [shape: f32[32,128], index: 2, kind: input, shape index: {}]
  %s3 = inlined_call_operand.vmem [shape: f32[1,128], index: 3, kind: input, shape index: {}]
  %s4 = inlined_call_operand.vmem [shape: f32[64,16], index: 4, kind: input, shape index: {}]
  %s5 = inlined_call_operand.vmem [shape: f32[1,16], index: 5, kind: input, shape index: {}]
  %s6 = inlined_call_operand.vmem [shape: f32[16,3], index: 6, kind: input, shape index: {}]
  %s7 = inlined_call_operand.vmem [shape: f32[1,3], index: 7, kind: input, shape index: {}]
  %s8 = inlined_call_operand.hbm [shape: f32[2,3], index: 8, kind: output, shape index: {}]
  %s9 = sld [smem:[#allocation0]]
  $region42: #{bimpm_forward.7} parent=0
    _
  %s11 = ssub.s32 1, %s9
  %s12 = scalar_select 0, %s11, %s9
  $region1: #{bimpm_forward.7} parent=0
    #allocation3 [shape = 'u8[1024]{0}', space=vmem, size = 0x400, scoped, tag = 'output window, operand 0, single buffered']
    #allocation4 [shape = 's32[1]{0}', space=sflag, size = 0x4, scoped, tag = 'scoped memory for bimpm_forward.7']
    %13 = vsyncpa [#allocation4], 0
    // Predicated region
    $region2: #{bimpm_forward.7} parent=1 // pred_check
      _
    $region3: #{bimpm_forward.7} parent=1 // pred_check_branch
      %15 = sbr.rel (0) target = $region5
    $region4: #{bimpm_forward.7} parent=1 // pred_region
      _
    $region5: #{bimpm_forward.7} parent=1 // pred_fallthru
      _
    // Predicated region
    $region6: #{bimpm_forward.7} parent=1 // pred_check
      _
    $region7: #{bimpm_forward.7} parent=1 // pred_check_branch
      %17 = sbr.rel (0) target = $region9
    $region8: #{bimpm_forward.7} parent=1 // pred_region
      _
    $region9: #{bimpm_forward.7} parent=1 // pred_fallthru
      _
    // Predicated region
    $region10: #{bimpm_forward.7} parent=1 // pred_check
      _
    $region11: #{bimpm_forward.7} parent=1 // pred_check_branch
      %19 = sbr.rel (0) target = $region13
    $region12: #{bimpm_forward.7} parent=1 // pred_region
      _
    $region13: #{bimpm_forward.7} parent=1 // pred_fallthru
      _
    // Predicated region
    $region14: #{bimpm_forward.7} parent=1 // pred_check
      _
    $region15: #{bimpm_forward.7} parent=1 // pred_check_branch
      %21 = sbr.rel (0) target = $region17
    $region16: #{bimpm_forward.7} parent=1 // pred_region
      _
    $region17: #{bimpm_forward.7} parent=1 // pred_fallthru
      _
    // Predicated region
    $region18: #{bimpm_forward.7} parent=1 // pred_check
      _
    $region19: #{bimpm_forward.7} parent=1 // pred_check_branch
      %23 = sbr.rel (0) target = $region21
    $region20: #{bimpm_forward.7} parent=1 // pred_region
      _
    $region21: #{bimpm_forward.7} parent=1 // pred_fallthru
      _
    // Predicated region
    $region22: #{bimpm_forward.7} parent=1 // pred_check
      _
    $region23: #{bimpm_forward.7} parent=1 // pred_check_branch
      %25 = sbr.rel (0) target = $region25
    $region24: #{bimpm_forward.7} parent=1 // pred_region
      _
    $region25: #{bimpm_forward.7} parent=1 // pred_fallthru
      _
    // Predicated region
    $region26: #{bimpm_forward.7} parent=1 // pred_check
      _
    $region27: #{bimpm_forward.7} parent=1 // pred_check_branch
      %27 = sbr.rel (0) target = $region29
    $region28: #{bimpm_forward.7} parent=1 // pred_region
      _
    $region29: #{bimpm_forward.7} parent=1 // pred_fallthru
      _
    // Predicated region
    $region30: #{bimpm_forward.7} parent=1 // pred_check
      _
    $region31: #{bimpm_forward.7} parent=1 // pred_check_branch
      %29 = sbr.rel (0) target = $region33
    $region32: #{bimpm_forward.7} parent=1 // pred_region
      _
    $region33: #{bimpm_forward.7} parent=1 // pred_fallthru
      _
    %v31 = vld [vmem:[%s0] sm:$0xf]
    %v32 = vld [vmem:[%s0 + $0x4] sm:$0xf]
    %v33 = vld [vmem:[%s0 + $0x8] sm:$0xf]
    %v34 = vld [vmem:[%s0 + $0xc] sm:$0xf]
    %v35 = vld [vmem:[%s0 + $0x10] sm:$0xf]
    %v36 = vld [vmem:[%s0 + $0x14] sm:$0xf]
    %v43 = vcombine.low %v31, %v32
    %v44 = vcombine.low %v33, %v34
    %v45 = vcombine.low %v35, %v36
    %v49 = vpack.c.bf16 %v44, %v43
    %v50 = vpack.c.bf16 %v45, %v45
    %v51 = vld [vmem:[%s1] sm:$0xf]
    %v52 = vld [vmem:[%s1 + $0x4] sm:$0xf]
    %v53 = vld [vmem:[%s1 + $0x8] sm:$0xf]
    %v54 = vld [vmem:[%s1 + $0xc] sm:$0xf]
    %v55 = vld [vmem:[%s1 + $0x10] sm:$0xf]
    %v56 = vld [vmem:[%s1 + $0x14] sm:$0xf]
    %v57 = vld [vmem:[%s1 + $0x18] sm:$0xf]
    %v58 = vld [vmem:[%s1 + $0x1c] sm:$0xf]
    %v59 = vld [vmem:[%s1 + $0x20] sm:$0xf]
    %v60 = vld [vmem:[%s1 + $0x24] sm:$0xf]
    %v61 = vld [vmem:[%s1 + $0x28] sm:$0xf]
    %v62 = vld [vmem:[%s1 + $0x2c] sm:$0xf]
    %v63 = vld [vmem:[%s1 + $0x30] sm:$0xf]
    %v64 = vld [vmem:[%s1 + $0x34] sm:$0xf]
    %v65 = vld [vmem:[%s1 + $0x38] sm:$0xf]
    %v66 = vld [vmem:[%s1 + $0x3c] sm:$0xf]
    %v83 = vunpack.c.l.b16 %v51
    %v84 = vunpack.c.l.b16 %v52
    %v85 = vunpack.c.l.b16 %v53
    %v86 = vunpack.c.l.b16 %v54
    %v87 = vunpack.c.l.b16 %v55
    %v88 = vunpack.c.l.b16 %v56
    %v89 = vunpack.c.l.b16 %v57
    %v90 = vunpack.c.l.b16 %v58
    %v91 = vunpack.c.l.b16 %v59
    %v92 = vunpack.c.l.b16 %v60
    %v93 = vunpack.c.l.b16 %v61
    %v94 = vunpack.c.l.b16 %v62
    %v95 = vunpack.c.l.b16 %v63
    %v96 = vunpack.c.l.b16 %v64
    %v97 = vunpack.c.l.b16 %v65
    %v98 = vunpack.c.l.b16 %v66
    %v99 = vpack.c.b16 %v84, %v83
    %v100 = vpack.c.b16 %v86, %v85
    %v101 = vpack.c.b16 %v88, %v87
    %v102 = vpack.c.b16 %v90, %v89
    %v103 = vpack.c.b16 %v92, %v91
    %v104 = vpack.c.b16 %v94, %v93
    %v105 = vpack.c.b16 %v96, %v95
    %v106 = vpack.c.b16 %v98, %v97
    %115 = vmatprep.subr.bf16.mxu0 0
    %116 = vmatpush1.bf16.msra.mxu0 %v99
    %117 = vmatprep.subr.bf16.mxu0 0
    %118 = vmatpush1.bf16.msra.mxu0 %v100
    %119 = vmatprep.subr.bf16.mxu0 0
    %120 = vmatpush1.bf16.msra.mxu0 %v101
    %121 = vmatprep.subr.bf16.mxu0 0
    %122 = vmatpush1.bf16.msra.mxu0 %v102
    %123 = vmatprep.subr.bf16.mxu0 0
    %124 = vmatpush1.bf16.msra.mxu0 %v103
    %125 = vmatprep.subr.bf16.mxu0 0
    %126 = vmatpush1.bf16.msra.mxu0 %v104
    %127 = vmatprep.subr.bf16.mxu0 0
    %128 = vmatpush1.bf16.msra.mxu0 %v105
    %129 = vmatprep.subr.bf16.mxu0 0
    %130 = vmatpush1.bf16.msra.mxu0 %v106
    %131 = vmatprep.subr.bf16.mxu0 0
    %132 = vmatpush1.bf16.msra.mxu0 0
    %133 = vmatprep.subr.bf16.mxu0 0
    %134 = vmatpush1.bf16.msra.mxu0 0
    %135 = vmatprep.subr.bf16.mxu0 0
    %136 = vmatpush1.bf16.msra.mxu0 0
    %137 = vmatprep.subr.bf16.mxu0 0
    %138 = vmatpush1.bf16.msra.mxu0 0
    %139 = vmatprep.subr.bf16.mxu0 0
    %140 = vmatpush1.bf16.msra.mxu0 0
    %141 = vmatprep.subr.bf16.mxu0 0
    %142 = vmatpush1.bf16.msra.mxu0 0
    %143 = vmatprep.subr.bf16.mxu0 0
    %144 = vmatpush1.bf16.msra.mxu0 0
    %145 = vmatprep.subr.bf16.mxu0 0
    %146 = vmatpush1.bf16.msra.mxu0 0
    %147 = vmatprep.mubr.bf16.mxu0 0
    %148 = vmatmul.mubr.bf16.gmra.mrb[0].mxu0 %v49
    %v149 = vpop.f32.mrb[0].mxu0
    %v150 = vadd.f32 0.0, %v149
    %v151 = vpop.f32.mrb[0].mxu0
    %v152 = vpop.f32.mrb[0].mxu0
    %v153 = vadd.f32 0.0, %v152
    %v154 = vpop.f32.mrb[0].mxu0
    %155 = vmatprep.mubr.bf16.mxu0 0
    %156 = vmatmul.mubr.bf16.gmra.mrb[0].mxu0 %v50
    %v157 = vpop.f32.mrb[0].mxu0
    %v158 = vadd.f32 0.0, %v157
    %v159 = vpop.f32.mrb[0].mxu0
    %v160 = vpop.f32.mrb[0].mxu0
    %v161 = vpop.f32.mrb[0].mxu0
    %162 = vdwg.mxu0
    %v166 = vcombine.high %v150, %v150
    %v167 = vcombine.high %v153, %v153
    %v168 = vcombine.high %v158, %v158
    %v172 = vld [vmem:[%s3] sm:$0x1]
    %v174 = vlaneseq
    %v175 = vshrl.u32 %v174, 7
    %v176 = vsub.s32 0, %v175
    %v177 = vrot.slane %v172, %v176
    %v179 = vadd.f32 %v150, %v177
    %v180 = vadd.f32 %v166, %v177
    %v181 = vadd.f32 %v153, %v177
    %v182 = vadd.f32 %v167, %v177
    %v183 = vadd.f32 %v158, %v177
    %v184 = vadd.f32 %v168, %v177
    %185 = vst [vmem:[#allocation2] sm:$0xf] %v179
    %186 = vst [vmem:[#allocation2 + $0x4] sm:$0xf] %v180
    %187 = vst [vmem:[#allocation2 + $0x8] sm:$0xf] %v181
    %188 = vst [vmem:[#allocation2 + $0xc] sm:$0xf] %v182
    %189 = vst [vmem:[#allocation2 + $0x10] sm:$0xf] %v183
    %190 = vst [vmem:[#allocation2 + $0x14] sm:$0xf] %v184
    %v191 = vld [vmem:[%s2] sm:$0xff]
    %v192 = vld [vmem:[%s2 + $0x8] sm:$0xff]
    %v193 = vld [vmem:[%s2 + $0x10] sm:$0xff]
    %v194 = vld [vmem:[%s2 + $0x18] sm:$0xff]
    %vm195 = vcmask 261120
    %v197 = vsel %vm195, 0.0, 0
    %199 = vmatprep.subr.mxu0 0.0
    %200 = vmatpush1.msra.mxu0 %v191
    %201 = vmatprep.subr.mxu0 0.0
    %202 = vmatpush1.msra.mxu0 %v192
    %203 = vmatprep.subr.mxu0 0.0
    %204 = vmatpush1.msra.mxu0 %v193
    %205 = vmatprep.subr.mxu0 0.0
    %206 = vmatpush1.msra.mxu0 %v194
    %207 = vmatprep.subr.mxu0 0.0
    %208 = vmatpush1.msra.mxu0 0.0
    %209 = vmatprep.subr.mxu0 0.0
    %210 = vmatpush1.msra.mxu0 0.0
    %211 = vmatprep.subr.mxu0 0.0
    %212 = vmatpush1.msra.mxu0 0.0
    %213 = vmatprep.subr.mxu0 0.0
    %214 = vmatpush1.msra.mxu0 0.0
    %215 = vmatprep.subr.mxu0 0.0
    %216 = vmatpush1.msra.mxu0 0.0
    %217 = vmatprep.subr.mxu0 0.0
    %218 = vmatpush1.msra.mxu0 0.0
    %219 = vmatprep.subr.mxu0 0.0
    %220 = vmatpush1.msra.mxu0 0.0
    %221 = vmatprep.subr.mxu0 0.0
    %222 = vmatpush1.msra.mxu0 0.0
    %223 = vmatprep.subr.mxu0 0.0
    %224 = vmatpush1.msra.mxu0 0.0
    %225 = vmatprep.subr.mxu0 0.0
    %226 = vmatpush1.msra.mxu0 0.0
    %227 = vmatprep.subr.mxu0 0.0
    %228 = vmatpush1.msra.mxu0 0.0
    %229 = vmatprep.subr.mxu0 0.0
    %230 = vmatpush1.msra.mxu0 0.0
    %231 = vmatprep.subr.mxu0 0.0
    %232 = vmatpush1.msra.mxu0 0.0
    %233 = vmatprep.subr.mxu0 0.0
    %234 = vmatpush1.msra.mxu0 0.0
    %235 = vmatprep.subr.mxu0 0.0
    %236 = vmatpush1.msra.mxu0 0.0
    %237 = vmatprep.subr.mxu0 0.0
    %238 = vmatpush1.msra.mxu0 0.0
    %239 = vmatprep.subr.mxu0 0.0
    %240 = vmatpush1.msra.mxu0 0.0
    %241 = vmatprep.subr.mxu0 0.0
    %242 = vmatpush1.msra.mxu0 0.0
    %243 = vmatprep.subr.mxu0 0.0
    %244 = vmatpush1.msra.mxu0 0.0
    %245 = vmatprep.subr.mxu0 0.0
    %246 = vmatpush1.msra.mxu0 0.0
    %247 = vmatprep.subr.mxu0 0.0
    %248 = vmatpush1.msra.mxu0 0.0
    %249 = vmatprep.subr.mxu0 0.0
    %250 = vmatpush1.msra.mxu0 0.0
    %251 = vmatprep.subr.mxu0 0.0
    %252 = vmatpush1.msra.mxu0 0.0
    %253 = vmatprep.subr.mxu0 0.0
    %254 = vmatpush1.msra.mxu0 0.0
    %255 = vmatprep.subr.mxu0 0.0
    %256 = vmatpush1.msra.mxu0 0.0
    %257 = vmatprep.subr.mxu0 0.0
    %258 = vmatpush1.msra.mxu0 0.0
    %259 = vmatprep.subr.mxu0 0.0
    %260 = vmatpush1.msra.mxu0 0.0
    %261 = vmatprep.subr.mxu0 0.0
    %262 = vmatpush1.msra.mxu0 0.0
    %263 = vmatprep.mubr.f32.mxu0 0.0
    %264 = vmatmul.mubr.f32.gmra.mrb[0].mxu0 %v197
    %v265 = vpop.f32.mrb[0].mxu0
    %v266 = vadd.f32 0.0, %v265
    %v267 = vpop.f32.mrb[0].mxu0
    %268 = vdwg.mxu0
    %v269 = vld [vmem:[#allocation2] sm:$0xf]
    %v270 = vadd.f32 %v269, %v266
    %s271 = scalar_lea.vmem [#allocation2], 20
    %v272 = vld [vmem:[%s271] sm:$0xf]
    %v273 = vadd.f32 %v272, %v266
    %v274 = vxor.u32 %v270, 2147483648
    %v275 = vmul.f32 %v274, 1.442695
    %v276 = vpow.pop %v275
    %v277 = vadd.f32 %v276, 1.0
    %v278 = vrcp.pop %v277
    %v279 = vmul.f32 1.0, %v278
    %v280 = vtanh.pop %v270
    %v281 = vmul.f32 %v279, 0.0
    %283 = vrot.lane.b32.xlu0 %v280, 96
    %v284 = vpop.permute.xlu0 %283
    %v286 = vmul.f32 %v279, %v284
    %288 = vrot.lane.b32.xlu0 %v286, 16
    %v289 = vpop.permute.xlu0 %288
    %v291 = vadd.f32 %v281, %v289
    %v292 = vtanh.pop %v291
    %294 = vrot.lane.b32.xlu0 %v292, 32
    %v295 = vpop.permute.xlu0 %294
    %v297 = vmul.f32 %v279, %v295
    %v298 = vxor.u32 %v273, 2147483648
    %v299 = vmul.f32 %v298, 1.442695
    %v300 = vpow.pop %v299
    %v301 = vadd.f32 %v300, 1.0
    %v302 = vrcp.pop %v301
    %v303 = vmul.f32 1.0, %v302
    %v304 = vtanh.pop %v273
    %v305 = vmul.f32 %v303, 0.0
    %307 = vrot.lane.b32.xlu0 %v304, 96
    %v308 = vpop.permute.xlu0 %307
    %v310 = vmul.f32 %v303, %v308
    %312 = vrot.lane.b32.xlu0 %v310, 16
    %v313 = vpop.permute.xlu0 %312
    %v315 = vadd.f32 %v305, %v313
    %v316 = vtanh.pop %v315
    %318 = vrot.lane.b32.xlu0 %v316, 32
    %v319 = vpop.permute.xlu0 %318
    %v321 = vmul.f32 %v303, %v319
    %323 = vrot.lane.b32.xlu0 %v297, 80
    %v324 = vpop.permute.xlu0 %323
    %327 = vrot.lane.b32.xlu0 %v321, 32
    %v328 = vpop.permute.xlu0 %327
    %vm330 = vcmask 130048
    %v331 = vsel %vm330, %v324, %v328
    %v333 = vsel %vm195, %v331, 0
    %335 = vmatprep.subr.mxu0 0.0
    %336 = vmatpush1.msra.mxu0 %v191
    %337 = vmatprep.subr.mxu0 0.0
    %338 = vmatpush1.msra.mxu0 %v192
    %339 = vmatprep.subr.mxu0 0.0
    %340 = vmatpush1.msra.mxu0 %v193
    %341 = vmatprep.subr.mxu0 0.0
    %342 = vmatpush1.msra.mxu0 %v194
    %343 = vmatprep.subr.mxu0 0.0
    %344 = vmatpush1.msra.mxu0 0.0
    %345 = vmatprep.subr.mxu0 0.0
    %346 = vmatpush1.msra.mxu0 0.0
    %347 = vmatprep.subr.mxu0 0.0
    %348 = vmatpush1.msra.mxu0 0.0
    %349 = vmatprep.subr.mxu0 0.0
    %350 = vmatpush1.msra.mxu0 0.0
    %351 = vmatprep.subr.mxu0 0.0
    %352 = vmatpush1.msra.mxu0 0.0
    %353 = vmatprep.subr.mxu0 0.0
    %354 = vmatpush1.msra.mxu0 0.0
    %355 = vmatprep.subr.mxu0 0.0
    %356 = vmatpush1.msra.mxu0 0.0
    %357 = vmatprep.subr.mxu0 0.0
    %358 = vmatpush1.msra.mxu0 0.0
    %359 = vmatprep.subr.mxu0 0.0
    %360 = vmatpush1.msra.mxu0 0.0
    %361 = vmatprep.subr.mxu0 0.0
    %362 = vmatpush1.msra.mxu0 0.0
    %363 = vmatprep.subr.mxu0 0.0
    %364 = vmatpush1.msra.mxu0 0.0
    %365 = vmatprep.subr.mxu0 0.0
    %366 = vmatpush1.msra.mxu0 0.0
    %367 = vmatprep.subr.mxu0 0.0
    %368 = vmatpush1.msra.mxu0 0.0
    %369 = vmatprep.subr.mxu0 0.0
    %370 = vmatpush1.msra.mxu0 0.0
    %371 = vmatprep.subr.mxu0 0.0
    %372 = vmatpush1.msra.mxu0 0.0
    %373 = vmatprep.subr.mxu0 0.0
    %374 = vmatpush1.msra.mxu0 0.0
    %375 = vmatprep.subr.mxu0 0.0
    %376 = vmatpush1.msra.mxu0 0.0
    %377 = vmatprep.subr.mxu0 0.0
    %378 = vmatpush1.msra.mxu0 0.0
    %379 = vmatprep.subr.mxu0 0.0
    %380 = vmatpush1.msra.mxu0 0.0
    %381 = vmatprep.subr.mxu0 0.0
    %382 = vmatpush1.msra.mxu0 0.0
    %383 = vmatprep.subr.mxu0 0.0
    %384 = vmatpush1.msra.mxu0 0.0
    %385 = vmatprep.subr.mxu0 0.0
    %386 = vmatpush1.msra.mxu0 0.0
    %387 = vmatprep.subr.mxu0 0.0
    %388 = vmatpush1.msra.mxu0 0.0
    %389 = vmatprep.subr.mxu0 0.0
    %390 = vmatpush1.msra.mxu0 0.0
    %391 = vmatprep.subr.mxu0 0.0
    %392 = vmatpush1.msra.mxu0 0.0
    %393 = vmatprep.subr.mxu0 0.0
    %394 = vmatpush1.msra.mxu0 0.0
    %395 = vmatprep.subr.mxu0 0.0
    %396 = vmatpush1.msra.mxu0 0.0
    %397 = vmatprep.subr.mxu0 0.0
    %398 = vmatpush1.msra.mxu0 0.0
    %399 = vmatprep.mubr.f32.mxu0 0.0
    %400 = vmatmul.mubr.f32.gmra.mrb[0].mxu0 %v333
    %v401 = vpop.f32.mrb[0].mxu0
    %v402 = vadd.f32 0.0, %v401
    %v403 = vpop.f32.mrb[0].mxu0
    %404 = vdwg.mxu0
    %s405 = scalar_lea.vmem [#allocation2], 4
    %v406 = vld [vmem:[%s405] sm:$0xf]
    %v407 = vadd.f32 %v406, %v402
    %s408 = scalar_lea.vmem [#allocation2], 16
    %v409 = vld [vmem:[%s408] sm:$0xf]
    %v410 = vadd.f32 %v409, %v402
    %v411 = vxor.u32 %v407, 2147483648
    %v412 = vmul.f32 %v411, 1.442695
    %v413 = vpow.pop %v412
    %v414 = vadd.f32 %v413, 1.0
    %v415 = vrcp.pop %v414
    %v416 = vmul.f32 1.0, %v415
    %v417 = vtanh.pop %v407
    %v418 = vmul.f32 %v416, %v291
    %420 = vrot.lane.b32.xlu0 %v417, 96
    %v421 = vpop.permute.xlu0 %420
    %v423 = vmul.f32 %v416, %v421
    %425 = vrot.lane.b32.xlu0 %v423, 16
    %v426 = vpop.permute.xlu0 %425
    %v428 = vadd.f32 %v418, %v426
    %v429 = vtanh.pop %v428
    %431 = vrot.lane.b32.xlu0 %v429, 32
    %v432 = vpop.permute.xlu0 %431
    %v434 = vmul.f32 %v416, %v432
    %v435 = vxor.u32 %v410, 2147483648
    %v436 = vmul.f32 %v435, 1.442695
    %v437 = vpow.pop %v436
    %v438 = vadd.f32 %v437, 1.0
    %v439 = vrcp.pop %v438
    %v440 = vmul.f32 1.0, %v439
    %v441 = vtanh.pop %v410
    %v442 = vmul.f32 %v440, %v315
    %444 = vrot.lane.b32.xlu0 %v441, 96
    %v445 = vpop.permute.xlu0 %444
    %v447 = vmul.f32 %v440, %v445
    %449 = vrot.lane.b32.xlu0 %v447, 16
    %v450 = vpop.permute.xlu0 %449
    %v452 = vadd.f32 %v442, %v450
    %v453 = vtanh.pop %v452
    %455 = vrot.lane.b32.xlu0 %v453, 32
    %v456 = vpop.permute.xlu0 %455
    %v458 = vmul.f32 %v440, %v456
    %460 = vrot.lane.b32.xlu0 %v434, 80
    %v461 = vpop.permute.xlu0 %460
    %464 = vrot.lane.b32.xlu0 %v458, 32
    %v465 = vpop.permute.xlu0 %464
    %v467 = vsel %vm330, %v461, %v465
    %v469 = vsel %vm195, %v467, 0
    %471 = vmatprep.subr.mxu0 0.0
    %472 = vmatpush1.msra.mxu0 %v191
    %473 = vmatprep.subr.mxu0 0.0
    %474 = vmatpush1.msra.mxu0 %v192
    %475 = vmatprep.subr.mxu0 0.0
    %476 = vmatpush1.msra.mxu0 %v193
    %477 = vmatprep.subr.mxu0 0.0
    %478 = vmatpush1.msra.mxu0 %v194
    %479 = vmatprep.subr.mxu0 0.0
    %480 = vmatpush1.msra.mxu0 0.0
    %481 = vmatprep.subr.mxu0 0.0
    %482 = vmatpush1.msra.mxu0 0.0
    %483 = vmatprep.subr.mxu0 0.0
    %484 = vmatpush1.msra.mxu0 0.0
    %485 = vmatprep.subr.mxu0 0.0
    %486 = vmatpush1.msra.mxu0 0.0
    %487 = vmatprep.subr.mxu0 0.0
    %488 = vmatpush1.msra.mxu0 0.0
    %489 = vmatprep.subr.mxu0 0.0
    %490 = vmatpush1.msra.mxu0 0.0
    %491 = vmatprep.subr.mxu0 0.0
    %492 = vmatpush1.msra.mxu0 0.0
    %493 = vmatprep.subr.mxu0 0.0
    %494 = vmatpush1.msra.mxu0 0.0
    %495 = vmatprep.subr.mxu0 0.0
    %496 = vmatpush1.msra.mxu0 0.0
    %497 = vmatprep.subr.mxu0 0.0
    %498 = vmatpush1.msra.mxu0 0.0
    %499 = vmatprep.subr.mxu0 0.0
    %500 = vmatpush1.msra.mxu0 0.0
    %501 = vmatprep.subr.mxu0 0.0
    %502 = vmatpush1.msra.mxu0 0.0
    %503 = vmatprep.subr.mxu0 0.0
    %504 = vmatpush1.msra.mxu0 0.0
    %505 = vmatprep.subr.mxu0 0.0
    %506 = vmatpush1.msra.mxu0 0.0
    %507 = vmatprep.subr.mxu0 0.0
    %508 = vmatpush1.msra.mxu0 0.0
    %509 = vmatprep.subr.mxu0 0.0
    %510 = vmatpush1.msra.mxu0 0.0
    %511 = vmatprep.subr.mxu0 0.0
    %512 = vmatpush1.msra.mxu0 0.0
    %513 = vmatprep.subr.mxu0 0.0
    %514 = vmatpush1.msra.mxu0 0.0
    %515 = vmatprep.subr.mxu0 0.0
    %516 = vmatpush1.msra.mxu0 0.0
    %517 = vmatprep.subr.mxu0 0.0
    %518 = vmatpush1.msra.mxu0 0.0
    %519 = vmatprep.subr.mxu0 0.0
    %520 = vmatpush1.msra.mxu0 0.0
    %521 = vmatprep.subr.mxu0 0.0
    %522 = vmatpush1.msra.mxu0 0.0
    %523 = vmatprep.subr.mxu0 0.0
    %524 = vmatpush1.msra.mxu0 0.0
    %525 = vmatprep.subr.mxu0 0.0
    %526 = vmatpush1.msra.mxu0 0.0
    %527 = vmatprep.subr.mxu0 0.0
    %528 = vmatpush1.msra.mxu0 0.0
    %529 = vmatprep.subr.mxu0 0.0
    %530 = vmatpush1.msra.mxu0 0.0
    %531 = vmatprep.subr.mxu0 0.0
    %532 = vmatpush1.msra.mxu0 0.0
    %533 = vmatprep.subr.mxu0 0.0
    %534 = vmatpush1.msra.mxu0 0.0
    %535 = vmatprep.mubr.f32.mxu0 0.0
    %536 = vmatmul.mubr.f32.gmra.mrb[0].mxu0 %v469
    %v537 = vpop.f32.mrb[0].mxu0
    %v538 = vadd.f32 0.0, %v537
    %v539 = vpop.f32.mrb[0].mxu0
    %540 = vdwg.mxu0
    %s541 = scalar_lea.vmem [#allocation2], 8
    %v542 = vld [vmem:[%s541] sm:$0xf]
    %v543 = vadd.f32 %v542, %v538
    %s544 = scalar_lea.vmem [#allocation2], 12
    %v545 = vld [vmem:[%s544] sm:$0xf]
    %v546 = vadd.f32 %v545, %v538
    %v547 = vxor.u32 %v543, 2147483648
    %v548 = vmul.f32 %v547, 1.442695
    %v549 = vpow.pop %v548
    %v550 = vadd.f32 %v549, 1.0
    %v551 = vrcp.pop %v550
    %v552 = vmul.f32 1.0, %v551
    %v553 = vtanh.pop %v543
    %v554 = vmul.f32 %v552, %v428
    %556 = vrot.lane.b32.xlu0 %v553, 96
    %v557 = vpop.permute.xlu0 %556
    %v559 = vmul.f32 %v552, %v557
    %561 = vrot.lane.b32.xlu0 %v559, 16
    %v562 = vpop.permute.xlu0 %561
    %v564 = vadd.f32 %v554, %v562
    %v565 = vtanh.pop %v564
    %567 = vrot.lane.b32.xlu0 %v565, 32
    %v568 = vpop.permute.xlu0 %567
    %v570 = vmul.f32 %v552, %v568
    %v571 = vxor.u32 %v546, 2147483648
    %v572 = vmul.f32 %v571, 1.442695
    %v573 = vpow.pop %v572
    %v574 = vadd.f32 %v573, 1.0
    %v575 = vrcp.pop %v574
    %v576 = vmul.f32 1.0, %v575
    %v577 = vtanh.pop %v546
    %v578 = vmul.f32 %v576, %v452
    %580 = vrot.lane.b32.xlu0 %v577, 96
    %v581 = vpop.permute.xlu0 %580
    %v583 = vmul.f32 %v576, %v581
    %585 = vrot.lane.b32.xlu0 %v583, 16
    %v586 = vpop.permute.xlu0 %585
    %v588 = vadd.f32 %v578, %v586
    %v589 = vtanh.pop %v588
    %591 = vrot.lane.b32.xlu0 %v589, 32
    %v592 = vpop.permute.xlu0 %591
    %v594 = vmul.f32 %v576, %v592
    %596 = vrot.lane.b32.xlu0 %v570, 80
    %v597 = vpop.permute.xlu0 %596
    %600 = vrot.lane.b32.xlu0 %v594, 32
    %v601 = vpop.permute.xlu0 %600
    %v603 = vsel %vm330, %v597, %v601
    %v605 = vsel %vm195, %v603, 0
    %607 = vmatprep.subr.mxu0 0.0
    %608 = vmatpush1.msra.mxu0 %v191
    %609 = vmatprep.subr.mxu0 0.0
    %610 = vmatpush1.msra.mxu0 %v192
    %611 = vmatprep.subr.mxu0 0.0
    %612 = vmatpush1.msra.mxu0 %v193
    %613 = vmatprep.subr.mxu0 0.0
    %614 = vmatpush1.msra.mxu0 %v194
    %615 = vmatprep.subr.mxu0 0.0
    %616 = vmatpush1.msra.mxu0 0.0
    %617 = vmatprep.subr.mxu0 0.0
    %618 = vmatpush1.msra.mxu0 0.0
    %619 = vmatprep.subr.mxu0 0.0
    %620 = vmatpush1.msra.mxu0 0.0
    %621 = vmatprep.subr.mxu0 0.0
    %622 = vmatpush1.msra.mxu0 0.0
    %623 = vmatprep.subr.mxu0 0.0
    %624 = vmatpush1.msra.mxu0 0.0
    %625 = vmatprep.subr.mxu0 0.0
    %626 = vmatpush1.msra.mxu0 0.0
    %627 = vmatprep.subr.mxu0 0.0
    %628 = vmatpush1.msra.mxu0 0.0
    %629 = vmatprep.subr.mxu0 0.0
    %630 = vmatpush1.msra.mxu0 0.0
    %631 = vmatprep.subr.mxu0 0.0
    %632 = vmatpush1.msra.mxu0 0.0
    %633 = vmatprep.subr.mxu0 0.0
    %634 = vmatpush1.msra.mxu0 0.0
    %635 = vmatprep.subr.mxu0 0.0
    %636 = vmatpush1.msra.mxu0 0.0
    %637 = vmatprep.subr.mxu0 0.0
    %638 = vmatpush1.msra.mxu0 0.0
    %639 = vmatprep.subr.mxu0 0.0
    %640 = vmatpush1.msra.mxu0 0.0
    %641 = vmatprep.subr.mxu0 0.0
    %642 = vmatpush1.msra.mxu0 0.0
    %643 = vmatprep.subr.mxu0 0.0
    %644 = vmatpush1.msra.mxu0 0.0
    %645 = vmatprep.subr.mxu0 0.0
    %646 = vmatpush1.msra.mxu0 0.0
    %647 = vmatprep.subr.mxu0 0.0
    %648 = vmatpush1.msra.mxu0 0.0
    %649 = vmatprep.subr.mxu0 0.0
    %650 = vmatpush1.msra.mxu0 0.0
    %651 = vmatprep.subr.mxu0 0.0
    %652 = vmatpush1.msra.mxu0 0.0
    %653 = vmatprep.subr.mxu0 0.0
    %654 = vmatpush1.msra.mxu0 0.0
    %655 = vmatprep.subr.mxu0 0.0
    %656 = vmatpush1.msra.mxu0 0.0
    %657 = vmatprep.subr.mxu0 0.0
    %658 = vmatpush1.msra.mxu0 0.0
    %659 = vmatprep.subr.mxu0 0.0
    %660 = vmatpush1.msra.mxu0 0.0
    %661 = vmatprep.subr.mxu0 0.0
    %662 = vmatpush1.msra.mxu0 0.0
    %663 = vmatprep.subr.mxu0 0.0
    %664 = vmatpush1.msra.mxu0 0.0
    %665 = vmatprep.subr.mxu0 0.0
    %666 = vmatpush1.msra.mxu0 0.0
    %667 = vmatprep.subr.mxu0 0.0
    %668 = vmatpush1.msra.mxu0 0.0
    %669 = vmatprep.subr.mxu0 0.0
    %670 = vmatpush1.msra.mxu0 0.0
    %671 = vmatprep.mubr.f32.mxu0 0.0
    %672 = vmatmul.mubr.f32.gmra.mrb[0].mxu0 %v605
    %v673 = vpop.f32.mrb[0].mxu0
    %v674 = vadd.f32 0.0, %v673
    %v675 = vpop.f32.mrb[0].mxu0
    %676 = vdwg.mxu0
    %v677 = vadd.f32 %v545, %v674
    %v678 = vadd.f32 %v542, %v674
    %v679 = vxor.u32 %v677, 2147483648
    %v680 = vmul.f32 %v679, 1.442695
    %v681 = vpow.pop %v680
    %v682 = vadd.f32 %v681, 1.0
    %v683 = vrcp.pop %v682
    %v684 = vmul.f32 1.0, %v683
    %v685 = vtanh.pop %v677
    %v686 = vmul.f32 %v684, %v564
    %688 = vrot.lane.b32.xlu0 %v685, 96
    %v689 = vpop.permute.xlu0 %688
    %v691 = vmul.f32 %v684, %v689
    %693 = vrot.lane.b32.xlu0 %v691, 16
    %v694 = vpop.permute.xlu0 %693
    %v696 = vadd.f32 %v686, %v694
    %v697 = vtanh.pop %v696
    %699 = vrot.lane.b32.xlu0 %v697, 32
    %v700 = vpop.permute.xlu0 %699
    %v702 = vmul.f32 %v684, %v700
    %v703 = vxor.u32 %v678, 2147483648
    %v704 = vmul.f32 %v703, 1.442695
    %v705 = vpow.pop %v704
    %v706 = vadd.f32 %v705, 1.0
    %v707 = vrcp.pop %v706
    %v708 = vmul.f32 1.0, %v707
    %v709 = vtanh.pop %v678
    %v710 = vmul.f32 %v708, %v588
    %712 = vrot.lane.b32.xlu0 %v709, 96
    %v713 = vpop.permute.xlu0 %712
    %v715 = vmul.f32 %v708, %v713
    %717 = vrot.lane.b32.xlu0 %v715, 16
    %v718 = vpop.permute.xlu0 %717
    %v720 = vadd.f32 %v710, %v718
    %v721 = vtanh.pop %v720
    %723 = vrot.lane.b32.xlu0 %v721, 32
    %v724 = vpop.permute.xlu0 %723
    %v726 = vmul.f32 %v708, %v724
    %728 = vrot.lane.b32.xlu0 %v702, 80
    %v729 = vpop.permute.xlu0 %728
    %732 = vrot.lane.b32.xlu0 %v726, 32
    %v733 = vpop.permute.xlu0 %732
    %v735 = vsel %vm330, %v729, %v733
    %v737 = vsel %vm195, %v735, 0
    %739 = vmatprep.subr.mxu0 0.0
    %740 = vmatpush1.msra.mxu0 %v191
    %741 = vmatprep.subr.mxu0 0.0
    %742 = vmatpush1.msra.mxu0 %v192
    %743 = vmatprep.subr.mxu0 0.0
    %744 = vmatpush1.msra.mxu0 %v193
    %745 = vmatprep.subr.mxu0 0.0
    %746 = vmatpush1.msra.mxu0 %v194
    %747 = vmatprep.subr.mxu0 0.0
    %748 = vmatpush1.msra.mxu0 0.0
    %749 = vmatprep.subr.mxu0 0.0
    %750 = vmatpush1.msra.mxu0 0.0
    %751 = vmatprep.subr.mxu0 0.0
    %752 = vmatpush1.msra.mxu0 0.0
    %753 = vmatprep.subr.mxu0 0.0
    %754 = vmatpush1.msra.mxu0 0.0
    %755 = vmatprep.subr.mxu0 0.0
    %756 = vmatpush1.msra.mxu0 0.0
    %757 = vmatprep.subr.mxu0 0.0
    %758 = vmatpush1.msra.mxu0 0.0
    %759 = vmatprep.subr.mxu0 0.0
    %760 = vmatpush1.msra.mxu0 0.0
    %761 = vmatprep.subr.mxu0 0.0
    %762 = vmatpush1.msra.mxu0 0.0
    %763 = vmatprep.subr.mxu0 0.0
    %764 = vmatpush1.msra.mxu0 0.0
    %765 = vmatprep.subr.mxu0 0.0
    %766 = vmatpush1.msra.mxu0 0.0
    %767 = vmatprep.subr.mxu0 0.0
    %768 = vmatpush1.msra.mxu0 0.0
    %769 = vmatprep.subr.mxu0 0.0
    %770 = vmatpush1.msra.mxu0 0.0
    %771 = vmatprep.subr.mxu0 0.0
    %772 = vmatpush1.msra.mxu0 0.0
    %773 = vmatprep.subr.mxu0 0.0
    %774 = vmatpush1.msra.mxu0 0.0
    %775 = vmatprep.subr.mxu0 0.0
    %776 = vmatpush1.msra.mxu0 0.0
    %777 = vmatprep.subr.mxu0 0.0
    %778 = vmatpush1.msra.mxu0 0.0
    %779 = vmatprep.subr.mxu0 0.0
    %780 = vmatpush1.msra.mxu0 0.0
    %781 = vmatprep.subr.mxu0 0.0
    %782 = vmatpush1.msra.mxu0 0.0
    %783 = vmatprep.subr.mxu0 0.0
    %784 = vmatpush1.msra.mxu0 0.0
    %785 = vmatprep.subr.mxu0 0.0
    %786 = vmatpush1.msra.mxu0 0.0
    %787 = vmatprep.subr.mxu0 0.0
    %788 = vmatpush1.msra.mxu0 0.0
    %789 = vmatprep.subr.mxu0 0.0
    %790 = vmatpush1.msra.mxu0 0.0
    %791 = vmatprep.subr.mxu0 0.0
    %792 = vmatpush1.msra.mxu0 0.0
    %793 = vmatprep.subr.mxu0 0.0
    %794 = vmatpush1.msra.mxu0 0.0
    %795 = vmatprep.subr.mxu0 0.0
    %796 = vmatpush1.msra.mxu0 0.0
    %797 = vmatprep.subr.mxu0 0.0
    %798 = vmatpush1.msra.mxu0 0.0
    %799 = vmatprep.subr.mxu0 0.0
    %800 = vmatpush1.msra.mxu0 0.0
    %801 = vmatprep.subr.mxu0 0.0
    %802 = vmatpush1.msra.mxu0 0.0
    %803 = vmatprep.mubr.f32.mxu0 0.0
    %804 = vmatmul.mubr.f32.gmra.mrb[0].mxu0 %v737
    %v805 = vpop.f32.mrb[0].mxu0
    %v806 = vadd.f32 0.0, %v805
    %v807 = vpop.f32.mrb[0].mxu0
    %808 = vdwg.mxu0
    %v809 = vadd.f32 %v409, %v806
    %v810 = vadd.f32 %v406, %v806
    %v811 = vxor.u32 %v809, 2147483648
    %v812 = vmul.f32 %v811, 1.442695
    %v813 = vpow.pop %v812
    %v814 = vadd.f32 %v813, 1.0
    %v815 = vrcp.pop %v814
    %v816 = vmul.f32 1.0, %v815
    %v817 = vtanh.pop %v809
    %v818 = vmul.f32 %v816, %v696
    %820 = vrot.lane.b32.xlu0 %v817, 96
    %v821 = vpop.permute.xlu0 %820
    %v823 = vmul.f32 %v816, %v821
    %825 = vrot.lane.b32.xlu0 %v823, 16
    %v826 = vpop.permute.xlu0 %825
    %v828 = vadd.f32 %v818, %v826
    %v829 = vtanh.pop %v828
    %831 = vrot.lane.b32.xlu0 %v829, 32
    %v832 = vpop.permute.xlu0 %831
    %v834 = vmul.f32 %v816, %v832
    %v835 = vxor.u32 %v810, 2147483648
    %v836 = vmul.f32 %v835, 1.442695
    %v837 = vpow.pop %v836
    %v838 = vadd.f32 %v837, 1.0
    %v839 = vrcp.pop %v838
    %v840 = vmul.f32 1.0, %v839
    %v841 = vtanh.pop %v810
    %v842 = vmul.f32 %v840, %v720
    %844 = vrot.lane.b32.xlu0 %v841, 96
    %v845 = vpop.permute.xlu0 %844
    %v847 = vmul.f32 %v840, %v845
    %849 = vrot.lane.b32.xlu0 %v847, 16
    %v850 = vpop.permute.xlu0 %849
    %v852 = vadd.f32 %v842, %v850
    %v853 = vtanh.pop %v852
    %855 = vrot.lane.b32.xlu0 %v853, 32
    %v856 = vpop.permute.xlu0 %855
    %v858 = vmul.f32 %v840, %v856
    %860 = vrot.lane.b32.xlu0 %v834, 80
    %v861 = vpop.permute.xlu0 %860
    %864 = vrot.lane.b32.xlu0 %v858, 32
    %v865 = vpop.permute.xlu0 %864
    %v867 = vsel %vm330, %v861, %v865
    %v869 = vsel %vm195, %v867, 0
    %871 = vmatprep.subr.mxu0 0.0
    %872 = vmatpush1.msra.mxu0 %v191
    %873 = vmatprep.subr.mxu0 0.0
    %874 = vmatpush1.msra.mxu0 %v192
    %875 = vmatprep.subr.mxu0 0.0
    %876 = vmatpush1.msra.mxu0 %v193
    %877 = vmatprep.subr.mxu0 0.0
    %878 = vmatpush1.msra.mxu0 %v194
    %879 = vmatprep.subr.mxu0 0.0
    %880 = vmatpush1.msra.mxu0 0.0
    %881 = vmatprep.subr.mxu0 0.0
    %882 = vmatpush1.msra.mxu0 0.0
    %883 = vmatprep.subr.mxu0 0.0
    %884 = vmatpush1.msra.mxu0 0.0
    %885 = vmatprep.subr.mxu0 0.0
    %886 = vmatpush1.msra.mxu0 0.0
    %887 = vmatprep.subr.mxu0 0.0
    %888 = vmatpush1.msra.mxu0 0.0
    %889 = vmatprep.subr.mxu0 0.0
    %890 = vmatpush1.msra.mxu0 0.0
    %891 = vmatprep.subr.mxu0 0.0
    %892 = vmatpush1.msra.mxu0 0.0
    %893 = vmatprep.subr.mxu0 0.0
    %894 = vmatpush1.msra.mxu0 0.0
    %895 = vmatprep.subr.mxu0 0.0
    %896 = vmatpush1.msra.mxu0 0.0
    %897 = vmatprep.subr.mxu0 0.0
    %898 = vmatpush1.msra.mxu0 0.0
    %899 = vmatprep.subr.mxu0 0.0
    %900 = vmatpush1.msra.mxu0 0.0
    %901 = vmatprep.subr.mxu0 0.0
    %902 = vmatpush1.msra.mxu0 0.0
    %903 = vmatprep.subr.mxu0 0.0
    %904 = vmatpush1.msra.mxu0 0.0
    %905 = vmatprep.subr.mxu0 0.0
    %906 = vmatpush1.msra.mxu0 0.0
    %907 = vmatprep.subr.mxu0 0.0
    %908 = vmatpush1.msra.mxu0 0.0
    %909 = vmatprep.subr.mxu0 0.0
    %910 = vmatpush1.msra.mxu0 0.0
    %911 = vmatprep.subr.mxu0 0.0
    %912 = vmatpush1.msra.mxu0 0.0
    %913 = vmatprep.subr.mxu0 0.0
    %914 = vmatpush1.msra.mxu0 0.0
    %915 = vmatprep.subr.mxu0 0.0
    %916 = vmatpush1.msra.mxu0 0.0
    %917 = vmatprep.subr.mxu0 0.0
    %918 = vmatpush1.msra.mxu0 0.0
    %919 = vmatprep.subr.mxu0 0.0
    %920 = vmatpush1.msra.mxu0 0.0
    %921 = vmatprep.subr.mxu0 0.0
    %922 = vmatpush1.msra.mxu0 0.0
    %923 = vmatprep.subr.mxu0 0.0
    %924 = vmatpush1.msra.mxu0 0.0
    %925 = vmatprep.subr.mxu0 0.0
    %926 = vmatpush1.msra.mxu0 0.0
    %927 = vmatprep.subr.mxu0 0.0
    %928 = vmatpush1.msra.mxu0 0.0
    %929 = vmatprep.subr.mxu0 0.0
    %930 = vmatpush1.msra.mxu0 0.0
    %931 = vmatprep.subr.mxu0 0.0
    %932 = vmatpush1.msra.mxu0 0.0
    %933 = vmatprep.subr.mxu0 0.0
    %934 = vmatpush1.msra.mxu0 0.0
    %935 = vmatprep.mubr.f32.mxu0 0.0
    %936 = vmatmul.mubr.f32.gmra.mrb[0].mxu0 %v869
    %v937 = vpop.f32.mrb[0].mxu0
    %v938 = vadd.f32 0.0, %v937
    %v939 = vpop.f32.mrb[0].mxu0
    %940 = vdwg.mxu0
    %v941 = vadd.f32 %v272, %v938
    %v942 = vadd.f32 %v269, %v938
    %v943 = vxor.u32 %v941, 2147483648
    %v944 = vmul.f32 %v943, 1.442695
    %v945 = vpow.pop %v944
    %v946 = vadd.f32 %v945, 1.0
    %v947 = vrcp.pop %v946
    %v948 = vmul.f32 1.0, %v947
    %v949 = vtanh.pop %v941
    %v950 = vmul.f32 %v948, %v828
    %952 = vrot.lane.b32.xlu0 %v949, 96
    %v953 = vpop.permute.xlu0 %952
    %v955 = vmul.f32 %v948, %v953
    %957 = vrot.lane.b32.xlu0 %v955, 16
    %v958 = vpop.permute.xlu0 %957
    %v960 = vadd.f32 %v950, %v958
    %v961 = vtanh.pop %v960
    %963 = vrot.lane.b32.xlu0 %v961, 32
    %v964 = vpop.permute.xlu0 %963
    %v966 = vmul.f32 %v948, %v964
    %v967 = vxor.u32 %v942, 2147483648
    %v968 = vmul.f32 %v967, 1.442695
    %v969 = vpow.pop %v968
    %v970 = vadd.f32 %v969, 1.0
    %v971 = vrcp.pop %v970
    %v972 = vmul.f32 1.0, %v971
    %v973 = vtanh.pop %v942
    %v974 = vmul.f32 %v972, %v852
    %976 = vrot.lane.b32.xlu0 %v973, 96
    %v977 = vpop.permute.xlu0 %976
    %v979 = vmul.f32 %v972, %v977
    %981 = vrot.lane.b32.xlu0 %v979, 16
    %v982 = vpop.permute.xlu0 %981
    %v984 = vadd.f32 %v974, %v982
    %v985 = vtanh.pop %v984
    %987 = vrot.lane.b32.xlu0 %v985, 32
    %v988 = vpop.permute.xlu0 %987
    %v990 = vmul.f32 %v972, %v988
    %992 = vrot.lane.b32.xlu0 %v966, 80
    %v993 = vpop.permute.xlu0 %992
    %996 = vrot.lane.b32.xlu0 %v990, 32
    %v997 = vpop.permute.xlu0 %996
    %v999 = vrot.slane %v966, 2
    %1000 = vrot.lane.b32.xlu0 %v999, 112
    %v1001 = vpop.permute.xlu0 %1000
    %v1003 = vrot.slane %v990, 2
    %1004 = vrot.lane.b32.xlu0 %v1003, 64
    %v1005 = vpop.permute.xlu0 %1004
    %v1007 = vsel %vm330, %v993, %v997
    %v1008 = vsel %vm195, %v1007, %v1001
    %vm1009 = vcmask 392192
    %v1010 = vsel %vm1009, %v1008, %v1005
    %v1011 = vld [vmem:[%s4] sm:$0xff]
    %v1012 = vld [vmem:[%s4 + $0x8] sm:$0xff]
    %v1013 = vld [vmem:[%s4 + $0x10] sm:$0xff]
    %v1014 = vld [vmem:[%s4 + $0x18] sm:$0xff]
    %v1015 = vld [vmem:[%s4 + $0x20] sm:$0xff]
    %v1016 = vld [vmem:[%s4 + $0x28] sm:$0xff]
    %v1017 = vld [vmem:[%s4 + $0x30] sm:$0xff]
    %v1018 = vld [vmem:[%s4 + $0x38] sm:$0xff]
    %v1019 = vld [vmem:[%s5] sm:$0x1]
    %v1021 = vlaneseq
    %v1022 = vshrl.u32 %v1021, 7
    %v1023 = vsub.s32 0, %v1022
    %v1024 = vrot.slane %v1019, %v1023
    %vm1026 = vcmask 523264
    %v1028 = vsel %vm1026, %v1010, 0
    %1030 = vmatprep.subr.mxu0 0.0
    %1031 = vmatpush1.msra.mxu0 %v1011
    %1032 = vmatprep.subr.mxu0 0.0
    %1033 = vmatpush1.msra.mxu0 %v1012
    %1034 = vmatprep.subr.mxu0 0.0
    %1035 = vmatpush1.msra.mxu0 %v1013
    %1036 = vmatprep.subr.mxu0 0.0
    %1037 = vmatpush1.msra.mxu0 %v1014
    %1038 = vmatprep.subr.mxu0 0.0
    %1039 = vmatpush1.msra.mxu0 %v1015
    %1040 = vmatprep.subr.mxu0 0.0
    %1041 = vmatpush1.msra.mxu0 %v1016
    %1042 = vmatprep.subr.mxu0 0.0
    %1043 = vmatpush1.msra.mxu0 %v1017
    %1044 = vmatprep.subr.mxu0 0.0
    %1045 = vmatpush1.msra.mxu0 %v1018
    %1046 = vmatprep.subr.mxu0 0.0
    %1047 = vmatpush1.msra.mxu0 0.0
    %1048 = vmatprep.subr.mxu0 0.0
    %1049 = vmatpush1.msra.mxu0 0.0
    %1050 = vmatprep.subr.mxu0 0.0
    %1051 = vmatpush1.msra.mxu0 0.0
    %1052 = vmatprep.subr.mxu0 0.0
    %1053 = vmatpush1.msra.mxu0 0.0
    %1054 = vmatprep.subr.mxu0 0.0
    %1055 = vmatpush1.msra.mxu0 0.0
    %1056 = vmatprep.subr.mxu0 0.0
    %1057 = vmatpush1.msra.mxu0 0.0
    %1058 = vmatprep.subr.mxu0 0.0
    %1059 = vmatpush1.msra.mxu0 0.0
    %1060 = vmatprep.subr.mxu0 0.0
    %1061 = vmatpush1.msra.mxu0 0.0
    %1062 = vmatprep.subr.mxu0 0.0
    %1063 = vmatpush1.msra.mxu0 0.0
    %1064 = vmatprep.subr.mxu0 0.0
    %1065 = vmatpush1.msra.mxu0 0.0
    %1066 = vmatprep.subr.mxu0 0.0
    %1067 = vmatpush1.msra.mxu0 0.0
    %1068 = vmatprep.subr.mxu0 0.0
    %1069 = vmatpush1.msra.mxu0 0.0
    %1070 = vmatprep.subr.mxu0 0.0
    %1071 = vmatpush1.msra.mxu0 0.0
    %1072 = vmatprep.subr.mxu0 0.0
    %1073 = vmatpush1.msra.mxu0 0.0
    %1074 = vmatprep.subr.mxu0 0.0
    %1075 = vmatpush1.msra.mxu0 0.0
    %1076 = vmatprep.subr.mxu0 0.0
    %1077 = vmatpush1.msra.mxu0 0.0
    %1078 = vmatprep.subr.mxu0 0.0
    %1079 = vmatpush1.msra.mxu0 0.0
    %1080 = vmatprep.subr.mxu0 0.0
    %1081 = vmatpush1.msra.mxu0 0.0
    %1082 = vmatprep.subr.mxu0 0.0
    %1083 = vmatpush1.msra.mxu0 0.0
    %1084 = vmatprep.subr.mxu0 0.0
    %1085 = vmatpush1.msra.mxu0 0.0
    %1086 = vmatprep.subr.mxu0 0.0
    %1087 = vmatpush1.msra.mxu0 0.0
    %1088 = vmatprep.subr.mxu0 0.0
    %1089 = vmatpush1.msra.mxu0 0.0
    %1090 = vmatprep.subr.mxu0 0.0
    %1091 = vmatpush1.msra.mxu0 0.0
    %1092 = vmatprep.subr.mxu0 0.0
    %1093 = vmatpush1.msra.mxu0 0.0
    %1094 = vmatprep.mubr.f32.mxu0 0.0
    %1095 = vmatmul.mubr.f32.gmra.mrb[0].mxu0 %v1028
    %v1096 = vpop.f32.mrb[0].mxu0
    %v1097 = vadd.f32 %v1024, %v1096
    %v1098 = vpop.f32.mrb[0].mxu0
    %1099 = vdwg.mxu0
    %v1100 = vtanh.pop %v1097
    %v1101 = vld [vmem:[%s6] sm:$0xff]
    %v1102 = vld [vmem:[%s6 + $0x8] sm:$0xff]
    %v1103 = vld [vmem:[%s7] sm:$0x1]
    %v1105 = vlaneseq
    %v1106 = vshrl.u32 %v1105, 7
    %v1107 = vsub.s32 0, %v1106
    %v1108 = vrot.slane %v1103, %v1107
    %v1111 = vsel %vm330, %v1100, 0
    %1113 = vmatprep.subr.mxu0 0.0
    %1114 = vmatpush1.msra.mxu0 %v1101
    %1115 = vmatprep.subr.mxu0 0.0
    %1116 = vmatpush1.msra.mxu0 %v1102
    %1117 = vmatprep.subr.mxu0 0.0
    %1118 = vmatpush1.msra.mxu0 0.0
    %1119 = vmatprep.subr.mxu0 0.0
    %1120 = vmatpush1.msra.mxu0 0.0
    %1121 = vmatprep.subr.mxu0 0.0
    %1122 = vmatpush1.msra.mxu0 0.0
    %1123 = vmatprep.subr.mxu0 0.0
    %1124 = vmatpush1.msra.mxu0 0.0
    %1125 = vmatprep.subr.mxu0 0.0
    %1126 = vmatpush1.msra.mxu0 0.0
    %1127 = vmatprep.subr.mxu0 0.0
    %1128 = vmatpush1.msra.mxu0 0.0
    %1129 = vmatprep.subr.mxu0 0.0
    %1130 = vmatpush1.msra.mxu0 0.0
    %1131 = vmatprep.subr.mxu0 0.0
    %1132 = vmatpush1.msra.mxu0 0.0
    %1133 = vmatprep.subr.mxu0 0.0
    %1134 = vmatpush1.msra.mxu0 0.0
    %1135 = vmatprep.subr.mxu0 0.0
    %1136 = vmatpush1.msra.mxu0 0.0
    %1137 = vmatprep.subr.mxu0 0.0
    %1138 = vmatpush1.msra.mxu0 0.0
    %1139 = vmatprep.subr.mxu0 0.0
    %1140 = vmatpush1.msra.mxu0 0.0
    %1141 = vmatprep.subr.mxu0 0.0
    %1142 = vmatpush1.msra.mxu0 0.0
    %1143 = vmatprep.subr.mxu0 0.0
    %1144 = vmatpush1.msra.mxu0 0.0
    %1145 = vmatprep.subr.mxu0 0.0
    %1146 = vmatpush1.msra.mxu0 0.0
    %1147 = vmatprep.subr.mxu0 0.0
    %1148 = vmatpush1.msra.mxu0 0.0
    %1149 = vmatprep.subr.mxu0 0.0
    %1150 = vmatpush1.msra.mxu0 0.0
    %1151 = vmatprep.subr.mxu0 0.0
    %1152 = vmatpush1.msra.mxu0 0.0
    %1153 = vmatprep.subr.mxu0 0.0
    %1154 = vmatpush1.msra.mxu0 0.0
    %1155 = vmatprep.subr.mxu0 0.0
    %1156 = vmatpush1.msra.mxu0 0.0
    %1157 = vmatprep.subr.mxu0 0.0
    %1158 = vmatpush1.msra.mxu0 0.0
    %1159 = vmatprep.subr.mxu0 0.0
    %1160 = vmatpush1.msra.mxu0 0.0
    %1161 = vmatprep.subr.mxu0 0.0
    %1162 = vmatpush1.msra.mxu0 0.0
    %1163 = vmatprep.subr.mxu0 0.0
    %1164 = vmatpush1.msra.mxu0 0.0
    %1165 = vmatprep.subr.mxu0 0.0
    %1166 = vmatpush1.msra.mxu0 0.0
    %1167 = vmatprep.subr.mxu0 0.0
    %1168 = vmatpush1.msra.mxu0 0.0
    %1169 = vmatprep.subr.mxu0 0.0
    %1170 = vmatpush1.msra.mxu0 0.0
    %1171 = vmatprep.subr.mxu0 0.0
    %1172 = vmatpush1.msra.mxu0 0.0
    %1173 = vmatprep.subr.mxu0 0.0
    %1174 = vmatpush1.msra.mxu0 0.0
    %1175 = vmatprep.subr.mxu0 0.0
    %1176 = vmatpush1.msra.mxu0 0.0
    %1177 = vmatprep.mubr.f32.mxu0 0.0
    %1178 = vmatmul.mubr.f32.gmra.mrb[0].mxu0 %v1111
    %v1179 = vpop.f32.mrb[0].mxu0
    %v1180 = vadd.f32 %v1108, %v1179
    %v1181 = vpop.f32.mrb[0].mxu0
    %1182 = vdwg.mxu0
    %vm1183 = vcmask 17408
    %1184 = vst.msk [vmem:[#allocation3] sm:$0x3] %vm1183, %v1180
    // Predicated region
    $region34: #{bimpm_forward.7} parent=1 // pred_check
      _
    $region35: #{bimpm_forward.7} parent=1 // pred_check_branch
      %1186 = sbr.rel (0) target = $region37
    $region36: #{bimpm_forward.7} parent=1 // pred_region
      %s1188 = ssub.s32 32, 32
      %1189 = vsyncadd [#allocation4], %s1188
      %s1191 = sshll.u32 [#allocation3], 4
      %s1192 = int_to_ptr.vmem [resolvable:$true] %s1191
      %1194 = dma.vmem_to_hbm [thread:$0]  %s1192, 32, %s8, [#allocation4]
    $region37: #{bimpm_forward.7} parent=1 // pred_fallthru
      _
    // Predicated region
    $region38: #{bimpm_forward.7} parent=1 // pred_check
      _
    $region39: #{bimpm_forward.7} parent=1 // pred_check_branch
      %1196 = sbr.rel (0) target = $region41
    $region40: #{bimpm_forward.7} parent=1 // pred_region
      %1197 = dma.done [#allocation4], 32
    $region41: #{bimpm_forward.7} parent=1 // pred_fallthru
      _
    %1198 = vsyncpa [#allocation4], 1

// kernel: bimpm_forward.6
$region0: #{bimpm_forward.6}
  #allocation0 [shape = 'u32[]', space=smem, size = 0x4, offset = 0x4, fixed_abs, tag = 'smem constant byte address 0x4 - core index']
  #allocation1 [shape = 'u32[144,128]{1,0:T(1,128)}', space=vmem, size = 0x12000, scoped, tag = 'internal scratch']
  %s0 = inlined_call_operand.vmem [shape: f32[2,2,6,16], index: 0, kind: input, shape index: {}, may-alias: {0,2}]
  %s1 = inlined_call_operand.vmem [shape: f32[2,2,6,16], index: 1, kind: input, shape index: {}, may-alias: {1,3}]
  %s2 = inlined_call_operand.vmem [shape: f32[2,2,6,16], index: 2, kind: input, shape index: {}, may-alias: {0,2}]
  %s3 = inlined_call_operand.vmem [shape: f32[2,2,6,16], index: 3, kind: input, shape index: {}, may-alias: {1,3}]
  %s4 = inlined_call_operand.vmem [shape: f32[8,4,16], index: 4, kind: input, shape index: {}]
  %s5 = inlined_call_operand.vmem [shape: f32[2,2,6,128], index: 5, kind: output, shape index: {}]
  %s6 = sld [smem:[#allocation0]]
  $region53: #{bimpm_forward.6} parent=0
    _
  %s8 = ssub.s32 1, %s6
  %s9 = scalar_select 0, %s8, %s6
  loop: start=0, step=1, limit=4
  $region2: #{bimpm_forward.6} parent=0 // loop_pre_header
    _
  $region3: #{bimpm_forward.6} parent=0 // loop_header
    %s11 = sphi 0, %s15
    %p12 = scmp.ge.s32.totalorder %s11, 4
    %s18 = sphi 0, %s30
    %s19 = sphi 0, %s26
    %s20 = sphi 0, %s18
    %s21 = sphi 0, %s19
    %s22 = sphi 0, %s20
    %s23 = sphi 0, %s21
    %s35 = sphi 0, %s37
    %s38 = sphi 0, %s35
    %s39 = sphi 0, %s38
    %s55 = sphi 0, %s39
    %s63 = sphi 0, %s65
    %s66 = sphi 0, %s63
    %s67 = sphi 0, %s66
    %s83 = sphi 0, %s67
    %s91 = sphi 0, %s93
    %s94 = sphi 0, %s91
    %s95 = sphi 0, %s94
    %s111 = sphi 0, %s95
    %s119 = sphi 0, %s121
    %s122 = sphi 0, %s119
    %s123 = sphi 0, %s122
    %s139 = sphi 0, %s123
    %s143 = sphi 0, %s143
    %s145 = sphi 0, %s143
    %s146 = sphi 0, %s145
    %s160 = sphi 0, %s146
    %s168 = sphi 0, %s170
    %s171 = sphi 0, %s168
    %s172 = sphi 0, %s171
    %s188 = sphi 0, %s172
  $region4: #{bimpm_forward.6} parent=0 // loop_header_branch
    %14 = sbr.rel (%p12) target = $region8
  $region5: #{bimpm_forward.6} parent=0 // loop_body
    %s16 = ssub.s32 %s11, 1
    %s17 = ssub.s32 %s11, 2
    %s24 = sadd.s32 1, %s19
    %p25 = scmp.ge.s32.totalorder %s24, 1
    %s26 = scalar_select %p25, 0, %s24
    %s27 = sadd.s32 1, %s18
    %s28 = scalar_select %p25, %s27, %s18
    %p29 = scmp.ge.s32.totalorder %s28, 2
    %s30 = scalar_select %p29, 0, %s28
    %s31 = ssub.s32 %s18, %s30
    %s32 = ssub.s32 %s19, %s26
    %s33 = sor.u32 %s31, %s32
    %p34 = scmp.eq.s32.totalorder %s33, 0
    %s36 = sadd.s32 %s35, 1
    %s37 = scalar_select %p34, %s35, %s36
    %p40 = pneg %p34
    %p41 = scmp.eq.s32.totalorder %s11, 1
    %p42 = por %p40, %p41
    %p43 = scmp.ne.s32.totalorder %s35, %s38
    %p44 = scmp.eq.s32.totalorder %s11, 0
    %p45 = por %p43, %p44
    %p46 = scmp.ne.s32.totalorder %s35, %s38
    %p47 = scmp.eq.s32.totalorder %s16, 1
    %p48 = por %p46, %p47
    %p49 = scmp.ne.s32.totalorder %s38, %s39
    %p50 = scmp.eq.s32.totalorder %s16, 0
    %p51 = por %p49, %p50
    %p52 = scmp.ne.s32.totalorder %s38, %s39
    %p53 = scmp.eq.s32.totalorder %s17, 1
    %p54 = por %p52, %p53
    %p56 = scmp.ne.s32.totalorder %s39, %s55
    %p57 = scmp.eq.s32.totalorder %s17, 0
    %p58 = por %p56, %p57
    %s59 = ssub.s32 %s18, %s30
    %s60 = ssub.s32 %s19, %s26
    %s61 = sor.u32 %s59, %s60
    %p62 = scmp.eq.s32.totalorder %s61, 0
    %s64 = sadd.s32 %s63, 1
    %s65 = scalar_select %p62, %s63, %s64
    %p68 = pneg %p62
    %p69 = scmp.eq.s32.totalorder %s11, 1
    %p70 = por %p68, %p69
    %p71 = scmp.ne.s32.totalorder %s63, %s66
    %p72 = scmp.eq.s32.totalorder %s11, 0
    %p73 = por %p71, %p72
    %p74 = scmp.ne.s32.totalorder %s63, %s66
    %p75 = scmp.eq.s32.totalorder %s16, 1
    %p76 = por %p74, %p75
    %p77 = scmp.ne.s32.totalorder %s66, %s67
    %p78 = scmp.eq.s32.totalorder %s16, 0
    %p79 = por %p77, %p78
    %p80 = scmp.ne.s32.totalorder %s66, %s67
    %p81 = scmp.eq.s32.totalorder %s17, 1
    %p82 = por %p80, %p81
    %p84 = scmp.ne.s32.totalorder %s67, %s83
    %p85 = scmp.eq.s32.totalorder %s17, 0
    %p86 = por %p84, %p85
    %s87 = ssub.s32 1, %s18
    %s88 = ssub.s32 1, %s30
    %s89 = ssub.s32 %s87, %s88
    %p90 = scmp.eq.s32.totalorder %s89, 0
    %s92 = sadd.s32 %s91, 1
    %s93 = scalar_select %p90, %s91, %s92
    %p96 = pneg %p90
    %p97 = scmp.eq.s32.totalorder %s11, 1
    %p98 = por %p96, %p97
    %p99 = scmp.ne.s32.totalorder %s91, %s94
    %p100 = scmp.eq.s32.totalorder %s11, 0
    %p101 = por %p99, %p100
    %p102 = scmp.ne.s32.totalorder %s91, %s94
    %p103 = scmp.eq.s32.totalorder %s16, 1
    %p104 = por %p102, %p103
    %p105 = scmp.ne.s32.totalorder %s94, %s95
    %p106 = scmp.eq.s32.totalorder %s16, 0
    %p107 = por %p105, %p106
    %p108 = scmp.ne.s32.totalorder %s94, %s95
    %p109 = scmp.eq.s32.totalorder %s17, 1
    %p110 = por %p108, %p109
    %p112 = scmp.ne.s32.totalorder %s95, %s111
    %p113 = scmp.eq.s32.totalorder %s17, 0
    %p114 = por %p112, %p113
    %s115 = ssub.s32 1, %s18
    %s116 = ssub.s32 1, %s30
    %s117 = ssub.s32 %s115, %s116
    %p118 = scmp.eq.s32.totalorder %s117, 0
    %s120 = sadd.s32 %s119, 1
    %s121 = scalar_select %p118, %s119, %s120
    %p124 = pneg %p118
    %p125 = scmp.eq.s32.totalorder %s11, 1
    %p126 = por %p124, %p125
    %p127 = scmp.ne.s32.totalorder %s119, %s122
    %p128 = scmp.eq.s32.totalorder %s11, 0
    %p129 = por %p127, %p128
    %p130 = scmp.ne.s32.totalorder %s119, %s122
    %p131 = scmp.eq.s32.totalorder %s16, 1
    %p132 = por %p130, %p131
    %p133 = scmp.ne.s32.totalorder %s122, %s123
    %p134 = scmp.eq.s32.totalorder %s16, 0
    %p135 = por %p133, %p134
    %p136 = scmp.ne.s32.totalorder %s122, %s123
    %p137 = scmp.eq.s32.totalorder %s17, 1
    %p138 = por %p136, %p137
    %p140 = scmp.ne.s32.totalorder %s123, %s139
    %p141 = scmp.eq.s32.totalorder %s17, 0
    %p142 = por %p140, %p141
    %s144 = sadd.s32 %s143, 1
    %p147 = scmp.eq.s32.totalorder %s11, 1
    %p148 = scmp.ne.s32.totalorder %s143, %s145
    %p149 = scmp.eq.s32.totalorder %s11, 0
    %p150 = por %p148, %p149
    %p151 = scmp.ne.s32.totalorder %s143, %s145
    %p152 = scmp.eq.s32.totalorder %s16, 1
    %p153 = por %p151, %p152
    %p154 = scmp.ne.s32.totalorder %s145, %s146
    %p155 = scmp.eq.s32.totalorder %s16, 0
    %p156 = por %p154, %p155
    %p157 = scmp.ne.s32.totalorder %s145, %s146
    %p158 = scmp.eq.s32.totalorder %s17, 1
    %p159 = por %p157, %p158
    %p161 = scmp.ne.s32.totalorder %s146, %s160
    %p162 = scmp.eq.s32.totalorder %s17, 0
    %p163 = por %p161, %p162
    %s164 = ssub.s32 %s18, %s30
    %s165 = ssub.s32 %s19, %s26
    %s166 = sor.u32 %s164, %s165
    %p167 = scmp.eq.s32.totalorder %s166, 0
    %s169 = sadd.s32 %s168, 1
    %s170 = scalar_select %p167, %s168, %s169
    %p173 = pneg %p167
    %p174 = scmp.eq.s32.totalorder %s11, 1
    %p175 = por %p173, %p174
    %p176 = scmp.ne.s32.totalorder %s168, %s171
    %p177 = scmp.eq.s32.totalorder %s11, 0
    %p178 = por %p176, %p177
    %p179 = scmp.ne.s32.totalorder %s168, %s171
    %p180 = scmp.eq.s32.totalorder %s16, 1
    %p181 = por %p179, %p180
    %p182 = scmp.ne.s32.totalorder %s171, %s172
    %p183 = scmp.eq.s32.totalorder %s16, 0
    %p184 = por %p182, %p183
    %p185 = scmp.ne.s32.totalorder %s171, %s172
    %p186 = scmp.eq.s32.totalorder %s17, 1
    %p187 = por %p185, %p186
    %p189 = scmp.ne.s32.totalorder %s172, %s188
    %p190 = scmp.eq.s32.totalorder %s17, 0
    %p191 = por %p189, %p190
    %p192 = scmp.le.s32.totalorder 1, %s11
    %p193 = scmp.lt.s32.totalorder %s11, 3
    %p194 = pnand %p192, %p193
    %p195 = pneg %p194
    // Predicated region
    $region9: #{bimpm_forward.6} parent=5 // pred_check
      _
    $region10: #{bimpm_forward.6} parent=5 // pred_check_branch
      %197 = sbr.rel (%p194) target = $region12
    $region11: #{bimpm_forward.6} parent=5 // pred_region
      %s198 = ssub.s32 %s11, 1
      // Predicated region
      $region13: #{bimpm_forward.6} parent=11 // pred_check
        %p199 = pneg %p156
      $region14: #{bimpm_forward.6} parent=11 // pred_check_branch
        %201 = sbr.rel (%p199) target = $region16
      $region15: #{bimpm_forward.6} parent=11 // pred_region
        _
      $region16: #{bimpm_forward.6} parent=11 // pred_fallthru
        _
    $region12: #{bimpm_forward.6} parent=5 // pred_fallthru
      _
    %p202 = scmp.lt.s32.totalorder %s11, 2
    // Predicated region
    $region17: #{bimpm_forward.6} parent=5 // pred_check
      %p203 = pneg %p202
    $region18: #{bimpm_forward.6} parent=5 // pred_check_branch
      %205 = sbr.rel (%p203) target = $region20
    $region19: #{bimpm_forward.6} parent=5 // pred_region
      // Predicated region
      $region21: #{bimpm_forward.6} parent=19 // pred_check
        %p206 = pneg %p45
      $region22: #{bimpm_forward.6} parent=19 // pred_check_branch
        %208 = sbr.rel (%p206) target = $region24
      $region23: #{bimpm_forward.6} parent=19 // pred_region
        %p209 = scmp.lt.s32.totalorder %s18, 1
        %s210 = scalar_select %p209, %s18, 1
        %p211 = scmp.lt.s32.totalorder %s19, 0
        %s212 = scalar_select %p211, %s19, 0
        %s213 = smul.addr %s210, 2
        %s214 = sadd.s32 %s212, %s213
        %s215 = smul.addr %s214, 8
        %s216 = scalar_lea.vmem %s0, %s215
      $region24: #{bimpm_forward.6} parent=19 // pred_fallthru
        _
      // Predicated region
      $region25: #{bimpm_forward.6} parent=19 // pred_check
        %p217 = pneg %p73
      $region26: #{bimpm_forward.6} parent=19 // pred_check_branch
        %219 = sbr.rel (%p217) target = $region28
      $region27: #{bimpm_forward.6} parent=19 // pred_region
        %p220 = scmp.lt.s32.totalorder %s18, 1
        %s221 = scalar_select %p220, %s18, 1
        %p222 = scmp.lt.s32.totalorder %s19, 0
        %s223 = scalar_select %p222, %s19, 0
        %s224 = smul.addr %s221, 2
        %s225 = sadd.s32 %s223, %s224
        %s226 = smul.addr %s225, 8
        %s227 = scalar_lea.vmem %s1, %s226
      $region28: #{bimpm_forward.6} parent=19 // pred_fallthru
        _
      // Predicated region
      $region29: #{bimpm_forward.6} parent=19 // pred_check
        %p228 = pneg %p101
      $region30: #{bimpm_forward.6} parent=19 // pred_check_branch
        %230 = sbr.rel (%p228) target = $region32
      $region31: #{bimpm_forward.6} parent=19 // pred_region
        %s231 = ssub.s32 1, %s18
        %p232 = scmp.lt.s32.totalorder %s231, 1
        %s233 = scalar_select %p232, %s231, 1
        %s234 = smul.addr %s233, 2
        %s235 = smul.addr %s234, 8
        %s236 = scalar_lea.vmem %s2, %s235
        %s237 = ssub.s32 1, %s18
      $region32: #{bimpm_forward.6} parent=19 // pred_fallthru
        _
      // Predicated region
      $region33: #{bimpm_forward.6} parent=19 // pred_check
        %p238 = pneg %p129
      $region34: #{bimpm_forward.6} parent=19 // pred_check_branch
        %240 = sbr.rel (%p238) target = $region36
      $region35: #{bimpm_forward.6} parent=19 // pred_region
        %s241 = ssub.s32 1, %s18
        %p242 = scmp.lt.s32.totalorder %s241, 1
        %s243 = scalar_select %p242, %s241, 1
        %s244 = smul.addr %s243, 2
        %s245 = smul.addr %s244, 8
        %s246 = scalar_lea.vmem %s3, %s245
        %s247 = ssub.s32 1, %s18
      $region36: #{bimpm_forward.6} parent=19 // pred_fallthru
        _
    $region20: #{bimpm_forward.6} parent=5 // pred_fallthru
      _
    %p248 = scmp.le.s32.totalorder 1, %s11
    %p249 = scmp.lt.s32.totalorder %s11, 3
    %p250 = pnand %p248, %p249
    %p251 = pneg %p250
    // Predicated region
    $region37: #{bimpm_forward.6} parent=5 // pred_check
      _
    $region38: #{bimpm_forward.6} parent=5 // pred_check_branch
      %253 = sbr.rel (%p250) target = $region40
    $region39: #{bimpm_forward.6} parent=5 // pred_region
      %s254 = ssub.s32 %s11, 1
      %p255 = scmp.lt.s32.totalorder %s20, 1
      %s256 = scalar_select %p255, %s20, 1
      %p257 = scmp.lt.s32.totalorder %s21, 0
      %s258 = scalar_select %p257, %s21, 0
      %s259 = smul.addr %s256, 2
      %s260 = sadd.s32 %s258, %s259
      %s261 = smul.addr %s260, 8
      %s262 = scalar_lea.vmem %s0, %s261
      %p263 = pneg %p51
      %p264 = pneg %p48
      %p265 = scmp.lt.s32.totalorder %s20, 1
      %s266 = scalar_select %p265, %s20, 1
      %p267 = scmp.lt.s32.totalorder %s21, 0
      %s268 = scalar_select %p267, %s21, 0
      %s269 = smul.addr %s266, 2
      %s270 = sadd.s32 %s268, %s269
      %s271 = smul.addr %s270, 8
      %s272 = scalar_lea.vmem %s1, %s271
      %p273 = pneg %p79
      %p274 = pneg %p76
      %s275 = ssub.s32 1, %s20
      %p276 = scmp.lt.s32.totalorder %s275, 1
      %s277 = scalar_select %p276, %s275, 1
      %s278 = smul.addr %s277, 2
      %s279 = smul.addr %s278, 8
      %s280 = scalar_lea.vmem %s2, %s279
      %p281 = pneg %p107
      %p282 = pneg %p104
      %s283 = ssub.s32 1, %s20
      %p284 = scmp.lt.s32.totalorder %s283, 1
      %s285 = scalar_select %p284, %s283, 1
      %s286 = smul.addr %s285, 2
      %s287 = smul.addr %s286, 8
      %s288 = scalar_lea.vmem %s3, %s287
      %p289 = pneg %p135
      %p290 = pneg %p132
      %p291 = pneg %p156
      %p292 = pneg %p153
      %p293 = pneg %p184
      %p294 = pneg %p181
      %p295 = scmp.lt.s32.totalorder %s20, 1
      %s296 = scalar_select %p295, %s20, 1
      %p297 = scmp.lt.s32.totalorder %s21, 0
      %s298 = scalar_select %p297, %s21, 0
      %s299 = smul.addr %s296, 2
      %s300 = sadd.s32 %s298, %s299
      %s301 = smul.addr %s300, 8
      %s302 = scalar_lea.vmem %s5, %s301
      %p303 = scmp.lt.s32.totalorder %s20, 1
      %s304 = scalar_select %p303, %s20, 1
      %p305 = scmp.lt.s32.totalorder %s21, 0
      %s306 = scalar_select %p305, %s21, 0
      %s307 = smul.addr %s304, 2
      %s308 = sadd.s32 %s306, %s307
      %s309 = smul.addr %s308, 8
      %s310 = scalar_lea.vmem %s0, %s309
      %p311 = scmp.lt.s32.totalorder %s20, 1
      %s312 = scalar_select %p311, %s20, 1
      %p313 = scmp.lt.s32.totalorder %s21, 0
      %s314 = scalar_select %p313, %s21, 0
      %s315 = smul.addr %s312, 2
      %s316 = sadd.s32 %s314, %s315
      %s317 = smul.addr %s316, 8
      %s318 = scalar_lea.vmem %s1, %s317
      %s319 = ssub.s32 1, %s20
      %p320 = scmp.lt.s32.totalorder %s319, 1
      %s321 = scalar_select %p320, %s319, 1
      %s322 = smul.addr %s321, 2
      %s323 = smul.addr %s322, 8
      %s324 = scalar_lea.vmem %s2, %s323
      %s325 = ssub.s32 1, %s20
      %s326 = ssub.s32 1, %s20
      %p327 = scmp.lt.s32.totalorder %s326, 1
      %s328 = scalar_select %p327, %s326, 1
      %s329 = smul.addr %s328, 2
      %s330 = smul.addr %s329, 8
      %s331 = scalar_lea.vmem %s3, %s330
      %s332 = ssub.s32 1, %s20
      %p333 = scmp.lt.s32.totalorder %s20, 1
      %s334 = scalar_select %p333, %s20, 1
      %p335 = scmp.lt.s32.totalorder %s21, 0
      %s336 = scalar_select %p335, %s21, 0
      %s337 = smul.addr %s334, 2
      %s338 = sadd.s32 %s336, %s337
      %s339 = smul.addr %s338, 8
      %s340 = scalar_lea.vmem %s5, %s339
      %v342 = vld [vmem:[%s4] sm:$0xf]
      %v343 = vld [vmem:[%s4 + $0x4] sm:$0xf]
      %v344 = vld [vmem:[%s4 + $0x8] sm:$0xf]
      %v345 = vld [vmem:[%s4 + $0xc] sm:$0xf]
      %v346 = vld [vmem:[%s4 + $0x10] sm:$0xf]
      %v347 = vld [vmem:[%s4 + $0x14] sm:$0xf]
      %v348 = vld [vmem:[%s4 + $0x18] sm:$0xf]
      %v349 = vld [vmem:[%s4 + $0x1c] sm:$0xf]
      %v350 = vld [vmem:[%s324] sm:$0x3f]
      %v351 = vld [vmem:[%s324 + $0x8] sm:$0x3f]
      %v352 = vld [vmem:[%s331] sm:$0x3f]
      %v353 = vld [vmem:[%s331 + $0x8] sm:$0x3f]
      %v354 = vld [vmem:[%s310] sm:$0x3f]
      %v355 = vld [vmem:[%s310 + $0x8] sm:$0x3f]
      %v356 = vmul.f32 %v342, %v342
      %357 = vxpose.xlu0.b32.start [1/16] %v356, 128
      %358 = vxpose.xlu0.b32.cont [2/16] 0.0, 128
      %359 = vxpose.xlu0.b32.cont [3/16] 0.0, 128
      %360 = vxpose.xlu0.b32.cont [4/16] 0.0, 128
      %361 = vxpose.xlu0.b32.cont [5/16] 0.0, 128
      %362 = vxpose.xlu0.b32.cont [6/16] 0.0, 128
      %363 = vxpose.xlu0.b32.cont [7/16] 0.0, 128
      %364 = vxpose.xlu0.b32.cont [8/16] 0.0, 128
      %365 = vxpose.xlu0.b32.cont [9/16] 0.0, 128
      %366 = vxpose.xlu0.b32.cont [10/16] 0.0, 128
      %367 = vxpose.xlu0.b32.cont [11/16] 0.0, 128
      %368 = vxpose.xlu0.b32.cont [12/16] 0.0, 128
      %369 = vxpose.xlu0.b32.cont [13/16] 0.0, 128
      %370 = vxpose.xlu0.b32.cont [14/16] 0.0, 128
      %371 = vxpose.xlu0.b32.cont [15/16] 0.0, 128
      %372 = vxpose.xlu0.b32.end [16/16] 0.0, 128
      %v373 = vpop.trf.xlu0
      %v374 = vpop.trf.xlu0
      %v375 = vpop.trf.xlu0
      %v376 = vpop.trf.xlu0
      %v377 = vpop.trf.xlu0
      %v378 = vpop.trf.xlu0
      %v379 = vpop.trf.xlu0
      %v380 = vpop.trf.xlu0
      %v381 = vpop.trf.xlu0
      %v382 = vpop.trf.xlu0
      %v383 = vpop.trf.xlu0
      %v384 = vpop.trf.xlu0
      %v385 = vpop.trf.xlu0
      %v386 = vpop.trf.xlu0
      %v387 = vpop.trf.xlu0
      %v388 = vpop.trf.xlu0
      %v389 = vmul.f32 %v343, %v343
      %v390 = vmul.f32 %v344, %v344
      %391 = vxpose.xlu0.b32.start [1/16] %v390, 128
      %392 = vxpose.xlu0.b32.cont [2/16] 0.0, 128
      %393 = vxpose.xlu0.b32.cont [3/16] 0.0, 128
      %394 = vxpose.xlu0.b32.cont [4/16] 0.0, 128
      %395 = vxpose.xlu0.b32.cont [5/16] 0.0, 128
      %396 = vxpose.xlu0.b32.cont [6/16] 0.0, 128
      %397 = vxpose.xlu0.b32.cont [7/16] 0.0, 128
      %398 = vxpose.xlu0.b32.cont [8/16] 0.0, 128
      %399 = vxpose.xlu0.b32.cont [9/16] 0.0, 128
      %400 = vxpose.xlu0.b32.cont [10/16] 0.0, 128
      %401 = vxpose.xlu0.b32.cont [11/16] 0.0, 128
      %402 = vxpose.xlu0.b32.cont [12/16] 0.0, 128
      %403 = vxpose.xlu0.b32.cont [13/16] 0.0, 128
      %404 = vxpose.xlu0.b32.cont [14/16] 0.0, 128
      %405 = vxpose.xlu0.b32.cont [15/16] 0.0, 128
      %406 = vxpose.xlu0.b32.end [16/16] 0.0, 128
      %v407 = vpop.trf.xlu0
      %v408 = vpop.trf.xlu0
      %v409 = vpop.trf.xlu0
      %v410 = vpop.trf.xlu0
      %v411 = vpop.trf.xlu0
      %v412 = vpop.trf.xlu0
      %v413 = vpop.trf.xlu0
      %v414 = vpop.trf.xlu0
      %v415 = vpop.trf.xlu0
      %v416 = vpop.trf.xlu0
      %v417 = vpop.trf.xlu0
      %v418 = vpop.trf.xlu0
      %v419 = vpop.trf.xlu0
      %v420 = vpop.trf.xlu0
      %v421 = vpop.trf.xlu0
      %v422 = vpop.trf.xlu0
      %v423 = vmul.f32 %v345, %v345
      %424 = vxpose.xlu0.b32.start [1/16] %v423, 128
      %425 = vxpose.xlu0.b32.cont [2/16] 0.0, 128
      %426 = vxpose.xlu0.b32.cont [3/16] 0.0, 128
      %427 = vxpose.xlu0.b32.cont [4/16] 0.0, 128
      %428 = vxpose.xlu0.b32.cont [5/16] 0.0, 128
      %429 = vxpose.xlu0.b32.cont [6/16] 0.0, 128
      %430 = vxpose.xlu0.b32.cont [7/16] 0.0, 128
      %431 = vxpose.xlu0.b32.cont [8/16] 0.0, 128
      %432 = vxpose.xlu0.b32.cont [9/16] 0.0, 128
      %433 = vxpose.xlu0.b32.cont [10/16] 0.0, 128
      %434 = vxpose.xlu0.b32.cont [11/16] 0.0, 128
      %435 = vxpose.xlu0.b32.cont [12/16] 0.0, 128
      %436 = vxpose.xlu0.b32.cont [13/16] 0.0, 128
      %437 = vxpose.xlu0.b32.cont [14/16] 0.0, 128
      %438 = vxpose.xlu0.b32.cont [15/16] 0.0, 128
      %439 = vxpose.xlu0.b32.end [16/16] 0.0, 128
      %v440 = vpop.trf.xlu0
      %v441 = vpop.trf.xlu0
      %v442 = vpop.trf.xlu0
      %v443 = vpop.trf.xlu0
      %v444 = vpop.trf.xlu0
      %v445 = vpop.trf.xlu0
      %v446 = vpop.trf.xlu0
      %v447 = vpop.trf.xlu0
      %v448 = vpop.trf.xlu0
      %v449 = vpop.trf.xlu0
      %v450 = vpop.trf.xlu0
      %v451 = vpop.trf.xlu0
      %v452 = vpop.trf.xlu0
      %v453 = vpop.trf.xlu0
      %v454 = vpop.trf.xlu0
      %v455 = vpop.trf.xlu0
      %v456 = vlaneseq
      %v457 = vshrl.u32 %v456, 7
      %v458 = vsub.s32 5, %v457
      %v459 = vrot.slane %v350, %v458
      %v460 = vlaneseq
      %v461 = vshrl.u32 %v460, 7
      %v462 = vsub.s32 5, %v461
      %v463 = vrot.slane %v351, %v462
      %v464 = vmul.f32 %v354, %v459
      %v465 = vmul.f32 %v355, %v463
      %v468 = vcombine.high %v464, %v464
      %v470 = vunpack.c.l.s4 1983009808
      %v471 = vunpack.c.0.s8 %v470
      %v472 = vlaneseq
      %v473 = vshrl.u32 %v472, 7
      %v474 = vsub.s32 %v471, %v473
      %v475 = vrot.slane %v464, %v474
      %v477 = vunpack.c.l.s4 1983009808
      %v478 = vunpack.c.0.s8 %v477
      %v479 = vlaneseq
      %v480 = vshrl.u32 %v479, 7
      %v481 = vsub.s32 %v478, %v480
      %v482 = vrot.slane %v468, %v481
      %v483 = vcombine.high %v475, %v475
      %v484 = vcombine.high %v465, %v465
      %v486 = vunpack.c.l.s4 1983009808
      %v487 = vunpack.c.0.s8 %v486
      %v488 = vlaneseq
      %v489 = vshrl.u32 %v488, 7
      %v490 = vsub.s32 %v487, %v489
      %v491 = vrot.slane %v465, %v490
      %v493 = vunpack.c.l.s4 1983009808
      %v494 = vunpack.c.0.s8 %v493
      %v495 = vlaneseq
      %v496 = vshrl.u32 %v495, 7
      %v497 = vsub.s32 %v494, %v496
      %v498 = vrot.slane %v484, %v497
      %v499 = vcombine.high %v491, %v491
      %v500 = vcombine.low %v475, %v483
      %v501 = vcombine.low %v482, %v491
      %v503 = vunpack.c.l.s4 1983009808
      %v504 = vunpack.c.0.s8 %v503
      %v505 = vlaneseq
      %v506 = vshrl.u32 %v505, 7
      %v507 = vsub.s32 %v504, %v506
      %v508 = vrot.slane %v500, %v507
      %v510 = vunpack.c.l.s4 1983009808
      %v511 = vunpack.c.0.s8 %v510
      %v512 = vlaneseq
      %v513 = vshrl.u32 %v512, 7
      %v514 = vsub.s32 %v511, %v513
      %v515 = vrot.slane %v501, %v514
      %v516 = vcombine.low %v508, %v515
      %v517 = vcombine.low %v499, %v498
      %v519 = vunpack.c.l.s4 1983009808
      %v520 = vunpack.c.0.s8 %v519
      %v521 = vlaneseq
      %v522 = vshrl.u32 %v521, 7
      %v523 = vsub.s32 %v520, %v522
      %v524 = vrot.slane %v517, %v523
      %v527 = vpack.c.bf16 %v524, %v516
      %v528 = vpack.c.bf16 %v374, %v373
      %vm529 = vcmask 130048
      %v531 = vsel %vm529, %v527, 0
      %533 = vmatprep.subr.bf16.mxu0 0
      %534 = vmatpush1.bf16.msra.mxu0 %v528
      %535 = vmatprep.subr.bf16.mxu0 0
      %536 = vmatpush1.bf16.msra.mxu0 0
      %537 = vmatprep.subr.bf16.mxu0 0
      %538 = vmatpush1.bf16.msra.mxu0 0
      %539 = vmatprep.subr.bf16.mxu0 0
      %540 = vmatpush1.bf16.msra.mxu0 0
      %541 = vmatprep.subr.bf16.mxu0 0
      %542 = vmatpush1.bf16.msra.mxu0 0
      %543 = vmatprep.subr.bf16.mxu0 0
      %544 = vmatpush1.bf16.msra.mxu0 0
      %545 = vmatprep.subr.bf16.mxu0 0
      %546 = vmatpush1.bf16.msra.mxu0 0
      %547 = vmatprep.subr.bf16.mxu0 0
      %548 = vmatpush1.bf16.msra.mxu0 0
      %549 = vmatprep.subr.bf16.mxu0 0
      %550 = vmatpush1.bf16.msra.mxu0 0
      %551 = vmatprep.subr.bf16.mxu0 0
      %552 = vmatpush1.bf16.msra.mxu0 0
      %553 = vmatprep.subr.bf16.mxu0 0
      %554 = vmatpush1.bf16.msra.mxu0 0
      %555 = vmatprep.subr.bf16.mxu0 0
      %556 = vmatpush1.bf16.msra.mxu0 0
      %557 = vmatprep.subr.bf16.mxu0 0
      %558 = vmatpush1.bf16.msra.mxu0 0
      %559 = vmatprep.subr.bf16.mxu0 0
      %560 = vmatpush1.bf16.msra.mxu0 0
      %561 = vmatprep.subr.bf16.mxu0 0
      %562 = vmatpush1.bf16.msra.mxu0 0
      %563 = vmatprep.subr.bf16.mxu0 0
      %564 = vmatpush1.bf16.msra.mxu0 0
      %565 = vmatprep.mubr.bf16.mxu0 0
      %566 = vmatmul.mubr.bf16.gmra.mrb[0].mxu0 %v531
      %v567 = vpop.f32.mrb[0].mxu0
      %v568 = vadd.f32 0.0, %v567
      %v569 = vpop.f32.mrb[0].mxu0
      %v570 = vpop.f32.mrb[0].mxu0
      %v571 = vadd.f32 0.0, %v570
      %v572 = vpop.f32.mrb[0].mxu0
      %573 = vdwg.mxu0
      %v576 = vcombine.high %v568, %v568
      %v578 = vunpack.c.l.s4 1983009808
      %v579 = vunpack.c.0.s8 %v578
      %v580 = vlaneseq
      %v581 = vshrl.u32 %v580, 7
      %v582 = vsub.s32 %v579, %v581
      %v583 = vrot.slane %v568, %v582
      %v585 = vunpack.c.l.s4 1983009808
      %v586 = vunpack.c.0.s8 %v585
      %v587 = vlaneseq
      %v588 = vshrl.u32 %v587, 7
      %v589 = vsub.s32 %v586, %v588
      %v590 = vrot.slane %v576, %v589
      %v591 = vcombine.high %v583, %v583
      %v592 = vcombine.high %v590, %v590
      %v594 = vunpack.c.l.s4 1983009808
      %v595 = vunpack.c.0.s8 %v594
      %v596 = vlaneseq
      %v597 = vshrl.u32 %v596, 7
      %v598 = vsub.s32 %v595, %v597
      %v599 = vrot.slane %v571, %v598
      %v600 = vcombine.high %v599, %v599
      %v607 = vmul.f32 %v354, %v354
      %v608 = vmul.f32 %v355, %v355
      %v611 = vcombine.high %v607, %v607
      %v613 = vunpack.c.l.s4 1983009808
      %v614 = vunpack.c.0.s8 %v613
      %v615 = vlaneseq
      %v616 = vshrl.u32 %v615, 7
      %v617 = vsub.s32 %v614, %v616
      %v618 = vrot.slane %v607, %v617
      %v620 = vunpack.c.l.s4 1983009808
      %v621 = vunpack.c.0.s8 %v620
      %v622 = vlaneseq
      %v623 = vshrl.u32 %v622, 7
      %v624 = vsub.s32 %v621, %v623
      %v625 = vrot.slane %v611, %v624
      %v626 = vcombine.high %v618, %v618
      %v627 = vcombine.high %v608, %v608
      %v629 = vunpack.c.l.s4 1983009808
      %v630 = vunpack.c.0.s8 %v629
      %v631 = vlaneseq
      %v632 = vshrl.u32 %v631, 7
      %v633 = vsub.s32 %v630, %v632
      %v634 = vrot.slane %v608, %v633
      %v636 = vunpack.c.l.s4 1983009808
      %v637 = vunpack.c.0.s8 %v636
      %v638 = vlaneseq
      %v639 = vshrl.u32 %v638, 7
      %v640 = vsub.s32 %v637, %v639
      %v641 = vrot.slane %v627, %v640
      %v642 = vcombine.high %v634, %v634
      %v643 = vcombine.low %v618, %v626
      %v644 = vcombine.low %v625, %v634
      %v646 = vunpack.c.l.s4 1983009808
      %v647 = vunpack.c.0.s8 %v646
      %v648 = vlaneseq
      %v649 = vshrl.u32 %v648, 7
      %v650 = vsub.s32 %v647, %v649
      %v651 = vrot.slane %v643, %v650
      %v653 = vunpack.c.l.s4 1983009808
      %v654 = vunpack.c.0.s8 %v653
      %v655 = vlaneseq
      %v656 = vshrl.u32 %v655, 7
      %v657 = vsub.s32 %v654, %v656
      %v658 = vrot.slane %v644, %v657
      %v659 = vcombine.low %v651, %v658
      %v660 = vcombine.low %v642, %v641
      %v662 = vunpack.c.l.s4 1983009808
      %v663 = vunpack.c.0.s8 %v662
      %v664 = vlaneseq
      %v665 = vshrl.u32 %v664, 7
      %v666 = vsub.s32 %v663, %v665
      %v667 = vrot.slane %v660, %v666
      %v670 = vpack.c.bf16 %v667, %v659
      %v672 = vsel %vm529, %v670, 0
      %674 = vmatprep.subr.bf16.mxu0 0
      %675 = vmatpush1.bf16.msra.mxu0 %v528
      %676 = vmatprep.subr.bf16.mxu0 0
      %677 = vmatpush1.bf16.msra.mxu0 0
      %678 = vmatprep.subr.bf16.mxu0 0
      %679 = vmatpush1.bf16.msra.mxu0 0
      %680 = vmatprep.subr.bf16.mxu0 0
      %681 = vmatpush1.bf16.msra.mxu0 0
      %682 = vmatprep.subr.bf16.mxu0 0
      %683 = vmatpush1.bf16.msra.mxu0 0
      %684 = vmatprep.subr.bf16.mxu0 0
      %685 = vmatpush1.bf16.msra.mxu0 0
      %686 = vmatprep.subr.bf16.mxu0 0
      %687 = vmatpush1.bf16.msra.mxu0 0
      %688 = vmatprep.subr.bf16.mxu0 0
      %689 = vmatpush1.bf16.msra.mxu0 0
      %690 = vmatprep.subr.bf16.mxu0 0
      %691 = vmatpush1.bf16.msra.mxu0 0
      %692 = vmatprep.subr.bf16.mxu0 0
      %693 = vmatpush1.bf16.msra.mxu0 0
      %694 = vmatprep.subr.bf16.mxu0 0
      %695 = vmatpush1.bf16.msra.mxu0 0
      %696 = vmatprep.subr.bf16.mxu0 0
      %697 = vmatpush1.bf16.msra.mxu0 0
      %698 = vmatprep.subr.bf16.mxu0 0
      %699 = vmatpush1.bf16.msra.mxu0 0
      %700 = vmatprep.subr.bf16.mxu0 0
      %701 = vmatpush1.bf16.msra.mxu0 0
      %702 = vmatprep.subr.bf16.mxu0 0
      %703 = vmatpush1.bf16.msra.mxu0 0
      %704 = vmatprep.subr.bf16.mxu0 0
      %705 = vmatpush1.bf16.msra.mxu0 0
      %706 = vmatprep.mubr.bf16.mxu0 0
      %707 = vmatmul.mubr.bf16.gmra.mrb[0].mxu0 %v672
      %v708 = vpop.f32.mrb[0].mxu0
      %v709 = vadd.f32 0.0, %v708
      %v710 = vpop.f32.mrb[0].mxu0
      %v711 = vpop.f32.mrb[0].mxu0
      %v712 = vadd.f32 0.0, %v711
      %v713 = vpop.f32.mrb[0].mxu0
      %714 = vdwg.mxu0
      %v717 = vcombine.high %v709, %v709
      %v719 = vunpack.c.l.s4 1983009808
      %v720 = vunpack.c.0.s8 %v719
      %v721 = vlaneseq
      %v722 = vshrl.u32 %v721, 7
      %v723 = vsub.s32 %v720, %v722
      %v724 = vrot.slane %v709, %v723
      %v726 = vunpack.c.l.s4 1983009808
      %v727 = vunpack.c.0.s8 %v726
      %v728 = vlaneseq
      %v729 = vshrl.u32 %v728, 7
      %v730 = vsub.s32 %v727, %v729
      %v731 = vrot.slane %v717, %v730
      %v732 = vcombine.high %v724, %v724
      %v733 = vcombine.high %v731, %v731
      %v735 = vunpack.c.l.s4 1983009808
      %v736 = vunpack.c.0.s8 %v735
      %v737 = vlaneseq
      %v738 = vshrl.u32 %v737, 7
      %v739 = vsub.s32 %v736, %v738
      %v740 = vrot.slane %v712, %v739
      %v741 = vcombine.high %v740, %v740
      %v748 = vadd.f32 %v724, 1e-06
      %v749 = vadd.f32 %v732, 1e-06
      %v750 = vadd.f32 %v731, 1e-06
      %v751 = vadd.f32 %v733, 1e-06
      %v752 = vadd.f32 %v740, 1e-06
      %v753 = vadd.f32 %v741, 1e-06
      %v754 = vrsqrt.pop %v748
      %v755 = vrsqrt.pop %v749
      %v756 = vrsqrt.pop %v750
      %v757 = vrsqrt.pop %v751
      %v758 = vrsqrt.pop %v752
      %v759 = vrsqrt.pop %v753
      %v760 = vmul.f32 %v583, %v754
      %v761 = vmul.f32 %v591, %v755
      %v762 = vmul.f32 %v590, %v756
      %v763 = vmul.f32 %v592, %v757
      %v764 = vmul.f32 %v599, %v758
      %v765 = vmul.f32 %v600, %v759
      %v766 = vmul.f32 %v350, %v350
      %v767 = vmul.f32 %v351, %v351
      %v768 = vpack.c.bf16 %v766, %v766
      %v769 = vpack.c.bf16 %v767, %v767
      %v772 = vunpack.c.l.b16 %v768
      %v773 = vunpack.c.l.b16 %v769
      %v774 = vrot.slane %v772, 5
      %v775 = vrot.slane %v773, 4
      %vm776 = vcmask 1041409
      %v777 = vsel %vm776, %v775, %v774
      %v778 = vpack.c.b16 %v777, %v777
      %v780 = vsel %vm529, %v778, 0
      %782 = vmatprep.subr.bf16.mxu0 0
      %783 = vmatpush1.bf16.msra.mxu0 %v528
      %784 = vmatprep.subr.bf16.mxu0 0
      %785 = vmatpush1.bf16.msra.mxu0 0
      %786 = vmatprep.subr.bf16.mxu0 0
      %787 = vmatpush1.bf16.msra.mxu0 0
      %788 = vmatprep.subr.bf16.mxu0 0
      %789 = vmatpush1.bf16.msra.mxu0 0
      %790 = vmatprep.subr.bf16.mxu0 0
      %791 = vmatpush1.bf16.msra.mxu0 0
      %792 = vmatprep.subr.bf16.mxu0 0
      %793 = vmatpush1.bf16.msra.mxu0 0
      %794 = vmatprep.subr.bf16.mxu0 0
      %795 = vmatpush1.bf16.msra.mxu0 0
      %796 = vmatprep.subr.bf16.mxu0 0
      %797 = vmatpush1.bf16.msra.mxu0 0
      %798 = vmatprep.subr.bf16.mxu0 0
      %799 = vmatpush1.bf16.msra.mxu0 0
      %800 = vmatprep.subr.bf16.mxu0 0
      %801 = vmatpush1.bf16.msra.mxu0 0
      %802 = vmatprep.subr.bf16.mxu0 0
      %803 = vmatpush1.bf16.msra.mxu0 0
      %804 = vmatprep.subr.bf16.mxu0 0
      %805 = vmatpush1.bf16.msra.mxu0 0
      %806 = vmatprep.subr.bf16.mxu0 0
      %807 = vmatpush1.bf16.msra.mxu0 0
      %808 = vmatprep.subr.bf16.mxu0 0
      %809 = vmatpush1.bf16.msra.mxu0 0
      %810 = vmatprep.subr.bf16.mxu0 0
      %811 = vmatpush1.bf16.msra.mxu0 0
      %812 = vmatprep.subr.bf16.mxu0 0
      %813 = vmatpush1.bf16.msra.mxu0 0
      %814 = vmatprep.mubr.bf16.mxu0 0
      %815 = vmatmul.mubr.bf16.gmra.mrb[0].mxu0 %v780
      %v816 = vpop.f32.mrb[0].mxu0
      %v817 = vadd.f32 0.0, %v816
      %v818 = vpop.f32.mrb[0].mxu0
      %v819 = vpop.f32.mrb[0].mxu0
      %v820 = vpop.f32.mrb[0].mxu0
      %821 = vdwg.mxu0
      %v824 = vunpack.c.l.s4 1966171168
      %v825 = vunpack.c.0.s8 %v824
      %v826 = vlaneseq
      %v827 = vshrl.u32 %v826, 7
      %v828 = vsub.s32 %v825, %v827
      %v829 = vrot.slane %v817, %v828
      %v830 = vcombine.high %v829, %v829
      %v832 = vunpack.c.l.s4 1966171168
      %v833 = vunpack.c.0.s8 %v832
      %v834 = vlaneseq
      %v835 = vshrl.u32 %v834, 7
      %v836 = vsub.s32 %v833, %v835
      %v837 = vrot.slane %v829, %v836
      %v839 = vunpack.c.l.s4 1966171168
      %v840 = vunpack.c.0.s8 %v839
      %v841 = vlaneseq
      %v842 = vshrl.u32 %v841, 7
      %v843 = vsub.s32 %v840, %v842
      %v844 = vrot.slane %v830, %v843
      %v847 = vadd.f32 %v837, 1e-06
      %v848 = vadd.f32 %v844, 1e-06
      %v849 = vrsqrt.pop %v847
      %v850 = vrsqrt.pop %v848
      %v853 = vlaneseq
      %v854 = vshrl.u32 %v853, 7
      %v855 = vsub.s32 0, %v854
      %v856 = vrot.slane %v849, %v855
      %v857 = vlaneseq
      %v858 = vshrl.u32 %v857, 7
      %v859 = vsub.s32 0, %v858
      %v860 = vrot.slane %v850, %v859
      %v861 = vcombine.high %v856, %v856
      %v863 = vunpack.c.l.s4 1983009808
      %v864 = vunpack.c.0.s8 %v863
      %v865 = vlaneseq
      %v866 = vshrl.u32 %v865, 7
      %v867 = vsub.s32 %v864, %v866
      %v868 = vrot.slane %v856, %v867
      %v870 = vunpack.c.l.s4 1983009808
      %v871 = vunpack.c.0.s8 %v870
      %v872 = vlaneseq
      %v873 = vshrl.u32 %v872, 7
      %v874 = vsub.s32 %v871, %v873
      %v875 = vrot.slane %v861, %v874
      %v876 = vcombine.high %v868, %v868
      %v877 = vcombine.high %v860, %v860
      %v879 = vunpack.c.l.s4 1983009808
      %v880 = vunpack.c.0.s8 %v879
      %v881 = vlaneseq
      %v882 = vshrl.u32 %v881, 7
      %v883 = vsub.s32 %v880, %v882
      %v884 = vrot.slane %v860, %v883
      %v886 = vunpack.c.l.s4 1983009808
      %v887 = vunpack.c.0.s8 %v886
      %v888 = vlaneseq
      %v889 = vshrl.u32 %v888, 7
      %v890 = vsub.s32 %v887, %v889
      %v891 = vrot.slane %v877, %v890
      %v892 = vcombine.high %v884, %v884
      %v899 = vmul.f32 %v760, %v868
      %v900 = vmul.f32 %v761, %v876
      %v901 = vmul.f32 %v762, %v875
      %v902 = vmul.f32 %v763, %v884
      %v903 = vmul.f32 %v764, %v892
      %v904 = vmul.f32 %v765, %v891
      %v907 = vcombine.high %v354, %v354
      %v909 = vunpack.c.l.s4 1966171168
      %v910 = vunpack.c.0.s8 %v909
      %v911 = vlaneseq
      %v912 = vshrl.u32 %v911, 7
      %v913 = vsub.s32 %v910, %v912
      %v914 = vrot.slane %v354, %v913
      %v916 = vunpack.c.l.s4 1966171168
      %v917 = vunpack.c.0.s8 %v916
      %v918 = vlaneseq
      %v919 = vshrl.u32 %v918, 7
      %v920 = vsub.s32 %v917, %v919
      %v921 = vrot.slane %v907, %v920
      %v922 = vcombine.high %v914, %v914
      %v923 = vcombine.high %v921, %v921
      %v925 = vunpack.c.l.s4 1966171168
      %v926 = vunpack.c.0.s8 %v925
      %v927 = vlaneseq
      %v928 = vshrl.u32 %v927, 7
      %v929 = vsub.s32 %v926, %v928
      %v930 = vrot.slane %v914, %v929
      %v932 = vunpack.c.l.s4 1966171168
      %v933 = vunpack.c.0.s8 %v932
      %v934 = vlaneseq
      %v935 = vshrl.u32 %v934, 7
      %v936 = vsub.s32 %v933, %v935
      %v937 = vrot.slane %v921, %v936
      %v939 = vunpack.c.l.s4 1966171168
      %v940 = vunpack.c.0.s8 %v939
      %v941 = vlaneseq
      %v942 = vshrl.u32 %v941, 7
      %v943 = vsub.s32 %v940, %v942
      %v944 = vrot.slane %v922, %v943
      %v946 = vunpack.c.l.s4 1966171168
      %v947 = vunpack.c.0.s8 %v946
      %v948 = vlaneseq
      %v949 = vshrl.u32 %v948, 7
      %v950 = vsub.s32 %v947, %v949
      %v951 = vrot.slane %v923, %v950
      %v952 = vcombine.high %v930, %v930
      %v953 = vcombine.high %v944, %v944
      %v954 = vcombine.high %v355, %v355
      %v956 = vunpack.c.l.s4 1966171168
      %v957 = vunpack.c.0.s8 %v956
      %v958 = vlaneseq
      %v959 = vshrl.u32 %v958, 7
      %v960 = vsub.s32 %v957, %v959
      %v961 = vrot.slane %v355, %v960
      %v963 = vunpack.c.l.s4 1966171168
      %v964 = vunpack.c.0.s8 %v963
      %v965 = vlaneseq
      %v966 = vshrl.u32 %v965, 7
      %v967 = vsub.s32 %v964, %v966
      %v968 = vrot.slane %v954, %v967
      %v969 = vcombine.high %v961, %v961
      %v970 = vcombine.high %v968, %v968
      %v972 = vunpack.c.l.s4 1966171168
      %v973 = vunpack.c.0.s8 %v972
      %v974 = vlaneseq
      %v975 = vshrl.u32 %v974, 7
      %v976 = vsub.s32 %v973, %v975
      %v977 = vrot.slane %v961, %v976
      %v979 = vunpack.c.l.s4 1966171168
      %v980 = vunpack.c.0.s8 %v979
      %v981 = vlaneseq
      %v982 = vshrl.u32 %v981, 7
      %v983 = vsub.s32 %v980, %v982
      %v984 = vrot.slane %v968, %v983
      %v986 = vunpack.c.l.s4 1966171168
      %v987 = vunpack.c.0.s8 %v986
      %v988 = vlaneseq
      %v989 = vshrl.u32 %v988, 7
      %v990 = vsub.s32 %v987, %v989
      %v991 = vrot.slane %v969, %v990
      %v993 = vunpack.c.l.s4 1966171168
      %v994 = vunpack.c.0.s8 %v993
      %v995 = vlaneseq
      %v996 = vshrl.u32 %v995, 7
      %v997 = vsub.s32 %v994, %v996
      %v998 = vrot.slane %v970, %v997
      %v999 = vcombine.high %v977, %v977
      %v1000 = vcombine.high %v991, %v991
      %v1001 = vlaneseq
      %v1002 = vshrl.u32 %v1001, 7
      %v1003 = vsub.s32 0, %v1002
      %v1004 = vrot.slane %v930, %v1003
      %v1005 = vlaneseq
      %v1006 = vshrl.u32 %v1005, 7
      %v1007 = vsub.s32 0, %v1006
      %v1008 = vrot.slane %v944, %v1007
      %v1009 = vlaneseq
      %v1010 = vshrl.u32 %v1009, 7
      %v1011 = vsub.s32 0, %v1010
      %v1012 = vrot.slane %v952, %v1011
      %v1013 = vlaneseq
      %v1014 = vshrl.u32 %v1013, 7
      %v1015 = vsub.s32 0, %v1014
      %v1016 = vrot.slane %v953, %v1015
      %v1017 = vlaneseq
      %v1018 = vshrl.u32 %v1017, 7
      %v1019 = vsub.s32 0, %v1018
      %v1020 = vrot.slane %v937, %v1019
      %v1021 = vlaneseq
      %v1022 = vshrl.u32 %v1021, 7
      %v1023 = vsub.s32 0, %v1022
      %v1024 = vrot.slane %v951, %v1023
      %v1025 = vlaneseq
      %v1026 = vshrl.u32 %v1025, 7
      %v1027 = vsub.s32 0, %v1026
      %v1028 = vrot.slane %v977, %v1027
      %v1029 = vlaneseq
      %v1030 = vshrl.u32 %v1029, 7
      %v1031 = vsub.s32 0, %v1030
      %v1032 = vrot.slane %v991, %v1031
      %v1033 = vlaneseq
      %v1034 = vshrl.u32 %v1033, 7
      %v1035 = vsub.s32 0, %v1034
      %v1036 = vrot.slane %v999, %v1035
      %v1037 = vlaneseq
      %v1038 = vshrl.u32 %v1037, 7
      %v1039 = vsub.s32 0, %v1038
      %v1040 = vrot.slane %v1000, %v1039
      %v1041 = vlaneseq
      %v1042 = vshrl.u32 %v1041, 7
      %v1043 = vsub.s32 0, %v1042
      %v1044 = vrot.slane %v984, %v1043
      %v1045 = vlaneseq
      %v1046 = vshrl.u32 %v1045, 7
      %v1047 = vsub.s32 0, %v1046
      %v1048 = vrot.slane %v998, %v1047
      %v1061 = vmul.f32 %v1004, %v389
      %v1062 = vmul.f32 %v1008, %v389
      %v1063 = vmul.f32 %v1012, %v389
      %v1064 = vmul.f32 %v1016, %v389
      %v1065 = vmul.f32 %v1020, %v389
      %v1066 = vmul.f32 %v1024, %v389
      %v1067 = vmul.f32 %v1028, %v389
      %v1068 = vmul.f32 %v1032, %v389
      %v1069 = vmul.f32 %v1036, %v389
      %v1070 = vmul.f32 %v1040, %v389
      %v1071 = vmul.f32 %v1044, %v389
      %v1072 = vmul.f32 %v1048, %v389
      %v1085 = vcombine.low %v1061, %v1062
      %v1086 = vcombine.low %v1063, %v1064
      %v1087 = vcombine.low %v1065, %v1066
      %v1088 = vcombine.low %v1067, %v1068
      %v1089 = vcombine.low %v1069, %v1070
      %v1090 = vcombine.low %v1071, %v1072
      %v1097 = vpack.c.bf16 %v1086, %v1085
      %v1098 = vpack.c.bf16 %v1087, %v1087
      %v1099 = vpack.c.bf16 %v1089, %v1088
      %v1100 = vpack.c.bf16 %v1090, %v1090
      %v1101 = vpack.c.bf16 %v350, %v350
      %v1102 = vpack.c.bf16 %v351, %v351
      %v1104 = vsel %vm529, %v1097, 0
      %v1107 = vsel %vm529, %v1098, 0
      %v1110 = vsel %vm529, %v1101, 0
      %1112 = vmatprep.subr.bf16.mxu0 0
      %1113 = vmatpush1.bf16.xpose.msra.mxu0 %v1110
      %1114 = vmatprep.subr.bf16.mxu0 0
      %1115 = vmatpush1.bf16.xpose.msra.mxu0 0
      %1116 = vmatprep.subr.bf16.mxu0 0
      %1117 = vmatpush1.bf16.xpose.msra.mxu0 0
      %1118 = vmatprep.subr.bf16.mxu0 0
      %1119 = vmatpush1.bf16.xpose.msra.mxu0 0
      %1120 = vmatprep.subr.bf16.mxu0 0
      %1121 = vmatpush1.bf16.xpose.msra.mxu0 0
      %1122 = vmatprep.subr.bf16.mxu0 0
      %1123 = vmatpush1.bf16.xpose.msra.mxu0 0
      %1124 = vmatprep.subr.bf16.mxu0 0
      %1125 = vmatpush1.bf16.xpose.msra.mxu0 0
      %1126 = vmatprep.subr.bf16.mxu0 0
      %1127 = vmatpush1.bf16.xpose.msra.mxu0 0
      %1128 = vmatprep.subr.bf16.mxu0 0
      %1129 = vmatpush1.bf16.xpose.msra.mxu0 0
      %1130 = vmatprep.subr.bf16.mxu0 0
      %1131 = vmatpush1.bf16.xpose.msra.mxu0 0
      %1132 = vmatprep.subr.bf16.mxu0 0
      %1133 = vmatpush1.bf16.xpose.msra.mxu0 0
      %1134 = vmatprep.subr.bf16.mxu0 0
      %1135 = vmatpush1.bf16.xpose.msra.mxu0 0
      %1136 = vmatprep.subr.bf16.mxu0 0
      %1137 = vmatpush1.bf16.xpose.msra.mxu0 0
      %1138 = vmatprep.subr.bf16.mxu0 0
      %1139 = vmatpush1.bf16.xpose.msra.mxu0 0
      %1140 = vmatprep.subr.bf16.mxu0 0
      %1141 = vmatpush1.bf16.xpose.msra.mxu0 0
      %1142 = vmatprep.subr.bf16.mxu0 0
      %1143 = vmatpush1.bf16.xpose.msra.mxu0 0
      %1144 = vmatprep.mubr.bf16.mxu0 0
      %1145 = vmatmul.mubr.bf16.gmra.mrb[0].mxu0 %v1104
      %v1146 = vpop.f32.mrb[0].mxu0
      %v1147 = vadd.f32 0.0, %v1146
      %v1148 = vpop.f32.mrb[0].mxu0
      %v1149 = vpop.f32.mrb[0].mxu0
      %v1150 = vadd.f32 0.0, %v1149
      %v1151 = vpop.f32.mrb[0].mxu0
      %1152 = vmatprep.mubr.bf16.mxu0 0
      %1153 = vmatmul.mubr.bf16.gmra.mrb[0].mxu0 %v1107
      %v1154 = vpop.f32.mrb[0].mxu0
      %v1155 = vadd.f32 0.0, %v1154
      %v1156 = vpop.f32.mrb[0].mxu0
      %v1157 = vpop.f32.mrb[0].mxu0
      %v1158 = vpop.f32.mrb[0].mxu0
      %1159 = vdwg.mxu0
      %v1161 = vsel %vm529, %v1099, 0
      %v1164 = vsel %vm529, %v1100, 0
      %v1167 = vsel %vm529, %v1102, 0
      %1169 = vmatprep.subr.bf16.mxu0 0
      %1170 = vmatpush1.bf16.xpose.msra.mxu0 %v1167
      %1171 = vmatprep.subr.bf16.mxu0 0
      %1172 = vmatpush1.bf16.xpose.msra.mxu0 0
      %1173 = vmatprep.subr.bf16.mxu0 0
      %1174 = vmatpush1.bf16.xpose.msra.mxu0 0
      %1175 = vmatprep.subr.bf16.mxu0 0
      %1176 = vmatpush1.bf16.xpose.msra.mxu0 0
      %1177 = vmatprep.subr.bf16.mxu0 0
      %1178 = vmatpush1.bf16.xpose.msra.mxu0 0
      %1179 = vmatprep.subr.bf16.mxu0 0
      %1180 = vmatpush1.bf16.xpose.msra.mxu0 0
      %1181 = vmatprep.subr.bf16.mxu0 0
      %1182 = vmatpush1.bf16.xpose.msra.mxu0 0
      %1183 = vmatprep.subr.bf16.mxu0 0
      %1184 = vmatpush1.bf16.xpose.msra.mxu0 0
      %1185 = vmatprep.subr.bf16.mxu0 0
      %1186 = vmatpush1.bf16.xpose.msra.mxu0 0
      %1187 = vmatprep.subr.bf16.mxu0 0
      %1188 = vmatpush1.bf16.xpose.msra.mxu0 0
      %1189 = vmatprep.subr.bf16.mxu0 0
      %1190 = vmatpush1.bf16.xpose.msra.mxu0 0
      %1191 = vmatprep.subr.bf16.mxu0 0
      %1192 = vmatpush1.bf16.xpose.msra.mxu0 0
      %1193 = vmatprep.subr.bf16.mxu0 0
      %1194 = vmatpush1.bf16.xpose.msra.mxu0 0
      %1195 = vmatprep.subr.bf16.mxu0 0
      %1196 = vmatpush1.bf16.xpose.msra.mxu0 0
      %1197 = vmatprep.subr.bf16.mxu0 0
      %1198 = vmatpush1.bf16.xpose.msra.mxu0 0
      %1199 = vmatprep.subr.bf16.mxu0 0
      %1200 = vmatpush1.bf16.xpose.msra.mxu0 0
      %1201 = vmatprep.mubr.bf16.mxu0 0
      %1202 = vmatmul.mubr.bf16.gmra.mrb[0].mxu0 %v1161
      %v1203 = vpop.f32.mrb[0].mxu0
      %v1204 = vadd.f32 0.0, %v1203
      %v1205 = vpop.f32.mrb[0].mxu0
      %v1206 = vpop.f32.mrb[0].mxu0
      %v1207 = vadd.f32 0.0, %v1206
      %v1208 = vpop.f32.mrb[0].mxu0
      %1209 = vmatprep.mubr.bf16.mxu0 0
      %1210 = vmatmul.mubr.bf16.gmra.mrb[0].mxu0 %v1164
      %v1211 = vpop.f32.mrb[0].mxu0
      %v1212 = vadd.f32 0.0, %v1211
      %v1213 = vpop.f32.mrb[0].mxu0
      %v1214 = vpop.f32.mrb[0].mxu0
      %v1215 = vpop.f32.mrb[0].mxu0
      %1216 = vdwg.mxu0
      %v1223 = vcombine.high %v1147, %v1147
      %v1224 = vcombine.high %v1150, %v1150
      %v1225 = vcombine.high %v1155, %v1155
      %v1226 = vcombine.high %v1204, %v1204
      %v1227 = vcombine.high %v1207, %v1207
      %v1228 = vcombine.high %v1212, %v1212
      %1235 = vxpose.xlu0.b32.start [1/16] %v389, 128
      %1236 = vxpose.xlu0.b32.cont [2/16] 0.0, 128
      %1237 = vxpose.xlu0.b32.cont [3/16] 0.0, 128
      %1238 = vxpose.xlu0.b32.cont [4/16] 0.0, 128
      %1239 = vxpose.xlu0.b32.cont [5/16] 0.0, 128
      %1240 = vxpose.xlu0.b32.cont [6/16] 0.0, 128
      %1241 = vxpose.xlu0.b32.cont [7/16] 0.0, 128
      %1242 = vxpose.xlu0.b32.cont [8/16] 0.0, 128
      %1243 = vxpose.xlu0.b32.cont [9/16] 0.0, 128
      %1244 = vxpose.xlu0.b32.cont [10/16] 0.0, 128
      %1245 = vxpose.xlu0.b32.cont [11/16] 0.0, 128
      %1246 = vxpose.xlu0.b32.cont [12/16] 0.0, 128
      %1247 = vxpose.xlu0.b32.cont [13/16] 0.0, 128
      %1248 = vxpose.xlu0.b32.cont [14/16] 0.0, 128
      %1249 = vxpose.xlu0.b32.cont [15/16] 0.0, 128
      %1250 = vxpose.xlu0.b32.end [16/16] 0.0, 128
      %v1251 = vpop.trf.xlu0
      %v1252 = vpop.trf.xlu0
      %v1253 = vpop.trf.xlu0
      %v1254 = vpop.trf.xlu0
      %v1255 = vpop.trf.xlu0
      %v1256 = vpop.trf.xlu0
      %v1257 = vpop.trf.xlu0
      %v1258 = vpop.trf.xlu0
      %v1259 = vpop.trf.xlu0
      %v1260 = vpop.trf.xlu0
      %v1261 = vpop.trf.xlu0
      %v1262 = vpop.trf.xlu0
      %v1263 = vpop.trf.xlu0
      %v1264 = vpop.trf.xlu0
      %v1265 = vpop.trf.xlu0
      %v1266 = vpop.trf.xlu0
      %v1267 = vpack.c.bf16 %v1252, %v1251
      %1268 = vmatprep.subr.bf16.mxu0 0
      %1269 = vmatpush1.bf16.msra.mxu0 %v1267
      %1270 = vmatprep.subr.bf16.mxu0 0
      %1271 = vmatpush1.bf16.msra.mxu0 0
      %1272 = vmatprep.subr.bf16.mxu0 0
      %1273 = vmatpush1.bf16.msra.mxu0 0
      %1274 = vmatprep.subr.bf16.mxu0 0
      %1275 = vmatpush1.bf16.msra.mxu0 0
      %1276 = vmatprep.subr.bf16.mxu0 0
      %1277 = vmatpush1.bf16.msra.mxu0 0
      %1278 = vmatprep.subr.bf16.mxu0 0
      %1279 = vmatpush1.bf16.msra.mxu0 0
      %1280 = vmatprep.subr.bf16.mxu0 0
      %1281 = vmatpush1.bf16.msra.mxu0 0
      %1282 = vmatprep.subr.bf16.mxu0 0
      %1283 = vmatpush1.bf16.msra.mxu0 0
      %1284 = vmatprep.subr.bf16.mxu0 0
      %1285 = vmatpush1.bf16.msra.mxu0 0
      %1286 = vmatprep.subr.bf16.mxu0 0
      %1287 = vmatpush1.bf16.msra.mxu0 0
      %1288 = vmatprep.subr.bf16.mxu0 0
      %1289 = vmatpush1.bf16.msra.mxu0 0
      %1290 = vmatprep.subr.bf16.mxu0 0
      %1291 = vmatpush1.bf16.msra.mxu0 0
      %1292 = vmatprep.subr.bf16.mxu0 0
      %1293 = vmatpush1.bf16.msra.mxu0 0
      %1294 = vmatprep.subr.bf16.mxu0 0
      %1295 = vmatpush1.bf16.msra.mxu0 0
      %1296 = vmatprep.subr.bf16.mxu0 0
      %1297 = vmatpush1.bf16.msra.mxu0 0
      %1298 = vmatprep.subr.bf16.mxu0 0
      %1299 = vmatpush1.bf16.msra.mxu0 0
      %1300 = vmatprep.mubr.bf16.mxu0 0
      %1301 = vmatmul.mubr.bf16.gmra.mrb[0].mxu0 %v672
      %v1302 = vpop.f32.mrb[0].mxu0
      %v1303 = vadd.f32 0.0, %v1302
      %v1304 = vpop.f32.mrb[0].mxu0
      %v1305 = vpop.f32.mrb[0].mxu0
      %v1306 = vadd.f32 0.0, %v1305
      %v1307 = vpop.f32.mrb[0].mxu0
      %1308 = vdwg.mxu0
      %v1311 = vcombine.high %v1303, %v1303
      %v1313 = vunpack.c.l.s4 1983009808
      %v1314 = vunpack.c.0.s8 %v1313
      %v1315 = vlaneseq
      %v1316 = vshrl.u32 %v1315, 7
      %v1317 = vsub.s32 %v1314, %v1316
      %v1318 = vrot.slane %v1303, %v1317
      %v1320 = vunpack.c.l.s4 1983009808
      %v1321 = vunpack.c.0.s8 %v1320
      %v1322 = vlaneseq
      %v1323 = vshrl.u32 %v1322, 7
      %v1324 = vsub.s32 %v1321, %v1323
      %v1325 = vrot.slane %v1311, %v1324
      %v1326 = vcombine.high %v1318, %v1318
      %v1327 = vcombine.high %v1325, %v1325
      %v1329 = vunpack.c.l.s4 1983009808
      %v1330 = vunpack.c.0.s8 %v1329
      %v1331 = vlaneseq
      %v1332 = vshrl.u32 %v1331, 7
      %v1333 = vsub.s32 %v1330, %v1332
      %v1334 = vrot.slane %v1306, %v1333
      %v1335 = vcombine.high %v1334, %v1334
      %v1342 = vadd.f32 %v1318, 1e-06
      %v1343 = vadd.f32 %v1326, 1e-06
      %v1344 = vadd.f32 %v1325, 1e-06
      %v1345 = vadd.f32 %v1327, 1e-06
      %v1346 = vadd.f32 %v1334, 1e-06
      %v1347 = vadd.f32 %v1335, 1e-06
      %v1348 = vrsqrt.pop %v1342
      %v1349 = vrsqrt.pop %v1343
      %v1350 = vrsqrt.pop %v1344
      %v1351 = vrsqrt.pop %v1345
      %v1352 = vrsqrt.pop %v1346
      %v1353 = vrsqrt.pop %v1347
      %v1356 = vcombine.high %v766, %v766
      %v1358 = vunpack.c.l.s4 1983009808
      %v1359 = vunpack.c.0.s8 %v1358
      %v1360 = vlaneseq
      %v1361 = vshrl.u32 %v1360, 7
      %v1362 = vsub.s32 %v1359, %v1361
      %v1363 = vrot.slane %v766, %v1362
      %v1365 = vunpack.c.l.s4 1983009808
      %v1366 = vunpack.c.0.s8 %v1365
      %v1367 = vlaneseq
      %v1368 = vshrl.u32 %v1367, 7
      %v1369 = vsub.s32 %v1366, %v1368
      %v1370 = vrot.slane %v1356, %v1369
      %v1371 = vcombine.high %v1363, %v1363
      %v1372 = vcombine.high %v767, %v767
      %v1374 = vunpack.c.l.s4 1983009808
      %v1375 = vunpack.c.0.s8 %v1374
      %v1376 = vlaneseq
      %v1377 = vshrl.u32 %v1376, 7
      %v1378 = vsub.s32 %v1375, %v1377
      %v1379 = vrot.slane %v767, %v1378
      %v1381 = vunpack.c.l.s4 1983009808
      %v1382 = vunpack.c.0.s8 %v1381
      %v1383 = vlaneseq
      %v1384 = vshrl.u32 %v1383, 7
      %v1385 = vsub.s32 %v1382, %v1384
      %v1386 = vrot.slane %v1372, %v1385
      %v1387 = vcombine.high %v1379, %v1379
      %v1388 = vcombine.low %v1363, %v1371
      %v1389 = vcombine.low %v1370, %v1379
      %v1391 = vunpack.c.l.s4 1983009808
      %v1392 = vunpack.c.0.s8 %v1391
      %v1393 = vlaneseq
      %v1394 = vshrl.u32 %v1393, 7
      %v1395 = vsub.s32 %v1392, %v1394
      %v1396 = vrot.slane %v1388, %v1395
      %v1398 = vunpack.c.l.s4 1983009808
      %v1399 = vunpack.c.0.s8 %v1398
      %v1400 = vlaneseq
      %v1401 = vshrl.u32 %v1400, 7
      %v1402 = vsub.s32 %v1399, %v1401
      %v1403 = vrot.slane %v1389, %v1402
      %v1404 = vcombine.low %v1396, %v1403
      %v1405 = vcombine.low %v1387, %v1386
      %v1407 = vunpack.c.l.s4 1983009808
      %v1408 = vunpack.c.0.s8 %v1407
      %v1409 = vlaneseq
      %v1410 = vshrl.u32 %v1409, 7
      %v1411 = vsub.s32 %v1408, %v1410
      %v1412 = vrot.slane %v1405, %v1411
      %v1415 = vpack.c.bf16 %v1412, %v1404
      %v1417 = vsel %vm529, %v1415, 0
      %1419 = vmatprep.subr.bf16.mxu0 0
      %1420 = vmatpush1.bf16.msra.mxu0 %v1267
      %1421 = vmatprep.subr.bf16.mxu0 0
      %1422 = vmatpush1.bf16.msra.mxu0 0
      %1423 = vmatprep.subr.bf16.mxu0 0
      %1424 = vmatpush1.bf16.msra.mxu0 0
      %1425 = vmatprep.subr.bf16.mxu0 0
      %1426 = vmatpush1.bf16.msra.mxu0 0
      %1427 = vmatprep.subr.bf16.mxu0 0
      %1428 = vmatpush1.bf16.msra.mxu0 0
      %1429 = vmatprep.subr.bf16.mxu0 0
      %1430 = vmatpush1.bf16.msra.mxu0 0
      %1431 = vmatprep.subr.bf16.mxu0 0
      %1432 = vmatpush1.bf16.msra.mxu0 0
      %1433 = vmatprep.subr.bf16.mxu0 0
      %1434 = vmatpush1.bf16.msra.mxu0 0
      %1435 = vmatprep.subr.bf16.mxu0 0
      %1436 = vmatpush1.bf16.msra.mxu0 0
      %1437 = vmatprep.subr.bf16.mxu0 0
      %1438 = vmatpush1.bf16.msra.mxu0 0
      %1439 = vmatprep.subr.bf16.mxu0 0
      %1440 = vmatpush1.bf16.msra.mxu0 0
      %1441 = vmatprep.subr.bf16.mxu0 0
      %1442 = vmatpush1.bf16.msra.mxu0 0
      %1443 = vmatprep.subr.bf16.mxu0 0
      %1444 = vmatpush1.bf16.msra.mxu0 0
      %1445 = vmatprep.subr.bf16.mxu0 0
      %1446 = vmatpush1.bf16.msra.mxu0 0
      %1447 = vmatprep.subr.bf16.mxu0 0
      %1448 = vmatpush1.bf16.msra.mxu0 0
      %1449 = vmatprep.subr.bf16.mxu0 0
      %1450 = vmatpush1.bf16.msra.mxu0 0
      %1451 = vmatprep.mubr.bf16.mxu0 0
      %1452 = vmatmul.mubr.bf16.gmra.mrb[0].mxu0 %v1417
      %v1453 = vpop.f32.mrb[0].mxu0
      %v1454 = vadd.f32 0.0, %v1453
      %v1455 = vpop.f32.mrb[0].mxu0
      %v1456 = vpop.f32.mrb[0].mxu0
      %v1457 = vadd.f32 0.0, %v1456
      %v1458 = vpop.f32.mrb[0].mxu0
      %1459 = vdwg.mxu0
      %v1462 = vcombine.high %v1454, %v1454
      %v1464 = vunpack.c.l.s4 1983009808
      %v1465 = vunpack.c.0.s8 %v1464
      %v1466 = vlaneseq
      %v1467 = vshrl.u32 %v1466, 7
      %v1468 = vsub.s32 %v1465, %v1467
      %v1469 = vrot.slane %v1454, %v1468
      %v1471 = vunpack.c.l.s4 1983009808
      %v1472 = vunpack.c.0.s8 %v1471
      %v1473 = vlaneseq
      %v1474 = vshrl.u32 %v1473, 7
      %v1475 = vsub.s32 %v1472, %v1474
      %v1476 = vrot.slane %v1462, %v1475
      %v1477 = vcombine.high %v1469, %v1469
      %v1478 = vcombine.high %v1476, %v1476
      %v1480 = vunpack.c.l.s4 1983009808
      %v1481 = vunpack.c.0.s8 %v1480
      %v1482 = vlaneseq
      %v1483 = vshrl.u32 %v1482, 7
      %v1484 = vsub.s32 %v1481, %v1483
      %v1485 = vrot.slane %v1457, %v1484
      %v1486 = vcombine.high %v1485, %v1485
      %v1493 = vadd.f32 %v1469, 1e-06
      %v1494 = vadd.f32 %v1477, 1e-06
      %v1495 = vadd.f32 %v1476, 1e-06
      %v1496 = vadd.f32 %v1478, 1e-06
      %v1497 = vadd.f32 %v1485, 1e-06
      %v1498 = vadd.f32 %v1486, 1e-06
      %v1499 = vrsqrt.pop %v1493
      %v1500 = vrsqrt.pop %v1494
      %v1501 = vrsqrt.pop %v1495
      %v1502 = vrsqrt.pop %v1496
      %v1503 = vrsqrt.pop %v1497
      %v1504 = vrsqrt.pop %v1498
      %v1511 = vcombine.low %v1348, %v1349
      %v1513 = vunpack.c.l.s4 1983009808
      %v1514 = vunpack.c.0.s8 %v1513
      %v1515 = vlaneseq
      %v1516 = vshrl.u32 %v1515, 7
      %v1517 = vsub.s32 %v1514, %v1516
      %v1518 = vrot.slane %v1511, %v1517
      %v1520 = vunpack.c.l.s4 1983009808
      %v1521 = vunpack.c.0.s8 %v1520
      %v1522 = vlaneseq
      %v1523 = vshrl.u32 %v1522, 7
      %v1524 = vsub.s32 %v1521, %v1523
      %v1525 = vrot.slane %v1350, %v1524
      %v1526 = vcombine.low %v1518, %v1525
      %v1527 = vcombine.low %v1351, %v1352
      %v1529 = vunpack.c.l.s4 1983009808
      %v1530 = vunpack.c.0.s8 %v1529
      %v1531 = vlaneseq
      %v1532 = vshrl.u32 %v1531, 7
      %v1533 = vsub.s32 %v1530, %v1532
      %v1534 = vrot.slane %v1527, %v1533
      %v1536 = vunpack.c.l.s4 1983009808
      %v1537 = vunpack.c.0.s8 %v1536
      %v1538 = vlaneseq
      %v1539 = vshrl.u32 %v1538, 7
      %v1540 = vsub.s32 %v1537, %v1539
      %v1541 = vrot.slane %v1353, %v1540
      %v1542 = vcombine.low %v1534, %v1541
      %v1545 = vlaneseq
      %v1546 = vshrl.u32 %v1545, 7
      %v1547 = vsub.s32 0, %v1546
      %v1548 = vrot.slane %v1526, %v1547
      %1550 = vbcast.lane.b32.xlu0 %v1548, 256
      %v1551 = vpop.permute.xlu0 %1550
      %v1552 = vlaneseq
      %v1553 = vshrl.u32 %v1552, 7
      %v1554 = vsub.s32 1, %v1553
      %v1555 = vrot.slane %v1526, %v1554
      %1557 = vbcast.lane.b32.xlu0 %v1555, 256
      %v1558 = vpop.permute.xlu0 %1557
      %v1559 = vlaneseq
      %v1560 = vshrl.u32 %v1559, 7
      %v1561 = vsub.s32 2, %v1560
      %v1562 = vrot.slane %v1526, %v1561
      %1564 = vbcast.lane.b32.xlu0 %v1562, 256
      %v1565 = vpop.permute.xlu0 %1564
      %v1566 = vlaneseq
      %v1567 = vshrl.u32 %v1566, 7
      %v1568 = vsub.s32 3, %v1567
      %v1569 = vrot.slane %v1526, %v1568
      %1571 = vbcast.lane.b32.xlu0 %v1569, 256
      %v1572 = vpop.permute.xlu0 %1571
      %v1573 = vlaneseq
      %v1574 = vshrl.u32 %v1573, 7
      %v1575 = vsub.s32 4, %v1574
      %v1576 = vrot.slane %v1526, %v1575
      %1578 = vbcast.lane.b32.xlu0 %v1576, 256
      %v1579 = vpop.permute.xlu0 %1578
      %v1580 = vlaneseq
      %v1581 = vshrl.u32 %v1580, 7
      %v1582 = vsub.s32 5, %v1581
      %v1583 = vrot.slane %v1526, %v1582
      %1585 = vbcast.lane.b32.xlu0 %v1583, 256
      %v1586 = vpop.permute.xlu0 %1585
      %v1587 = vlaneseq
      %v1588 = vshrl.u32 %v1587, 7
      %v1589 = vsub.s32 0, %v1588
      %v1590 = vrot.slane %v1542, %v1589
      %1592 = vbcast.lane.b32.xlu0 %v1590, 256
      %v1593 = vpop.permute.xlu0 %1592
      %v1594 = vlaneseq
      %v1595 = vshrl.u32 %v1594, 7
      %v1596 = vsub.s32 1, %v1595
      %v1597 = vrot.slane %v1542, %v1596
      %1599 = vbcast.lane.b32.xlu0 %v1597, 256
      %v1600 = vpop.permute.xlu0 %1599
      %v1601 = vlaneseq
      %v1602 = vshrl.u32 %v1601, 7
      %v1603 = vsub.s32 2, %v1602
      %v1604 = vrot.slane %v1542, %v1603
      %1606 = vbcast.lane.b32.xlu0 %v1604, 256
      %v1607 = vpop.permute.xlu0 %1606
      %v1608 = vlaneseq
      %v1609 = vshrl.u32 %v1608, 7
      %v1610 = vsub.s32 3, %v1609
      %v1611 = vrot.slane %v1542, %v1610
      %1613 = vbcast.lane.b32.xlu0 %v1611, 256
      %v1614 = vpop.permute.xlu0 %1613
      %v1615 = vlaneseq
      %v1616 = vshrl.u32 %v1615, 7
      %v1617 = vsub.s32 4, %v1616
      %v1618 = vrot.slane %v1542, %v1617
      %1620 = vbcast.lane.b32.xlu0 %v1618, 256
      %v1621 = vpop.permute.xlu0 %1620
      %v1622 = vlaneseq
      %v1623 = vshrl.u32 %v1622, 7
      %v1624 = vsub.s32 5, %v1623
      %v1625 = vrot.slane %v1542, %v1624
      %1627 = vbcast.lane.b32.xlu0 %v1625, 256
      %v1628 = vpop.permute.xlu0 %1627
      %v1629 = vmul.f32 %v1147, %v1551
      %v1630 = vmul.f32 %v1223, %v1558
      %v1631 = vmul.f32 %v1150, %v1565
      %v1632 = vmul.f32 %v1224, %v1572
      %v1633 = vmul.f32 %v1155, %v1579
      %v1634 = vmul.f32 %v1225, %v1586
      %v1635 = vmul.f32 %v1204, %v1593
      %v1636 = vmul.f32 %v1226, %v1600
      %v1637 = vmul.f32 %v1207, %v1607
      %v1638 = vmul.f32 %v1227, %v1614
      %v1639 = vmul.f32 %v1212, %v1621
      %v1640 = vmul.f32 %v1228, %v1628
      %v1647 = vcombine.low %v1499, %v1500
      %v1649 = vunpack.c.l.s4 1983009808
      %v1650 = vunpack.c.0.s8 %v1649
      %v1651 = vlaneseq
      %v1652 = vshrl.u32 %v1651, 7
      %v1653 = vsub.s32 %v1650, %v1652
      %v1654 = vrot.slane %v1647, %v1653
      %v1656 = vunpack.c.l.s4 1983009808
      %v1657 = vunpack.c.0.s8 %v1656
      %v1658 = vlaneseq
      %v1659 = vshrl.u32 %v1658, 7
      %v1660 = vsub.s32 %v1657, %v1659
      %v1661 = vrot.slane %v1501, %v1660
      %v1662 = vcombine.low %v1654, %v1661
      %v1663 = vcombine.low %v1502, %v1503
      %v1665 = vunpack.c.l.s4 1983009808
      %v1666 = vunpack.c.0.s8 %v1665
      %v1667 = vlaneseq
      %v1668 = vshrl.u32 %v1667, 7
      %v1669 = vsub.s32 %v1666, %v1668
      %v1670 = vrot.slane %v1663, %v1669
      %v1672 = vunpack.c.l.s4 1983009808
      %v1673 = vunpack.c.0.s8 %v1672
      %v1674 = vlaneseq
      %v1675 = vshrl.u32 %v1674, 7
      %v1676 = vsub.s32 %v1673, %v1675
      %v1677 = vrot.slane %v1504, %v1676
      %v1678 = vcombine.low %v1670, %v1677
      %1681 = vxpose.xlu0.b32.start [1/16] %v1662, 128
      %1682 = vxpose.xlu0.b32.cont [2/16] 0.0, 128
      %1683 = vxpose.xlu0.b32.cont [3/16] 0.0, 128
      %1684 = vxpose.xlu0.b32.cont [4/16] 0.0, 128
      %1685 = vxpose.xlu0.b32.cont [5/16] 0.0, 128
      %1686 = vxpose.xlu0.b32.cont [6/16] 0.0, 128
      %1687 = vxpose.xlu0.b32.cont [7/16] 0.0, 128
      %1688 = vxpose.xlu0.b32.cont [8/16] 0.0, 128
      %1689 = vxpose.xlu0.b32.cont [9/16] 0.0, 128
      %1690 = vxpose.xlu0.b32.cont [10/16] 0.0, 128
      %1691 = vxpose.xlu0.b32.cont [11/16] 0.0, 128
      %1692 = vxpose.xlu0.b32.cont [12/16] 0.0, 128
      %1693 = vxpose.xlu0.b32.cont [13/16] 0.0, 128
      %1694 = vxpose.xlu0.b32.cont [14/16] 0.0, 128
      %1695 = vxpose.xlu0.b32.cont [15/16] 0.0, 128
      %1696 = vxpose.xlu0.b32.end [16/16] 0.0, 128
      %v1697 = vpop.trf.xlu0
      %v1698 = vpop.trf.xlu0
      %v1699 = vpop.trf.xlu0
      %v1700 = vpop.trf.xlu0
      %v1701 = vpop.trf.xlu0
      %v1702 = vpop.trf.xlu0
      %v1703 = vpop.trf.xlu0
      %v1704 = vpop.trf.xlu0
      %v1705 = vpop.trf.xlu0
      %v1706 = vpop.trf.xlu0
      %v1707 = vpop.trf.xlu0
      %v1708 = vpop.trf.xlu0
      %v1709 = vpop.trf.xlu0
      %v1710 = vpop.trf.xlu0
      %v1711 = vpop.trf.xlu0
      %v1712 = vpop.trf.xlu0
      %1713 = vxpose.xlu0.b32.start [1/16] %v1678, 128
      %1714 = vxpose.xlu0.b32.cont [2/16] 0.0, 128
      %1715 = vxpose.xlu0.b32.cont [3/16] 0.0, 128
      %1716 = vxpose.xlu0.b32.cont [4/16] 0.0, 128
      %1717 = vxpose.xlu0.b32.cont [5/16] 0.0, 128
      %1718 = vxpose.xlu0.b32.cont [6/16] 0.0, 128
      %1719 = vxpose.xlu0.b32.cont [7/16] 0.0, 128
      %1720 = vxpose.xlu0.b32.cont [8/16] 0.0, 128
      %1721 = vxpose.xlu0.b32.cont [9/16] 0.0, 128
      %1722 = vxpose.xlu0.b32.cont [10/16] 0.0, 128
      %1723 = vxpose.xlu0.b32.cont [11/16] 0.0, 128
      %1724 = vxpose.xlu0.b32.cont [12/16] 0.0, 128
      %1725 = vxpose.xlu0.b32.cont [13/16] 0.0, 128
      %1726 = vxpose.xlu0.b32.cont [14/16] 0.0, 128
      %1727 = vxpose.xlu0.b32.cont [15/16] 0.0, 128
      %1728 = vxpose.xlu0.b32.end [16/16] 0.0, 128
      %v1729 = vpop.trf.xlu0
      %v1730 = vpop.trf.xlu0
      %v1731 = vpop.trf.xlu0
      %v1732 = vpop.trf.xlu0
      %v1733 = vpop.trf.xlu0
      %v1734 = vpop.trf.xlu0
      %v1735 = vpop.trf.xlu0
      %v1736 = vpop.trf.xlu0
      %v1737 = vpop.trf.xlu0
      %v1738 = vpop.trf.xlu0
      %v1739 = vpop.trf.xlu0
      %v1740 = vpop.trf.xlu0
      %v1741 = vpop.trf.xlu0
      %v1742 = vpop.trf.xlu0
      %v1743 = vpop.trf.xlu0
      %v1744 = vpop.trf.xlu0
      %v1745 = vmul.f32 %v1629, %v1697
      %v1746 = vmul.f32 %v1630, %v1697
      %v1747 = vmul.f32 %v1631, %v1697
      %v1748 = vmul.f32 %v1632, %v1697
      %v1749 = vmul.f32 %v1633, %v1697
      %v1750 = vmul.f32 %v1634, %v1697
      %v1751 = vmul.f32 %v1635, %v1729
      %v1752 = vmul.f32 %v1636, %v1729
      %v1753 = vmul.f32 %v1637, %v1729
      %v1754 = vmul.f32 %v1638, %v1729
      %v1755 = vmul.f32 %v1639, %v1729
      %v1756 = vmul.f32 %v1640, %v1729
      %vm1757 = vcmask 44032
      %v1758 = vsel %vm1757, %v1745, -inf
      %1759 = vmax.xlane.f32.xlu0 %v1758
      %v1760 = vpop.xlane.xlu0 %1759
      %v1761 = vsel %vm1757, %v1746, -inf
      %1762 = vmax.xlane.f32.xlu0 %v1761
      %v1763 = vpop.xlane.xlu0 %1762
      %v1764 = vsel %vm1757, %v1747, -inf
      %1765 = vmax.xlane.f32.xlu0 %v1764
      %v1766 = vpop.xlane.xlu0 %1765
      %v1767 = vsel %vm1757, %v1748, -inf
      %1768 = vmax.xlane.f32.xlu0 %v1767
      %v1769 = vpop.xlane.xlu0 %1768
      %v1770 = vsel %vm1757, %v1749, -inf
      %1771 = vmax.xlane.f32.xlu0 %v1770
      %v1772 = vpop.xlane.xlu0 %1771
      %v1773 = vsel %vm1757, %v1750, -inf
      %1774 = vmax.xlane.f32.xlu0 %v1773
      %v1775 = vpop.xlane.xlu0 %1774
      %v1776 = vsel %vm1757, %v1751, -inf
      %1777 = vmax.xlane.f32.xlu0 %v1776
      %v1778 = vpop.xlane.xlu0 %1777
      %v1779 = vsel %vm1757, %v1752, -inf
      %1780 = vmax.xlane.f32.xlu0 %v1779
      %v1781 = vpop.xlane.xlu0 %1780
      %v1782 = vsel %vm1757, %v1753, -inf
      %1783 = vmax.xlane.f32.xlu0 %v1782
      %v1784 = vpop.xlane.xlu0 %1783
      %v1785 = vsel %vm1757, %v1754, -inf
      %1786 = vmax.xlane.f32.xlu0 %v1785
      %v1787 = vpop.xlane.xlu0 %1786
      %v1788 = vsel %vm1757, %v1755, -inf
      %1789 = vmax.xlane.f32.xlu0 %v1788
      %v1790 = vpop.xlane.xlu0 %1789
      %v1791 = vsel %vm1757, %v1756, -inf
      %1792 = vmax.xlane.f32.xlu0 %v1791
      %v1793 = vpop.xlane.xlu0 %1792
      %v1794 = vsel %vm529, %v354, 0
      %v1797 = vsel %vm529, %v350, 0
      %1799 = vmatprep.subr.mxu0 0.0
      %1800 = vmatpush1.xpose.msra.mxu0 %v1797
      %1801 = vmatprep.subr.mxu0 0.0
      %1802 = vmatpush1.xpose.msra.mxu0 0.0
      %1803 = vmatprep.subr.mxu0 0.0
      %1804 = vmatpush1.xpose.msra.mxu0 0.0
      %1805 = vmatprep.subr.mxu0 0.0
      %1806 = vmatpush1.xpose.msra.mxu0 0.0
      %1807 = vmatprep.subr.mxu0 0.0
      %1808 = vmatpush1.xpose.msra.mxu0 0.0
      %1809 = vmatprep.subr.mxu0 0.0
      %1810 = vmatpush1.xpose.msra.mxu0 0.0
      %1811 = vmatprep.subr.mxu0 0.0
      %1812 = vmatpush1.xpose.msra.mxu0 0.0
      %1813 = vmatprep.subr.mxu0 0.0
      %1814 = vmatpush1.xpose.msra.mxu0 0.0
      %1815 = vmatprep.subr.mxu0 0.0
      %1816 = vmatpush1.xpose.msra.mxu0 0.0
      %1817 = vmatprep.subr.mxu0 0.0
      %1818 = vmatpush1.xpose.msra.mxu0 0.0
      %1819 = vmatprep.subr.mxu0 0.0
      %1820 = vmatpush1.xpose.msra.mxu0 0.0
      %1821 = vmatprep.subr.mxu0 0.0
      %1822 = vmatpush1.xpose.msra.mxu0 0.0
      %1823 = vmatprep.subr.mxu0 0.0
      %1824 = vmatpush1.xpose.msra.mxu0 0.0
      %1825 = vmatprep.subr.mxu0 0.0
      %1826 = vmatpush1.xpose.msra.mxu0 0.0
      %1827 = vmatprep.subr.mxu0 0.0
      %1828 = vmatpush1.xpose.msra.mxu0 0.0
      %1829 = vmatprep.subr.mxu0 0.0
      %1830 = vmatpush1.xpose.msra.mxu0 0.0
      %1831 = vmatprep.subr.mxu0 0.0
      %1832 = vmatpush1.xpose.msra.mxu0 0.0
      %1833 = vmatprep.subr.mxu0 0.0
      %1834 = vmatpush1.xpose.msra.mxu0 0.0
      %1835 = vmatprep.subr.mxu0 0.0
      %1836 = vmatpush1.xpose.msra.mxu0 0.0
      %1837 = vmatprep.subr.mxu0 0.0
      %1838 = vmatpush1.xpose.msra.mxu0 0.0
      %1839 = vmatprep.subr.mxu0 0.0
      %1840 = vmatpush1.xpose.msra.mxu0 0.0
      %1841 = vmatprep.subr.mxu0 0.0
      %1842 = vmatpush1.xpose.msra.mxu0 0.0
      %1843 = vmatprep.subr.mxu0 0.0
      %1844 = vmatpush1.xpose.msra.mxu0 0.0
      %1845 = vmatprep.subr.mxu0 0.0
      %1846 = vmatpush1.xpose.msra.mxu0 0.0
      %1847 = vmatprep.subr.mxu0 0.0
      %1848 = vmatpush1.xpose.msra.mxu0 0.0
      %1849 = vmatprep.subr.mxu0 0.0
      %1850 = vmatpush1.xpose.msra.mxu0 0.0
      %1851 = vmatprep.subr.mxu0 0.0
      %1852 = vmatpush1.xpose.msra.mxu0 0.0
      %1853 = vmatprep.subr.mxu0 0.0
      %1854 = vmatpush1.xpose.msra.mxu0 0.0
      %1855 = vmatprep.subr.mxu0 0.0
      %1856 = vmatpush1.xpose.msra.mxu0 0.0
      %1857 = vmatprep.subr.mxu0 0.0
      %1858 = vmatpush1.xpose.msra.mxu0 0.0
      %1859 = vmatprep.subr.mxu0 0.0
      %1860 = vmatpush1.xpose.msra.mxu0 0.0
      %1861 = vmatprep.subr.mxu0 0.0
      %1862 = vmatpush1.xpose.msra.mxu0 0.0
      %1863 = vmatprep.mubr.f32.mxu0 0.0
      %1864 = vmatmul.mubr.f32.gmra.mrb[0].mxu0 %v1794
      %v1865 = vpop.f32.mrb[0].mxu0
      %v1866 = vadd.f32 0.0, %v1865
      %v1867 = vpop.f32.mrb[0].mxu0
      %1868 = vdwg.mxu0
      %v1869 = vsel %vm529, %v355, 0
      %v1872 = vsel %vm529, %v351, 0
      %1874 = vmatprep.subr.mxu0 0.0
      %1875 = vmatpush1.xpose.msra.mxu0 %v1872
      %1876 = vmatprep.subr.mxu0 0.0
      %1877 = vmatpush1.xpose.msra.mxu0 0.0
      %1878 = vmatprep.subr.mxu0 0.0
      %1879 = vmatpush1.xpose.msra.mxu0 0.0
      %1880 = vmatprep.subr.mxu0 0.0
      %1881 = vmatpush1.xpose.msra.mxu0 0.0
      %1882 = vmatprep.subr.mxu0 0.0
      %1883 = vmatpush1.xpose.msra.mxu0 0.0
      %1884 = vmatprep.subr.mxu0 0.0
      %1885 = vmatpush1.xpose.msra.mxu0 0.0
      %1886 = vmatprep.subr.mxu0 0.0
      %1887 = vmatpush1.xpose.msra.mxu0 0.0
      %1888 = vmatprep.subr.mxu0 0.0
      %1889 = vmatpush1.xpose.msra.mxu0 0.0
      %1890 = vmatprep.subr.mxu0 0.0
      %1891 = vmatpush1.xpose.msra.mxu0 0.0
      %1892 = vmatprep.subr.mxu0 0.0
      %1893 = vmatpush1.xpose.msra.mxu0 0.0
      %1894 = vmatprep.subr.mxu0 0.0
      %1895 = vmatpush1.xpose.msra.mxu0 0.0
      %1896 = vmatprep.subr.mxu0 0.0
      %1897 = vmatpush1.xpose.msra.mxu0 0.0
      %1898 = vmatprep.subr.mxu0 0.0
      %1899 = vmatpush1.xpose.msra.mxu0 0.0
      %1900 = vmatprep.subr.mxu0 0.0
      %1901 = vmatpush1.xpose.msra.mxu0 0.0
      %1902 = vmatprep.subr.mxu0 0.0
      %1903 = vmatpush1.xpose.msra.mxu0 0.0
      %1904 = vmatprep.subr.mxu0 0.0
      %1905 = vmatpush1.xpose.msra.mxu0 0.0
      %1906 = vmatprep.subr.mxu0 0.0
      %1907 = vmatpush1.xpose.msra.mxu0 0.0
      %1908 = vmatprep.subr.mxu0 0.0
      %1909 = vmatpush1.xpose.msra.mxu0 0.0
      %1910 = vmatprep.subr.mxu0 0.0
      %1911 = vmatpush1.xpose.msra.mxu0 0.0
      %1912 = vmatprep.subr.mxu0 0.0
      %1913 = vmatpush1.xpose.msra.mxu0 0.0
      %1914 = vmatprep.subr.mxu0 0.0
      %1915 = vmatpush1.xpose.msra.mxu0 0.0
      %1916 = vmatprep.subr.mxu0 0.0
      %1917 = vmatpush1.xpose.msra.mxu0 0.0
      %1918 = vmatprep.subr.mxu0 0.0
      %1919 = vmatpush1.xpose.msra.mxu0 0.0
      %1920 = vmatprep.subr.mxu0 0.0
      %1921 = vmatpush1.xpose.msra.mxu0 0.0
      %1922 = vmatprep.subr.mxu0 0.0
      %1923 = vmatpush1.xpose.msra.mxu0 0.0
      %1924 = vmatprep.subr.mxu0 0.0
      %1925 = vmatpush1.xpose.msra.mxu0 0.0
      %1926 = vmatprep.subr.mxu0 0.0
      %1927 = vmatpush1.xpose.msra.mxu0 0.0
      %1928 = vmatprep.subr.mxu0 0.0
      %1929 = vmatpush1.xpose.msra.mxu0 0.0
      %1930 = vmatprep.subr.mxu0 0.0
      %1931 = vmatpush1.xpose.msra.mxu0 0.0
      %1932 = vmatprep.subr.mxu0 0.0
      %1933 = vmatpush1.xpose.msra.mxu0 0.0
      %1934 = vmatprep.subr.mxu0 0.0
      %1935 = vmatpush1.xpose.msra.mxu0 0.0
      %1936 = vmatprep.subr.mxu0 0.0
      %1937 = vmatpush1.xpose.msra.mxu0 0.0
      %1938 = vmatprep.mubr.f32.mxu0 0.0
      %1939 = vmatmul.mubr.f32.gmra.mrb[0].mxu0 %v1869
      %v1940 = vpop.f32.mrb[0].mxu0
      %v1941 = vadd.f32 0.0, %v1940
      %v1942 = vpop.f32.mrb[0].mxu0
      %1943 = vdwg.mxu0
      %vm1944 = vcmask 128000
      %v1945 = vsel %vm1944, %v607, 0.0
      %1946 = vadd.xlane.f32.xlu0 %v1945
      %v1947 = vpop.xlane.xlu0 %1946
      %v1948 = vsel %vm1944, %v608, 0.0
      %1949 = vadd.xlane.f32.xlu0 %v1948
      %v1950 = vpop.xlane.xlu0 %1949
      %v1951 = vadd.f32 %v1947, 1e-06
      %v1952 = vadd.f32 %v1950, 1e-06
      %v1953 = vrsqrt.pop %v1951
      %v1954 = vrsqrt.pop %v1952
      %v1955 = vmul.f32 %v1866, %v1953
      %v1956 = vmul.f32 %v1941, %v1954
      %v1957 = vsel %vm1944, %v766, 0.0
      %1958 = vadd.xlane.f32.xlu0 %v1957
      %v1959 = vpop.xlane.xlu0 %1958
      %v1960 = vsel %vm1944, %v767, 0.0
      %1961 = vadd.xlane.f32.xlu0 %v1960
      %v1962 = vpop.xlane.xlu0 %1961
      %v1963 = vadd.f32 %v1959, 1e-06
      %v1964 = vadd.f32 %v1962, 1e-06
      %v1965 = vrsqrt.pop %v1963
      %v1966 = vrsqrt.pop %v1964
      %v1969 = vlaneseq
      %v1970 = vand.u32 %v1969, 127
      %v1971 = vlaneseq
      %v1972 = vshrl.u32 %v1971, 7
      %v1973 = vsub.s32 %v1970, %v1972
      %v1974 = vrot.slane %v1965, %v1973
      %v1975 = vlaneseq
      %v1976 = vshrl.u32 %v1975, 7
      %v1977 = vsub.s32 %v1970, %v1976
      %v1978 = vrot.slane %v1966, %v1977
      %vm1979 = vcmask 1042434
      %v1980 = vsel %vm1979, %v1974, %v1974
      %vm1981 = vcmask 1043459
      %v1982 = vsel %vm1981, %v1974, %v1980
      %vm1983 = vcmask 1044484
      %v1984 = vsel %vm1983, %v1974, %v1982
      %vm1985 = vcmask 1045509
      %v1986 = vsel %vm1985, %v1974, %v1984
      %v1987 = vsel %vm1979, %v1978, %v1978
      %v1988 = vsel %vm1981, %v1978, %v1987
      %v1989 = vsel %vm1983, %v1978, %v1988
      %v1990 = vsel %vm1985, %v1978, %v1989
      %v1993 = vmul.f32 %v1955, %v1986
      %v1994 = vmul.f32 %v1956, %v1990
      %vm1995 = vcmask 48128
      %v1997 = vsel %vm1995, %v1993, 0
      %vm1999 = vcmask 1045504
      %v2000 = vsel %vm1999, %v350, 0
      %2002 = vmatprep.subr.mxu0 0.0
      %2003 = vmatpush1.msra.mxu0 %v2000
      %2004 = vmatprep.subr.mxu0 0.0
      %2005 = vmatpush1.msra.mxu0 0.0
      %2006 = vmatprep.subr.mxu0 0.0
      %2007 = vmatpush1.msra.mxu0 0.0
      %2008 = vmatprep.subr.mxu0 0.0
      %2009 = vmatpush1.msra.mxu0 0.0
      %2010 = vmatprep.subr.mxu0 0.0
      %2011 = vmatpush1.msra.mxu0 0.0
      %2012 = vmatprep.subr.mxu0 0.0
      %2013 = vmatpush1.msra.mxu0 0.0
      %2014 = vmatprep.subr.mxu0 0.0
      %2015 = vmatpush1.msra.mxu0 0.0
      %2016 = vmatprep.subr.mxu0 0.0
      %2017 = vmatpush1.msra.mxu0 0.0
      %2018 = vmatprep.subr.mxu0 0.0
      %2019 = vmatpush1.msra.mxu0 0.0
      %2020 = vmatprep.subr.mxu0 0.0
      %2021 = vmatpush1.msra.mxu0 0.0
      %2022 = vmatprep.subr.mxu0 0.0
      %2023 = vmatpush1.msra.mxu0 0.0
      %2024 = vmatprep.subr.mxu0 0.0
      %2025 = vmatpush1.msra.mxu0 0.0
      %2026 = vmatprep.subr.mxu0 0.0
      %2027 = vmatpush1.msra.mxu0 0.0
      %2028 = vmatprep.subr.mxu0 0.0
      %2029 = vmatpush1.msra.mxu0 0.0
      %2030 = vmatprep.subr.mxu0 0.0
      %2031 = vmatpush1.msra.mxu0 0.0
      %2032 = vmatprep.subr.mxu0 0.0
      %2033 = vmatpush1.msra.mxu0 0.0
      %2034 = vmatprep.subr.mxu0 0.0
      %2035 = vmatpush1.msra.mxu0 0.0
      %2036 = vmatprep.subr.mxu0 0.0
      %2037 = vmatpush1.msra.mxu0 0.0
      %2038 = vmatprep.subr.mxu0 0.0
      %2039 = vmatpush1.msra.mxu0 0.0
      %2040 = vmatprep.subr.mxu0 0.0
      %2041 = vmatpush1.msra.mxu0 0.0
      %2042 = vmatprep.subr.mxu0 0.0
      %2043 = vmatpush1.msra.mxu0 0.0
      %2044 = vmatprep.subr.mxu0 0.0
      %2045 = vmatpush1.msra.mxu0 0.0
      %2046 = vmatprep.subr.mxu0 0.0
      %2047 = vmatpush1.msra.mxu0 0.0
      %2048 = vmatprep.subr.mxu0 0.0
      %2049 = vmatpush1.msra.mxu0 0.0
      %2050 = vmatprep.subr.mxu0 0.0
      %2051 = vmatpush1.msra.mxu0 0.0
      %2052 = vmatprep.subr.mxu0 0.0
      %2053 = vmatpush1.msra.mxu0 0.0
      %2054 = vmatprep.subr.mxu0 0.0
      %2055 = vmatpush1.msra.mxu0 0.0
      %2056 = vmatprep.subr.mxu0 0.0
      %2057 = vmatpush1.msra.mxu0 0.0
      %2058 = vmatprep.subr.mxu0 0.0
      %2059 = vmatpush1.msra.mxu0 0.0
      %2060 = vmatprep.subr.mxu0 0.0
      %2061 = vmatpush1.msra.mxu0 0.0
      %2062 = vmatprep.subr.mxu0 0.0
      %2063 = vmatpush1.msra.mxu0 0.0
      %2064 = vmatprep.subr.mxu0 0.0
      %2065 = vmatpush1.msra.mxu0 0.0
      %2066 = vmatprep.mubr.f32.mxu0 0.0
      %2067 = vmatmul.mubr.f32.gmra.mrb[0].mxu0 %v1997
      %v2068 = vpop.f32.mrb[0].mxu0
      %v2069 = vadd.f32 0.0, %v2068
      %v2070 = vpop.f32.mrb[0].mxu0
      %2071 = vdwg.mxu0
      %v2073 = vsel %vm1995, %v1994, 0
      %v2075 = vsel %vm1999, %v351, 0
      %2077 = vmatprep.subr.mxu0 0.0
      %2078 = vmatpush1.msra.mxu0 %v2075
      %2079 = vmatprep.subr.mxu0 0.0
      %2080 = vmatpush1.msra.mxu0 0.0
      %2081 = vmatprep.subr.mxu0 0.0
      %2082 = vmatpush1.msra.mxu0 0.0
      %2083 = vmatprep.subr.mxu0 0.0
      %2084 = vmatpush1.msra.mxu0 0.0
      %2085 = vmatprep.subr.mxu0 0.0
      %2086 = vmatpush1.msra.mxu0 0.0
      %2087 = vmatprep.subr.mxu0 0.0
      %2088 = vmatpush1.msra.mxu0 0.0
      %2089 = vmatprep.subr.mxu0 0.0
      %2090 = vmatpush1.msra.mxu0 0.0
      %2091 = vmatprep.subr.mxu0 0.0
      %2092 = vmatpush1.msra.mxu0 0.0
      %2093 = vmatprep.subr.mxu0 0.0
      %2094 = vmatpush1.msra.mxu0 0.0
      %2095 = vmatprep.subr.mxu0 0.0
      %2096 = vmatpush1.msra.mxu0 0.0
      %2097 = vmatprep.subr.mxu0 0.0
      %2098 = vmatpush1.msra.mxu0 0.0
      %2099 = vmatprep.subr.mxu0 0.0
      %2100 = vmatpush1.msra.mxu0 0.0
      %2101 = vmatprep.subr.mxu0 0.0
      %2102 = vmatpush1.msra.mxu0 0.0
      %2103 = vmatprep.subr.mxu0 0.0
      %2104 = vmatpush1.msra.mxu0 0.0
      %2105 = vmatprep.subr.mxu0 0.0
      %2106 = vmatpush1.msra.mxu0 0.0
      %2107 = vmatprep.subr.mxu0 0.0
      %2108 = vmatpush1.msra.mxu0 0.0
      %2109 = vmatprep.subr.mxu0 0.0
      %2110 = vmatpush1.msra.mxu0 0.0
      %2111 = vmatprep.subr.mxu0 0.0
      %2112 = vmatpush1.msra.mxu0 0.0
      %2113 = vmatprep.subr.mxu0 0.0
      %2114 = vmatpush1.msra.mxu0 0.0
      %2115 = vmatprep.subr.mxu0 0.0
      %2116 = vmatpush1.msra.mxu0 0.0
      %2117 = vmatprep.subr.mxu0 0.0
      %2118 = vmatpush1.msra.mxu0 0.0
      %2119 = vmatprep.subr.mxu0 0.0
      %2120 = vmatpush1.msra.mxu0 0.0
      %2121 = vmatprep.subr.mxu0 0.0
      %2122 = vmatpush1.msra.mxu0 0.0
      %2123 = vmatprep.subr.mxu0 0.0
      %2124 = vmatpush1.msra.mxu0 0.0
      %2125 = vmatprep.subr.mxu0 0.0
      %2126 = vmatpush1.msra.mxu0 0.0
      %2127 = vmatprep.subr.mxu0 0.0
      %2128 = vmatpush1.msra.mxu0 0.0
      %2129 = vmatprep.subr.mxu0 0.0
      %2130 = vmatpush1.msra.mxu0 0.0
      %2131 = vmatprep.subr.mxu0 0.0
      %2132 = vmatpush1.msra.mxu0 0.0
      %2133 = vmatprep.subr.mxu0 0.0
      %2134 = vmatpush1.msra.mxu0 0.0
      %2135 = vmatprep.subr.mxu0 0.0
      %2136 = vmatpush1.msra.mxu0 0.0
      %2137 = vmatprep.subr.mxu0 0.0
      %2138 = vmatpush1.msra.mxu0 0.0
      %2139 = vmatprep.subr.mxu0 0.0
      %2140 = vmatpush1.msra.mxu0 0.0
      %2141 = vmatprep.mubr.f32.mxu0 0.0
      %2142 = vmatmul.mubr.f32.gmra.mrb[0].mxu0 %v2073
      %v2143 = vpop.f32.mrb[0].mxu0
      %v2144 = vadd.f32 0.0, %v2143
      %v2145 = vpop.f32.mrb[0].mxu0
      %2146 = vdwg.mxu0
      %vm2147 = vcmask 46080
      %v2148 = vsel %vm2147, %v1993, 0.0
      %2149 = vadd.xlane.f32.xlu0 %v2148
      %v2150 = vpop.xlane.xlu0 %2149
      %v2151 = vsel %vm2147, %v1994, 0.0
      %2152 = vadd.xlane.f32.xlu0 %v2151
      %v2153 = vpop.xlane.xlu0 %2152
      %v2154 = vadd.f32 %v2150, 1e-06
      %v2155 = vadd.f32 %v2153, 1e-06
      %v2156 = vrcp.pop %v2154
      %v2157 = vrcp.pop %v2155
      %v2158 = vmul.f32 %v2069, %v2156
      %v2159 = vmul.f32 %v2144, %v2157
      %v2160 = vmul.f32 %v354, %v2158
      %v2161 = vmul.f32 %v355, %v2159
      %v2164 = vcombine.high %v2160, %v2160
      %v2166 = vunpack.c.l.s4 1983009808
      %v2167 = vunpack.c.0.s8 %v2166
      %v2168 = vlaneseq
      %v2169 = vshrl.u32 %v2168, 7
      %v2170 = vsub.s32 %v2167, %v2169
      %v2171 = vrot.slane %v2160, %v2170
      %v2173 = vunpack.c.l.s4 1983009808
      %v2174 = vunpack.c.0.s8 %v2173
      %v2175 = vlaneseq
      %v2176 = vshrl.u32 %v2175, 7
      %v2177 = vsub.s32 %v2174, %v2176
      %v2178 = vrot.slane %v2164, %v2177
      %v2179 = vcombine.high %v2171, %v2171
      %v2180 = vcombine.high %v2161, %v2161
      %v2182 = vunpack.c.l.s4 1983009808
      %v2183 = vunpack.c.0.s8 %v2182
      %v2184 = vlaneseq
      %v2185 = vshrl.u32 %v2184, 7
      %v2186 = vsub.s32 %v2183, %v2185
      %v2187 = vrot.slane %v2161, %v2186
      %v2189 = vunpack.c.l.s4 1983009808
      %v2190 = vunpack.c.0.s8 %v2189
      %v2191 = vlaneseq
      %v2192 = vshrl.u32 %v2191, 7
      %v2193 = vsub.s32 %v2190, %v2192
      %v2194 = vrot.slane %v2180, %v2193
      %v2195 = vcombine.high %v2187, %v2187
      %v2196 = vcombine.low %v2171, %v2179
      %v2197 = vcombine.low %v2178, %v2187
      %v2199 = vunpack.c.l.s4 1983009808
      %v2200 = vunpack.c.0.s8 %v2199
      %v2201 = vlaneseq
      %v2202 = vshrl.u32 %v2201, 7
      %v2203 = vsub.s32 %v2200, %v2202
      %v2204 = vrot.slane %v2196, %v2203
      %v2206 = vunpack.c.l.s4 1983009808
      %v2207 = vunpack.c.0.s8 %v2206
      %v2208 = vlaneseq
      %v2209 = vshrl.u32 %v2208, 7
      %v2210 = vsub.s32 %v2207, %v2209
      %v2211 = vrot.slane %v2197, %v2210
      %v2212 = vcombine.low %v2204, %v2211
      %v2213 = vcombine.low %v2195, %v2194
      %v2215 = vunpack.c.l.s4 1983009808
      %v2216 = vunpack.c.0.s8 %v2215
      %v2217 = vlaneseq
      %v2218 = vshrl.u32 %v2217, 7
      %v2219 = vsub.s32 %v2216, %v2218
      %v2220 = vrot.slane %v2213, %v2219
      %v2223 = vpack.c.bf16 %v2220, %v2212
      %v2224 = vpack.c.bf16 %v408, %v407
      %v2226 = vsel %vm529, %v2223, 0
      %2228 = vmatprep.subr.bf16.mxu0 0
      %2229 = vmatpush1.bf16.msra.mxu0 %v2224
      %2230 = vmatprep.subr.bf16.mxu0 0
      %2231 = vmatpush1.bf16.msra.mxu0 0
      %2232 = vmatprep.subr.bf16.mxu0 0
      %2233 = vmatpush1.bf16.msra.mxu0 0
      %2234 = vmatprep.subr.bf16.mxu0 0
      %2235 = vmatpush1.bf16.msra.mxu0 0
      %2236 = vmatprep.subr.bf16.mxu0 0
      %2237 = vmatpush1.bf16.msra.mxu0 0
      %2238 = vmatprep.subr.bf16.mxu0 0
      %2239 = vmatpush1.bf16.msra.mxu0 0
      %2240 = vmatprep.subr.bf16.mxu0 0
      %2241 = vmatpush1.bf16.msra.mxu0 0
      %2242 = vmatprep.subr.bf16.mxu0 0
      %2243 = vmatpush1.bf16.msra.mxu0 0
      %2244 = vmatprep.subr.bf16.mxu0 0
      %2245 = vmatpush1.bf16.msra.mxu0 0
      %2246 = vmatprep.subr.bf16.mxu0 0
      %2247 = vmatpush1.bf16.msra.mxu0 0
      %2248 = vmatprep.subr.bf16.mxu0 0
      %2249 = vmatpush1.bf16.msra.mxu0 0
      %2250 = vmatprep.subr.bf16.mxu0 0
      %2251 = vmatpush1.bf16.msra.mxu0 0
      %2252 = vmatprep.subr.bf16.mxu0 0
      %2253 = vmatpush1.bf16.msra.mxu0 0
      %2254 = vmatprep.subr.bf16.mxu0 0
      %2255 = vmatpush1.bf16.msra.mxu0 0
      %2256 = vmatprep.subr.bf16.mxu0 0
      %2257 = vmatpush1.bf16.msra.mxu0 0
      %2258 = vmatprep.subr.bf16.mxu0 0
      %2259 = vmatpush1.bf16.msra.mxu0 0
      %2260 = vmatprep.mubr.bf16.mxu0 0
      %2261 = vmatmul.mubr.bf16.gmra.mrb[0].mxu0 %v2226
      %v2262 = vpop.f32.mrb[0].mxu0
      %v2263 = vadd.f32 0.0, %v2262
      %v2264 = vpop.f32.mrb[0].mxu0
      %v2265 = vpop.f32.mrb[0].mxu0
      %v2266 = vadd.f32 0.0, %v2265
      %v2267 = vpop.f32.mrb[0].mxu0
      %2268 = vdwg.mxu0
      %v2271 = vcombine.high %v2263, %v2263
      %v2273 = vunpack.c.l.s4 1983009808
      %v2274 = vunpack.c.0.s8 %v2273
      %v2275 = vlaneseq
      %v2276 = vshrl.u32 %v2275, 7
      %v2277 = vsub.s32 %v2274, %v2276
      %v2278 = vrot.slane %v2263, %v2277
      %v2280 = vunpack.c.l.s4 1983009808
      %v2281 = vunpack.c.0.s8 %v2280
      %v2282 = vlaneseq
      %v2283 = vshrl.u32 %v2282, 7
      %v2284 = vsub.s32 %v2281, %v2283
      %v2285 = vrot.slane %v2271, %v2284
      %v2286 = vcombine.high %v2278, %v2278
      %v2287 = vcombine.high %v2285, %v2285
      %v2289 = vunpack.c.l.s4 1983009808
      %v2290 = vunpack.c.0.s8 %v2289
      %v2291 = vlaneseq
      %v2292 = vshrl.u32 %v2291, 7
      %v2293 = vsub.s32 %v2290, %v2292
      %v2294 = vrot.slane %v2266, %v2293
      %v2295 = vcombine.high %v2294, %v2294
      %2302 = vmatprep.subr.bf16.mxu0 0
      %2303 = vmatpush1.bf16.msra.mxu0 %v2224
      %2304 = vmatprep.subr.bf16.mxu0 0
      %2305 = vmatpush1.bf16.msra.mxu0 0
      %2306 = vmatprep.subr.bf16.mxu0 0
      %2307 = vmatpush1.bf16.msra.mxu0 0
      %2308 = vmatprep.subr.bf16.mxu0 0
      %2309 = vmatpush1.bf16.msra.mxu0 0
      %2310 = vmatprep.subr.bf16.mxu0 0
      %2311 = vmatpush1.bf16.msra.mxu0 0
      %2312 = vmatprep.subr.bf16.mxu0 0
      %2313 = vmatpush1.bf16.msra.mxu0 0
      %2314 = vmatprep.subr.bf16.mxu0 0
      %2315 = vmatpush1.bf16.msra.mxu0 0
      %2316 = vmatprep.subr.bf16.mxu0 0
      %2317 = vmatpush1.bf16.msra.mxu0 0
      %2318 = vmatprep.subr.bf16.mxu0 0
      %2319 = vmatpush1.bf16.msra.mxu0 0
      %2320 = vmatprep.subr.bf16.mxu0 0
      %2321 = vmatpush1.bf16.msra.mxu0 0
      %2322 = vmatprep.subr.bf16.mxu0 0
      %2323 = vmatpush1.bf16.msra.mxu0 0
      %2324 = vmatprep.subr.bf16.mxu0 0
      %2325 = vmatpush1.bf16.msra.mxu0 0
      %2326 = vmatprep.subr.bf16.mxu0 0
      %2327 = vmatpush1.bf16.msra.mxu0 0
      %2328 = vmatprep.subr.bf16.mxu0 0
      %2329 = vmatpush1.bf16.msra.mxu0 0
      %2330 = vmatprep.subr.bf16.mxu0 0
      %2331 = vmatpush1.bf16.msra.mxu0 0
      %2332 = vmatprep.subr.bf16.mxu0 0
      %2333 = vmatpush1.bf16.msra.mxu0 0
      %2334 = vmatprep.mubr.bf16.mxu0 0
      %2335 = vmatmul.mubr.bf16.gmra.mrb[0].mxu0 %v672
      %v2336 = vpop.f32.mrb[0].mxu0
      %v2337 = vadd.f32 0.0, %v2336
      %v2338 = vpop.f32.mrb[0].mxu0
      %v2339 = vpop.f32.mrb[0].mxu0
      %v2340 = vadd.f32 0.0, %v2339
      %v2341 = vpop.f32.mrb[0].mxu0
      %2342 = vdwg.mxu0
      %v2345 = vcombine.high %v2337, %v2337
      %v2347 = vunpack.c.l.s4 1983009808
      %v2348 = vunpack.c.0.s8 %v2347
      %v2349 = vlaneseq
      %v2350 = vshrl.u32 %v2349, 7
      %v2351 = vsub.s32 %v2348, %v2350
      %v2352 = vrot.slane %v2337, %v2351
      %v2354 = vunpack.c.l.s4 1983009808
      %v2355 = vunpack.c.0.s8 %v2354
      %v2356 = vlaneseq
      %v2357 = vshrl.u32 %v2356, 7
      %v2358 = vsub.s32 %v2355, %v2357
      %v2359 = vrot.slane %v2345, %v2358
      %v2360 = vcombine.high %v2352, %v2352
      %v2361 = vcombine.high %v2359, %v2359
      %v2363 = vunpack.c.l.s4 1983009808
      %v2364 = vunpack.c.0.s8 %v2363
      %v2365 = vlaneseq
      %v2366 = vshrl.u32 %v2365, 7
      %v2367 = vsub.s32 %v2364, %v2366
      %v2368 = vrot.slane %v2340, %v2367
      %v2369 = vcombine.high %v2368, %v2368
      %v2376 = vadd.f32 %v2352, 1e-06
      %v2377 = vadd.f32 %v2360, 1e-06
      %v2378 = vadd.f32 %v2359, 1e-06
      %v2379 = vadd.f32 %v2361, 1e-06
      %v2380 = vadd.f32 %v2368, 1e-06
      %v2381 = vadd.f32 %v2369, 1e-06
      %v2382 = vrsqrt.pop %v2376
      %v2383 = vrsqrt.pop %v2377
      %v2384 = vrsqrt.pop %v2378
      %v2385 = vrsqrt.pop %v2379
      %v2386 = vrsqrt.pop %v2380
      %v2387 = vrsqrt.pop %v2381
      %v2388 = vmul.f32 %v2278, %v2382
      %v2389 = vmul.f32 %v2286, %v2383
      %v2390 = vmul.f32 %v2285, %v2384
      %v2391 = vmul.f32 %v2287, %v2385
      %v2392 = vmul.f32 %v2294, %v2386
      %v2393 = vmul.f32 %v2295, %v2387
      %v2394 = vmul.f32 %v2158, %v2158
      %v2395 = vmul.f32 %v2159, %v2159
      %v2398 = vcombine.high %v2394, %v2394
      %v2400 = vunpack.c.l.s4 1983009808
      %v2401 = vunpack.c.0.s8 %v2400
      %v2402 = vlaneseq
      %v2403 = vshrl.u32 %v2402, 7
      %v2404 = vsub.s32 %v2401, %v2403
      %v2405 = vrot.slane %v2394, %v2404
      %v2407 = vunpack.c.l.s4 1983009808
      %v2408 = vunpack.c.0.s8 %v2407
      %v2409 = vlaneseq
      %v2410 = vshrl.u32 %v2409, 7
      %v2411 = vsub.s32 %v2408, %v2410
      %v2412 = vrot.slane %v2398, %v2411
      %v2413 = vcombine.high %v2405, %v2405
      %v2414 = vcombine.high %v2395, %v2395
      %v2416 = vunpack.c.l.s4 1983009808
      %v2417 = vunpack.c.0.s8 %v2416
      %v2418 = vlaneseq
      %v2419 = vshrl.u32 %v2418, 7
      %v2420 = vsub.s32 %v2417, %v2419
      %v2421 = vrot.slane %v2395, %v2420
      %v2423 = vunpack.c.l.s4 1983009808
      %v2424 = vunpack.c.0.s8 %v2423
      %v2425 = vlaneseq
      %v2426 = vshrl.u32 %v2425, 7
      %v2427 = vsub.s32 %v2424, %v2426
      %v2428 = vrot.slane %v2414, %v2427
      %v2429 = vcombine.high %v2421, %v2421
      %v2430 = vcombine.low %v2405, %v2413
      %v2431 = vcombine.low %v2412, %v2421
      %v2433 = vunpack.c.l.s4 1983009808
      %v2434 = vunpack.c.0.s8 %v2433
      %v2435 = vlaneseq
      %v2436 = vshrl.u32 %v2435, 7
      %v2437 = vsub.s32 %v2434, %v2436
      %v2438 = vrot.slane %v2430, %v2437
      %v2440 = vunpack.c.l.s4 1983009808
      %v2441 = vunpack.c.0.s8 %v2440
      %v2442 = vlaneseq
      %v2443 = vshrl.u32 %v2442, 7
      %v2444 = vsub.s32 %v2441, %v2443
      %v2445 = vrot.slane %v2431, %v2444
      %v2446 = vcombine.low %v2438, %v2445
      %v2447 = vcombine.low %v2429, %v2428
      %v2449 = vunpack.c.l.s4 1983009808
      %v2450 = vunpack.c.0.s8 %v2449
      %v2451 = vlaneseq
      %v2452 = vshrl.u32 %v2451, 7
      %v2453 = vsub.s32 %v2450, %v2452
      %v2454 = vrot.slane %v2447, %v2453
      %v2457 = vpack.c.bf16 %v2454, %v2446
      %v2459 = vsel %vm529, %v2457, 0
      %2461 = vmatprep.subr.bf16.mxu0 0
      %2462 = vmatpush1.bf16.msra.mxu0 %v2224
      %2463 = vmatprep.subr.bf16.mxu0 0
      %2464 = vmatpush1.bf16.msra.mxu0 0
      %2465 = vmatprep.subr.bf16.mxu0 0
      %2466 = vmatpush1.bf16.msra.mxu0 0
      %2467 = vmatprep.subr.bf16.mxu0 0
      %2468 = vmatpush1.bf16.msra.mxu0 0
      %2469 = vmatprep.subr.bf16.mxu0 0
      %2470 = vmatpush1.bf16.msra.mxu0 0
      %2471 = vmatprep.subr.bf16.mxu0 0
      %2472 = vmatpush1.bf16.msra.mxu0 0
      %2473 = vmatprep.subr.bf16.mxu0 0
      %2474 = vmatpush1.bf16.msra.mxu0 0
      %2475 = vmatprep.subr.bf16.mxu0 0
      %2476 = vmatpush1.bf16.msra.mxu0 0
      %2477 = vmatprep.subr.bf16.mxu0 0
      %2478 = vmatpush1.bf16.msra.mxu0 0
      %2479 = vmatprep.subr.bf16.mxu0 0
      %2480 = vmatpush1.bf16.msra.mxu0 0
      %2481 = vmatprep.subr.bf16.mxu0 0
      %2482 = vmatpush1.bf16.msra.mxu0 0
      %2483 = vmatprep.subr.bf16.mxu0 0
      %2484 = vmatpush1.bf16.msra.mxu0 0
      %2485 = vmatprep.subr.bf16.mxu0 0
      %2486 = vmatpush1.bf16.msra.mxu0 0
      %2487 = vmatprep.subr.bf16.mxu0 0
      %2488 = vmatpush1.bf16.msra.mxu0 0
      %2489 = vmatprep.subr.bf16.mxu0 0
      %2490 = vmatpush1.bf16.msra.mxu0 0
      %2491 = vmatprep.subr.bf16.mxu0 0
      %2492 = vmatpush1.bf16.msra.mxu0 0
      %2493 = vmatprep.mubr.bf16.mxu0 0
      %2494 = vmatmul.mubr.bf16.gmra.mrb[0].mxu0 %v2459
      %v2495 = vpop.f32.mrb[0].mxu0
      %v2496 = vadd.f32 0.0, %v2495
      %v2497 = vpop.f32.mrb[0].mxu0
      %v2498 = vpop.f32.mrb[0].mxu0
      %v2499 = vadd.f32 0.0, %v2498
      %v2500 = vpop.f32.mrb[0].mxu0
      %2501 = vdwg.mxu0
      %v2504 = vcombine.high %v2496, %v2496
      %v2506 = vunpack.c.l.s4 1983009808
      %v2507 = vunpack.c.0.s8 %v2506
      %v2508 = vlaneseq
      %v2509 = vshrl.u32 %v2508, 7
      %v2510 = vsub.s32 %v2507, %v2509
      %v2511 = vrot.slane %v2496, %v2510
      %v2513 = vunpack.c.l.s4 1983009808
      %v2514 = vunpack.c.0.s8 %v2513
      %v2515 = vlaneseq
      %v2516 = vshrl.u32 %v2515, 7
      %v2517 = vsub.s32 %v2514, %v2516
      %v2518 = vrot.slane %v2504, %v2517
      %v2519 = vcombine.high %v2511, %v2511
      %v2520 = vcombine.high %v2518, %v2518
      %v2522 = vunpack.c.l.s4 1983009808
      %v2523 = vunpack.c.0.s8 %v2522
      %v2524 = vlaneseq
      %v2525 = vshrl.u32 %v2524, 7
      %v2526 = vsub.s32 %v2523, %v2525
      %v2527 = vrot.slane %v2499, %v2526
      %v2528 = vcombine.high %v2527, %v2527
      %v2535 = vadd.f32 %v2511, 1e-06
      %v2536 = vadd.f32 %v2519, 1e-06
      %v2537 = vadd.f32 %v2518, 1e-06
      %v2538 = vadd.f32 %v2520, 1e-06
      %v2539 = vadd.f32 %v2527, 1e-06
      %v2540 = vadd.f32 %v2528, 1e-06
      %v2541 = vrsqrt.pop %v2535
      %v2542 = vrsqrt.pop %v2536
      %v2543 = vrsqrt.pop %v2537
      %v2544 = vrsqrt.pop %v2538
      %v2545 = vrsqrt.pop %v2539
      %v2546 = vrsqrt.pop %v2540
      %v2547 = vmul.f32 %v2388, %v2541
      %v2548 = vmul.f32 %v2389, %v2542
      %v2549 = vmul.f32 %v2390, %v2543
      %v2550 = vmul.f32 %v2391, %v2544
      %v2551 = vmul.f32 %v2392, %v2545
      %v2552 = vmul.f32 %v2393, %v2546
      %v2553 = vsel %vm2147, %v1993, -inf
      %2554 = vmax.xlane.f32.xlu0 %v2553
      %v2555 = vpop.xlane.xlu0 %2554
      %v2556 = vsel %vm2147, %v1994, -inf
      %2557 = vmax.xlane.f32.xlu0 %v2556
      %v2558 = vpop.xlane.xlu0 %2557
      %vm2559 = vcmp.ge.f32.partialorder %v1993, %v2555
      %vm2560 = vcmp.ge.f32.partialorder %v1994, %v2558
      %v2561 = vsel %vm2559, 1, 0
      %v2562 = vsel %vm2560, 1, 0
      %v2563 = vcvt.s32.f32 %v2561
      %v2564 = vcvt.s32.f32 %v2562
      %v2565 = vsel %vm2147, %v2563, 0.0
      %2566 = vadd.xlane.f32.xlu0 %v2565
      %v2567 = vpop.xlane.xlu0 %2566
      %v2568 = vsel %vm2147, %v2564, 0.0
      %2569 = vadd.xlane.f32.xlu0 %v2568
      %v2570 = vpop.xlane.xlu0 %2569
      %v2571 = vrcp.pop %v2567
      %v2572 = vrcp.pop %v2570
      %v2573 = vmul.f32 %v2563, %v2571
      %v2574 = vmul.f32 %v2564, %v2572
      %v2576 = vsel %vm1995, %v2573, 0
      %2578 = vmatprep.subr.mxu0 0.0
      %2579 = vmatpush1.msra.mxu0 %v2000
      %2580 = vmatprep.subr.mxu0 0.0
      %2581 = vmatpush1.msra.mxu0 0.0
      %2582 = vmatprep.subr.mxu0 0.0
      %2583 = vmatpush1.msra.mxu0 0.0
      %2584 = vmatprep.subr.mxu0 0.0
      %2585 = vmatpush1.msra.mxu0 0.0
      %2586 = vmatprep.subr.mxu0 0.0
      %2587 = vmatpush1.msra.mxu0 0.0
      %2588 = vmatprep.subr.mxu0 0.0
      %2589 = vmatpush1.msra.mxu0 0.0
      %2590 = vmatprep.subr.mxu0 0.0
      %2591 = vmatpush1.msra.mxu0 0.0
      %2592 = vmatprep.subr.mxu0 0.0
      %2593 = vmatpush1.msra.mxu0 0.0
      %2594 = vmatprep.subr.mxu0 0.0
      %2595 = vmatpush1.msra.mxu0 0.0
      %2596 = vmatprep.subr.mxu0 0.0
      %2597 = vmatpush1.msra.mxu0 0.0
      %2598 = vmatprep.subr.mxu0 0.0
      %2599 = vmatpush1.msra.mxu0 0.0
      %2600 = vmatprep.subr.mxu0 0.0
      %2601 = vmatpush1.msra.mxu0 0.0
      %2602 = vmatprep.subr.mxu0 0.0
      %2603 = vmatpush1.msra.mxu0 0.0
      %2604 = vmatprep.subr.mxu0 0.0
      %2605 = vmatpush1.msra.mxu0 0.0
      %2606 = vmatprep.subr.mxu0 0.0
      %2607 = vmatpush1.msra.mxu0 0.0
      %2608 = vmatprep.subr.mxu0 0.0
      %2609 = vmatpush1.msra.mxu0 0.0
      %2610 = vmatprep.subr.mxu0 0.0
      %2611 = vmatpush1.msra.mxu0 0.0
      %2612 = vmatprep.subr.mxu0 0.0
      %2613 = vmatpush1.msra.mxu0 0.0
      %2614 = vmatprep.subr.mxu0 0.0
      %2615 = vmatpush1.msra.mxu0 0.0
      %2616 = vmatprep.subr.mxu0 0.0
      %2617 = vmatpush1.msra.mxu0 0.0
      %2618 = vmatprep.subr.mxu0 0.0
      %2619 = vmatpush1.msra.mxu0 0.0
      %2620 = vmatprep.subr.mxu0 0.0
      %2621 = vmatpush1.msra.mxu0 0.0
      %2622 = vmatprep.subr.mxu0 0.0
      %2623 = vmatpush1.msra.mxu0 0.0
      %2624 = vmatprep.subr.mxu0 0.0
      %2625 = vmatpush1.msra.mxu0 0.0
      %2626 = vmatprep.subr.mxu0 0.0
      %2627 = vmatpush1.msra.mxu0 0.0
      %2628 = vmatprep.subr.mxu0 0.0
      %2629 = vmatpush1.msra.mxu0 0.0
      %2630 = vmatprep.subr.mxu0 0.0
      %2631 = vmatpush1.msra.mxu0 0.0
      %2632 = vmatprep.subr.mxu0 0.0
      %2633 = vmatpush1.msra.mxu0 0.0
      %2634 = vmatprep.subr.mxu0 0.0
      %2635 = vmatpush1.msra.mxu0 0.0
      %2636 = vmatprep.subr.mxu0 0.0
      %2637 = vmatpush1.msra.mxu0 0.0
      %2638 = vmatprep.subr.mxu0 0.0
      %2639 = vmatpush1.msra.mxu0 0.0
      %2640 = vmatprep.subr.mxu0 0.0
      %2641 = vmatpush1.msra.mxu0 0.0
      %2642 = vmatprep.mubr.f32.mxu0 0.0
      %2643 = vmatmul.mubr.f32.gmra.mrb[0].mxu0 %v2576
      %v2644 = vpop.f32.mrb[0].mxu0
      %v2645 = vadd.f32 0.0, %v2644
      %v2646 = vpop.f32.mrb[0].mxu0
      %2647 = vdwg.mxu0
      %v2649 = vsel %vm1995, %v2574, 0
      %2651 = vmatprep.subr.mxu0 0.0
      %2652 = vmatpush1.msra.mxu0 %v2075
      %2653 = vmatprep.subr.mxu0 0.0
      %2654 = vmatpush1.msra.mxu0 0.0
      %2655 = vmatprep.subr.mxu0 0.0
      %2656 = vmatpush1.msra.mxu0 0.0
      %2657 = vmatprep.subr.mxu0 0.0
      %2658 = vmatpush1.msra.mxu0 0.0
      %2659 = vmatprep.subr.mxu0 0.0
      %2660 = vmatpush1.msra.mxu0 0.0
      %2661 = vmatprep.subr.mxu0 0.0
      %2662 = vmatpush1.msra.mxu0 0.0
      %2663 = vmatprep.subr.mxu0 0.0
      %2664 = vmatpush1.msra.mxu0 0.0
      %2665 = vmatprep.subr.mxu0 0.0
      %2666 = vmatpush1.msra.mxu0 0.0
      %2667 = vmatprep.subr.mxu0 0.0
      %2668 = vmatpush1.msra.mxu0 0.0
      %2669 = vmatprep.subr.mxu0 0.0
      %2670 = vmatpush1.msra.mxu0 0.0
      %2671 = vmatprep.subr.mxu0 0.0
      %2672 = vmatpush1.msra.mxu0 0.0
      %2673 = vmatprep.subr.mxu0 0.0
      %2674 = vmatpush1.msra.mxu0 0.0
      %2675 = vmatprep.subr.mxu0 0.0
      %2676 = vmatpush1.msra.mxu0 0.0
      %2677 = vmatprep.subr.mxu0 0.0
      %2678 = vmatpush1.msra.mxu0 0.0
      %2679 = vmatprep.subr.mxu0 0.0
      %2680 = vmatpush1.msra.mxu0 0.0
      %2681 = vmatprep.subr.mxu0 0.0
      %2682 = vmatpush1.msra.mxu0 0.0
      %2683 = vmatprep.subr.mxu0 0.0
      %2684 = vmatpush1.msra.mxu0 0.0
      %2685 = vmatprep.subr.mxu0 0.0
      %2686 = vmatpush1.msra.mxu0 0.0
      %2687 = vmatprep.subr.mxu0 0.0
      %2688 = vmatpush1.msra.mxu0 0.0
      %2689 = vmatprep.subr.mxu0 0.0
      %2690 = vmatpush1.msra.mxu0 0.0
      %2691 = vmatprep.subr.mxu0 0.0
      %2692 = vmatpush1.msra.mxu0 0.0
      %2693 = vmatprep.subr.mxu0 0.0
      %2694 = vmatpush1.msra.mxu0 0.0
      %2695 = vmatprep.subr.mxu0 0.0
      %2696 = vmatpush1.msra.mxu0 0.0
      %2697 = vmatprep.subr.mxu0 0.0
      %2698 = vmatpush1.msra.mxu0 0.0
      %2699 = vmatprep.subr.mxu0 0.0
      %2700 = vmatpush1.msra.mxu0 0.0
      %2701 = vmatprep.subr.mxu0 0.0
      %2702 = vmatpush1.msra.mxu0 0.0
      %2703 = vmatprep.subr.mxu0 0.0
      %2704 = vmatpush1.msra.mxu0 0.0
      %2705 = vmatprep.subr.mxu0 0.0
      %2706 = vmatpush1.msra.mxu0 0.0
      %2707 = vmatprep.subr.mxu0 0.0
      %2708 = vmatpush1.msra.mxu0 0.0
      %2709 = vmatprep.subr.mxu0 0.0
      %2710 = vmatpush1.msra.mxu0 0.0
      %2711 = vmatprep.subr.mxu0 0.0
      %2712 = vmatpush1.msra.mxu0 0.0
      %2713 = vmatprep.subr.mxu0 0.0
      %2714 = vmatpush1.msra.mxu0 0.0
      %2715 = vmatprep.mubr.f32.mxu0 0.0
      %2716 = vmatmul.mubr.f32.gmra.mrb[0].mxu0 %v2649
      %v2717 = vpop.f32.mrb[0].mxu0
      %v2718 = vadd.f32 0.0, %v2717
      %v2719 = vpop.f32.mrb[0].mxu0
      %2720 = vdwg.mxu0
      %v2721 = vmul.f32 %v354, %v2645
      %v2722 = vmul.f32 %v355, %v2718
      %v2725 = vcombine.high %v2721, %v2721
      %v2727 = vunpack.c.l.s4 1983009808
      %v2728 = vunpack.c.0.s8 %v2727
      %v2729 = vlaneseq
      %v2730 = vshrl.u32 %v2729, 7
      %v2731 = vsub.s32 %v2728, %v2730
      %v2732 = vrot.slane %v2721, %v2731
      %v2734 = vunpack.c.l.s4 1983009808
      %v2735 = vunpack.c.0.s8 %v2734
      %v2736 = vlaneseq
      %v2737 = vshrl.u32 %v2736, 7
      %v2738 = vsub.s32 %v2735, %v2737
      %v2739 = vrot.slane %v2725, %v2738
      %v2740 = vcombine.high %v2732, %v2732
      %v2741 = vcombine.high %v2722, %v2722
      %v2743 = vunpack.c.l.s4 1983009808
      %v2744 = vunpack.c.0.s8 %v2743
      %v2745 = vlaneseq
      %v2746 = vshrl.u32 %v2745, 7
      %v2747 = vsub.s32 %v2744, %v2746
      %v2748 = vrot.slane %v2722, %v2747
      %v2750 = vunpack.c.l.s4 1983009808
      %v2751 = vunpack.c.0.s8 %v2750
      %v2752 = vlaneseq
      %v2753 = vshrl.u32 %v2752, 7
      %v2754 = vsub.s32 %v2751, %v2753
      %v2755 = vrot.slane %v2741, %v2754
      %v2756 = vcombine.high %v2748, %v2748
      %v2757 = vcombine.low %v2732, %v2740
      %v2758 = vcombine.low %v2739, %v2748
      %v2760 = vunpack.c.l.s4 1983009808
      %v2761 = vunpack.c.0.s8 %v2760
      %v2762 = vlaneseq
      %v2763 = vshrl.u32 %v2762, 7
      %v2764 = vsub.s32 %v2761, %v2763
      %v2765 = vrot.slane %v2757, %v2764
      %v2767 = vunpack.c.l.s4 1983009808
      %v2768 = vunpack.c.0.s8 %v2767
      %v2769 = vlaneseq
      %v2770 = vshrl.u32 %v2769, 7
      %v2771 = vsub.s32 %v2768, %v2770
      %v2772 = vrot.slane %v2758, %v2771
      %v2773 = vcombine.low %v2765, %v2772
      %v2774 = vcombine.low %v2756, %v2755
      %v2776 = vunpack.c.l.s4 1983009808
      %v2777 = vunpack.c.0.s8 %v2776
      %v2778 = vlaneseq
      %v2779 = vshrl.u32 %v2778, 7
      %v2780 = vsub.s32 %v2777, %v2779
      %v2781 = vrot.slane %v2774, %v2780
      %v2784 = vpack.c.bf16 %v2781, %v2773
      %v2785 = vpack.c.bf16 %v441, %v440
      %v2787 = vsel %vm529, %v2784, 0
      %2789 = vmatprep.subr.bf16.mxu0 0
      %2790 = vmatpush1.bf16.msra.mxu0 %v2785
      %2791 = vmatprep.subr.bf16.mxu0 0
      %2792 = vmatpush1.bf16.msra.mxu0 0
      %2793 = vmatprep.subr.bf16.mxu0 0
      %2794 = vmatpush1.bf16.msra.mxu0 0
      %2795 = vmatprep.subr.bf16.mxu0 0
      %2796 = vmatpush1.bf16.msra.mxu0 0
      %2797 = vmatprep.subr.bf16.mxu0 0
      %2798 = vmatpush1.bf16.msra.mxu0 0
      %2799 = vmatprep.subr.bf16.mxu0 0
      %2800 = vmatpush1.bf16.msra.mxu0 0
      %2801 = vmatprep.subr.bf16.mxu0 0
      %2802 = vmatpush1.bf16.msra.mxu0 0
      %2803 = vmatprep.subr.bf16.mxu0 0
      %2804 = vmatpush1.bf16.msra.mxu0 0
      %2805 = vmatprep.subr.bf16.mxu0 0
      %2806 = vmatpush1.bf16.msra.mxu0 0
      %2807 = vmatprep.subr.bf16.mxu0 0
      %2808 = vmatpush1.bf16.msra.mxu0 0
      %2809 = vmatprep.subr.bf16.mxu0 0
      %2810 = vmatpush1.bf16.msra.mxu0 0
      %2811 = vmatprep.subr.bf16.mxu0 0
      %2812 = vmatpush1.bf16.msra.mxu0 0
      %2813 = vmatprep.subr.bf16.mxu0 0
      %2814 = vmatpush1.bf16.msra.mxu0 0
      %2815 = vmatprep.subr.bf16.mxu0 0
      %2816 = vmatpush1.bf16.msra.mxu0 0
      %2817 = vmatprep.subr.bf16.mxu0 0
      %2818 = vmatpush1.bf16.msra.mxu0 0
      %2819 = vmatprep.subr.bf16.mxu0 0
      %2820 = vmatpush1.bf16.msra.mxu0 0
      %2821 = vmatprep.mubr.bf16.mxu0 0
      %2822 = vmatmul.mubr.bf16.gmra.mrb[0].mxu0 %v2787
      %v2823 = vpop.f32.mrb[0].mxu0
      %v2824 = vadd.f32 0.0, %v2823
      %v2825 = vpop.f32.mrb[0].mxu0
      %v2826 = vpop.f32.mrb[0].mxu0
      %v2827 = vadd.f32 0.0, %v2826
      %v2828 = vpop.f32.mrb[0].mxu0
      %2829 = vdwg.mxu0
      %v2832 = vcombine.high %v2824, %v2824
      %v2834 = vunpack.c.l.s4 1983009808
      %v2835 = vunpack.c.0.s8 %v2834
      %v2836 = vlaneseq
      %v2837 = vshrl.u32 %v2836, 7
      %v2838 = vsub.s32 %v2835, %v2837
      %v2839 = vrot.slane %v2824, %v2838
      %v2841 = vunpack.c.l.s4 1983009808
      %v2842 = vunpack.c.0.s8 %v2841
      %v2843 = vlaneseq
      %v2844 = vshrl.u32 %v2843, 7
      %v2845 = vsub.s32 %v2842, %v2844
      %v2846 = vrot.slane %v2832, %v2845
      %v2847 = vcombine.high %v2839, %v2839
      %v2848 = vcombine.high %v2846, %v2846
      %v2850 = vunpack.c.l.s4 1983009808
      %v2851 = vunpack.c.0.s8 %v2850
      %v2852 = vlaneseq
      %v2853 = vshrl.u32 %v2852, 7
      %v2854 = vsub.s32 %v2851, %v2853
      %v2855 = vrot.slane %v2827, %v2854
      %v2856 = vcombine.high %v2855, %v2855
      %2863 = vmatprep.subr.bf16.mxu0 0
      %2864 = vmatpush1.bf16.msra.mxu0 %v2785
      %2865 = vmatprep.subr.bf16.mxu0 0
      %2866 = vmatpush1.bf16.msra.mxu0 0
      %2867 = vmatprep.subr.bf16.mxu0 0
      %2868 = vmatpush1.bf16.msra.mxu0 0
      %2869 = vmatprep.subr.bf16.mxu0 0
      %2870 = vmatpush1.bf16.msra.mxu0 0
      %2871 = vmatprep.subr.bf16.mxu0 0
      %2872 = vmatpush1.bf16.msra.mxu0 0
      %2873 = vmatprep.subr.bf16.mxu0 0
      %2874 = vmatpush1.bf16.msra.mxu0 0
      %2875 = vmatprep.subr.bf16.mxu0 0
      %2876 = vmatpush1.bf16.msra.mxu0 0
      %2877 = vmatprep.subr.bf16.mxu0 0
      %2878 = vmatpush1.bf16.msra.mxu0 0
      %2879 = vmatprep.subr.bf16.mxu0 0
      %2880 = vmatpush1.bf16.msra.mxu0 0
      %2881 = vmatprep.subr.bf16.mxu0 0
      %2882 = vmatpush1.bf16.msra.mxu0 0
      %2883 = vmatprep.subr.bf16.mxu0 0
      %2884 = vmatpush1.bf16.msra.mxu0 0
      %2885 = vmatprep.subr.bf16.mxu0 0
      %2886 = vmatpush1.bf16.msra.mxu0 0
      %2887 = vmatprep.subr.bf16.mxu0 0
      %2888 = vmatpush1.bf16.msra.mxu0 0
      %2889 = vmatprep.subr.bf16.mxu0 0
      %2890 = vmatpush1.bf16.msra.mxu0 0
      %2891 = vmatprep.subr.bf16.mxu0 0
      %2892 = vmatpush1.bf16.msra.mxu0 0
      %2893 = vmatprep.subr.bf16.mxu0 0
      %2894 = vmatpush1.bf16.msra.mxu0 0
      %2895 = vmatprep.mubr.bf16.mxu0 0
      %2896 = vmatmul.mubr.bf16.gmra.mrb[0].mxu0 %v672
      %v2897 = vpop.f32.mrb[0].mxu0
      %v2898 = vadd.f32 0.0, %v2897
      %v2899 = vpop.f32.mrb[0].mxu0
      %v2900 = vpop.f32.mrb[0].mxu0
      %v2901 = vadd.f32 0.0, %v2900
      %v2902 = vpop.f32.mrb[0].mxu0
      %2903 = vdwg.mxu0
      %v2906 = vcombine.high %v2898, %v2898
      %v2908 = vunpack.c.l.s4 1983009808
      %v2909 = vunpack.c.0.s8 %v2908
      %v2910 = vlaneseq
      %v2911 = vshrl.u32 %v2910, 7
      %v2912 = vsub.s32 %v2909, %v2911
      %v2913 = vrot.slane %v2898, %v2912
      %v2915 = vunpack.c.l.s4 1983009808
      %v2916 = vunpack.c.0.s8 %v2915
      %v2917 = vlaneseq
      %v2918 = vshrl.u32 %v2917, 7
      %v2919 = vsub.s32 %v2916, %v2918
      %v2920 = vrot.slane %v2906, %v2919
      %v2921 = vcombine.high %v2913, %v2913
      %v2922 = vcombine.high %v2920, %v2920
      %v2924 = vunpack.c.l.s4 1983009808
      %v2925 = vunpack.c.0.s8 %v2924
      %v2926 = vlaneseq
      %v2927 = vshrl.u32 %v2926, 7
      %v2928 = vsub.s32 %v2925, %v2927
      %v2929 = vrot.slane %v2901, %v2928
      %v2930 = vcombine.high %v2929, %v2929
      %v2937 = vadd.f32 %v2913, 1e-06
      %v2938 = vadd.f32 %v2921, 1e-06
      %v2939 = vadd.f32 %v2920, 1e-06
      %v2940 = vadd.f32 %v2922, 1e-06
      %v2941 = vadd.f32 %v2929, 1e-06
      %v2942 = vadd.f32 %v2930, 1e-06
      %v2943 = vrsqrt.pop %v2937
      %v2944 = vrsqrt.pop %v2938
      %v2945 = vrsqrt.pop %v2939
      %v2946 = vrsqrt.pop %v2940
      %v2947 = vrsqrt.pop %v2941
      %v2948 = vrsqrt.pop %v2942
      %v2949 = vmul.f32 %v2839, %v2943
      %v2950 = vmul.f32 %v2847, %v2944
      %v2951 = vmul.f32 %v2846, %v2945
      %v2952 = vmul.f32 %v2848, %v2946
      %v2953 = vmul.f32 %v2855, %v2947
      %v2954 = vmul.f32 %v2856, %v2948
      %v2955 = vmul.f32 %v2645, %v2645
      %v2956 = vmul.f32 %v2718, %v2718
      %v2959 = vcombine.high %v2955, %v2955
      %v2961 = vunpack.c.l.s4 1983009808
      %v2962 = vunpack.c.0.s8 %v2961
      %v2963 = vlaneseq
      %v2964 = vshrl.u32 %v2963, 7
      %v2965 = vsub.s32 %v2962, %v2964
      %v2966 = vrot.slane %v2955, %v2965
      %v2968 = vunpack.c.l.s4 1983009808
      %v2969 = vunpack.c.0.s8 %v2968
      %v2970 = vlaneseq
      %v2971 = vshrl.u32 %v2970, 7
      %v2972 = vsub.s32 %v2969, %v2971
      %v2973 = vrot.slane %v2959, %v2972
      %v2974 = vcombine.high %v2966, %v2966
      %v2975 = vcombine.high %v2956, %v2956
      %v2977 = vunpack.c.l.s4 1983009808
      %v2978 = vunpack.c.0.s8 %v2977
      %v2979 = vlaneseq
      %v2980 = vshrl.u32 %v2979, 7
      %v2981 = vsub.s32 %v2978, %v2980
      %v2982 = vrot.slane %v2956, %v2981
      %v2984 = vunpack.c.l.s4 1983009808
      %v2985 = vunpack.c.0.s8 %v2984
      %v2986 = vlaneseq
      %v2987 = vshrl.u32 %v2986, 7
      %v2988 = vsub.s32 %v2985, %v2987
      %v2989 = vrot.slane %v2975, %v2988
      %v2990 = vcombine.high %v2982, %v2982
      %v2991 = vcombine.low %v2966, %v2974
      %v2992 = vcombine.low %v2973, %v2982
      %v2994 = vunpack.c.l.s4 1983009808
      %v2995 = vunpack.c.0.s8 %v2994
      %v2996 = vlaneseq
      %v2997 = vshrl.u32 %v2996, 7
      %v2998 = vsub.s32 %v2995, %v2997
      %v2999 = vrot.slane %v2991, %v2998
      %v3001 = vunpack.c.l.s4 1983009808
      %v3002 = vunpack.c.0.s8 %v3001
      %v3003 = vlaneseq
      %v3004 = vshrl.u32 %v3003, 7
      %v3005 = vsub.s32 %v3002, %v3004
      %v3006 = vrot.slane %v2992, %v3005
      %v3007 = vcombine.low %v2999, %v3006
      %v3008 = vcombine.low %v2990, %v2989
      %v3010 = vunpack.c.l.s4 1983009808
      %v3011 = vunpack.c.0.s8 %v3010
      %v3012 = vlaneseq
      %v3013 = vshrl.u32 %v3012, 7
      %v3014 = vsub.s32 %v3011, %v3013
      %v3015 = vrot.slane %v3008, %v3014
      %v3018 = vpack.c.bf16 %v3015, %v3007
      %v3020 = vsel %vm529, %v3018, 0
      %3022 = vmatprep.subr.bf16.mxu0 0
      %3023 = vmatpush1.bf16.msra.mxu0 %v2785
      %3024 = vmatprep.subr.bf16.mxu0 0
      %3025 = vmatpush1.bf16.msra.mxu0 0
      %3026 = vmatprep.subr.bf16.mxu0 0
      %3027 = vmatpush1.bf16.msra.mxu0 0
      %3028 = vmatprep.subr.bf16.mxu0 0
      %3029 = vmatpush1.bf16.msra.mxu0 0
      %3030 = vmatprep.subr.bf16.mxu0 0
      %3031 = vmatpush1.bf16.msra.mxu0 0
      %3032 = vmatprep.subr.bf16.mxu0 0
      %3033 = vmatpush1.bf16.msra.mxu0 0
      %3034 = vmatprep.subr.bf16.mxu0 0
      %3035 = vmatpush1.bf16.msra.mxu0 0
      %3036 = vmatprep.subr.bf16.mxu0 0
      %3037 = vmatpush1.bf16.msra.mxu0 0
      %3038 = vmatprep.subr.bf16.mxu0 0
      %3039 = vmatpush1.bf16.msra.mxu0 0
      %3040 = vmatprep.subr.bf16.mxu0 0
      %3041 = vmatpush1.bf16.msra.mxu0 0
      %3042 = vmatprep.subr.bf16.mxu0 0
      %3043 = vmatpush1.bf16.msra.mxu0 0
      %3044 = vmatprep.subr.bf16.mxu0 0
      %3045 = vmatpush1.bf16.msra.mxu0 0
      %3046 = vmatprep.subr.bf16.mxu0 0
      %3047 = vmatpush1.bf16.msra.mxu0 0
      %3048 = vmatprep.subr.bf16.mxu0 0
      %3049 = vmatpush1.bf16.msra.mxu0 0
      %3050 = vmatprep.subr.bf16.mxu0 0
      %3051 = vmatpush1.bf16.msra.mxu0 0
      %3052 = vmatprep.subr.bf16.mxu0 0
      %3053 = vmatpush1.bf16.msra.mxu0 0
      %3054 = vmatprep.mubr.bf16.mxu0 0
      %3055 = vmatmul.mubr.bf16.gmra.mrb[0].mxu0 %v3020
      %v3056 = vpop.f32.mrb[0].mxu0
      %v3057 = vadd.f32 0.0, %v3056
      %v3058 = vpop.f32.mrb[0].mxu0
      %v3059 = vpop.f32.mrb[0].mxu0
      %v3060 = vadd.f32 0.0, %v3059
      %v3061 = vpop.f32.mrb[0].mxu0
      %3062 = vdwg.mxu0
      %v3065 = vcombine.high %v3057, %v3057
      %v3067 = vunpack.c.l.s4 1983009808
      %v3068 = vunpack.c.0.s8 %v3067
      %v3069 = vlaneseq
      %v3070 = vshrl.u32 %v3069, 7
      %v3071 = vsub.s32 %v3068, %v3070
      %v3072 = vrot.slane %v3057, %v3071
      %v3074 = vunpack.c.l.s4 1983009808
      %v3075 = vunpack.c.0.s8 %v3074
      %v3076 = vlaneseq
      %v3077 = vshrl.u32 %v3076, 7
      %v3078 = vsub.s32 %v3075, %v3077
      %v3079 = vrot.slane %v3065, %v3078
      %v3080 = vcombine.high %v3072, %v3072
      %v3081 = vcombine.high %v3079, %v3079
      %v3083 = vunpack.c.l.s4 1983009808
      %v3084 = vunpack.c.0.s8 %v3083
      %v3085 = vlaneseq
      %v3086 = vshrl.u32 %v3085, 7
      %v3087 = vsub.s32 %v3084, %v3086
      %v3088 = vrot.slane %v3060, %v3087
      %v3089 = vcombine.high %v3088, %v3088
      %v3096 = vadd.f32 %v3072, 1e-06
      %v3097 = vadd.f32 %v3080, 1e-06
      %v3098 = vadd.f32 %v3079, 1e-06
      %v3099 = vadd.f32 %v3081, 1e-06
      %v3100 = vadd.f32 %v3088, 1e-06
      %v3101 = vadd.f32 %v3089, 1e-06
      %v3102 = vrsqrt.pop %v3096
      %v3103 = vrsqrt.pop %v3097
      %v3104 = vrsqrt.pop %v3098
      %v3105 = vrsqrt.pop %v3099
      %v3106 = vrsqrt.pop %v3100
      %v3107 = vrsqrt.pop %v3101
      %v3108 = vmul.f32 %v2949, %v3102
      %v3109 = vmul.f32 %v2950, %v3103
      %v3110 = vmul.f32 %v2951, %v3104
      %v3111 = vmul.f32 %v2952, %v3105
      %v3112 = vmul.f32 %v2953, %v3106
      %v3113 = vmul.f32 %v2954, %v3107
      %v3114 = vld [vmem:[%s318] sm:$0x3f]
      %v3115 = vld [vmem:[%s318 + $0x8] sm:$0x3f]
      %v3116 = vmul.f32 %v346, %v346
      %3117 = vxpose.xlu0.b32.start [1/16] %v3116, 128
      %3118 = vxpose.xlu0.b32.cont [2/16] 0.0, 128
      %3119 = vxpose.xlu0.b32.cont [3/16] 0.0, 128
      %3120 = vxpose.xlu0.b32.cont [4/16] 0.0, 128
      %3121 = vxpose.xlu0.b32.cont [5/16] 0.0, 128
      %3122 = vxpose.xlu0.b32.cont [6/16] 0.0, 128
      %3123 = vxpose.xlu0.b32.cont [7/16] 0.0, 128
      %3124 = vxpose.xlu0.b32.cont [8/16] 0.0, 128
      %3125 = vxpose.xlu0.b32.cont [9/16] 0.0, 128
      %3126 = vxpose.xlu0.b32.cont [10/16] 0.0, 128
      %3127 = vxpose.xlu0.b32.cont [11/16] 0.0, 128
      %3128 = vxpose.xlu0.b32.cont [12/16] 0.0, 128
      %3129 = vxpose.xlu0.b32.cont [13/16] 0.0, 128
      %3130 = vxpose.xlu0.b32.cont [14/16] 0.0, 128
      %3131 = vxpose.xlu0.b32.cont [15/16] 0.0, 128
      %3132 = vxpose.xlu0.b32.end [16/16] 0.0, 128
      %v3133 = vpop.trf.xlu0
      %v3134 = vpop.trf.xlu0
      %v3135 = vpop.trf.xlu0
      %v3136 = vpop.trf.xlu0
      %v3137 = vpop.trf.xlu0
      %v3138 = vpop.trf.xlu0
      %v3139 = vpop.trf.xlu0
      %v3140 = vpop.trf.xlu0
      %v3141 = vpop.trf.xlu0
      %v3142 = vpop.trf.xlu0
      %v3143 = vpop.trf.xlu0
      %v3144 = vpop.trf.xlu0
      %v3145 = vpop.trf.xlu0
      %v3146 = vpop.trf.xlu0
      %v3147 = vpop.trf.xlu0
      %v3148 = vpop.trf.xlu0
      %v3149 = vmul.f32 %v347, %v347
      %v3150 = vmul.f32 %v348, %v348
      %3151 = vxpose.xlu0.b32.start [1/16] %v3150, 128
      %3152 = vxpose.xlu0.b32.cont [2/16] 0.0, 128
      %3153 = vxpose.xlu0.b32.cont [3/16] 0.0, 128
      %3154 = vxpose.xlu0.b32.cont [4/16] 0.0, 128
      %3155 = vxpose.xlu0.b32.cont [5/16] 0.0, 128
      %3156 = vxpose.xlu0.b32.cont [6/16] 0.0, 128
      %3157 = vxpose.xlu0.b32.cont [7/16] 0.0, 128
      %3158 = vxpose.xlu0.b32.cont [8/16] 0.0, 128
      %3159 = vxpose.xlu0.b32.cont [9/16] 0.0, 128
      %3160 = vxpose.xlu0.b32.cont [10/16] 0.0, 128
      %3161 = vxpose.xlu0.b32.cont [11/16] 0.0, 128
      %3162 = vxpose.xlu0.b32.cont [12/16] 0.0, 128
      %3163 = vxpose.xlu0.b32.cont [13/16] 0.0, 128
      %3164 = vxpose.xlu0.b32.cont [14/16] 0.0, 128
      %3165 = vxpose.xlu0.b32.cont [15/16] 0.0, 128
      %3166 = vxpose.xlu0.b32.end [16/16] 0.0, 128
      %v3167 = vpop.trf.xlu0
      %v3168 = vpop.trf.xlu0
      %v3169 = vpop.trf.xlu0
      %v3170 = vpop.trf.xlu0
      %v3171 = vpop.trf.xlu0
      %v3172 = vpop.trf.xlu0
      %v3173 = vpop.trf.xlu0
      %v3174 = vpop.trf.xlu0
      %v3175 = vpop.trf.xlu0
      %v3176 = vpop.trf.xlu0
      %v3177 = vpop.trf.xlu0
      %v3178 = vpop.trf.xlu0
      %v3179 = vpop.trf.xlu0
      %v3180 = vpop.trf.xlu0
      %v3181 = vpop.trf.xlu0
      %v3182 = vpop.trf.xlu0
      %v3183 = vmul.f32 %v349, %v349
      %3184 = vxpose.xlu0.b32.start [1/16] %v3183, 128
      %3185 = vxpose.xlu0.b32.cont [2/16] 0.0, 128
      %3186 = vxpose.xlu0.b32.cont [3/16] 0.0, 128
      %3187 = vxpose.xlu0.b32.cont [4/16] 0.0, 128
      %3188 = vxpose.xlu0.b32.cont [5/16] 0.0, 128
      %3189 = vxpose.xlu0.b32.cont [6/16] 0.0, 128
      %3190 = vxpose.xlu0.b32.cont [7/16] 0.0, 128
      %3191 = vxpose.xlu0.b32.cont [8/16] 0.0, 128
      %3192 = vxpose.xlu0.b32.cont [9/16] 0.0, 128
      %3193 = vxpose.xlu0.b32.cont [10/16] 0.0, 128
      %3194 = vxpose.xlu0.b32.cont [11/16] 0.0, 128
      %3195 = vxpose.xlu0.b32.cont [12/16] 0.0, 128
      %3196 = vxpose.xlu0.b32.cont [13/16] 0.0, 128
      %3197 = vxpose.xlu0.b32.cont [14/16] 0.0, 128
      %3198 = vxpose.xlu0.b32.cont [15/16] 0.0, 128
      %3199 = vxpose.xlu0.b32.end [16/16] 0.0, 128
      %v3200 = vpop.trf.xlu0
      %v3201 = vpop.trf.xlu0
      %v3202 = vpop.trf.xlu0
      %v3203 = vpop.trf.xlu0
      %v3204 = vpop.trf.xlu0
      %v3205 = vpop.trf.xlu0
      %v3206 = vpop.trf.xlu0
      %v3207 = vpop.trf.xlu0
      %v3208 = vpop.trf.xlu0
      %v3209 = vpop.trf.xlu0
      %v3210 = vpop.trf.xlu0
      %v3211 = vpop.trf.xlu0
      %v3212 = vpop.trf.xlu0
      %v3213 = vpop.trf.xlu0
      %v3214 = vpop.trf.xlu0
      %v3215 = vpop.trf.xlu0
      %v3216 = vlaneseq
      %v3217 = vshrl.u32 %v3216, 7
      %v3218 = vsub.s32 0, %v3217
      %v3219 = vrot.slane %v352, %v3218
      %v3220 = vlaneseq
      %v3221 = vshrl.u32 %v3220, 7
      %v3222 = vsub.s32 0, %v3221
      %v3223 = vrot.slane %v353, %v3222
      %v3224 = vmul.f32 %v3114, %v3219
      %v3225 = vmul.f32 %v3115, %v3223
      %v3228 = vcombine.high %v3224, %v3224
      %v3230 = vunpack.c.l.s4 1983009808
      %v3231 = vunpack.c.0.s8 %v3230
      %v3232 = vlaneseq
      %v3233 = vshrl.u32 %v3232, 7
      %v3234 = vsub.s32 %v3231, %v3233
      %v3235 = vrot.slane %v3224, %v3234
      %v3237 = vunpack.c.l.s4 1983009808
      %v3238 = vunpack.c.0.s8 %v3237
      %v3239 = vlaneseq
      %v3240 = vshrl.u32 %v3239, 7
      %v3241 = vsub.s32 %v3238, %v3240
      %v3242 = vrot.slane %v3228, %v3241
      %v3243 = vcombine.high %v3235, %v3235
      %v3244 = vcombine.high %v3225, %v3225
      %v3246 = vunpack.c.l.s4 1983009808
      %v3247 = vunpack.c.0.s8 %v3246
      %v3248 = vlaneseq
      %v3249 = vshrl.u32 %v3248, 7
      %v3250 = vsub.s32 %v3247, %v3249
      %v3251 = vrot.slane %v3225, %v3250
      %v3253 = vunpack.c.l.s4 1983009808
      %v3254 = vunpack.c.0.s8 %v3253
      %v3255 = vlaneseq
      %v3256 = vshrl.u32 %v3255, 7
      %v3257 = vsub.s32 %v3254, %v3256
      %v3258 = vrot.slane %v3244, %v3257
      %v3259 = vcombine.high %v3251, %v3251
      %v3260 = vcombine.low %v3235, %v3243
      %v3261 = vcombine.low %v3242, %v3251
      %v3263 = vunpack.c.l.s4 1983009808
      %v3264 = vunpack.c.0.s8 %v3263
      %v3265 = vlaneseq
      %v3266 = vshrl.u32 %v3265, 7
      %v3267 = vsub.s32 %v3264, %v3266
      %v3268 = vrot.slane %v3260, %v3267
      %v3270 = vunpack.c.l.s4 1983009808
      %v3271 = vunpack.c.0.s8 %v3270
      %v3272 = vlaneseq
      %v3273 = vshrl.u32 %v3272, 7
      %v3274 = vsub.s32 %v3271, %v3273
      %v3275 = vrot.slane %v3261, %v3274
      %v3276 = vcombine.low %v3268, %v3275
      %v3277 = vcombine.low %v3259, %v3258
      %v3279 = vunpack.c.l.s4 1983009808
      %v3280 = vunpack.c.0.s8 %v3279
      %v3281 = vlaneseq
      %v3282 = vshrl.u32 %v3281, 7
      %v3283 = vsub.s32 %v3280, %v3282
      %v3284 = vrot.slane %v3277, %v3283
      %v3287 = vpack.c.bf16 %v3284, %v3276
      %v3288 = vpack.c.bf16 %v3134, %v3133
      %v3290 = vsel %vm529, %v3287, 0
      %3292 = vmatprep.subr.bf16.mxu0 0
      %3293 = vmatpush1.bf16.msra.mxu0 %v3288
      %3294 = vmatprep.subr.bf16.mxu0 0
      %3295 = vmatpush1.bf16.msra.mxu0 0
      %3296 = vmatprep.subr.bf16.mxu0 0
      %3297 = vmatpush1.bf16.msra.mxu0 0
      %3298 = vmatprep.subr.bf16.mxu0 0
      %3299 = vmatpush1.bf16.msra.mxu0 0
      %3300 = vmatprep.subr.bf16.mxu0 0
      %3301 = vmatpush1.bf16.msra.mxu0 0
      %3302 = vmatprep.subr.bf16.mxu0 0
      %3303 = vmatpush1.bf16.msra.mxu0 0
      %3304 = vmatprep.subr.bf16.mxu0 0
      %3305 = vmatpush1.bf16.msra.mxu0 0
      %3306 = vmatprep.subr.bf16.mxu0 0
      %3307 = vmatpush1.bf16.msra.mxu0 0
      %3308 = vmatprep.subr.bf16.mxu0 0
      %3309 = vmatpush1.bf16.msra.mxu0 0
      %3310 = vmatprep.subr.bf16.mxu0 0
      %3311 = vmatpush1.bf16.msra.mxu0 0
      %3312 = vmatprep.subr.bf16.mxu0 0
      %3313 = vmatpush1.bf16.msra.mxu0 0
      %3314 = vmatprep.subr.bf16.mxu0 0
      %3315 = vmatpush1.bf16.msra.mxu0 0
      %3316 = vmatprep.subr.bf16.mxu0 0
      %3317 = vmatpush1.bf16.msra.mxu0 0
      %3318 = vmatprep.subr.bf16.mxu0 0
      %3319 = vmatpush1.bf16.msra.mxu0 0
      %3320 = vmatprep.subr.bf16.mxu0 0
      %3321 = vmatpush1.bf16.msra.mxu0 0
      %3322 = vmatprep.subr.bf16.mxu0 0
      %3323 = vmatpush1.bf16.msra.mxu0 0
      %3324 = vmatprep.mubr.bf16.mxu0 0
      %3325 = vmatmul.mubr.bf16.gmra.mrb[0].mxu0 %v3290
      %v3326 = vpop.f32.mrb[0].mxu0
      %v3327 = vadd.f32 0.0, %v3326
      %v3328 = vpop.f32.mrb[0].mxu0
      %v3329 = vpop.f32.mrb[0].mxu0
      %v3330 = vadd.f32 0.0, %v3329
      %v3331 = vpop.f32.mrb[0].mxu0
      %3332 = vdwg.mxu0
      %v3335 = vcombine.high %v3327, %v3327
      %v3337 = vunpack.c.l.s4 1983009808
      %v3338 = vunpack.c.0.s8 %v3337
      %v3339 = vlaneseq
      %v3340 = vshrl.u32 %v3339, 7
      %v3341 = vsub.s32 %v3338, %v3340
      %v3342 = vrot.slane %v3327, %v3341
      %v3344 = vunpack.c.l.s4 1983009808
      %v3345 = vunpack.c.0.s8 %v3344
      %v3346 = vlaneseq
      %v3347 = vshrl.u32 %v3346, 7
      %v3348 = vsub.s32 %v3345, %v3347
      %v3349 = vrot.slane %v3335, %v3348
      %v3350 = vcombine.high %v3342, %v3342
      %v3351 = vcombine.high %v3349, %v3349
      %v3353 = vunpack.c.l.s4 1983009808
      %v3354 = vunpack.c.0.s8 %v3353
      %v3355 = vlaneseq
      %v3356 = vshrl.u32 %v3355, 7
      %v3357 = vsub.s32 %v3354, %v3356
      %v3358 = vrot.slane %v3330, %v3357
      %v3359 = vcombine.high %v3358, %v3358
      %v3366 = vmul.f32 %v3114, %v3114
      %v3367 = vmul.f32 %v3115, %v3115
      %v3370 = vcombine.high %v3366, %v3366
      %v3372 = vunpack.c.l.s4 1983009808
      %v3373 = vunpack.c.0.s8 %v3372
      %v3374 = vlaneseq
      %v3375 = vshrl.u32 %v3374, 7
      %v3376 = vsub.s32 %v3373, %v3375
      %v3377 = vrot.slane %v3366, %v3376
      %v3379 = vunpack.c.l.s4 1983009808
      %v3380 = vunpack.c.0.s8 %v3379
      %v3381 = vlaneseq
      %v3382 = vshrl.u32 %v3381, 7
      %v3383 = vsub.s32 %v3380, %v3382
      %v3384 = vrot.slane %v3370, %v3383
      %v3385 = vcombine.high %v3377, %v3377
      %v3386 = vcombine.high %v3367, %v3367
      %v3388 = vunpack.c.l.s4 1983009808
      %v3389 = vunpack.c.0.s8 %v3388
      %v3390 = vlaneseq
      %v3391 = vshrl.u32 %v3390, 7
      %v3392 = vsub.s32 %v3389, %v3391
      %v3393 = vrot.slane %v3367, %v3392
      %v3395 = vunpack.c.l.s4 1983009808
      %v3396 = vunpack.c.0.s8 %v3395
      %v3397 = vlaneseq
      %v3398 = vshrl.u32 %v3397, 7
      %v3399 = vsub.s32 %v3396, %v3398
      %v3400 = vrot.slane %v3386, %v3399
      %v3401 = vcombine.high %v3393, %v3393
      %v3402 = vcombine.low %v3377, %v3385
      %v3403 = vcombine.low %v3384, %v3393
      %v3405 = vunpack.c.l.s4 1983009808
      %v3406 = vunpack.c.0.s8 %v3405
      %v3407 = vlaneseq
      %v3408 = vshrl.u32 %v3407, 7
      %v3409 = vsub.s32 %v3406, %v3408
      %v3410 = vrot.slane %v3402, %v3409
      %v3412 = vunpack.c.l.s4 1983009808
      %v3413 = vunpack.c.0.s8 %v3412
      %v3414 = vlaneseq
      %v3415 = vshrl.u32 %v3414, 7
      %v3416 = vsub.s32 %v3413, %v3415
      %v3417 = vrot.slane %v3403, %v3416
      %v3418 = vcombine.low %v3410, %v3417
      %v3419 = vcombine.low %v3401, %v3400
      %v3421 = vunpack.c.l.s4 1983009808
      %v3422 = vunpack.c.0.s8 %v3421
      %v3423 = vlaneseq
      %v3424 = vshrl.u32 %v3423, 7
      %v3425 = vsub.s32 %v3422, %v3424
      %v3426 = vrot.slane %v3419, %v3425
      %v3429 = vpack.c.bf16 %v3426, %v3418
      %v3431 = vsel %vm529, %v3429, 0
      %3433 = vmatprep.subr.bf16.mxu0 0
      %3434 = vmatpush1.bf16.msra.mxu0 %v3288
      %3435 = vmatprep.subr.bf16.mxu0 0
      %3436 = vmatpush1.bf16.msra.mxu0 0
      %3437 = vmatprep.subr.bf16.mxu0 0
      %3438 = vmatpush1.bf16.msra.mxu0 0
      %3439 = vmatprep.subr.bf16.mxu0 0
      %3440 = vmatpush1.bf16.msra.mxu0 0
      %3441 = vmatprep.subr.bf16.mxu0 0
      %3442 = vmatpush1.bf16.msra.mxu0 0
      %3443 = vmatprep.subr.bf16.mxu0 0
      %3444 = vmatpush1.bf16.msra.mxu0 0
      %3445 = vmatprep.subr.bf16.mxu0 0
      %3446 = vmatpush1.bf16.msra.mxu0 0
      %3447 = vmatprep.subr.bf16.mxu0 0
      %3448 = vmatpush1.bf16.msra.mxu0 0
      %3449 = vmatprep.subr.bf16.mxu0 0
      %3450 = vmatpush1.bf16.msra.mxu0 0
      %3451 = vmatprep.subr.bf16.mxu0 0
      %3452 = vmatpush1.bf16.msra.mxu0 0
      %3453 = vmatprep.subr.bf16.mxu0 0
      %3454 = vmatpush1.bf16.msra.mxu0 0
      %3455 = vmatprep.subr.bf16.mxu0 0
      %3456 = vmatpush1.bf16.msra.mxu0 0
      %3457 = vmatprep.subr.bf16.mxu0 0
      %3458 = vmatpush1.bf16.msra.mxu0 0
      %3459 = vmatprep.subr.bf16.mxu0 0
      %3460 = vmatpush1.bf16.msra.mxu0 0
      %3461 = vmatprep.subr.bf16.mxu0 0
      %3462 = vmatpush1.bf16.msra.mxu0 0
      %3463 = vmatprep.subr.bf16.mxu0 0
      %3464 = vmatpush1.bf16.msra.mxu0 0
      %3465 = vmatprep.mubr.bf16.mxu0 0
      %3466 = vmatmul.mubr.bf16.gmra.mrb[0].mxu0 %v3431
      %v3467 = vpop.f32.mrb[0].mxu0
      %v3468 = vadd.f32 0.0, %v3467
      %v3469 = vpop.f32.mrb[0].mxu0
      %v3470 = vpop.f32.mrb[0].mxu0
      %v3471 = vadd.f32 0.0, %v3470
      %v3472 = vpop.f32.mrb[0].mxu0
      %3473 = vdwg.mxu0
      %v3476 = vcombine.high %v3468, %v3468
      %v3478 = vunpack.c.l.s4 1983009808
      %v3479 = vunpack.c.0.s8 %v3478
      %v3480 = vlaneseq
      %v3481 = vshrl.u32 %v3480, 7
      %v3482 = vsub.s32 %v3479, %v3481
      %v3483 = vrot.slane %v3468, %v3482
      %v3485 = vunpack.c.l.s4 1983009808
      %v3486 = vunpack.c.0.s8 %v3485
      %v3487 = vlaneseq
      %v3488 = vshrl.u32 %v3487, 7
      %v3489 = vsub.s32 %v3486, %v3488
      %v3490 = vrot.slane %v3476, %v3489
      %v3491 = vcombine.high %v3483, %v3483
      %v3492 = vcombine.high %v3490, %v3490
      %v3494 = vunpack.c.l.s4 1983009808
      %v3495 = vunpack.c.0.s8 %v3494
      %v3496 = vlaneseq
      %v3497 = vshrl.u32 %v3496, 7
      %v3498 = vsub.s32 %v3495, %v3497
      %v3499 = vrot.slane %v3471, %v3498
      %v3500 = vcombine.high %v3499, %v3499
      %v3507 = vadd.f32 %v3483, 1e-06
      %v3508 = vadd.f32 %v3491, 1e-06
      %v3509 = vadd.f32 %v3490, 1e-06
      %v3510 = vadd.f32 %v3492, 1e-06
      %v3511 = vadd.f32 %v3499, 1e-06
      %v3512 = vadd.f32 %v3500, 1e-06
      %v3513 = vrsqrt.pop %v3507
      %v3514 = vrsqrt.pop %v3508
      %v3515 = vrsqrt.pop %v3509
      %v3516 = vrsqrt.pop %v3510
      %v3517 = vrsqrt.pop %v3511
      %v3518 = vrsqrt.pop %v3512
      %v3519 = vmul.f32 %v3342, %v3513
      %v3520 = vmul.f32 %v3350, %v3514
      %v3521 = vmul.f32 %v3349, %v3515
      %v3522 = vmul.f32 %v3351, %v3516
      %v3523 = vmul.f32 %v3358, %v3517
      %v3524 = vmul.f32 %v3359, %v3518
      %v3525 = vmul.f32 %v352, %v352
      %v3526 = vmul.f32 %v353, %v353
      %v3527 = vpack.c.bf16 %v3525, %v3525
      %v3528 = vpack.c.bf16 %v3526, %v3526
      %v3531 = vunpack.c.l.b16 %v3527
      %v3532 = vunpack.c.l.b16 %v3528
      %v3533 = vrot.slane %v3532, 7
      %v3534 = vsel %vm776, %v3533, %v3531
      %v3535 = vpack.c.b16 %v3534, %v3534
      %v3537 = vsel %vm529, %v3535, 0
      %3539 = vmatprep.subr.bf16.mxu0 0
      %3540 = vmatpush1.bf16.msra.mxu0 %v3288
      %3541 = vmatprep.subr.bf16.mxu0 0
      %3542 = vmatpush1.bf16.msra.mxu0 0
      %3543 = vmatprep.subr.bf16.mxu0 0
      %3544 = vmatpush1.bf16.msra.mxu0 0
      %3545 = vmatprep.subr.bf16.mxu0 0
      %3546 = vmatpush1.bf16.msra.mxu0 0
      %3547 = vmatprep.subr.bf16.mxu0 0
      %3548 = vmatpush1.bf16.msra.mxu0 0
      %3549 = vmatprep.subr.bf16.mxu0 0
      %3550 = vmatpush1.bf16.msra.mxu0 0
      %3551 = vmatprep.subr.bf16.mxu0 0
      %3552 = vmatpush1.bf16.msra.mxu0 0
      %3553 = vmatprep.subr.bf16.mxu0 0
      %3554 = vmatpush1.bf16.msra.mxu0 0
      %3555 = vmatprep.subr.bf16.mxu0 0
      %3556 = vmatpush1.bf16.msra.mxu0 0
      %3557 = vmatprep.subr.bf16.mxu0 0
      %3558 = vmatpush1.bf16.msra.mxu0 0
      %3559 = vmatprep.subr.bf16.mxu0 0
      %3560 = vmatpush1.bf16.msra.mxu0 0
      %3561 = vmatprep.subr.bf16.mxu0 0
      %3562 = vmatpush1.bf16.msra.mxu0 0
      %3563 = vmatprep.subr.bf16.mxu0 0
      %3564 = vmatpush1.bf16.msra.mxu0 0
      %3565 = vmatprep.subr.bf16.mxu0 0
      %3566 = vmatpush1.bf16.msra.mxu0 0
      %3567 = vmatprep.subr.bf16.mxu0 0
      %3568 = vmatpush1.bf16.msra.mxu0 0
      %3569 = vmatprep.subr.bf16.mxu0 0
      %3570 = vmatpush1.bf16.msra.mxu0 0
      %3571 = vmatprep.mubr.bf16.mxu0 0
      %3572 = vmatmul.mubr.bf16.gmra.mrb[0].mxu0 %v3537
      %v3573 = vpop.f32.mrb[0].mxu0
      %v3574 = vadd.f32 0.0, %v3573
      %v3575 = vpop.f32.mrb[0].mxu0
      %v3576 = vpop.f32.mrb[0].mxu0
      %v3577 = vpop.f32.mrb[0].mxu0
      %3578 = vdwg.mxu0
      %v3581 = vunpack.c.l.s4 1966171168
      %v3582 = vunpack.c.0.s8 %v3581
      %v3583 = vlaneseq
      %v3584 = vshrl.u32 %v3583, 7
      %v3585 = vsub.s32 %v3582, %v3584
      %v3586 = vrot.slane %v3574, %v3585
      %v3587 = vcombine.high %v3586, %v3586
      %v3589 = vunpack.c.l.s4 1966171168
      %v3590 = vunpack.c.0.s8 %v3589
      %v3591 = vlaneseq
      %v3592 = vshrl.u32 %v3591, 7
      %v3593 = vsub.s32 %v3590, %v3592
      %v3594 = vrot.slane %v3586, %v3593
      %v3596 = vunpack.c.l.s4 1966171168
      %v3597 = vunpack.c.0.s8 %v3596
      %v3598 = vlaneseq
      %v3599 = vshrl.u32 %v3598, 7
      %v3600 = vsub.s32 %v3597, %v3599
      %v3601 = vrot.slane %v3587, %v3600
      %v3604 = vadd.f32 %v3594, 1e-06
      %v3605 = vadd.f32 %v3601, 1e-06
      %v3606 = vrsqrt.pop %v3604
      %v3607 = vrsqrt.pop %v3605
      %v3610 = vlaneseq
      %v3611 = vshrl.u32 %v3610, 7
      %v3612 = vsub.s32 0, %v3611
      %v3613 = vrot.slane %v3606, %v3612
      %v3614 = vlaneseq
      %v3615 = vshrl.u32 %v3614, 7
      %v3616 = vsub.s32 0, %v3615
      %v3617 = vrot.slane %v3607, %v3616
      %v3618 = vcombine.high %v3613, %v3613
      %v3620 = vunpack.c.l.s4 1983009808
      %v3621 = vunpack.c.0.s8 %v3620
      %v3622 = vlaneseq
      %v3623 = vshrl.u32 %v3622, 7
      %v3624 = vsub.s32 %v3621, %v3623
      %v3625 = vrot.slane %v3613, %v3624
      %v3627 = vunpack.c.l.s4 1983009808
      %v3628 = vunpack.c.0.s8 %v3627
      %v3629 = vlaneseq
      %v3630 = vshrl.u32 %v3629, 7
      %v3631 = vsub.s32 %v3628, %v3630
      %v3632 = vrot.slane %v3618, %v3631
      %v3633 = vcombine.high %v3625, %v3625
      %v3634 = vcombine.high %v3617, %v3617
      %v3636 = vunpack.c.l.s4 1983009808
      %v3637 = vunpack.c.0.s8 %v3636
      %v3638 = vlaneseq
      %v3639 = vshrl.u32 %v3638, 7
      %v3640 = vsub.s32 %v3637, %v3639
      %v3641 = vrot.slane %v3617, %v3640
      %v3643 = vunpack.c.l.s4 1983009808
      %v3644 = vunpack.c.0.s8 %v3643
      %v3645 = vlaneseq
      %v3646 = vshrl.u32 %v3645, 7
      %v3647 = vsub.s32 %v3644, %v3646
      %v3648 = vrot.slane %v3634, %v3647
      %v3649 = vcombine.high %v3641, %v3641
      %v3656 = vmul.f32 %v3519, %v3625
      %v3657 = vmul.f32 %v3520, %v3633
      %v3658 = vmul.f32 %v3521, %v3632
      %v3659 = vmul.f32 %v3522, %v3641
      %v3660 = vmul.f32 %v3523, %v3649
      %v3661 = vmul.f32 %v3524, %v3648
      %v3664 = vcombine.high %v3114, %v3114
      %v3666 = vunpack.c.l.s4 1966171168
      %v3667 = vunpack.c.0.s8 %v3666
      %v3668 = vlaneseq
      %v3669 = vshrl.u32 %v3668, 7
      %v3670 = vsub.s32 %v3667, %v3669
      %v3671 = vrot.slane %v3114, %v3670
      %v3673 = vunpack.c.l.s4 1966171168
      %v3674 = vunpack.c.0.s8 %v3673
      %v3675 = vlaneseq
      %v3676 = vshrl.u32 %v3675, 7
      %v3677 = vsub.s32 %v3674, %v3676
      %v3678 = vrot.slane %v3664, %v3677
      %v3679 = vcombine.high %v3671, %v3671
      %v3680 = vcombine.high %v3678, %v3678
      %v3682 = vunpack.c.l.s4 1966171168
      %v3683 = vunpack.c.0.s8 %v3682
      %v3684 = vlaneseq
      %v3685 = vshrl.u32 %v3684, 7
      %v3686 = vsub.s32 %v3683, %v3685
      %v3687 = vrot.slane %v3671, %v3686
      %v3689 = vunpack.c.l.s4 1966171168
      %v3690 = vunpack.c.0.s8 %v3689
      %v3691 = vlaneseq
      %v3692 = vshrl.u32 %v3691, 7
      %v3693 = vsub.s32 %v3690, %v3692
      %v3694 = vrot.slane %v3678, %v3693
      %v3696 = vunpack.c.l.s4 1966171168
      %v3697 = vunpack.c.0.s8 %v3696
      %v3698 = vlaneseq
      %v3699 = vshrl.u32 %v3698, 7
      %v3700 = vsub.s32 %v3697, %v3699
      %v3701 = vrot.slane %v3679, %v3700
      %v3703 = vunpack.c.l.s4 1966171168
      %v3704 = vunpack.c.0.s8 %v3703
      %v3705 = vlaneseq
      %v3706 = vshrl.u32 %v3705, 7
      %v3707 = vsub.s32 %v3704, %v3706
      %v3708 = vrot.slane %v3680, %v3707
      %v3709 = vcombine.high %v3687, %v3687
      %v3710 = vcombine.high %v3701, %v3701
      %v3711 = vcombine.high %v3115, %v3115
      %v3713 = vunpack.c.l.s4 1966171168
      %v3714 = vunpack.c.0.s8 %v3713
      %v3715 = vlaneseq
      %v3716 = vshrl.u32 %v3715, 7
      %v3717 = vsub.s32 %v3714, %v3716
      %v3718 = vrot.slane %v3115, %v3717
      %v3720 = vunpack.c.l.s4 1966171168
      %v3721 = vunpack.c.0.s8 %v3720
      %v3722 = vlaneseq
      %v3723 = vshrl.u32 %v3722, 7
      %v3724 = vsub.s32 %v3721, %v3723
      %v3725 = vrot.slane %v3711, %v3724
      %v3726 = vcombine.high %v3718, %v3718
      %v3727 = vcombine.high %v3725, %v3725
      %v3729 = vunpack.c.l.s4 1966171168
      %v3730 = vunpack.c.0.s8 %v3729
      %v3731 = vlaneseq
      %v3732 = vshrl.u32 %v3731, 7
      %v3733 = vsub.s32 %v3730, %v3732
      %v3734 = vrot.slane %v3718, %v3733
      %v3736 = vunpack.c.l.s4 1966171168
      %v3737 = vunpack.c.0.s8 %v3736
      %v3738 = vlaneseq
      %v3739 = vshrl.u32 %v3738, 7
      %v3740 = vsub.s32 %v3737, %v3739
      %v3741 = vrot.slane %v3725, %v3740
      %v3743 = vunpack.c.l.s4 1966171168
      %v3744 = vunpack.c.0.s8 %v3743
      %v3745 = vlaneseq
      %v3746 = vshrl.u32 %v3745, 7
      %v3747 = vsub.s32 %v3744, %v3746
      %v3748 = vrot.slane %v3726, %v3747
      %v3750 = vunpack.c.l.s4 1966171168
      %v3751 = vunpack.c.0.s8 %v3750
      %v3752 = vlaneseq
      %v3753 = vshrl.u32 %v3752, 7
      %v3754 = vsub.s32 %v3751, %v3753
      %v3755 = vrot.slane %v3727, %v3754
      %v3756 = vcombine.high %v3734, %v3734
      %v3757 = vcombine.high %v3748, %v3748
      %v3758 = vlaneseq
      %v3759 = vshrl.u32 %v3758, 7
      %v3760 = vsub.s32 0, %v3759
      %v3761 = vrot.slane %v3687, %v3760
      %v3762 = vlaneseq
      %v3763 = vshrl.u32 %v3762, 7
      %v3764 = vsub.s32 0, %v3763
      %v3765 = vrot.slane %v3701, %v3764
      %v3766 = vlaneseq
      %v3767 = vshrl.u32 %v3766, 7
      %v3768 = vsub.s32 0, %v3767
      %v3769 = vrot.slane %v3709, %v3768
      %v3770 = vlaneseq
      %v3771 = vshrl.u32 %v3770, 7
      %v3772 = vsub.s32 0, %v3771
      %v3773 = vrot.slane %v3710, %v3772
      %v3774 = vlaneseq
      %v3775 = vshrl.u32 %v3774, 7
      %v3776 = vsub.s32 0, %v3775
      %v3777 = vrot.slane %v3694, %v3776
      %v3778 = vlaneseq
      %v3779 = vshrl.u32 %v3778, 7
      %v3780 = vsub.s32 0, %v3779
      %v3781 = vrot.slane %v3708, %v3780
      %v3782 = vlaneseq
      %v3783 = vshrl.u32 %v3782, 7
      %v3784 = vsub.s32 0, %v3783
      %v3785 = vrot.slane %v3734, %v3784
      %v3786 = vlaneseq
      %v3787 = vshrl.u32 %v3786, 7
      %v3788 = vsub.s32 0, %v3787
      %v3789 = vrot.slane %v3748, %v3788
      %v3790 = vlaneseq
      %v3791 = vshrl.u32 %v3790, 7
      %v3792 = vsub.s32 0, %v3791
      %v3793 = vrot.slane %v3756, %v3792
      %v3794 = vlaneseq
      %v3795 = vshrl.u32 %v3794, 7
      %v3796 = vsub.s32 0, %v3795
      %v3797 = vrot.slane %v3757, %v3796
      %v3798 = vlaneseq
      %v3799 = vshrl.u32 %v3798, 7
      %v3800 = vsub.s32 0, %v3799
      %v3801 = vrot.slane %v3741, %v3800
      %v3802 = vlaneseq
      %v3803 = vshrl.u32 %v3802, 7
      %v3804 = vsub.s32 0, %v3803
      %v3805 = vrot.slane %v3755, %v3804
      %v3818 = vmul.f32 %v3761, %v3149
      %v3819 = vmul.f32 %v3765, %v3149
      %v3820 = vmul.f32 %v3769, %v3149
      %v3821 = vmul.f32 %v3773, %v3149
      %v3822 = vmul.f32 %v3777, %v3149
      %v3823 = vmul.f32 %v3781, %v3149
      %v3824 = vmul.f32 %v3785, %v3149
      %v3825 = vmul.f32 %v3789, %v3149
      %v3826 = vmul.f32 %v3793, %v3149
      %v3827 = vmul.f32 %v3797, %v3149
      %v3828 = vmul.f32 %v3801, %v3149
      %v3829 = vmul.f32 %v3805, %v3149
      %v3842 = vcombine.low %v3818, %v3819
      %v3843 = vcombine.low %v3820, %v3821
      %v3844 = vcombine.low %v3822, %v3823
      %v3845 = vcombine.low %v3824, %v3825
      %v3846 = vcombine.low %v3826, %v3827
      %v3847 = vcombine.low %v3828, %v3829
      %v3854 = vpack.c.bf16 %v3843, %v3842
      %v3855 = vpack.c.bf16 %v3844, %v3844
      %v3856 = vpack.c.bf16 %v3846, %v3845
      %v3857 = vpack.c.bf16 %v3847, %v3847
      %v3858 = vpack.c.bf16 %v352, %v352
      %v3859 = vpack.c.bf16 %v353, %v353
      %v3861 = vsel %vm529, %v3854, 0
      %v3864 = vsel %vm529, %v3855, 0
      %v3867 = vsel %vm529, %v3858, 0
      %3869 = vmatprep.subr.bf16.mxu0 0
      %3870 = vmatpush1.bf16.xpose.msra.mxu0 %v3867
      %3871 = vmatprep.subr.bf16.mxu0 0
      %3872 = vmatpush1.bf16.xpose.msra.mxu0 0
      %3873 = vmatprep.subr.bf16.mxu0 0
      %3874 = vmatpush1.bf16.xpose.msra.mxu0 0
      %3875 = vmatprep.subr.bf16.mxu0 0
      %3876 = vmatpush1.bf16.xpose.msra.mxu0 0
      %3877 = vmatprep.subr.bf16.mxu0 0
      %3878 = vmatpush1.bf16.xpose.msra.mxu0 0
      %3879 = vmatprep.subr.bf16.mxu0 0
      %3880 = vmatpush1.bf16.xpose.msra.mxu0 0
      %3881 = vmatprep.subr.bf16.mxu0 0
      %3882 = vmatpush1.bf16.xpose.msra.mxu0 0
      %3883 = vmatprep.subr.bf16.mxu0 0
      %3884 = vmatpush1.bf16.xpose.msra.mxu0 0
      %3885 = vmatprep.subr.bf16.mxu0 0
      %3886 = vmatpush1.bf16.xpose.msra.mxu0 0
      %3887 = vmatprep.subr.bf16.mxu0 0
      %3888 = vmatpush1.bf16.xpose.msra.mxu0 0
      %3889 = vmatprep.subr.bf16.mxu0 0
      %3890 = vmatpush1.bf16.xpose.msra.mxu0 0
      %3891 = vmatprep.subr.bf16.mxu0 0
      %3892 = vmatpush1.bf16.xpose.msra.mxu0 0
      %3893 = vmatprep.subr.bf16.mxu0 0
      %3894 = vmatpush1.bf16.xpose.msra.mxu0 0
      %3895 = vmatprep.subr.bf16.mxu0 0
      %3896 = vmatpush1.bf16.xpose.msra.mxu0 0
      %3897 = vmatprep.subr.bf16.mxu0 0
      %3898 = vmatpush1.bf16.xpose.msra.mxu0 0
      %3899 = vmatprep.subr.bf16.mxu0 0
      %3900 = vmatpush1.bf16.xpose.msra.mxu0 0
      %3901 = vmatprep.mubr.bf16.mxu0 0
      %3902 = vmatmul.mubr.bf16.gmra.mrb[0].mxu0 %v3861
      %v3903 = vpop.f32.mrb[0].mxu0
      %v3904 = vadd.f32 0.0, %v3903
      %v3905 = vpop.f32.mrb[0].mxu0
      %v3906 = vpop.f32.mrb[0].mxu0
      %v3907 = vadd.f32 0.0, %v3906
      %v3908 = vpop.f32.mrb[0].mxu0
      %3909 = vmatprep.mubr.bf16.mxu0 0
      %3910 = vmatmul.mubr.bf16.gmra.mrb[0].mxu0 %v3864
      %v3911 = vpop.f32.mrb[0].mxu0
      %v3912 = vadd.f32 0.0, %v3911
      %v3913 = vpop.f32.mrb[0].mxu0
      %v3914 = vpop.f32.mrb[0].mxu0
      %v3915 = vpop.f32.mrb[0].mxu0
      %3916 = vdwg.mxu0
      %v3918 = vsel %vm529, %v3856, 0
      %v3921 = vsel %vm529, %v3857, 0
      %v3924 = vsel %vm529, %v3859, 0
      %3926 = vmatprep.subr.bf16.mxu0 0
      %3927 = vmatpush1.bf16.xpose.msra.mxu0 %v3924
      %3928 = vmatprep.subr.bf16.mxu0 0
      %3929 = vmatpush1.bf16.xpose.msra.mxu0 0
      %3930 = vmatprep.subr.bf16.mxu0 0
      %3931 = vmatpush1.bf16.xpose.msra.mxu0 0
      %3932 = vmatprep.subr.bf16.mxu0 0
      %3933 = vmatpush1.bf16.xpose.msra.mxu0 0
      %3934 = vmatprep.subr.bf16.mxu0 0
      %3935 = vmatpush1.bf16.xpose.msra.mxu0 0
      %3936 = vmatprep.subr.bf16.mxu0 0
      %3937 = vmatpush1.bf16.xpose.msra.mxu0 0
      %3938 = vmatprep.subr.bf16.mxu0 0
      %3939 = vmatpush1.bf16.xpose.msra.mxu0 0
      %3940 = vmatprep.subr.bf16.mxu0 0
      %3941 = vmatpush1.bf16.xpose.msra.mxu0 0
      %3942 = vmatprep.subr.bf16.mxu0 0
      %3943 = vmatpush1.bf16.xpose.msra.mxu0 0
      %3944 = vmatprep.subr.bf16.mxu0 0
      %3945 = vmatpush1.bf16.xpose.msra.mxu0 0
      %3946 = vmatprep.subr.bf16.mxu0 0
      %3947 = vmatpush1.bf16.xpose.msra.mxu0 0
      %3948 = vmatprep.subr.bf16.mxu0 0
      %3949 = vmatpush1.bf16.xpose.msra.mxu0 0
      %3950 = vmatprep.subr.bf16.mxu0 0
      %3951 = vmatpush1.bf16.xpose.msra.mxu0 0
      %3952 = vmatprep.subr.bf16.mxu0 0
      %3953 = vmatpush1.bf16.xpose.msra.mxu0 0
      %3954 = vmatprep.subr.bf16.mxu0 0
      %3955 = vmatpush1.bf16.xpose.msra.mxu0 0
      %3956 = vmatprep.subr.bf16.mxu0 0
      %3957 = vmatpush1.bf16.xpose.msra.mxu0 0
      %3958 = vmatprep.mubr.bf16.mxu0 0
      %3959 = vmatmul.mubr.bf16.gmra.mrb[0].mxu0 %v3918
      %v3960 = vpop.f32.mrb[0].mxu0
      %v3961 = vadd.f32 0.0, %v3960
      %v3962 = vpop.f32.mrb[0].mxu0
      %v3963 = vpop.f32.mrb[0].mxu0
      %v3964 = vadd.f32 0.0, %v3963
      %v3965 = vpop.f32.mrb[0].mxu0
      %3966 = vmatprep.mubr.bf16.mxu0 0
      %3967 = vmatmul.mubr.bf16.gmra.mrb[0].mxu0 %v3921
      %v3968 = vpop.f32.mrb[0].mxu0
      %v3969 = vadd.f32 0.0, %v3968
      %v3970 = vpop.f32.mrb[0].mxu0
      %v3971 = vpop.f32.mrb[0].mxu0
      %v3972 = vpop.f32.mrb[0].mxu0
      %3973 = vdwg.mxu0
      %v3980 = vcombine.high %v3904, %v3904
      %v3981 = vcombine.high %v3907, %v3907
      %v3982 = vcombine.high %v3912, %v3912
      %v3983 = vcombine.high %v3961, %v3961
      %v3984 = vcombine.high %v3964, %v3964
      %v3985 = vcombine.high %v3969, %v3969
      %3992 = vxpose.xlu0.b32.start [1/16] %v3149, 128
      %3993 = vxpose.xlu0.b32.cont [2/16] 0.0, 128
      %3994 = vxpose.xlu0.b32.cont [3/16] 0.0, 128
      %3995 = vxpose.xlu0.b32.cont [4/16] 0.0, 128
      %3996 = vxpose.xlu0.b32.cont [5/16] 0.0, 128
      %3997 = vxpose.xlu0.b32.cont [6/16] 0.0, 128
      %3998 = vxpose.xlu0.b32.cont [7/16] 0.0, 128
      %3999 = vxpose.xlu0.b32.cont [8/16] 0.0, 128
      %4000 = vxpose.xlu0.b32.cont [9/16] 0.0, 128
      %4001 = vxpose.xlu0.b32.cont [10/16] 0.0, 128
      %4002 = vxpose.xlu0.b32.cont [11/16] 0.0, 128
      %4003 = vxpose.xlu0.b32.cont [12/16] 0.0, 128
      %4004 = vxpose.xlu0.b32.cont [13/16] 0.0, 128
      %4005 = vxpose.xlu0.b32.cont [14/16] 0.0, 128
      %4006 = vxpose.xlu0.b32.cont [15/16] 0.0, 128
      %4007 = vxpose.xlu0.b32.end [16/16] 0.0, 128
      %v4008 = vpop.trf.xlu0
      %v4009 = vpop.trf.xlu0
      %v4010 = vpop.trf.xlu0
      %v4011 = vpop.trf.xlu0
      %v4012 = vpop.trf.xlu0
      %v4013 = vpop.trf.xlu0
      %v4014 = vpop.trf.xlu0
      %v4015 = vpop.trf.xlu0
      %v4016 = vpop.trf.xlu0
      %v4017 = vpop.trf.xlu0
      %v4018 = vpop.trf.xlu0
      %v4019 = vpop.trf.xlu0
      %v4020 = vpop.trf.xlu0
      %v4021 = vpop.trf.xlu0
      %v4022 = vpop.trf.xlu0
      %v4023 = vpop.trf.xlu0
      %v4024 = vpack.c.bf16 %v4009, %v4008
      %4025 = vmatprep.subr.bf16.mxu0 0
      %4026 = vmatpush1.bf16.msra.mxu0 %v4024
      %4027 = vmatprep.subr.bf16.mxu0 0
      %4028 = vmatpush1.bf16.msra.mxu0 0
      %4029 = vmatprep.subr.bf16.mxu0 0
      %4030 = vmatpush1.bf16.msra.mxu0 0
      %4031 = vmatprep.subr.bf16.mxu0 0
      %4032 = vmatpush1.bf16.msra.mxu0 0
      %4033 = vmatprep.subr.bf16.mxu0 0
      %4034 = vmatpush1.bf16.msra.mxu0 0
      %4035 = vmatprep.subr.bf16.mxu0 0
      %4036 = vmatpush1.bf16.msra.mxu0 0
      %4037 = vmatprep.subr.bf16.mxu0 0
      %4038 = vmatpush1.bf16.msra.mxu0 0
      %4039 = vmatprep.subr.bf16.mxu0 0
      %4040 = vmatpush1.bf16.msra.mxu0 0
      %4041 = vmatprep.subr.bf16.mxu0 0
      %4042 = vmatpush1.bf16.msra.mxu0 0
      %4043 = vmatprep.subr.bf16.mxu0 0
      %4044 = vmatpush1.bf16.msra.mxu0 0
      %4045 = vmatprep.subr.bf16.mxu0 0
      %4046 = vmatpush1.bf16.msra.mxu0 0
      %4047 = vmatprep.subr.bf16.mxu0 0
      %4048 = vmatpush1.bf16.msra.mxu0 0
      %4049 = vmatprep.subr.bf16.mxu0 0
      %4050 = vmatpush1.bf16.msra.mxu0 0
      %4051 = vmatprep.subr.bf16.mxu0 0
      %4052 = vmatpush1.bf16.msra.mxu0 0
      %4053 = vmatprep.subr.bf16.mxu0 0
      %4054 = vmatpush1.bf16.msra.mxu0 0
      %4055 = vmatprep.subr.bf16.mxu0 0
      %4056 = vmatpush1.bf16.msra.mxu0 0
      %4057 = vmatprep.mubr.bf16.mxu0 0
      %4058 = vmatmul.mubr.bf16.gmra.mrb[0].mxu0 %v3431
      %v4059 = vpop.f32.mrb[0].mxu0
      %v4060 = vadd.f32 0.0, %v4059
      %v4061 = vpop.f32.mrb[0].mxu0
      %v4062 = vpop.f32.mrb[0].mxu0
      %v4063 = vadd.f32 0.0, %v4062
      %v4064 = vpop.f32.mrb[0].mxu0
      %4065 = vdwg.mxu0
      %v4068 = vcombine.high %v4060, %v4060
      %v4070 = vunpack.c.l.s4 1983009808
      %v4071 = vunpack.c.0.s8 %v4070
      %v4072 = vlaneseq
      %v4073 = vshrl.u32 %v4072, 7
      %v4074 = vsub.s32 %v4071, %v4073
      %v4075 = vrot.slane %v4060, %v4074
      %v4077 = vunpack.c.l.s4 1983009808
      %v4078 = vunpack.c.0.s8 %v4077
      %v4079 = vlaneseq
      %v4080 = vshrl.u32 %v4079, 7
      %v4081 = vsub.s32 %v4078, %v4080
      %v4082 = vrot.slane %v4068, %v4081
      %v4083 = vcombine.high %v4075, %v4075
      %v4084 = vcombine.high %v4082, %v4082
      %v4086 = vunpack.c.l.s4 1983009808
      %v4087 = vunpack.c.0.s8 %v4086
      %v4088 = vlaneseq
      %v4089 = vshrl.u32 %v4088, 7
      %v4090 = vsub.s32 %v4087, %v4089
      %v4091 = vrot.slane %v4063, %v4090
      %v4092 = vcombine.high %v4091, %v4091
      %v4099 = vadd.f32 %v4075, 1e-06
      %v4100 = vadd.f32 %v4083, 1e-06
      %v4101 = vadd.f32 %v4082, 1e-06
      %v4102 = vadd.f32 %v4084, 1e-06
      %v4103 = vadd.f32 %v4091, 1e-06
      %v4104 = vadd.f32 %v4092, 1e-06
      %v4105 = vrsqrt.pop %v4099
      %v4106 = vrsqrt.pop %v4100
      %v4107 = vrsqrt.pop %v4101
      %v4108 = vrsqrt.pop %v4102
      %v4109 = vrsqrt.pop %v4103
      %v4110 = vrsqrt.pop %v4104
      %v4113 = vcombine.high %v3525, %v3525
      %v4115 = vunpack.c.l.s4 1983009808
      %v4116 = vunpack.c.0.s8 %v4115
      %v4117 = vlaneseq
      %v4118 = vshrl.u32 %v4117, 7
      %v4119 = vsub.s32 %v4116, %v4118
      %v4120 = vrot.slane %v3525, %v4119
      %v4122 = vunpack.c.l.s4 1983009808
      %v4123 = vunpack.c.0.s8 %v4122
      %v4124 = vlaneseq
      %v4125 = vshrl.u32 %v4124, 7
      %v4126 = vsub.s32 %v4123, %v4125
      %v4127 = vrot.slane %v4113, %v4126
      %v4128 = vcombine.high %v4120, %v4120
      %v4129 = vcombine.high %v3526, %v3526
      %v4131 = vunpack.c.l.s4 1983009808
      %v4132 = vunpack.c.0.s8 %v4131
      %v4133 = vlaneseq
      %v4134 = vshrl.u32 %v4133, 7
      %v4135 = vsub.s32 %v4132, %v4134
      %v4136 = vrot.slane %v3526, %v4135
      %v4138 = vunpack.c.l.s4 1983009808
      %v4139 = vunpack.c.0.s8 %v4138
      %v4140 = vlaneseq
      %v4141 = vshrl.u32 %v4140, 7
      %v4142 = vsub.s32 %v4139, %v4141
      %v4143 = vrot.slane %v4129, %v4142
      %v4144 = vcombine.high %v4136, %v4136
      %v4145 = vcombine.low %v4120, %v4128
      %v4146 = vcombine.low %v4127, %v4136
      %v4148 = vunpack.c.l.s4 1983009808
      %v4149 = vunpack.c.0.s8 %v4148
      %v4150 = vlaneseq
      %v4151 = vshrl.u32 %v4150, 7
      %v4152 = vsub.s32 %v4149, %v4151
      %v4153 = vrot.slane %v4145, %v4152
      %v4155 = vunpack.c.l.s4 1983009808
      %v4156 = vunpack.c.0.s8 %v4155
      %v4157 = vlaneseq
      %v4158 = vshrl.u32 %v4157, 7
      %v4159 = vsub.s32 %v4156, %v4158
      %v4160 = vrot.slane %v4146, %v4159
      %v4161 = vcombine.low %v4153, %v4160
      %v4162 = vcombine.low %v4144, %v4143
      %v4164 = vunpack.c.l.s4 1983009808
      %v4165 = vunpack.c.0.s8 %v4164
      %v4166 = vlaneseq
      %v4167 = vshrl.u32 %v4166, 7
      %v4168 = vsub.s32 %v4165, %v4167
      %v4169 = vrot.slane %v4162, %v4168
      %v4172 = vpack.c.bf16 %v4169, %v4161
      %v4174 = vsel %vm529, %v4172, 0
      %4176 = vmatprep.subr.bf16.mxu0 0
      %4177 = vmatpush1.bf16.msra.mxu0 %v4024
      %4178 = vmatprep.subr.bf16.mxu0 0
      %4179 = vmatpush1.bf16.msra.mxu0 0
      %4180 = vmatprep.subr.bf16.mxu0 0
      %4181 = vmatpush1.bf16.msra.mxu0 0
      %4182 = vmatprep.subr.bf16.mxu0 0
      %4183 = vmatpush1.bf16.msra.mxu0 0
      %4184 = vmatprep.subr.bf16.mxu0 0
      %4185 = vmatpush1.bf16.msra.mxu0 0
      %4186 = vmatprep.subr.bf16.mxu0 0
      %4187 = vmatpush1.bf16.msra.mxu0 0
      %4188 = vmatprep.subr.bf16.mxu0 0
      %4189 = vmatpush1.bf16.msra.mxu0 0
      %4190 = vmatprep.subr.bf16.mxu0 0
      %4191 = vmatpush1.bf16.msra.mxu0 0
      %4192 = vmatprep.subr.bf16.mxu0 0
      %4193 = vmatpush1.bf16.msra.mxu0 0
      %4194 = vmatprep.subr.bf16.mxu0 0
      %4195 = vmatpush1.bf16.msra.mxu0 0
      %4196 = vmatprep.subr.bf16.mxu0 0
      %4197 = vmatpush1.bf16.msra.mxu0 0
      %4198 = vmatprep.subr.bf16.mxu0 0
      %4199 = vmatpush1.bf16.msra.mxu0 0
      %4200 = vmatprep.subr.bf16.mxu0 0
      %4201 = vmatpush1.bf16.msra.mxu0 0
      %4202 = vmatprep.subr.bf16.mxu0 0
      %4203 = vmatpush1.bf16.msra.mxu0 0
      %4204 = vmatprep.subr.bf16.mxu0 0
      %4205 = vmatpush1.bf16.msra.mxu0 0
      %4206 = vmatprep.subr.bf16.mxu0 0
      %4207 = vmatpush1.bf16.msra.mxu0 0
      %4208 = vmatprep.mubr.bf16.mxu0 0
      %4209 = vmatmul.mubr.bf16.gmra.mrb[0].mxu0 %v4174
      %v4210 = vpop.f32.mrb[0].mxu0
      %v4211 = vadd.f32 0.0, %v4210
      %v4212 = vpop.f32.mrb[0].mxu0
      %v4213 = vpop.f32.mrb[0].mxu0
      %v4214 = vadd.f32 0.0, %v4213
      %v4215 = vpop.f32.mrb[0].mxu0
      %4216 = vdwg.mxu0
      %v4219 = vcombine.high %v4211, %v4211
      %v4221 = vunpack.c.l.s4 1983009808
      %v4222 = vunpack.c.0.s8 %v4221
      %v4223 = vlaneseq
      %v4224 = vshrl.u32 %v4223, 7
      %v4225 = vsub.s32 %v4222, %v4224
      %v4226 = vrot.slane %v4211, %v4225
      %v4228 = vunpack.c.l.s4 1983009808
      %v4229 = vunpack.c.0.s8 %v4228
      %v4230 = vlaneseq
      %v4231 = vshrl.u32 %v4230, 7
      %v4232 = vsub.s32 %v4229, %v4231
      %v4233 = vrot.slane %v4219, %v4232
      %v4234 = vcombine.high %v4226, %v4226
      %v4235 = vcombine.high %v4233, %v4233
      %v4237 = vunpack.c.l.s4 1983009808
      %v4238 = vunpack.c.0.s8 %v4237
      %v4239 = vlaneseq
      %v4240 = vshrl.u32 %v4239, 7
      %v4241 = vsub.s32 %v4238, %v4240
      %v4242 = vrot.slane %v4214, %v4241
      %v4243 = vcombine.high %v4242, %v4242
      %v4250 = vadd.f32 %v4226, 1e-06
      %v4251 = vadd.f32 %v4234, 1e-06
      %v4252 = vadd.f32 %v4233, 1e-06
      %v4253 = vadd.f32 %v4235, 1e-06
      %v4254 = vadd.f32 %v4242, 1e-06
      %v4255 = vadd.f32 %v4243, 1e-06
      %v4256 = vrsqrt.pop %v4250
      %v4257 = vrsqrt.pop %v4251
      %v4258 = vrsqrt.pop %v4252
      %v4259 = vrsqrt.pop %v4253
      %v4260 = vrsqrt.pop %v4254
      %v4261 = vrsqrt.pop %v4255
      %v4268 = vcombine.low %v4105, %v4106
      %v4270 = vunpack.c.l.s4 1983009808
      %v4271 = vunpack.c.0.s8 %v4270
      %v4272 = vlaneseq
      %v4273 = vshrl.u32 %v4272, 7
      %v4274 = vsub.s32 %v4271, %v4273
      %v4275 = vrot.slane %v4268, %v4274
      %v4277 = vunpack.c.l.s4 1983009808
      %v4278 = vunpack.c.0.s8 %v4277
      %v4279 = vlaneseq
      %v4280 = vshrl.u32 %v4279, 7
      %v4281 = vsub.s32 %v4278, %v4280
      %v4282 = vrot.slane %v4107, %v4281
      %v4283 = vcombine.low %v4275, %v4282
      %v4284 = vcombine.low %v4108, %v4109
      %v4286 = vunpack.c.l.s4 1983009808
      %v4287 = vunpack.c.0.s8 %v4286
      %v4288 = vlaneseq
      %v4289 = vshrl.u32 %v4288, 7
      %v4290 = vsub.s32 %v4287, %v4289
      %v4291 = vrot.slane %v4284, %v4290
      %v4293 = vunpack.c.l.s4 1983009808
      %v4294 = vunpack.c.0.s8 %v4293
      %v4295 = vlaneseq
      %v4296 = vshrl.u32 %v4295, 7
      %v4297 = vsub.s32 %v4294, %v4296
      %v4298 = vrot.slane %v4110, %v4297
      %v4299 = vcombine.low %v4291, %v4298
      %v4302 = vlaneseq
      %v4303 = vshrl.u32 %v4302, 7
      %v4304 = vsub.s32 0, %v4303
      %v4305 = vrot.slane %v4283, %v4304
      %4307 = vbcast.lane.b32.xlu0 %v4305, 256
      %v4308 = vpop.permute.xlu0 %4307
      %v4309 = vlaneseq
      %v4310 = vshrl.u32 %v4309, 7
      %v4311 = vsub.s32 1, %v4310
      %v4312 = vrot.slane %v4283, %v4311
      %4314 = vbcast.lane.b32.xlu0 %v4312, 256
      %v4315 = vpop.permute.xlu0 %4314
      %v4316 = vlaneseq
      %v4317 = vshrl.u32 %v4316, 7
      %v4318 = vsub.s32 2, %v4317
      %v4319 = vrot.slane %v4283, %v4318
      %4321 = vbcast.lane.b32.xlu0 %v4319, 256
      %v4322 = vpop.permute.xlu0 %4321
      %v4323 = vlaneseq
      %v4324 = vshrl.u32 %v4323, 7
      %v4325 = vsub.s32 3, %v4324
      %v4326 = vrot.slane %v4283, %v4325
      %4328 = vbcast.lane.b32.xlu0 %v4326, 256
      %v4329 = vpop.permute.xlu0 %4328
      %v4330 = vlaneseq
      %v4331 = vshrl.u32 %v4330, 7
      %v4332 = vsub.s32 4, %v4331
      %v4333 = vrot.slane %v4283, %v4332
      %4335 = vbcast.lane.b32.xlu0 %v4333, 256
      %v4336 = vpop.permute.xlu0 %4335
      %v4337 = vlaneseq
      %v4338 = vshrl.u32 %v4337, 7
      %v4339 = vsub.s32 5, %v4338
      %v4340 = vrot.slane %v4283, %v4339
      %4342 = vbcast.lane.b32.xlu0 %v4340, 256
      %v4343 = vpop.permute.xlu0 %4342
      %v4344 = vlaneseq
      %v4345 = vshrl.u32 %v4344, 7
      %v4346 = vsub.s32 0, %v4345
      %v4347 = vrot.slane %v4299, %v4346
      %4349 = vbcast.lane.b32.xlu0 %v4347, 256
      %v4350 = vpop.permute.xlu0 %4349
      %v4351 = vlaneseq
      %v4352 = vshrl.u32 %v4351, 7
      %v4353 = vsub.s32 1, %v4352
      %v4354 = vrot.slane %v4299, %v4353
      %4356 = vbcast.lane.b32.xlu0 %v4354, 256
      %v4357 = vpop.permute.xlu0 %4356
      %v4358 = vlaneseq
      %v4359 = vshrl.u32 %v4358, 7
      %v4360 = vsub.s32 2, %v4359
      %v4361 = vrot.slane %v4299, %v4360
      %4363 = vbcast.lane.b32.xlu0 %v4361, 256
      %v4364 = vpop.permute.xlu0 %4363
      %v4365 = vlaneseq
      %v4366 = vshrl.u32 %v4365, 7
      %v4367 = vsub.s32 3, %v4366
      %v4368 = vrot.slane %v4299, %v4367
      %4370 = vbcast.lane.b32.xlu0 %v4368, 256
      %v4371 = vpop.permute.xlu0 %4370
      %v4372 = vlaneseq
      %v4373 = vshrl.u32 %v4372, 7
      %v4374 = vsub.s32 4, %v4373
      %v4375 = vrot.slane %v4299, %v4374
      %4377 = vbcast.lane.b32.xlu0 %v4375, 256
      %v4378 = vpop.permute.xlu0 %4377
      %v4379 = vlaneseq
      %v4380 = vshrl.u32 %v4379, 7
      %v4381 = vsub.s32 5, %v4380
      %v4382 = vrot.slane %v4299, %v4381
      %4384 = vbcast.lane.b32.xlu0 %v4382, 256
      %v4385 = vpop.permute.xlu0 %4384
      %v4386 = vmul.f32 %v3904, %v4308
      %v4387 = vmul.f32 %v3980, %v4315
      %v4388 = vmul.f32 %v3907, %v4322
      %v4389 = vmul.f32 %v3981, %v4329
      %v4390 = vmul.f32 %v3912, %v4336
      %v4391 = vmul.f32 %v3982, %v4343
      %v4392 = vmul.f32 %v3961, %v4350
      %v4393 = vmul.f32 %v3983, %v4357
      %v4394 = vmul.f32 %v3964, %v4364
      %v4395 = vmul.f32 %v3984, %v4371
      %v4396 = vmul.f32 %v3969, %v4378
      %v4397 = vmul.f32 %v3985, %v4385
      %v4404 = vcombine.low %v4256, %v4257
      %v4406 = vunpack.c.l.s4 1983009808
      %v4407 = vunpack.c.0.s8 %v4406
      %v4408 = vlaneseq
      %v4409 = vshrl.u32 %v4408, 7
      %v4410 = vsub.s32 %v4407, %v4409
      %v4411 = vrot.slane %v4404, %v4410
      %v4413 = vunpack.c.l.s4 1983009808
      %v4414 = vunpack.c.0.s8 %v4413
      %v4415 = vlaneseq
      %v4416 = vshrl.u32 %v4415, 7
      %v4417 = vsub.s32 %v4414, %v4416
      %v4418 = vrot.slane %v4258, %v4417
      %v4419 = vcombine.low %v4411, %v4418
      %v4420 = vcombine.low %v4259, %v4260
      %v4422 = vunpack.c.l.s4 1983009808
      %v4423 = vunpack.c.0.s8 %v4422
      %v4424 = vlaneseq
      %v4425 = vshrl.u32 %v4424, 7
      %v4426 = vsub.s32 %v4423, %v4425
      %v4427 = vrot.slane %v4420, %v4426
      %v4429 = vunpack.c.l.s4 1983009808
      %v4430 = vunpack.c.0.s8 %v4429
      %v4431 = vlaneseq
      %v4432 = vshrl.u32 %v4431, 7
      %v4433 = vsub.s32 %v4430, %v4432
      %v4434 = vrot.slane %v4261, %v4433
      %v4435 = vcombine.low %v4427, %v4434
      %4438 = vxpose.xlu0.b32.start [1/16] %v4419, 128
      %4439 = vxpose.xlu0.b32.cont [2/16] 0.0, 128
      %4440 = vxpose.xlu0.b32.cont [3/16] 0.0, 128
      %4441 = vxpose.xlu0.b32.cont [4/16] 0.0, 128
      %4442 = vxpose.xlu0.b32.cont [5/16] 0.0, 128
      %4443 = vxpose.xlu0.b32.cont [6/16] 0.0, 128
      %4444 = vxpose.xlu0.b32.cont [7/16] 0.0, 128
      %4445 = vxpose.xlu0.b32.cont [8/16] 0.0, 128
      %4446 = vxpose.xlu0.b32.cont [9/16] 0.0, 128
      %4447 = vxpose.xlu0.b32.cont [10/16] 0.0, 128
      %4448 = vxpose.xlu0.b32.cont [11/16] 0.0, 128
      %4449 = vxpose.xlu0.b32.cont [12/16] 0.0, 128
      %4450 = vxpose.xlu0.b32.cont [13/16] 0.0, 128
      %4451 = vxpose.xlu0.b32.cont [14/16] 0.0, 128
      %4452 = vxpose.xlu0.b32.cont [15/16] 0.0, 128
      %4453 = vxpose.xlu0.b32.end [16/16] 0.0, 128
      %v4454 = vpop.trf.xlu0
      %v4455 = vpop.trf.xlu0
      %v4456 = vpop.trf.xlu0
      %v4457 = vpop.trf.xlu0
      %v4458 = vpop.trf.xlu0
      %v4459 = vpop.trf.xlu0
      %v4460 = vpop.trf.xlu0
      %v4461 = vpop.trf.xlu0
      %v4462 = vpop.trf.xlu0
      %v4463 = vpop.trf.xlu0
      %v4464 = vpop.trf.xlu0
      %v4465 = vpop.trf.xlu0
      %v4466 = vpop.trf.xlu0
      %v4467 = vpop.trf.xlu0
      %v4468 = vpop.trf.xlu0
      %v4469 = vpop.trf.xlu0
      %4470 = vxpose.xlu0.b32.start [1/16] %v4435, 128
      %4471 = vxpose.xlu0.b32.cont [2/16] 0.0, 128
      %4472 = vxpose.xlu0.b32.cont [3/16] 0.0, 128
      %4473 = vxpose.xlu0.b32.cont [4/16] 0.0, 128
      %4474 = vxpose.xlu0.b32.cont [5/16] 0.0, 128
      %4475 = vxpose.xlu0.b32.cont [6/16] 0.0, 128
      %4476 = vxpose.xlu0.b32.cont [7/16] 0.0, 128
      %4477 = vxpose.xlu0.b32.cont [8/16] 0.0, 128
      %4478 = vxpose.xlu0.b32.cont [9/16] 0.0, 128
      %4479 = vxpose.xlu0.b32.cont [10/16] 0.0, 128
      %4480 = vxpose.xlu0.b32.cont [11/16] 0.0, 128
      %4481 = vxpose.xlu0.b32.cont [12/16] 0.0, 128
      %4482 = vxpose.xlu0.b32.cont [13/16] 0.0, 128
      %4483 = vxpose.xlu0.b32.cont [14/16] 0.0, 128
      %4484 = vxpose.xlu0.b32.cont [15/16] 0.0, 128
      %4485 = vxpose.xlu0.b32.end [16/16] 0.0, 128
      %v4486 = vpop.trf.xlu0
      %v4487 = vpop.trf.xlu0
      %v4488 = vpop.trf.xlu0
      %v4489 = vpop.trf.xlu0
      %v4490 = vpop.trf.xlu0
      %v4491 = vpop.trf.xlu0
      %v4492 = vpop.trf.xlu0
      %v4493 = vpop.trf.xlu0
      %v4494 = vpop.trf.xlu0
      %v4495 = vpop.trf.xlu0
      %v4496 = vpop.trf.xlu0
      %v4497 = vpop.trf.xlu0
      %v4498 = vpop.trf.xlu0
      %v4499 = vpop.trf.xlu0
      %v4500 = vpop.trf.xlu0
      %v4501 = vpop.trf.xlu0
      %v4502 = vmul.f32 %v4386, %v4454
      %v4503 = vmul.f32 %v4387, %v4454
      %v4504 = vmul.f32 %v4388, %v4454
      %v4505 = vmul.f32 %v4389, %v4454
      %v4506 = vmul.f32 %v4390, %v4454
      %v4507 = vmul.f32 %v4391, %v4454
      %v4508 = vmul.f32 %v4392, %v4486
      %v4509 = vmul.f32 %v4393, %v4486
      %v4510 = vmul.f32 %v4394, %v4486
      %v4511 = vmul.f32 %v4395, %v4486
      %v4512 = vmul.f32 %v4396, %v4486
      %v4513 = vmul.f32 %v4397, %v4486
      %v4514 = vsel %vm1757, %v4502, -inf
      %4515 = vmax.xlane.f32.xlu0 %v4514
      %v4516 = vpop.xlane.xlu0 %4515
      %v4517 = vsel %vm1757, %v4503, -inf
      %4518 = vmax.xlane.f32.xlu0 %v4517
      %v4519 = vpop.xlane.xlu0 %4518
      %v4520 = vsel %vm1757, %v4504, -inf
      %4521 = vmax.xlane.f32.xlu0 %v4520
      %v4522 = vpop.xlane.xlu0 %4521
      %v4523 = vsel %vm1757, %v4505, -inf
      %4524 = vmax.xlane.f32.xlu0 %v4523
      %v4525 = vpop.xlane.xlu0 %4524
      %v4526 = vsel %vm1757, %v4506, -inf
      %4527 = vmax.xlane.f32.xlu0 %v4526
      %v4528 = vpop.xlane.xlu0 %4527
      %v4529 = vsel %vm1757, %v4507, -inf
      %4530 = vmax.xlane.f32.xlu0 %v4529
      %v4531 = vpop.xlane.xlu0 %4530
      %v4532 = vsel %vm1757, %v4508, -inf
      %4533 = vmax.xlane.f32.xlu0 %v4532
      %v4534 = vpop.xlane.xlu0 %4533
      %v4535 = vsel %vm1757, %v4509, -inf
      %4536 = vmax.xlane.f32.xlu0 %v4535
      %v4537 = vpop.xlane.xlu0 %4536
      %v4538 = vsel %vm1757, %v4510, -inf
      %4539 = vmax.xlane.f32.xlu0 %v4538
      %v4540 = vpop.xlane.xlu0 %4539
      %v4541 = vsel %vm1757, %v4511, -inf
      %4542 = vmax.xlane.f32.xlu0 %v4541
      %v4543 = vpop.xlane.xlu0 %4542
      %v4544 = vsel %vm1757, %v4512, -inf
      %4545 = vmax.xlane.f32.xlu0 %v4544
      %v4546 = vpop.xlane.xlu0 %4545
      %v4547 = vsel %vm1757, %v4513, -inf
      %4548 = vmax.xlane.f32.xlu0 %v4547
      %v4549 = vpop.xlane.xlu0 %4548
      %v4550 = vsel %vm529, %v3114, 0
      %v4553 = vsel %vm529, %v352, 0
      %4555 = vmatprep.subr.mxu0 0.0
      %4556 = vmatpush1.xpose.msra.mxu0 %v4553
      %4557 = vmatprep.subr.mxu0 0.0
      %4558 = vmatpush1.xpose.msra.mxu0 0.0
      %4559 = vmatprep.subr.mxu0 0.0
      %4560 = vmatpush1.xpose.msra.mxu0 0.0
      %4561 = vmatprep.subr.mxu0 0.0
      %4562 = vmatpush1.xpose.msra.mxu0 0.0
      %4563 = vmatprep.subr.mxu0 0.0
      %4564 = vmatpush1.xpose.msra.mxu0 0.0
      %4565 = vmatprep.subr.mxu0 0.0
      %4566 = vmatpush1.xpose.msra.mxu0 0.0
      %4567 = vmatprep.subr.mxu0 0.0
      %4568 = vmatpush1.xpose.msra.mxu0 0.0
      %4569 = vmatprep.subr.mxu0 0.0
      %4570 = vmatpush1.xpose.msra.mxu0 0.0
      %4571 = vmatprep.subr.mxu0 0.0
      %4572 = vmatpush1.xpose.msra.mxu0 0.0
      %4573 = vmatprep.subr.mxu0 0.0
      %4574 = vmatpush1.xpose.msra.mxu0 0.0
      %4575 = vmatprep.subr.mxu0 0.0
      %4576 = vmatpush1.xpose.msra.mxu0 0.0
      %4577 = vmatprep.subr.mxu0 0.0
      %4578 = vmatpush1.xpose.msra.mxu0 0.0
      %4579 = vmatprep.subr.mxu0 0.0
      %4580 = vmatpush1.xpose.msra.mxu0 0.0
      %4581 = vmatprep.subr.mxu0 0.0
      %4582 = vmatpush1.xpose.msra.mxu0 0.0
      %4583 = vmatprep.subr.mxu0 0.0
      %4584 = vmatpush1.xpose.msra.mxu0 0.0
      %4585 = vmatprep.subr.mxu0 0.0
      %4586 = vmatpush1.xpose.msra.mxu0 0.0
      %4587 = vmatprep.subr.mxu0 0.0
      %4588 = vmatpush1.xpose.msra.mxu0 0.0
      %4589 = vmatprep.subr.mxu0 0.0
      %4590 = vmatpush1.xpose.msra.mxu0 0.0
      %4591 = vmatprep.subr.mxu0 0.0
      %4592 = vmatpush1.xpose.msra.mxu0 0.0
      %4593 = vmatprep.subr.mxu0 0.0
      %4594 = vmatpush1.xpose.msra.mxu0 0.0
      %4595 = vmatprep.subr.mxu0 0.0
      %4596 = vmatpush1.xpose.msra.mxu0 0.0
      %4597 = vmatprep.subr.mxu0 0.0
      %4598 = vmatpush1.xpose.msra.mxu0 0.0
      %4599 = vmatprep.subr.mxu0 0.0
      %4600 = vmatpush1.xpose.msra.mxu0 0.0
      %4601 = vmatprep.subr.mxu0 0.0
      %4602 = vmatpush1.xpose.msra.mxu0 0.0
      %4603 = vmatprep.subr.mxu0 0.0
      %4604 = vmatpush1.xpose.msra.mxu0 0.0
      %4605 = vmatprep.subr.mxu0 0.0
      %4606 = vmatpush1.xpose.msra.mxu0 0.0
      %4607 = vmatprep.subr.mxu0 0.0
      %4608 = vmatpush1.xpose.msra.mxu0 0.0
      %4609 = vmatprep.subr.mxu0 0.0
      %4610 = vmatpush1.xpose.msra.mxu0 0.0
      %4611 = vmatprep.subr.mxu0 0.0
      %4612 = vmatpush1.xpose.msra.mxu0 0.0
      %4613 = vmatprep.subr.mxu0 0.0
      %4614 = vmatpush1.xpose.msra.mxu0 0.0
      %4615 = vmatprep.subr.mxu0 0.0
      %4616 = vmatpush1.xpose.msra.mxu0 0.0
      %4617 = vmatprep.subr.mxu0 0.0
      %4618 = vmatpush1.xpose.msra.mxu0 0.0
      %4619 = vmatprep.mubr.f32.mxu0 0.0
      %4620 = vmatmul.mubr.f32.gmra.mrb[0].mxu0 %v4550
      %v4621 = vpop.f32.mrb[0].mxu0
      %v4622 = vadd.f32 0.0, %v4621
      %v4623 = vpop.f32.mrb[0].mxu0
      %4624 = vdwg.mxu0
      %v4625 = vsel %vm529, %v3115, 0
      %v4628 = vsel %vm529, %v353, 0
      %4630 = vmatprep.subr.mxu0 0.0
      %4631 = vmatpush1.xpose.msra.mxu0 %v4628
      %4632 = vmatprep.subr.mxu0 0.0
      %4633 = vmatpush1.xpose.msra.mxu0 0.0
      %4634 = vmatprep.subr.mxu0 0.0
      %4635 = vmatpush1.xpose.msra.mxu0 0.0
      %4636 = vmatprep.subr.mxu0 0.0
      %4637 = vmatpush1.xpose.msra.mxu0 0.0
      %4638 = vmatprep.subr.mxu0 0.0
      %4639 = vmatpush1.xpose.msra.mxu0 0.0
      %4640 = vmatprep.subr.mxu0 0.0
      %4641 = vmatpush1.xpose.msra.mxu0 0.0
      %4642 = vmatprep.subr.mxu0 0.0
      %4643 = vmatpush1.xpose.msra.mxu0 0.0
      %4644 = vmatprep.subr.mxu0 0.0
      %4645 = vmatpush1.xpose.msra.mxu0 0.0
      %4646 = vmatprep.subr.mxu0 0.0
      %4647 = vmatpush1.xpose.msra.mxu0 0.0
      %4648 = vmatprep.subr.mxu0 0.0
      %4649 = vmatpush1.xpose.msra.mxu0 0.0
      %4650 = vmatprep.subr.mxu0 0.0
      %4651 = vmatpush1.xpose.msra.mxu0 0.0
      %4652 = vmatprep.subr.mxu0 0.0
      %4653 = vmatpush1.xpose.msra.mxu0 0.0
      %4654 = vmatprep.subr.mxu0 0.0
      %4655 = vmatpush1.xpose.msra.mxu0 0.0
      %4656 = vmatprep.subr.mxu0 0.0
      %4657 = vmatpush1.xpose.msra.mxu0 0.0
      %4658 = vmatprep.subr.mxu0 0.0
      %4659 = vmatpush1.xpose.msra.mxu0 0.0
      %4660 = vmatprep.subr.mxu0 0.0
      %4661 = vmatpush1.xpose.msra.mxu0 0.0
      %4662 = vmatprep.subr.mxu0 0.0
      %4663 = vmatpush1.xpose.msra.mxu0 0.0
      %4664 = vmatprep.subr.mxu0 0.0
      %4665 = vmatpush1.xpose.msra.mxu0 0.0
      %4666 = vmatprep.subr.mxu0 0.0
      %4667 = vmatpush1.xpose.msra.mxu0 0.0
      %4668 = vmatprep.subr.mxu0 0.0
      %4669 = vmatpush1.xpose.msra.mxu0 0.0
      %4670 = vmatprep.subr.mxu0 0.0
      %4671 = vmatpush1.xpose.msra.mxu0 0.0
      %4672 = vmatprep.subr.mxu0 0.0
      %4673 = vmatpush1.xpose.msra.mxu0 0.0
      %4674 = vmatprep.subr.mxu0 0.0
      %4675 = vmatpush1.xpose.msra.mxu0 0.0
      %4676 = vmatprep.subr.mxu0 0.0
      %4677 = vmatpush1.xpose.msra.mxu0 0.0
      %4678 = vmatprep.subr.mxu0 0.0
      %4679 = vmatpush1.xpose.msra.mxu0 0.0
      %4680 = vmatprep.subr.mxu0 0.0
      %4681 = vmatpush1.xpose.msra.mxu0 0.0
      %4682 = vmatprep.subr.mxu0 0.0
      %4683 = vmatpush1.xpose.msra.mxu0 0.0
      %4684 = vmatprep.subr.mxu0 0.0
      %4685 = vmatpush1.xpose.msra.mxu0 0.0
      %4686 = vmatprep.subr.mxu0 0.0
      %4687 = vmatpush1.xpose.msra.mxu0 0.0
      %4688 = vmatprep.subr.mxu0 0.0
      %4689 = vmatpush1.xpose.msra.mxu0 0.0
      %4690 = vmatprep.subr.mxu0 0.0
      %4691 = vmatpush1.xpose.msra.mxu0 0.0
      %4692 = vmatprep.subr.mxu0 0.0
      %4693 = vmatpush1.xpose.msra.mxu0 0.0
      %4694 = vmatprep.mubr.f32.mxu0 0.0
      %4695 = vmatmul.mubr.f32.gmra.mrb[0].mxu0 %v4625
      %v4696 = vpop.f32.mrb[0].mxu0
      %v4697 = vadd.f32 0.0, %v4696
      %v4698 = vpop.f32.mrb[0].mxu0
      %4699 = vdwg.mxu0
      %v4700 = vsel %vm1944, %v3366, 0.0
      %4701 = vadd.xlane.f32.xlu0 %v4700
      %v4702 = vpop.xlane.xlu0 %4701
      %v4703 = vsel %vm1944, %v3367, 0.0
      %4704 = vadd.xlane.f32.xlu0 %v4703
      %v4705 = vpop.xlane.xlu0 %4704
      %v4706 = vadd.f32 %v4702, 1e-06
      %v4707 = vadd.f32 %v4705, 1e-06
      %v4708 = vrsqrt.pop %v4706
      %v4709 = vrsqrt.pop %v4707
      %v4710 = vmul.f32 %v4622, %v4708
      %v4711 = vmul.f32 %v4697, %v4709
      %v4712 = vsel %vm1944, %v3525, 0.0
      %4713 = vadd.xlane.f32.xlu0 %v4712
      %v4714 = vpop.xlane.xlu0 %4713
      %v4715 = vsel %vm1944, %v3526, 0.0
      %4716 = vadd.xlane.f32.xlu0 %v4715
      %v4717 = vpop.xlane.xlu0 %4716
      %v4718 = vadd.f32 %v4714, 1e-06
      %v4719 = vadd.f32 %v4717, 1e-06
      %v4720 = vrsqrt.pop %v4718
      %v4721 = vrsqrt.pop %v4719
      %v4724 = vlaneseq
      %v4725 = vshrl.u32 %v4724, 7
      %v4726 = vsub.s32 %v1970, %v4725
      %v4727 = vrot.slane %v4720, %v4726
      %v4728 = vlaneseq
      %v4729 = vshrl.u32 %v4728, 7
      %v4730 = vsub.s32 %v1970, %v4729
      %v4731 = vrot.slane %v4721, %v4730
      %v4732 = vsel %vm1979, %v4727, %v4727
      %v4733 = vsel %vm1981, %v4727, %v4732
      %v4734 = vsel %vm1983, %v4727, %v4733
      %v4735 = vsel %vm1985, %v4727, %v4734
      %v4736 = vsel %vm1979, %v4731, %v4731
      %v4737 = vsel %vm1981, %v4731, %v4736
      %v4738 = vsel %vm1983, %v4731, %v4737
      %v4739 = vsel %vm1985, %v4731, %v4738
      %v4742 = vmul.f32 %v4710, %v4735
      %v4743 = vmul.f32 %v4711, %v4739
      %v4745 = vsel %vm1995, %v4742, 0
      %v4747 = vsel %vm1999, %v352, 0
      %4749 = vmatprep.subr.mxu0 0.0
      %4750 = vmatpush1.msra.mxu0 %v4747
      %4751 = vmatprep.subr.mxu0 0.0
      %4752 = vmatpush1.msra.mxu0 0.0
      %4753 = vmatprep.subr.mxu0 0.0
      %4754 = vmatpush1.msra.mxu0 0.0
      %4755 = vmatprep.subr.mxu0 0.0
      %4756 = vmatpush1.msra.mxu0 0.0
      %4757 = vmatprep.subr.mxu0 0.0
      %4758 = vmatpush1.msra.mxu0 0.0
      %4759 = vmatprep.subr.mxu0 0.0
      %4760 = vmatpush1.msra.mxu0 0.0
      %4761 = vmatprep.subr.mxu0 0.0
      %4762 = vmatpush1.msra.mxu0 0.0
      %4763 = vmatprep.subr.mxu0 0.0
      %4764 = vmatpush1.msra.mxu0 0.0
      %4765 = vmatprep.subr.mxu0 0.0
      %4766 = vmatpush1.msra.mxu0 0.0
      %4767 = vmatprep.subr.mxu0 0.0
      %4768 = vmatpush1.msra.mxu0 0.0
      %4769 = vmatprep.subr.mxu0 0.0
      %4770 = vmatpush1.msra.mxu0 0.0
      %4771 = vmatprep.subr.mxu0 0.0
      %4772 = vmatpush1.msra.mxu0 0.0
      %4773 = vmatprep.subr.mxu0 0.0
      %4774 = vmatpush1.msra.mxu0 0.0
      %4775 = vmatprep.subr.mxu0 0.0
      %4776 = vmatpush1.msra.mxu0 0.0
      %4777 = vmatprep.subr.mxu0 0.0
      %4778 = vmatpush1.msra.mxu0 0.0
      %4779 = vmatprep.subr.mxu0 0.0
      %4780 = vmatpush1.msra.mxu0 0.0
      %4781 = vmatprep.subr.mxu0 0.0
      %4782 = vmatpush1.msra.mxu0 0.0
      %4783 = vmatprep.subr.mxu0 0.0
      %4784 = vmatpush1.msra.mxu0 0.0
      %4785 = vmatprep.subr.mxu0 0.0
      %4786 = vmatpush1.msra.mxu0 0.0
      %4787 = vmatprep.subr.mxu0 0.0
      %4788 = vmatpush1.msra.mxu0 0.0
      %4789 = vmatprep.subr.mxu0 0.0
      %4790 = vmatpush1.msra.mxu0 0.0
      %4791 = vmatprep.subr.mxu0 0.0
      %4792 = vmatpush1.msra.mxu0 0.0
      %4793 = vmatprep.subr.mxu0 0.0
      %4794 = vmatpush1.msra.mxu0 0.0
      %4795 = vmatprep.subr.mxu0 0.0
      %4796 = vmatpush1.msra.mxu0 0.0
      %4797 = vmatprep.subr.mxu0 0.0
      %4798 = vmatpush1.msra.mxu0 0.0
      %4799 = vmatprep.subr.mxu0 0.0
      %4800 = vmatpush1.msra.mxu0 0.0
      %4801 = vmatprep.subr.mxu0 0.0
      %4802 = vmatpush1.msra.mxu0 0.0
      %4803 = vmatprep.subr.mxu0 0.0
      %4804 = vmatpush1.msra.mxu0 0.0
      %4805 = vmatprep.subr.mxu0 0.0
      %4806 = vmatpush1.msra.mxu0 0.0
      %4807 = vmatprep.subr.mxu0 0.0
      %4808 = vmatpush1.msra.mxu0 0.0
      %4809 = vmatprep.subr.mxu0 0.0
      %4810 = vmatpush1.msra.mxu0 0.0
      %4811 = vmatprep.subr.mxu0 0.0
      %4812 = vmatpush1.msra.mxu0 0.0
      %4813 = vmatprep.mubr.f32.mxu0 0.0
      %4814 = vmatmul.mubr.f32.gmra.mrb[0].mxu0 %v4745
      %v4815 = vpop.f32.mrb[0].mxu0
      %v4816 = vadd.f32 0.0, %v4815
      %v4817 = vpop.f32.mrb[0].mxu0
      %4818 = vdwg.mxu0
      %v4820 = vsel %vm1995, %v4743, 0
      %v4822 = vsel %vm1999, %v353, 0
      %4824 = vmatprep.subr.mxu0 0.0
      %4825 = vmatpush1.msra.mxu0 %v4822
      %4826 = vmatprep.subr.mxu0 0.0
      %4827 = vmatpush1.msra.mxu0 0.0
      %4828 = vmatprep.subr.mxu0 0.0
      %4829 = vmatpush1.msra.mxu0 0.0
      %4830 = vmatprep.subr.mxu0 0.0
      %4831 = vmatpush1.msra.mxu0 0.0
      %4832 = vmatprep.subr.mxu0 0.0
      %4833 = vmatpush1.msra.mxu0 0.0
      %4834 = vmatprep.subr.mxu0 0.0
      %4835 = vmatpush1.msra.mxu0 0.0
      %4836 = vmatprep.subr.mxu0 0.0
      %4837 = vmatpush1.msra.mxu0 0.0
      %4838 = vmatprep.subr.mxu0 0.0
      %4839 = vmatpush1.msra.mxu0 0.0
      %4840 = vmatprep.subr.mxu0 0.0
      %4841 = vmatpush1.msra.mxu0 0.0
      %4842 = vmatprep.subr.mxu0 0.0
      %4843 = vmatpush1.msra.mxu0 0.0
      %4844 = vmatprep.subr.mxu0 0.0
      %4845 = vmatpush1.msra.mxu0 0.0
      %4846 = vmatprep.subr.mxu0 0.0
      %4847 = vmatpush1.msra.mxu0 0.0
      %4848 = vmatprep.subr.mxu0 0.0
      %4849 = vmatpush1.msra.mxu0 0.0
      %4850 = vmatprep.subr.mxu0 0.0
      %4851 = vmatpush1.msra.mxu0 0.0
      %4852 = vmatprep.subr.mxu0 0.0
      %4853 = vmatpush1.msra.mxu0 0.0
      %4854 = vmatprep.subr.mxu0 0.0
      %4855 = vmatpush1.msra.mxu0 0.0
      %4856 = vmatprep.subr.mxu0 0.0
      %4857 = vmatpush1.msra.mxu0 0.0
      %4858 = vmatprep.subr.mxu0 0.0
      %4859 = vmatpush1.msra.mxu0 0.0
      %4860 = vmatprep.subr.mxu0 0.0
      %4861 = vmatpush1.msra.mxu0 0.0
      %4862 = vmatprep.subr.mxu0 0.0
      %4863 = vmatpush1.msra.mxu0 0.0
      %4864 = vmatprep.subr.mxu0 0.0
      %4865 = vmatpush1.msra.mxu0 0.0
      %4866 = vmatprep.subr.mxu0 0.0
      %4867 = vmatpush1.msra.mxu0 0.0
      %4868 = vmatprep.subr.mxu0 0.0
      %4869 = vmatpush1.msra.mxu0 0.0
      %4870 = vmatprep.subr.mxu0 0.0
      %4871 = vmatpush1.msra.mxu0 0.0
      %4872 = vmatprep.subr.mxu0 0.0
      %4873 = vmatpush1.msra.mxu0 0.0
      %4874 = vmatprep.subr.mxu0 0.0
      %4875 = vmatpush1.msra.mxu0 0.0
      %4876 = vmatprep.subr.mxu0 0.0
      %4877 = vmatpush1.msra.mxu0 0.0
      %4878 = vmatprep.subr.mxu0 0.0
      %4879 = vmatpush1.msra.mxu0 0.0
      %4880 = vmatprep.subr.mxu0 0.0
      %4881 = vmatpush1.msra.mxu0 0.0
      %4882 = vmatprep.subr.mxu0 0.0
      %4883 = vmatpush1.msra.mxu0 0.0
      %4884 = vmatprep.subr.mxu0 0.0
      %4885 = vmatpush1.msra.mxu0 0.0
      %4886 = vmatprep.subr.mxu0 0.0
      %4887 = vmatpush1.msra.mxu0 0.0
      %4888 = vmatprep.mubr.f32.mxu0 0.0
      %4889 = vmatmul.mubr.f32.gmra.mrb[0].mxu0 %v4820
      %v4890 = vpop.f32.mrb[0].mxu0
      %v4891 = vadd.f32 0.0, %v4890
      %v4892 = vpop.f32.mrb[0].mxu0
      %4893 = vdwg.mxu0
      %v4894 = vsel %vm2147, %v4742, 0.0
      %4895 = vadd.xlane.f32.xlu0 %v4894
      %v4896 = vpop.xlane.xlu0 %4895
      %v4897 = vsel %vm2147, %v4743, 0.0
      %4898 = vadd.xlane.f32.xlu0 %v4897
      %v4899 = vpop.xlane.xlu0 %4898
      %v4900 = vadd.f32 %v4896, 1e-06
      %v4901 = vadd.f32 %v4899, 1e-06
      %v4902 = vrcp.pop %v4900
      %v4903 = vrcp.pop %v4901
      %v4904 = vmul.f32 %v4816, %v4902
      %v4905 = vmul.f32 %v4891, %v4903
      %v4906 = vmul.f32 %v3114, %v4904
      %v4907 = vmul.f32 %v3115, %v4905
      %v4910 = vcombine.high %v4906, %v4906
      %v4912 = vunpack.c.l.s4 1983009808
      %v4913 = vunpack.c.0.s8 %v4912
      %v4914 = vlaneseq
      %v4915 = vshrl.u32 %v4914, 7
      %v4916 = vsub.s32 %v4913, %v4915
      %v4917 = vrot.slane %v4906, %v4916
      %v4919 = vunpack.c.l.s4 1983009808
      %v4920 = vunpack.c.0.s8 %v4919
      %v4921 = vlaneseq
      %v4922 = vshrl.u32 %v4921, 7
      %v4923 = vsub.s32 %v4920, %v4922
      %v4924 = vrot.slane %v4910, %v4923
      %v4925 = vcombine.high %v4917, %v4917
      %v4926 = vcombine.high %v4907, %v4907
      %v4928 = vunpack.c.l.s4 1983009808
      %v4929 = vunpack.c.0.s8 %v4928
      %v4930 = vlaneseq
      %v4931 = vshrl.u32 %v4930, 7
      %v4932 = vsub.s32 %v4929, %v4931
      %v4933 = vrot.slane %v4907, %v4932
      %v4935 = vunpack.c.l.s4 1983009808
      %v4936 = vunpack.c.0.s8 %v4935
      %v4937 = vlaneseq
      %v4938 = vshrl.u32 %v4937, 7
      %v4939 = vsub.s32 %v4936, %v4938
      %v4940 = vrot.slane %v4926, %v4939
      %v4941 = vcombine.high %v4933, %v4933
      %v4942 = vcombine.low %v4917, %v4925
      %v4943 = vcombine.low %v4924, %v4933
      %v4945 = vunpack.c.l.s4 1983009808
      %v4946 = vunpack.c.0.s8 %v4945
      %v4947 = vlaneseq
      %v4948 = vshrl.u32 %v4947, 7
      %v4949 = vsub.s32 %v4946, %v4948
      %v4950 = vrot.slane %v4942, %v4949
      %v4952 = vunpack.c.l.s4 1983009808
      %v4953 = vunpack.c.0.s8 %v4952
      %v4954 = vlaneseq
      %v4955 = vshrl.u32 %v4954, 7
      %v4956 = vsub.s32 %v4953, %v4955
      %v4957 = vrot.slane %v4943, %v4956
      %v4958 = vcombine.low %v4950, %v4957
      %v4959 = vcombine.low %v4941, %v4940
      %v4961 = vunpack.c.l.s4 1983009808
      %v4962 = vunpack.c.0.s8 %v4961
      %v4963 = vlaneseq
      %v4964 = vshrl.u32 %v4963, 7
      %v4965 = vsub.s32 %v4962, %v4964
      %v4966 = vrot.slane %v4959, %v4965
      %v4969 = vpack.c.bf16 %v4966, %v4958
      %v4970 = vpack.c.bf16 %v3168, %v3167
      %v4972 = vsel %vm529, %v4969, 0
      %4974 = vmatprep.subr.bf16.mxu0 0
      %4975 = vmatpush1.bf16.msra.mxu0 %v4970
      %4976 = vmatprep.subr.bf16.mxu0 0
      %4977 = vmatpush1.bf16.msra.mxu0 0
      %4978 = vmatprep.subr.bf16.mxu0 0
      %4979 = vmatpush1.bf16.msra.mxu0 0
      %4980 = vmatprep.subr.bf16.mxu0 0
      %4981 = vmatpush1.bf16.msra.mxu0 0
      %4982 = vmatprep.subr.bf16.mxu0 0
      %4983 = vmatpush1.bf16.msra.mxu0 0
      %4984 = vmatprep.subr.bf16.mxu0 0
      %4985 = vmatpush1.bf16.msra.mxu0 0
      %4986 = vmatprep.subr.bf16.mxu0 0
      %4987 = vmatpush1.bf16.msra.mxu0 0
      %4988 = vmatprep.subr.bf16.mxu0 0
      %4989 = vmatpush1.bf16.msra.mxu0 0
      %4990 = vmatprep.subr.bf16.mxu0 0
      %4991 = vmatpush1.bf16.msra.mxu0 0
      %4992 = vmatprep.subr.bf16.mxu0 0
      %4993 = vmatpush1.bf16.msra.mxu0 0
      %4994 = vmatprep.subr.bf16.mxu0 0
      %4995 = vmatpush1.bf16.msra.mxu0 0
      %4996 = vmatprep.subr.bf16.mxu0 0
      %4997 = vmatpush1.bf16.msra.mxu0 0
      %4998 = vmatprep.subr.bf16.mxu0 0
      %4999 = vmatpush1.bf16.msra.mxu0 0
      %5000 = vmatprep.subr.bf16.mxu0 0
      %5001 = vmatpush1.bf16.msra.mxu0 0
      %5002 = vmatprep.subr.bf16.mxu0 0
      %5003 = vmatpush1.bf16.msra.mxu0 0
      %5004 = vmatprep.subr.bf16.mxu0 0
      %5005 = vmatpush1.bf16.msra.mxu0 0
      %5006 = vmatprep.mubr.bf16.mxu0 0
      %5007 = vmatmul.mubr.bf16.gmra.mrb[0].mxu0 %v4972
      %v5008 = vpop.f32.mrb[0].mxu0
      %v5009 = vadd.f32 0.0, %v5008
      %v5010 = vpop.f32.mrb[0].mxu0
      %v5011 = vpop.f32.mrb[0].mxu0
      %v5012 = vadd.f32 0.0, %v5011
      %v5013 = vpop.f32.mrb[0].mxu0
      %5014 = vdwg.mxu0
      %v5017 = vcombine.high %v5009, %v5009
      %v5019 = vunpack.c.l.s4 1983009808
      %v5020 = vunpack.c.0.s8 %v5019
      %v5021 = vlaneseq
      %v5022 = vshrl.u32 %v5021, 7
      %v5023 = vsub.s32 %v5020, %v5022
      %v5024 = vrot.slane %v5009, %v5023
      %v5026 = vunpack.c.l.s4 1983009808
      %v5027 = vunpack.c.0.s8 %v5026
      %v5028 = vlaneseq
      %v5029 = vshrl.u32 %v5028, 7
      %v5030 = vsub.s32 %v5027, %v5029
      %v5031 = vrot.slane %v5017, %v5030
      %v5032 = vcombine.high %v5024, %v5024
      %v5033 = vcombine.high %v5031, %v5031
      %v5035 = vunpack.c.l.s4 1983009808
      %v5036 = vunpack.c.0.s8 %v5035
      %v5037 = vlaneseq
      %v5038 = vshrl.u32 %v5037, 7
      %v5039 = vsub.s32 %v5036, %v5038
      %v5040 = vrot.slane %v5012, %v5039
      %v5041 = vcombine.high %v5040, %v5040
      %5048 = vmatprep.subr.bf16.mxu0 0
      %5049 = vmatpush1.bf16.msra.mxu0 %v4970
      %5050 = vmatprep.subr.bf16.mxu0 0
      %5051 = vmatpush1.bf16.msra.mxu0 0
      %5052 = vmatprep.subr.bf16.mxu0 0
      %5053 = vmatpush1.bf16.msra.mxu0 0
      %5054 = vmatprep.subr.bf16.mxu0 0
      %5055 = vmatpush1.bf16.msra.mxu0 0
      %5056 = vmatprep.subr.bf16.mxu0 0
      %5057 = vmatpush1.bf16.msra.mxu0 0
      %5058 = vmatprep.subr.bf16.mxu0 0
      %5059 = vmatpush1.bf16.msra.mxu0 0
      %5060 = vmatprep.subr.bf16.mxu0 0
      %5061 = vmatpush1.bf16.msra.mxu0 0
      %5062 = vmatprep.subr.bf16.mxu0 0
      %5063 = vmatpush1.bf16.msra.mxu0 0
      %5064 = vmatprep.subr.bf16.mxu0 0
      %5065 = vmatpush1.bf16.msra.mxu0 0
      %5066 = vmatprep.subr.bf16.mxu0 0
      %5067 = vmatpush1.bf16.msra.mxu0 0
      %5068 = vmatprep.subr.bf16.mxu0 0
      %5069 = vmatpush1.bf16.msra.mxu0 0
      %5070 = vmatprep.subr.bf16.mxu0 0
      %5071 = vmatpush1.bf16.msra.mxu0 0
      %5072 = vmatprep.subr.bf16.mxu0 0
      %5073 = vmatpush1.bf16.msra.mxu0 0
      %5074 = vmatprep.subr.bf16.mxu0 0
      %5075 = vmatpush1.bf16.msra.mxu0 0
      %5076 = vmatprep.subr.bf16.mxu0 0
      %5077 = vmatpush1.bf16.msra.mxu0 0
      %5078 = vmatprep.subr.bf16.mxu0 0
      %5079 = vmatpush1.bf16.msra.mxu0 0
      %5080 = vmatprep.mubr.bf16.mxu0 0
      %5081 = vmatmul.mubr.bf16.gmra.mrb[0].mxu0 %v3431
      %v5082 = vpop.f32.mrb[0].mxu0
      %v5083 = vadd.f32 0.0, %v5082
      %v5084 = vpop.f32.mrb[0].mxu0
      %v5085 = vpop.f32.mrb[0].mxu0
      %v5086 = vadd.f32 0.0, %v5085
      %v5087 = vpop.f32.mrb[0].mxu0
      %5088 = vdwg.mxu0
      %v5091 = vcombine.high %v5083, %v5083
      %v5093 = vunpack.c.l.s4 1983009808
      %v5094 = vunpack.c.0.s8 %v5093
      %v5095 = vlaneseq
      %v5096 = vshrl.u32 %v5095, 7
      %v5097 = vsub.s32 %v5094, %v5096
      %v5098 = vrot.slane %v5083, %v5097
      %v5100 = vunpack.c.l.s4 1983009808
      %v5101 = vunpack.c.0.s8 %v5100
      %v5102 = vlaneseq
      %v5103 = vshrl.u32 %v5102, 7
      %v5104 = vsub.s32 %v5101, %v5103
      %v5105 = vrot.slane %v5091, %v5104
      %v5106 = vcombine.high %v5098, %v5098
      %v5107 = vcombine.high %v5105, %v5105
      %v5109 = vunpack.c.l.s4 1983009808
      %v5110 = vunpack.c.0.s8 %v5109
      %v5111 = vlaneseq
      %v5112 = vshrl.u32 %v5111, 7
      %v5113 = vsub.s32 %v5110, %v5112
      %v5114 = vrot.slane %v5086, %v5113
      %v5115 = vcombine.high %v5114, %v5114
      %v5122 = vadd.f32 %v5098, 1e-06
      %v5123 = vadd.f32 %v5106, 1e-06
      %v5124 = vadd.f32 %v5105, 1e-06
      %v5125 = vadd.f32 %v5107, 1e-06
      %v5126 = vadd.f32 %v5114, 1e-06
      %v5127 = vadd.f32 %v5115, 1e-06
      %v5128 = vrsqrt.pop %v5122
      %v5129 = vrsqrt.pop %v5123
      %v5130 = vrsqrt.pop %v5124
      %v5131 = vrsqrt.pop %v5125
      %v5132 = vrsqrt.pop %v5126
      %v5133 = vrsqrt.pop %v5127
      %v5134 = vmul.f32 %v5024, %v5128
      %v5135 = vmul.f32 %v5032, %v5129
      %v5136 = vmul.f32 %v5031, %v5130
      %v5137 = vmul.f32 %v5033, %v5131
      %v5138 = vmul.f32 %v5040, %v5132
      %v5139 = vmul.f32 %v5041, %v5133
      %v5140 = vmul.f32 %v4904, %v4904
      %v5141 = vmul.f32 %v4905, %v4905
      %v5144 = vcombine.high %v5140, %v5140
      %v5146 = vunpack.c.l.s4 1983009808
      %v5147 = vunpack.c.0.s8 %v5146
      %v5148 = vlaneseq
      %v5149 = vshrl.u32 %v5148, 7
      %v5150 = vsub.s32 %v5147, %v5149
      %v5151 = vrot.slane %v5140, %v5150
      %v5153 = vunpack.c.l.s4 1983009808
      %v5154 = vunpack.c.0.s8 %v5153
      %v5155 = vlaneseq
      %v5156 = vshrl.u32 %v5155, 7
      %v5157 = vsub.s32 %v5154, %v5156
      %v5158 = vrot.slane %v5144, %v5157
      %v5159 = vcombine.high %v5151, %v5151
      %v5160 = vcombine.high %v5141, %v5141
      %v5162 = vunpack.c.l.s4 1983009808
      %v5163 = vunpack.c.0.s8 %v5162
      %v5164 = vlaneseq
      %v5165 = vshrl.u32 %v5164, 7
      %v5166 = vsub.s32 %v5163, %v5165
      %v5167 = vrot.slane %v5141, %v5166
      %v5169 = vunpack.c.l.s4 1983009808
      %v5170 = vunpack.c.0.s8 %v5169
      %v5171 = vlaneseq
      %v5172 = vshrl.u32 %v5171, 7
      %v5173 = vsub.s32 %v5170, %v5172
      %v5174 = vrot.slane %v5160, %v5173
      %v5175 = vcombine.high %v5167, %v5167
      %v5176 = vcombine.low %v5151, %v5159
      %v5177 = vcombine.low %v5158, %v5167
      %v5179 = vunpack.c.l.s4 1983009808
      %v5180 = vunpack.c.0.s8 %v5179
      %v5181 = vlaneseq
      %v5182 = vshrl.u32 %v5181, 7
      %v5183 = vsub.s32 %v5180, %v5182
      %v5184 = vrot.slane %v5176, %v5183
      %v5186 = vunpack.c.l.s4 1983009808
      %v5187 = vunpack.c.0.s8 %v5186
      %v5188 = vlaneseq
      %v5189 = vshrl.u32 %v5188, 7
      %v5190 = vsub.s32 %v5187, %v5189
      %v5191 = vrot.slane %v5177, %v5190
      %v5192 = vcombine.low %v5184, %v5191
      %v5193 = vcombine.low %v5175, %v5174
      %v5195 = vunpack.c.l.s4 1983009808
      %v5196 = vunpack.c.0.s8 %v5195
      %v5197 = vlaneseq
      %v5198 = vshrl.u32 %v5197, 7
      %v5199 = vsub.s32 %v5196, %v5198
      %v5200 = vrot.slane %v5193, %v5199
      %v5203 = vpack.c.bf16 %v5200, %v5192
      %v5205 = vsel %vm529, %v5203, 0
      %5207 = vmatprep.subr.bf16.mxu0 0
      %5208 = vmatpush1.bf16.msra.mxu0 %v4970
      %5209 = vmatprep.subr.bf16.mxu0 0
      %5210 = vmatpush1.bf16.msra.mxu0 0
      %5211 = vmatprep.subr.bf16.mxu0 0
      %5212 = vmatpush1.bf16.msra.mxu0 0
      %5213 = vmatprep.subr.bf16.mxu0 0
      %5214 = vmatpush1.bf16.msra.mxu0 0
      %5215 = vmatprep.subr.bf16.mxu0 0
      %5216 = vmatpush1.bf16.msra.mxu0 0
      %5217 = vmatprep.subr.bf16.mxu0 0
      %5218 = vmatpush1.bf16.msra.mxu0 0
      %5219 = vmatprep.subr.bf16.mxu0 0
      %5220 = vmatpush1.bf16.msra.mxu0 0
      %5221 = vmatprep.subr.bf16.mxu0 0
      %5222 = vmatpush1.bf16.msra.mxu0 0
      %5223 = vmatprep.subr.bf16.mxu0 0
      %5224 = vmatpush1.bf16.msra.mxu0 0
      %5225 = vmatprep.subr.bf16.mxu0 0
      %5226 = vmatpush1.bf16.msra.mxu0 0
      %5227 = vmatprep.subr.bf16.mxu0 0
      %5228 = vmatpush1.bf16.msra.mxu0 0
      %5229 = vmatprep.subr.bf16.mxu0 0
      %5230 = vmatpush1.bf16.msra.mxu0 0
      %5231 = vmatprep.subr.bf16.mxu0 0
      %5232 = vmatpush1.bf16.msra.mxu0 0
      %5233 = vmatprep.subr.bf16.mxu0 0
      %5234 = vmatpush1.bf16.msra.mxu0 0
      %5235 = vmatprep.subr.bf16.mxu0 0
      %5236 = vmatpush1.bf16.msra.mxu0 0
      %5237 = vmatprep.subr.bf16.mxu0 0
      %5238 = vmatpush1.bf16.msra.mxu0 0
      %5239 = vmatprep.mubr.bf16.mxu0 0
      %5240 = vmatmul.mubr.bf16.gmra.mrb[0].mxu0 %v5205
      %v5241 = vpop.f32.mrb[0].mxu0
      %v5242 = vadd.f32 0.0, %v5241
      %v5243 = vpop.f32.mrb[0].mxu0
      %v5244 = vpop.f32.mrb[0].mxu0
      %v5245 = vadd.f32 0.0, %v5244
      %v5246 = vpop.f32.mrb[0].mxu0
      %5247 = vdwg.mxu0
      %v5250 = vcombine.high %v5242, %v5242
      %v5252 = vunpack.c.l.s4 1983009808
      %v5253 = vunpack.c.0.s8 %v5252
      %v5254 = vlaneseq
      %v5255 = vshrl.u32 %v5254, 7
      %v5256 = vsub.s32 %v5253, %v5255
      %v5257 = vrot.slane %v5242, %v5256
      %v5259 = vunpack.c.l.s4 1983009808
      %v5260 = vunpack.c.0.s8 %v5259
      %v5261 = vlaneseq
      %v5262 = vshrl.u32 %v5261, 7
      %v5263 = vsub.s32 %v5260, %v5262
      %v5264 = vrot.slane %v5250, %v5263
      %v5265 = vcombine.high %v5257, %v5257
      %v5266 = vcombine.high %v5264, %v5264
      %v5268 = vunpack.c.l.s4 1983009808
      %v5269 = vunpack.c.0.s8 %v5268
      %v5270 = vlaneseq
      %v5271 = vshrl.u32 %v5270, 7
      %v5272 = vsub.s32 %v5269, %v5271
      %v5273 = vrot.slane %v5245, %v5272
      %v5274 = vcombine.high %v5273, %v5273
      %v5281 = vadd.f32 %v5257, 1e-06
      %v5282 = vadd.f32 %v5265, 1e-06
      %v5283 = vadd.f32 %v5264, 1e-06
      %v5284 = vadd.f32 %v5266, 1e-06
      %v5285 = vadd.f32 %v5273, 1e-06
      %v5286 = vadd.f32 %v5274, 1e-06
      %v5287 = vrsqrt.pop %v5281
      %v5288 = vrsqrt.pop %v5282
      %v5289 = vrsqrt.pop %v5283
      %v5290 = vrsqrt.pop %v5284
      %v5291 = vrsqrt.pop %v5285
      %v5292 = vrsqrt.pop %v5286
      %v5293 = vmul.f32 %v5134, %v5287
      %v5294 = vmul.f32 %v5135, %v5288
      %v5295 = vmul.f32 %v5136, %v5289
      %v5296 = vmul.f32 %v5137, %v5290
      %v5297 = vmul.f32 %v5138, %v5291
      %v5298 = vmul.f32 %v5139, %v5292
      %v5299 = vsel %vm2147, %v4742, -inf
      %5300 = vmax.xlane.f32.xlu0 %v5299
      %v5301 = vpop.xlane.xlu0 %5300
      %v5302 = vsel %vm2147, %v4743, -inf
      %5303 = vmax.xlane.f32.xlu0 %v5302
      %v5304 = vpop.xlane.xlu0 %5303
      %vm5305 = vcmp.ge.f32.partialorder %v4742, %v5301
      %vm5306 = vcmp.ge.f32.partialorder %v4743, %v5304
      %v5307 = vsel %vm5305, 1, 0
      %v5308 = vsel %vm5306, 1, 0
      %v5309 = vcvt.s32.f32 %v5307
      %v5310 = vcvt.s32.f32 %v5308
      %v5311 = vsel %vm2147, %v5309, 0.0
      %5312 = vadd.xlane.f32.xlu0 %v5311
      %v5313 = vpop.xlane.xlu0 %5312
      %v5314 = vsel %vm2147, %v5310, 0.0
      %5315 = vadd.xlane.f32.xlu0 %v5314
      %v5316 = vpop.xlane.xlu0 %5315
      %v5317 = vrcp.pop %v5313
      %v5318 = vrcp.pop %v5316
      %v5319 = vmul.f32 %v5309, %v5317
      %v5320 = vmul.f32 %v5310, %v5318
      %v5322 = vsel %vm1995, %v5319, 0
      %5324 = vmatprep.subr.mxu0 0.0
      %5325 = vmatpush1.msra.mxu0 %v4747
      %5326 = vmatprep.subr.mxu0 0.0
      %5327 = vmatpush1.msra.mxu0 0.0
      %5328 = vmatprep.subr.mxu0 0.0
      %5329 = vmatpush1.msra.mxu0 0.0
      %5330 = vmatprep.subr.mxu0 0.0
      %5331 = vmatpush1.msra.mxu0 0.0
      %5332 = vmatprep.subr.mxu0 0.0
      %5333 = vmatpush1.msra.mxu0 0.0
      %5334 = vmatprep.subr.mxu0 0.0
      %5335 = vmatpush1.msra.mxu0 0.0
      %5336 = vmatprep.subr.mxu0 0.0
      %5337 = vmatpush1.msra.mxu0 0.0
      %5338 = vmatprep.subr.mxu0 0.0
      %5339 = vmatpush1.msra.mxu0 0.0
      %5340 = vmatprep.subr.mxu0 0.0
      %5341 = vmatpush1.msra.mxu0 0.0
      %5342 = vmatprep.subr.mxu0 0.0
      %5343 = vmatpush1.msra.mxu0 0.0
      %5344 = vmatprep.subr.mxu0 0.0
      %5345 = vmatpush1.msra.mxu0 0.0
      %5346 = vmatprep.subr.mxu0 0.0
      %5347 = vmatpush1.msra.mxu0 0.0
      %5348 = vmatprep.subr.mxu0 0.0
      %5349 = vmatpush1.msra.mxu0 0.0
      %5350 = vmatprep.subr.mxu0 0.0
      %5351 = vmatpush1.msra.mxu0 0.0
      %5352 = vmatprep.subr.mxu0 0.0
      %5353 = vmatpush1.msra.mxu0 0.0
      %5354 = vmatprep.subr.mxu0 0.0
      %5355 = vmatpush1.msra.mxu0 0.0
      %5356 = vmatprep.subr.mxu0 0.0
      %5357 = vmatpush1.msra.mxu0 0.0
      %5358 = vmatprep.subr.mxu0 0.0
      %5359 = vmatpush1.msra.mxu0 0.0
      %5360 = vmatprep.subr.mxu0 0.0
      %5361 = vmatpush1.msra.mxu0 0.0
      %5362 = vmatprep.subr.mxu0 0.0
      %5363 = vmatpush1.msra.mxu0 0.0
      %5364 = vmatprep.subr.mxu0 0.0
      %5365 = vmatpush1.msra.mxu0 0.0
      %5366 = vmatprep.subr.mxu0 0.0
      %5367 = vmatpush1.msra.mxu0 0.0
      %5368 = vmatprep.subr.mxu0 0.0
      %5369 = vmatpush1.msra.mxu0 0.0
      %5370 = vmatprep.subr.mxu0 0.0
      %5371 = vmatpush1.msra.mxu0 0.0
      %5372 = vmatprep.subr.mxu0 0.0
      %5373 = vmatpush1.msra.mxu0 0.0
      %5374 = vmatprep.subr.mxu0 0.0
      %5375 = vmatpush1.msra.mxu0 0.0
      %5376 = vmatprep.subr.mxu0 0.0
      %5377 = vmatpush1.msra.mxu0 0.0
      %5378 = vmatprep.subr.mxu0 0.0
      %5379 = vmatpush1.msra.mxu0 0.0
      %5380 = vmatprep.subr.mxu0 0.0
      %5381 = vmatpush1.msra.mxu0 0.0
      %5382 = vmatprep.subr.mxu0 0.0
      %5383 = vmatpush1.msra.mxu0 0.0
      %5384 = vmatprep.subr.mxu0 0.0
      %5385 = vmatpush1.msra.mxu0 0.0
      %5386 = vmatprep.subr.mxu0 0.0
      %5387 = vmatpush1.msra.mxu0 0.0
      %5388 = vmatprep.mubr.f32.mxu0 0.0
      %5389 = vmatmul.mubr.f32.gmra.mrb[0].mxu0 %v5322
      %v5390 = vpop.f32.mrb[0].mxu0
      %v5391 = vadd.f32 0.0, %v5390
      %v5392 = vpop.f32.mrb[0].mxu0
      %5393 = vdwg.mxu0
      %v5395 = vsel %vm1995, %v5320, 0
      %5397 = vmatprep.subr.mxu0 0.0
      %5398 = vmatpush1.msra.mxu0 %v4822
      %5399 = vmatprep.subr.mxu0 0.0
      %5400 = vmatpush1.msra.mxu0 0.0
      %5401 = vmatprep.subr.mxu0 0.0
      %5402 = vmatpush1.msra.mxu0 0.0
      %5403 = vmatprep.subr.mxu0 0.0
      %5404 = vmatpush1.msra.mxu0 0.0
      %5405 = vmatprep.subr.mxu0 0.0
      %5406 = vmatpush1.msra.mxu0 0.0
      %5407 = vmatprep.subr.mxu0 0.0
      %5408 = vmatpush1.msra.mxu0 0.0
      %5409 = vmatprep.subr.mxu0 0.0
      %5410 = vmatpush1.msra.mxu0 0.0
      %5411 = vmatprep.subr.mxu0 0.0
      %5412 = vmatpush1.msra.mxu0 0.0
      %5413 = vmatprep.subr.mxu0 0.0
      %5414 = vmatpush1.msra.mxu0 0.0
      %5415 = vmatprep.subr.mxu0 0.0
      %5416 = vmatpush1.msra.mxu0 0.0
      %5417 = vmatprep.subr.mxu0 0.0
      %5418 = vmatpush1.msra.mxu0 0.0
      %5419 = vmatprep.subr.mxu0 0.0
      %5420 = vmatpush1.msra.mxu0 0.0
      %5421 = vmatprep.subr.mxu0 0.0
      %5422 = vmatpush1.msra.mxu0 0.0
      %5423 = vmatprep.subr.mxu0 0.0
      %5424 = vmatpush1.msra.mxu0 0.0
      %5425 = vmatprep.subr.mxu0 0.0
      %5426 = vmatpush1.msra.mxu0 0.0
      %5427 = vmatprep.subr.mxu0 0.0
      %5428 = vmatpush1.msra.mxu0 0.0
      %5429 = vmatprep.subr.mxu0 0.0
      %5430 = vmatpush1.msra.mxu0 0.0
      %5431 = vmatprep.subr.mxu0 0.0
      %5432 = vmatpush1.msra.mxu0 0.0
      %5433 = vmatprep.subr.mxu0 0.0
      %5434 = vmatpush1.msra.mxu0 0.0
      %5435 = vmatprep.subr.mxu0 0.0
      %5436 = vmatpush1.msra.mxu0 0.0
      %5437 = vmatprep.subr.mxu0 0.0
      %5438 = vmatpush1.msra.mxu0 0.0
      %5439 = vmatprep.subr.mxu0 0.0
      %5440 = vmatpush1.msra.mxu0 0.0
      %5441 = vmatprep.subr.mxu0 0.0
      %5442 = vmatpush1.msra.mxu0 0.0
      %5443 = vmatprep.subr.mxu0 0.0
      %5444 = vmatpush1.msra.mxu0 0.0
      %5445 = vmatprep.subr.mxu0 0.0
      %5446 = vmatpush1.msra.mxu0 0.0
      %5447 = vmatprep.subr.mxu0 0.0
      %5448 = vmatpush1.msra.mxu0 0.0
      %5449 = vmatprep.subr.mxu0 0.0
      %5450 = vmatpush1.msra.mxu0 0.0
      %5451 = vmatprep.subr.mxu0 0.0
      %5452 = vmatpush1.msra.mxu0 0.0
      %5453 = vmatprep.subr.mxu0 0.0
      %5454 = vmatpush1.msra.mxu0 0.0
      %5455 = vmatprep.subr.mxu0 0.0
      %5456 = vmatpush1.msra.mxu0 0.0
      %5457 = vmatprep.subr.mxu0 0.0
      %5458 = vmatpush1.msra.mxu0 0.0
      %5459 = vmatprep.subr.mxu0 0.0
      %5460 = vmatpush1.msra.mxu0 0.0
      %5461 = vmatprep.mubr.f32.mxu0 0.0
      %5462 = vmatmul.mubr.f32.gmra.mrb[0].mxu0 %v5395
      %v5463 = vpop.f32.mrb[0].mxu0
      %v5464 = vadd.f32 0.0, %v5463
      %v5465 = vpop.f32.mrb[0].mxu0
      %5466 = vdwg.mxu0
      %v5467 = vmul.f32 %v3114, %v5391
      %v5468 = vmul.f32 %v3115, %v5464
      %v5471 = vcombine.high %v5467, %v5467
      %v5473 = vunpack.c.l.s4 1983009808
      %v5474 = vunpack.c.0.s8 %v5473
      %v5475 = vlaneseq
      %v5476 = vshrl.u32 %v5475, 7
      %v5477 = vsub.s32 %v5474, %v5476
      %v5478 = vrot.slane %v5467, %v5477
      %v5480 = vunpack.c.l.s4 1983009808
      %v5481 = vunpack.c.0.s8 %v5480
      %v5482 = vlaneseq
      %v5483 = vshrl.u32 %v5482, 7
      %v5484 = vsub.s32 %v5481, %v5483
      %v5485 = vrot.slane %v5471, %v5484
      %v5486 = vcombine.high %v5478, %v5478
      %v5487 = vcombine.high %v5468, %v5468
      %v5489 = vunpack.c.l.s4 1983009808
      %v5490 = vunpack.c.0.s8 %v5489
      %v5491 = vlaneseq
      %v5492 = vshrl.u32 %v5491, 7
      %v5493 = vsub.s32 %v5490, %v5492
      %v5494 = vrot.slane %v5468, %v5493
      %v5496 = vunpack.c.l.s4 1983009808
      %v5497 = vunpack.c.0.s8 %v5496
      %v5498 = vlaneseq
      %v5499 = vshrl.u32 %v5498, 7
      %v5500 = vsub.s32 %v5497, %v5499
      %v5501 = vrot.slane %v5487, %v5500
      %v5502 = vcombine.high %v5494, %v5494
      %v5503 = vcombine.low %v5478, %v5486
      %v5504 = vcombine.low %v5485, %v5494
      %v5506 = vunpack.c.l.s4 1983009808
      %v5507 = vunpack.c.0.s8 %v5506
      %v5508 = vlaneseq
      %v5509 = vshrl.u32 %v5508, 7
      %v5510 = vsub.s32 %v5507, %v5509
      %v5511 = vrot.slane %v5503, %v5510
      %v5513 = vunpack.c.l.s4 1983009808
      %v5514 = vunpack.c.0.s8 %v5513
      %v5515 = vlaneseq
      %v5516 = vshrl.u32 %v5515, 7
      %v5517 = vsub.s32 %v5514, %v5516
      %v5518 = vrot.slane %v5504, %v5517
      %v5519 = vcombine.low %v5511, %v5518
      %v5520 = vcombine.low %v5502, %v5501
      %v5522 = vunpack.c.l.s4 1983009808
      %v5523 = vunpack.c.0.s8 %v5522
      %v5524 = vlaneseq
      %v5525 = vshrl.u32 %v5524, 7
      %v5526 = vsub.s32 %v5523, %v5525
      %v5527 = vrot.slane %v5520, %v5526
      %v5530 = vpack.c.bf16 %v5527, %v5519
      %v5531 = vpack.c.bf16 %v3201, %v3200
      %v5533 = vsel %vm529, %v5530, 0
      %5535 = vmatprep.subr.bf16.mxu0 0
      %5536 = vmatpush1.bf16.msra.mxu0 %v5531
      %5537 = vmatprep.subr.bf16.mxu0 0
      %5538 = vmatpush1.bf16.msra.mxu0 0
      %5539 = vmatprep.subr.bf16.mxu0 0
      %5540 = vmatpush1.bf16.msra.mxu0 0
      %5541 = vmatprep.subr.bf16.mxu0 0
      %5542 = vmatpush1.bf16.msra.mxu0 0
      %5543 = vmatprep.subr.bf16.mxu0 0
      %5544 = vmatpush1.bf16.msra.mxu0 0
      %5545 = vmatprep.subr.bf16.mxu0 0
      %5546 = vmatpush1.bf16.msra.mxu0 0
      %5547 = vmatprep.subr.bf16.mxu0 0
      %5548 = vmatpush1.bf16.msra.mxu0 0
      %5549 = vmatprep.subr.bf16.mxu0 0
      %5550 = vmatpush1.bf16.msra.mxu0 0
      %5551 = vmatprep.subr.bf16.mxu0 0
      %5552 = vmatpush1.bf16.msra.mxu0 0
      %5553 = vmatprep.subr.bf16.mxu0 0
      %5554 = vmatpush1.bf16.msra.mxu0 0
      %5555 = vmatprep.subr.bf16.mxu0 0
      %5556 = vmatpush1.bf16.msra.mxu0 0
      %5557 = vmatprep.subr.bf16.mxu0 0
      %5558 = vmatpush1.bf16.msra.mxu0 0
      %5559 = vmatprep.subr.bf16.mxu0 0
      %5560 = vmatpush1.bf16.msra.mxu0 0
      %5561 = vmatprep.subr.bf16.mxu0 0
      %5562 = vmatpush1.bf16.msra.mxu0 0
      %5563 = vmatprep.subr.bf16.mxu0 0
      %5564 = vmatpush1.bf16.msra.mxu0 0
      %5565 = vmatprep.subr.bf16.mxu0 0
      %5566 = vmatpush1.bf16.msra.mxu0 0
      %5567 = vmatprep.mubr.bf16.mxu0 0
      %5568 = vmatmul.mubr.bf16.gmra.mrb[0].mxu0 %v5533
      %v5569 = vpop.f32.mrb[0].mxu0
      %v5570 = vadd.f32 0.0, %v5569
      %v5571 = vpop.f32.mrb[0].mxu0
      %v5572 = vpop.f32.mrb[0].mxu0
      %v5573 = vadd.f32 0.0, %v5572
      %v5574 = vpop.f32.mrb[0].mxu0
      %5575 = vdwg.mxu0
      %v5578 = vcombine.high %v5570, %v5570
      %v5580 = vunpack.c.l.s4 1983009808
      %v5581 = vunpack.c.0.s8 %v5580
      %v5582 = vlaneseq
      %v5583 = vshrl.u32 %v5582, 7
      %v5584 = vsub.s32 %v5581, %v5583
      %v5585 = vrot.slane %v5570, %v5584
      %v5587 = vunpack.c.l.s4 1983009808
      %v5588 = vunpack.c.0.s8 %v5587
      %v5589 = vlaneseq
      %v5590 = vshrl.u32 %v5589, 7
      %v5591 = vsub.s32 %v5588, %v5590
      %v5592 = vrot.slane %v5578, %v5591
      %v5593 = vcombine.high %v5585, %v5585
      %v5594 = vcombine.high %v5592, %v5592
      %v5596 = vunpack.c.l.s4 1983009808
      %v5597 = vunpack.c.0.s8 %v5596
      %v5598 = vlaneseq
      %v5599 = vshrl.u32 %v5598, 7
      %v5600 = vsub.s32 %v5597, %v5599
      %v5601 = vrot.slane %v5573, %v5600
      %v5602 = vcombine.high %v5601, %v5601
      %5609 = vmatprep.subr.bf16.mxu0 0
      %5610 = vmatpush1.bf16.msra.mxu0 %v5531
      %5611 = vmatprep.subr.bf16.mxu0 0
      %5612 = vmatpush1.bf16.msra.mxu0 0
      %5613 = vmatprep.subr.bf16.mxu0 0
      %5614 = vmatpush1.bf16.msra.mxu0 0
      %5615 = vmatprep.subr.bf16.mxu0 0
      %5616 = vmatpush1.bf16.msra.mxu0 0
      %5617 = vmatprep.subr.bf16.mxu0 0
      %5618 = vmatpush1.bf16.msra.mxu0 0
      %5619 = vmatprep.subr.bf16.mxu0 0
      %5620 = vmatpush1.bf16.msra.mxu0 0
      %5621 = vmatprep.subr.bf16.mxu0 0
      %5622 = vmatpush1.bf16.msra.mxu0 0
      %5623 = vmatprep.subr.bf16.mxu0 0
      %5624 = vmatpush1.bf16.msra.mxu0 0
      %5625 = vmatprep.subr.bf16.mxu0 0
      %5626 = vmatpush1.bf16.msra.mxu0 0
      %5627 = vmatprep.subr.bf16.mxu0 0
      %5628 = vmatpush1.bf16.msra.mxu0 0
      %5629 = vmatprep.subr.bf16.mxu0 0
      %5630 = vmatpush1.bf16.msra.mxu0 0
      %5631 = vmatprep.subr.bf16.mxu0 0
      %5632 = vmatpush1.bf16.msra.mxu0 0
      %5633 = vmatprep.subr.bf16.mxu0 0
      %5634 = vmatpush1.bf16.msra.mxu0 0
      %5635 = vmatprep.subr.bf16.mxu0 0
      %5636 = vmatpush1.bf16.msra.mxu0 0
      %5637 = vmatprep.subr.bf16.mxu0 0
      %5638 = vmatpush1.bf16.msra.mxu0 0
      %5639 = vmatprep.subr.bf16.mxu0 0
      %5640 = vmatpush1.bf16.msra.mxu0 0
      %5641 = vmatprep.mubr.bf16.mxu0 0
      %5642 = vmatmul.mubr.bf16.gmra.mrb[0].mxu0 %v3431
      %v5643 = vpop.f32.mrb[0].mxu0
      %v5644 = vadd.f32 0.0, %v5643
      %v5645 = vpop.f32.mrb[0].mxu0
      %v5646 = vpop.f32.mrb[0].mxu0
      %v5647 = vadd.f32 0.0, %v5646
      %v5648 = vpop.f32.mrb[0].mxu0
      %5649 = vdwg.mxu0
      %v5652 = vcombine.high %v5644, %v5644
      %v5654 = vunpack.c.l.s4 1983009808
      %v5655 = vunpack.c.0.s8 %v5654
      %v5656 = vlaneseq
      %v5657 = vshrl.u32 %v5656, 7
      %v5658 = vsub.s32 %v5655, %v5657
      %v5659 = vrot.slane %v5644, %v5658
      %v5661 = vunpack.c.l.s4 1983009808
      %v5662 = vunpack.c.0.s8 %v5661
      %v5663 = vlaneseq
      %v5664 = vshrl.u32 %v5663, 7
      %v5665 = vsub.s32 %v5662, %v5664
      %v5666 = vrot.slane %v5652, %v5665
      %v5667 = vcombine.high %v5659, %v5659
      %v5668 = vcombine.high %v5666, %v5666
      %v5670 = vunpack.c.l.s4 1983009808
      %v5671 = vunpack.c.0.s8 %v5670
      %v5672 = vlaneseq
      %v5673 = vshrl.u32 %v5672, 7
      %v5674 = vsub.s32 %v5671, %v5673
      %v5675 = vrot.slane %v5647, %v5674
      %v5676 = vcombine.high %v5675, %v5675
      %v5683 = vadd.f32 %v5659, 1e-06
      %v5684 = vadd.f32 %v5667, 1e-06
      %v5685 = vadd.f32 %v5666, 1e-06
      %v5686 = vadd.f32 %v5668, 1e-06
      %v5687 = vadd.f32 %v5675, 1e-06
      %v5688 = vadd.f32 %v5676, 1e-06
      %v5689 = vrsqrt.pop %v5683
      %v5690 = vrsqrt.pop %v5684
      %v5691 = vrsqrt.pop %v5685
      %v5692 = vrsqrt.pop %v5686
      %v5693 = vrsqrt.pop %v5687
      %v5694 = vrsqrt.pop %v5688
      %v5695 = vmul.f32 %v5585, %v5689
      %v5696 = vmul.f32 %v5593, %v5690
      %v5697 = vmul.f32 %v5592, %v5691
      %v5698 = vmul.f32 %v5594, %v5692
      %v5699 = vmul.f32 %v5601, %v5693
      %v5700 = vmul.f32 %v5602, %v5694
      %v5701 = vmul.f32 %v5391, %v5391
      %v5702 = vmul.f32 %v5464, %v5464
      %v5705 = vcombine.high %v5701, %v5701
      %v5707 = vunpack.c.l.s4 1983009808
      %v5708 = vunpack.c.0.s8 %v5707
      %v5709 = vlaneseq
      %v5710 = vshrl.u32 %v5709, 7
      %v5711 = vsub.s32 %v5708, %v5710
      %v5712 = vrot.slane %v5701, %v5711
      %v5714 = vunpack.c.l.s4 1983009808
      %v5715 = vunpack.c.0.s8 %v5714
      %v5716 = vlaneseq
      %v5717 = vshrl.u32 %v5716, 7
      %v5718 = vsub.s32 %v5715, %v5717
      %v5719 = vrot.slane %v5705, %v5718
      %v5720 = vcombine.high %v5712, %v5712
      %v5721 = vcombine.high %v5702, %v5702
      %v5723 = vunpack.c.l.s4 1983009808
      %v5724 = vunpack.c.0.s8 %v5723
      %v5725 = vlaneseq
      %v5726 = vshrl.u32 %v5725, 7
      %v5727 = vsub.s32 %v5724, %v5726
      %v5728 = vrot.slane %v5702, %v5727
      %v5730 = vunpack.c.l.s4 1983009808
      %v5731 = vunpack.c.0.s8 %v5730
      %v5732 = vlaneseq
      %v5733 = vshrl.u32 %v5732, 7
      %v5734 = vsub.s32 %v5731, %v5733
      %v5735 = vrot.slane %v5721, %v5734
      %v5736 = vcombine.high %v5728, %v5728
      %v5737 = vcombine.low %v5712, %v5720
      %v5738 = vcombine.low %v5719, %v5728
      %v5740 = vunpack.c.l.s4 1983009808
      %v5741 = vunpack.c.0.s8 %v5740
      %v5742 = vlaneseq
      %v5743 = vshrl.u32 %v5742, 7
      %v5744 = vsub.s32 %v5741, %v5743
      %v5745 = vrot.slane %v5737, %v5744
      %v5747 = vunpack.c.l.s4 1983009808
      %v5748 = vunpack.c.0.s8 %v5747
      %v5749 = vlaneseq
      %v5750 = vshrl.u32 %v5749, 7
      %v5751 = vsub.s32 %v5748, %v5750
      %v5752 = vrot.slane %v5738, %v5751
      %v5753 = vcombine.low %v5745, %v5752
      %v5754 = vcombine.low %v5736, %v5735
      %v5756 = vunpack.c.l.s4 1983009808
      %v5757 = vunpack.c.0.s8 %v5756
      %v5758 = vlaneseq
      %v5759 = vshrl.u32 %v5758, 7
      %v5760 = vsub.s32 %v5757, %v5759
      %v5761 = vrot.slane %v5754, %v5760
      %v5764 = vpack.c.bf16 %v5761, %v5753
      %v5766 = vsel %vm529, %v5764, 0
      %5768 = vmatprep.subr.bf16.mxu0 0
      %5769 = vmatpush1.bf16.msra.mxu0 %v5531
      %5770 = vmatprep.subr.bf16.mxu0 0
      %5771 = vmatpush1.bf16.msra.mxu0 0
      %5772 = vmatprep.subr.bf16.mxu0 0
      %5773 = vmatpush1.bf16.msra.mxu0 0
      %5774 = vmatprep.subr.bf16.mxu0 0
      %5775 = vmatpush1.bf16.msra.mxu0 0
      %5776 = vmatprep.subr.bf16.mxu0 0
      %5777 = vmatpush1.bf16.msra.mxu0 0
      %5778 = vmatprep.subr.bf16.mxu0 0
      %5779 = vmatpush1.bf16.msra.mxu0 0
      %5780 = vmatprep.subr.bf16.mxu0 0
      %5781 = vmatpush1.bf16.msra.mxu0 0
      %5782 = vmatprep.subr.bf16.mxu0 0
      %5783 = vmatpush1.bf16.msra.mxu0 0
      %5784 = vmatprep.subr.bf16.mxu0 0
      %5785 = vmatpush1.bf16.msra.mxu0 0
      %5786 = vmatprep.subr.bf16.mxu0 0
      %5787 = vmatpush1.bf16.msra.mxu0 0
      %5788 = vmatprep.subr.bf16.mxu0 0
      %5789 = vmatpush1.bf16.msra.mxu0 0
      %5790 = vmatprep.subr.bf16.mxu0 0
      %5791 = vmatpush1.bf16.msra.mxu0 0
      %5792 = vmatprep.subr.bf16.mxu0 0
      %5793 = vmatpush1.bf16.msra.mxu0 0
      %5794 = vmatprep.subr.bf16.mxu0 0
      %5795 = vmatpush1.bf16.msra.mxu0 0
      %5796 = vmatprep.subr.bf16.mxu0 0
      %5797 = vmatpush1.bf16.msra.mxu0 0
      %5798 = vmatprep.subr.bf16.mxu0 0
      %5799 = vmatpush1.bf16.msra.mxu0 0
      %5800 = vmatprep.mubr.bf16.mxu0 0
      %5801 = vmatmul.mubr.bf16.gmra.mrb[0].mxu0 %v5766
      %v5802 = vpop.f32.mrb[0].mxu0
      %v5803 = vadd.f32 0.0, %v5802
      %v5804 = vpop.f32.mrb[0].mxu0
      %v5805 = vpop.f32.mrb[0].mxu0
      %v5806 = vadd.f32 0.0, %v5805
      %v5807 = vpop.f32.mrb[0].mxu0
      %5808 = vdwg.mxu0
      %v5811 = vcombine.high %v5803, %v5803
      %v5813 = vunpack.c.l.s4 1983009808
      %v5814 = vunpack.c.0.s8 %v5813
      %v5815 = vlaneseq
      %v5816 = vshrl.u32 %v5815, 7
      %v5817 = vsub.s32 %v5814, %v5816
      %v5818 = vrot.slane %v5803, %v5817
      %v5820 = vunpack.c.l.s4 1983009808
      %v5821 = vunpack.c.0.s8 %v5820
      %v5822 = vlaneseq
      %v5823 = vshrl.u32 %v5822, 7
      %v5824 = vsub.s32 %v5821, %v5823
      %v5825 = vrot.slane %v5811, %v5824
      %v5826 = vcombine.high %v5818, %v5818
      %v5827 = vcombine.high %v5825, %v5825
      %v5829 = vunpack.c.l.s4 1983009808
      %v5830 = vunpack.c.0.s8 %v5829
      %v5831 = vlaneseq
      %v5832 = vshrl.u32 %v5831, 7
      %v5833 = vsub.s32 %v5830, %v5832
      %v5834 = vrot.slane %v5806, %v5833
      %v5835 = vcombine.high %v5834, %v5834
      %v5842 = vadd.f32 %v5818, 1e-06
      %v5843 = vadd.f32 %v5826, 1e-06
      %v5844 = vadd.f32 %v5825, 1e-06
      %v5845 = vadd.f32 %v5827, 1e-06
      %v5846 = vadd.f32 %v5834, 1e-06
      %v5847 = vadd.f32 %v5835, 1e-06
      %v5848 = vrsqrt.pop %v5842
      %v5849 = vrsqrt.pop %v5843
      %v5850 = vrsqrt.pop %v5844
      %v5851 = vrsqrt.pop %v5845
      %v5852 = vrsqrt.pop %v5846
      %v5853 = vrsqrt.pop %v5847
      %v5854 = vmul.f32 %v5695, %v5848
      %v5855 = vmul.f32 %v5696, %v5849
      %v5856 = vmul.f32 %v5697, %v5850
      %v5857 = vmul.f32 %v5698, %v5851
      %v5858 = vmul.f32 %v5699, %v5852
      %v5859 = vmul.f32 %v5700, %v5853
      %v5866 = vcombine.low %v899, %v900
      %v5868 = vunpack.c.l.s4 1983009808
      %v5869 = vunpack.c.0.s8 %v5868
      %v5870 = vlaneseq
      %v5871 = vshrl.u32 %v5870, 7
      %v5872 = vsub.s32 %v5869, %v5871
      %v5873 = vrot.slane %v5866, %v5872
      %v5875 = vunpack.c.l.s4 1983009808
      %v5876 = vunpack.c.0.s8 %v5875
      %v5877 = vlaneseq
      %v5878 = vshrl.u32 %v5877, 7
      %v5879 = vsub.s32 %v5876, %v5878
      %v5880 = vrot.slane %v901, %v5879
      %v5881 = vcombine.low %v5873, %v5880
      %v5882 = vcombine.low %v902, %v903
      %v5884 = vunpack.c.l.s4 1983009808
      %v5885 = vunpack.c.0.s8 %v5884
      %v5886 = vlaneseq
      %v5887 = vshrl.u32 %v5886, 7
      %v5888 = vsub.s32 %v5885, %v5887
      %v5889 = vrot.slane %v5882, %v5888
      %v5891 = vunpack.c.l.s4 1983009808
      %v5892 = vunpack.c.0.s8 %v5891
      %v5893 = vlaneseq
      %v5894 = vshrl.u32 %v5893, 7
      %v5895 = vsub.s32 %v5892, %v5894
      %v5896 = vrot.slane %v904, %v5895
      %v5897 = vcombine.low %v5889, %v5896
      %v5912 = vadd.s32 %v1970, 4294967292
      %v5913 = vlaneseq
      %v5914 = vshrl.u32 %v5913, 7
      %v5915 = vsub.s32 %v5912, %v5914
      %v5916 = vrot.slane %v1760, %v5915
      %v5917 = vlaneseq
      %v5918 = vshrl.u32 %v5917, 7
      %v5919 = vsub.s32 %v5912, %v5918
      %v5920 = vrot.slane %v1763, %v5919
      %v5921 = vlaneseq
      %v5922 = vshrl.u32 %v5921, 7
      %v5923 = vsub.s32 %v5912, %v5922
      %v5924 = vrot.slane %v1766, %v5923
      %v5925 = vlaneseq
      %v5926 = vshrl.u32 %v5925, 7
      %v5927 = vsub.s32 %v5912, %v5926
      %v5928 = vrot.slane %v1769, %v5927
      %v5929 = vlaneseq
      %v5930 = vshrl.u32 %v5929, 7
      %v5931 = vsub.s32 %v5912, %v5930
      %v5932 = vrot.slane %v1772, %v5931
      %v5933 = vlaneseq
      %v5934 = vshrl.u32 %v5933, 7
      %v5935 = vsub.s32 %v5912, %v5934
      %v5936 = vrot.slane %v1775, %v5935
      %v5937 = vlaneseq
      %v5938 = vshrl.u32 %v5937, 7
      %v5939 = vsub.s32 %v5912, %v5938
      %v5940 = vrot.slane %v1778, %v5939
      %v5941 = vlaneseq
      %v5942 = vshrl.u32 %v5941, 7
      %v5943 = vsub.s32 %v5912, %v5942
      %v5944 = vrot.slane %v1781, %v5943
      %v5945 = vlaneseq
      %v5946 = vshrl.u32 %v5945, 7
      %v5947 = vsub.s32 %v5912, %v5946
      %v5948 = vrot.slane %v1784, %v5947
      %v5949 = vlaneseq
      %v5950 = vshrl.u32 %v5949, 7
      %v5951 = vsub.s32 %v5912, %v5950
      %v5952 = vrot.slane %v1787, %v5951
      %v5953 = vlaneseq
      %v5954 = vshrl.u32 %v5953, 7
      %v5955 = vsub.s32 %v5912, %v5954
      %v5956 = vrot.slane %v1790, %v5955
      %v5957 = vlaneseq
      %v5958 = vshrl.u32 %v5957, 7
      %v5959 = vsub.s32 %v5912, %v5958
      %v5960 = vrot.slane %v1793, %v5959
      %v5961 = vsel %vm776, %v5920, %v5916
      %v5962 = vsel %vm1979, %v5924, %v5961
      %v5963 = vsel %vm1981, %v5928, %v5962
      %v5964 = vsel %vm1983, %v5932, %v5963
      %v5965 = vsel %vm1985, %v5936, %v5964
      %v5966 = vsel %vm776, %v5944, %v5940
      %v5967 = vsel %vm1979, %v5948, %v5966
      %v5968 = vsel %vm1981, %v5952, %v5967
      %v5969 = vsel %vm1983, %v5956, %v5968
      %v5970 = vsel %vm1985, %v5960, %v5969
      %v5979 = vcombine.low %v2547, %v2548
      %v5981 = vunpack.c.l.s4 1983009808
      %v5982 = vunpack.c.0.s8 %v5981
      %v5983 = vlaneseq
      %v5984 = vshrl.u32 %v5983, 7
      %v5985 = vsub.s32 %v5982, %v5984
      %v5986 = vrot.slane %v5979, %v5985
      %v5988 = vunpack.c.l.s4 1983009808
      %v5989 = vunpack.c.0.s8 %v5988
      %v5990 = vlaneseq
      %v5991 = vshrl.u32 %v5990, 7
      %v5992 = vsub.s32 %v5989, %v5991
      %v5993 = vrot.slane %v2549, %v5992
      %v5994 = vcombine.low %v5986, %v5993
      %v5995 = vcombine.low %v2550, %v2551
      %v5997 = vunpack.c.l.s4 1983009808
      %v5998 = vunpack.c.0.s8 %v5997
      %v5999 = vlaneseq
      %v6000 = vshrl.u32 %v5999, 7
      %v6001 = vsub.s32 %v5998, %v6000
      %v6002 = vrot.slane %v5995, %v6001
      %v6004 = vunpack.c.l.s4 1983009808
      %v6005 = vunpack.c.0.s8 %v6004
      %v6006 = vlaneseq
      %v6007 = vshrl.u32 %v6006, 7
      %v6008 = vsub.s32 %v6005, %v6007
      %v6009 = vrot.slane %v2552, %v6008
      %v6010 = vcombine.low %v6002, %v6009
      %6011 = vrot.lane.b32.xlu0 %v5994, 8
      %v6012 = vpop.permute.xlu0 %6011
      %6013 = vrot.lane.b32.xlu0 %v6010, 8
      %v6014 = vpop.permute.xlu0 %6013
      %v6023 = vcombine.low %v3108, %v3109
      %v6025 = vunpack.c.l.s4 1983009808
      %v6026 = vunpack.c.0.s8 %v6025
      %v6027 = vlaneseq
      %v6028 = vshrl.u32 %v6027, 7
      %v6029 = vsub.s32 %v6026, %v6028
      %v6030 = vrot.slane %v6023, %v6029
      %v6032 = vunpack.c.l.s4 1983009808
      %v6033 = vunpack.c.0.s8 %v6032
      %v6034 = vlaneseq
      %v6035 = vshrl.u32 %v6034, 7
      %v6036 = vsub.s32 %v6033, %v6035
      %v6037 = vrot.slane %v3110, %v6036
      %v6038 = vcombine.low %v6030, %v6037
      %v6039 = vcombine.low %v3111, %v3112
      %v6041 = vunpack.c.l.s4 1983009808
      %v6042 = vunpack.c.0.s8 %v6041
      %v6043 = vlaneseq
      %v6044 = vshrl.u32 %v6043, 7
      %v6045 = vsub.s32 %v6042, %v6044
      %v6046 = vrot.slane %v6039, %v6045
      %v6048 = vunpack.c.l.s4 1983009808
      %v6049 = vunpack.c.0.s8 %v6048
      %v6050 = vlaneseq
      %v6051 = vshrl.u32 %v6050, 7
      %v6052 = vsub.s32 %v6049, %v6051
      %v6053 = vrot.slane %v3113, %v6052
      %v6054 = vcombine.low %v6046, %v6053
      %6055 = vrot.lane.b32.xlu0 %v6038, 12
      %v6056 = vpop.permute.xlu0 %6055
      %6057 = vrot.lane.b32.xlu0 %v6054, 12
      %v6058 = vpop.permute.xlu0 %6057
      %v6067 = vcombine.low %v3656, %v3657
      %v6069 = vunpack.c.l.s4 1983009808
      %v6070 = vunpack.c.0.s8 %v6069
      %v6071 = vlaneseq
      %v6072 = vshrl.u32 %v6071, 7
      %v6073 = vsub.s32 %v6070, %v6072
      %v6074 = vrot.slane %v6067, %v6073
      %v6076 = vunpack.c.l.s4 1983009808
      %v6077 = vunpack.c.0.s8 %v6076
      %v6078 = vlaneseq
      %v6079 = vshrl.u32 %v6078, 7
      %v6080 = vsub.s32 %v6077, %v6079
      %v6081 = vrot.slane %v3658, %v6080
      %v6082 = vcombine.low %v6074, %v6081
      %v6083 = vcombine.low %v3659, %v3660
      %v6085 = vunpack.c.l.s4 1983009808
      %v6086 = vunpack.c.0.s8 %v6085
      %v6087 = vlaneseq
      %v6088 = vshrl.u32 %v6087, 7
      %v6089 = vsub.s32 %v6086, %v6088
      %v6090 = vrot.slane %v6083, %v6089
      %v6092 = vunpack.c.l.s4 1983009808
      %v6093 = vunpack.c.0.s8 %v6092
      %v6094 = vlaneseq
      %v6095 = vshrl.u32 %v6094, 7
      %v6096 = vsub.s32 %v6093, %v6095
      %v6097 = vrot.slane %v3661, %v6096
      %v6098 = vcombine.low %v6090, %v6097
      %6099 = vrot.lane.b32.xlu0 %v6082, 16
      %v6100 = vpop.permute.xlu0 %6099
      %6101 = vrot.lane.b32.xlu0 %v6098, 16
      %v6102 = vpop.permute.xlu0 %6101
      %v6117 = vadd.s32 %v1970, 4294967276
      %v6118 = vlaneseq
      %v6119 = vshrl.u32 %v6118, 7
      %v6120 = vsub.s32 %v6117, %v6119
      %v6121 = vrot.slane %v4516, %v6120
      %v6122 = vlaneseq
      %v6123 = vshrl.u32 %v6122, 7
      %v6124 = vsub.s32 %v6117, %v6123
      %v6125 = vrot.slane %v4519, %v6124
      %v6126 = vlaneseq
      %v6127 = vshrl.u32 %v6126, 7
      %v6128 = vsub.s32 %v6117, %v6127
      %v6129 = vrot.slane %v4522, %v6128
      %v6130 = vlaneseq
      %v6131 = vshrl.u32 %v6130, 7
      %v6132 = vsub.s32 %v6117, %v6131
      %v6133 = vrot.slane %v4525, %v6132
      %v6134 = vlaneseq
      %v6135 = vshrl.u32 %v6134, 7
      %v6136 = vsub.s32 %v6117, %v6135
      %v6137 = vrot.slane %v4528, %v6136
      %v6138 = vlaneseq
      %v6139 = vshrl.u32 %v6138, 7
      %v6140 = vsub.s32 %v6117, %v6139
      %v6141 = vrot.slane %v4531, %v6140
      %v6142 = vlaneseq
      %v6143 = vshrl.u32 %v6142, 7
      %v6144 = vsub.s32 %v6117, %v6143
      %v6145 = vrot.slane %v4534, %v6144
      %v6146 = vlaneseq
      %v6147 = vshrl.u32 %v6146, 7
      %v6148 = vsub.s32 %v6117, %v6147
      %v6149 = vrot.slane %v4537, %v6148
      %v6150 = vlaneseq
      %v6151 = vshrl.u32 %v6150, 7
      %v6152 = vsub.s32 %v6117, %v6151
      %v6153 = vrot.slane %v4540, %v6152
      %v6154 = vlaneseq
      %v6155 = vshrl.u32 %v6154, 7
      %v6156 = vsub.s32 %v6117, %v6155
      %v6157 = vrot.slane %v4543, %v6156
      %v6158 = vlaneseq
      %v6159 = vshrl.u32 %v6158, 7
      %v6160 = vsub.s32 %v6117, %v6159
      %v6161 = vrot.slane %v4546, %v6160
      %v6162 = vlaneseq
      %v6163 = vshrl.u32 %v6162, 7
      %v6164 = vsub.s32 %v6117, %v6163
      %v6165 = vrot.slane %v4549, %v6164
      %v6166 = vsel %vm776, %v6125, %v6121
      %v6167 = vsel %vm1979, %v6129, %v6166
      %v6168 = vsel %vm1981, %v6133, %v6167
      %v6169 = vsel %vm1983, %v6137, %v6168
      %v6170 = vsel %vm1985, %v6141, %v6169
      %v6171 = vsel %vm776, %v6149, %v6145
      %v6172 = vsel %vm1979, %v6153, %v6171
      %v6173 = vsel %vm1981, %v6157, %v6172
      %v6174 = vsel %vm1983, %v6161, %v6173
      %v6175 = vsel %vm1985, %v6165, %v6174
      %v6184 = vcombine.low %v5293, %v5294
      %v6186 = vunpack.c.l.s4 1983009808
      %v6187 = vunpack.c.0.s8 %v6186
      %v6188 = vlaneseq
      %v6189 = vshrl.u32 %v6188, 7
      %v6190 = vsub.s32 %v6187, %v6189
      %v6191 = vrot.slane %v6184, %v6190
      %v6193 = vunpack.c.l.s4 1983009808
      %v6194 = vunpack.c.0.s8 %v6193
      %v6195 = vlaneseq
      %v6196 = vshrl.u32 %v6195, 7
      %v6197 = vsub.s32 %v6194, %v6196
      %v6198 = vrot.slane %v5295, %v6197
      %v6199 = vcombine.low %v6191, %v6198
      %v6200 = vcombine.low %v5296, %v5297
      %v6202 = vunpack.c.l.s4 1983009808
      %v6203 = vunpack.c.0.s8 %v6202
      %v6204 = vlaneseq
      %v6205 = vshrl.u32 %v6204, 7
      %v6206 = vsub.s32 %v6203, %v6205
      %v6207 = vrot.slane %v6200, %v6206
      %v6209 = vunpack.c.l.s4 1983009808
      %v6210 = vunpack.c.0.s8 %v6209
      %v6211 = vlaneseq
      %v6212 = vshrl.u32 %v6211, 7
      %v6213 = vsub.s32 %v6210, %v6212
      %v6214 = vrot.slane %v5298, %v6213
      %v6215 = vcombine.low %v6207, %v6214
      %6216 = vrot.lane.b32.xlu0 %v6199, 24
      %v6217 = vpop.permute.xlu0 %6216
      %6218 = vrot.lane.b32.xlu0 %v6215, 24
      %v6219 = vpop.permute.xlu0 %6218
      %v6228 = vcombine.low %v5854, %v5855
      %v6230 = vunpack.c.l.s4 1983009808
      %v6231 = vunpack.c.0.s8 %v6230
      %v6232 = vlaneseq
      %v6233 = vshrl.u32 %v6232, 7
      %v6234 = vsub.s32 %v6231, %v6233
      %v6235 = vrot.slane %v6228, %v6234
      %v6237 = vunpack.c.l.s4 1983009808
      %v6238 = vunpack.c.0.s8 %v6237
      %v6239 = vlaneseq
      %v6240 = vshrl.u32 %v6239, 7
      %v6241 = vsub.s32 %v6238, %v6240
      %v6242 = vrot.slane %v5856, %v6241
      %v6243 = vcombine.low %v6235, %v6242
      %v6244 = vcombine.low %v5857, %v5858
      %v6246 = vunpack.c.l.s4 1983009808
      %v6247 = vunpack.c.0.s8 %v6246
      %v6248 = vlaneseq
      %v6249 = vshrl.u32 %v6248, 7
      %v6250 = vsub.s32 %v6247, %v6249
      %v6251 = vrot.slane %v6244, %v6250
      %v6253 = vunpack.c.l.s4 1983009808
      %v6254 = vunpack.c.0.s8 %v6253
      %v6255 = vlaneseq
      %v6256 = vshrl.u32 %v6255, 7
      %v6257 = vsub.s32 %v6254, %v6256
      %v6258 = vrot.slane %v5859, %v6257
      %v6259 = vcombine.low %v6251, %v6258
      %6260 = vrot.lane.b32.xlu0 %v6243, 28
      %v6261 = vpop.permute.xlu0 %6260
      %6262 = vrot.lane.b32.xlu0 %v6259, 28
      %v6263 = vpop.permute.xlu0 %6262
      %vm6266 = vcmask 31744
      %v6267 = vsel %vm6266, %v5881, %v5965
      %v6268 = vsel %vm6266, %v5897, %v5970
      %vm6269 = vcmask 64512
      %v6270 = vsel %vm6269, %v6267, %v6012
      %v6271 = vsel %vm6269, %v6268, %v6014
      %vm6272 = vcmask 97280
      %v6273 = vsel %vm6272, %v6270, %v6056
      %v6274 = vsel %vm6272, %v6271, %v6058
      %v6275 = vsel %vm529, %v6273, %v6100
      %v6276 = vsel %vm529, %v6274, %v6102
      %vm6277 = vcmask 162816
      %v6278 = vsel %vm6277, %v6275, %v6170
      %v6279 = vsel %vm6277, %v6276, %v6175
      %vm6280 = vcmask 195584
      %v6281 = vsel %vm6280, %v6278, %v6217
      %v6282 = vsel %vm6280, %v6279, %v6219
      %vm6283 = vcmask 228352
      %v6284 = vsel %vm6283, %v6281, %v6261
      %v6285 = vsel %vm6283, %v6282, %v6263
      %vm6286 = vcmask 261120
      %v6287 = vsel %vm6286, %v6284, 0.0
      %v6288 = vsel %vm6286, %v6285, 0.0
      %6289 = vst [vmem:[%s340] sm:$0x3f] %v6287
      %6290 = vst [vmem:[%s340 + $0x8] sm:$0x3f] %v6288
      %p6291 = scmp.lt.s32.totalorder %s20, 1
      %s6292 = scalar_select %p6291, %s20, 1
      %p6293 = scmp.lt.s32.totalorder %s21, 0
      %s6294 = scalar_select %p6293, %s21, 0
      %s6295 = smul.addr %s6292, 2
      %s6296 = sadd.s32 %s6294, %s6295
      %s6297 = smul.addr %s6296, 8
      %s6298 = scalar_lea.vmem %s5, %s6297
      // Predicated region
      $region41: #{bimpm_forward.6} parent=39 // pred_check
        %p6299 = pneg %p181
      $region42: #{bimpm_forward.6} parent=39 // pred_check_branch
        %6301 = sbr.rel (%p6299) target = $region44
      $region43: #{bimpm_forward.6} parent=39 // pred_region
        _
      $region44: #{bimpm_forward.6} parent=39 // pred_fallthru
        _
    $region40: #{bimpm_forward.6} parent=5 // pred_fallthru
      _
    %p6302 = scmp.le.s32.totalorder 2, %s11
    // Predicated region
    $region45: #{bimpm_forward.6} parent=5 // pred_check
      %p6303 = pneg %p6302
    $region46: #{bimpm_forward.6} parent=5 // pred_check_branch
      %6305 = sbr.rel (%p6303) target = $region48
    $region47: #{bimpm_forward.6} parent=5 // pred_region
      %s6306 = ssub.s32 %s11, 2
      // Predicated region
      $region49: #{bimpm_forward.6} parent=47 // pred_check
        %p6307 = pneg %p187
      $region50: #{bimpm_forward.6} parent=47 // pred_check_branch
        %6309 = sbr.rel (%p6307) target = $region52
      $region51: #{bimpm_forward.6} parent=47 // pred_region
        %p6310 = scmp.lt.s32.totalorder %s22, 1
        %s6311 = scalar_select %p6310, %s22, 1
        %p6312 = scmp.lt.s32.totalorder %s23, 0
        %s6313 = scalar_select %p6312, %s23, 0
        %s6314 = smul.addr %s6311, 2
        %s6315 = sadd.s32 %s6313, %s6314
        %s6316 = smul.addr %s6315, 8
        %s6317 = scalar_lea.vmem %s5, %s6316
      $region52: #{bimpm_forward.6} parent=47 // pred_fallthru
        _
    $region48: #{bimpm_forward.6} parent=5 // pred_fallthru
      _
  $region6: #{bimpm_forward.6} parent=0 // loop_footer
    %s15 = sadd.s32 1, %s11
  $region7: #{bimpm_forward.6} parent=0 // loop_footer_branch
    %10 = sbr.rel target = $region3
  $region8: #{bimpm_forward.6} parent=0 // loop_exit
    _

</llo_original>
